<compile_context>
chip_gen: v6e
topology: v6e:2x2x1
jax: 0.10.0
libtpu: 0.0.40
codegen_flags: <defaults>
</compile_context>

<pallas_src>
import math

import numpy as np

import jax
import jax.numpy as jnp
from jax.experimental import pallas as pl
from jax.experimental.pallas import tpu as pltpu

BN_EPS = 1e-5  # PyTorch BatchNorm2d default eps

VMEM = pl.BlockSpec(memory_space=pltpu.MemorySpace.VMEM)
ANY = pl.BlockSpec(memory_space=pl.ANY)


# ----------------------------- in-kernel helpers ----------------------------

def _bn_relu(y, gb):
    """Train-mode BatchNorm (biased batch stats over all rows) + ReLU."""
    m = y.shape[0]
    if m >= 32:
        # Reduce on the MXU (ones-matmul) instead of XLU cross-sublane sums;
        # the MXU is nearly idle here while the XLU is the scarce unit.
        ones = jnp.ones((1, m), jnp.float32)
        s1 = jnp.dot(ones, y, preferred_element_type=jnp.float32)
        s2 = jnp.dot(ones, y * y, preferred_element_type=jnp.float32)
    else:
        s1 = jnp.sum(y, axis=0, keepdims=True)
        s2 = jnp.sum(y * y, axis=0, keepdims=True)
    mean = s1 * (1.0 / m)
    # One-pass variance, clamped: E[y^2] - mean^2 can go slightly negative.
    var = jnp.maximum(s2 * (1.0 / m) - mean * mean, 0.0)
    inv = jax.lax.rsqrt(var + BN_EPS)
    return jnp.maximum((y - mean) * (inv * gb[0:1, :]) + gb[1:2, :], 0.0)


def _pool4(y):
    """2x2 max-pool over rows pre-arranged as 4 pool-quadrant groups."""
    mq = y.shape[0] // 4
    return jnp.maximum(jnp.maximum(y[0:mq], y[mq:2 * mq]),
                       jnp.maximum(y[2 * mq:3 * mq], y[3 * mq:4 * mq]))


def _conv9(p, w_ref, rows, cin):
    """conv3x3 as 9 accumulating matmuls.  p is the stacked gathered patch
    matrix [9*rows, cin] (f32); w_ref holds the weights [9*cin, cout] (bf16)."""
    cout = w_ref.shape[1]
    y = jnp.zeros((rows, cout), jnp.float32)
    for j in range(9):
        y = y + jnp.dot(p[j * rows:(j + 1) * rows].astype(jnp.bfloat16),
                        w_ref[j * cin:(j + 1) * cin, :],
                        preferred_element_type=jnp.float32)
    return y


# ------------------------------ fused kernel --------------------------------

def _encoder_kernel(p1_ref, w1_ref, gb1_ref,
                    g2_ref, w2_ref, gb2_ref,
                    g3_ref, w3_hbm, gb3_ref,
                    w4_hbm, gb4_ref,
                    w5_hbm, gb5_ref,
                    w6_ref, b6_ref,
                    o_ref,
                    w3_vmem, w4_vmem, w5_vmem, sem):
    f32, bf16 = jnp.float32, jnp.bfloat16

    # Kick off the tail-weight DMAs (HBM -> VMEM) immediately so the ~1.35 MB
    # of bf16 weight traffic overlaps the block-1/2 compute.
    cp3 = pltpu.make_async_copy(w3_hbm, w3_vmem, sem.at[0])
    cp3.start()
    cp4 = pltpu.make_async_copy(w4_hbm, w4_vmem, sem.at[1])
    cp4.start()
    cp5 = pltpu.make_async_copy(w5_hbm, w5_vmem, sem.at[2])
    cp5.start()

    # block 1: conv3x3 s2 (host-built im2col, bias folded into BN) + BN + ReLU
    # + 2x2 max-pool.  Rows of p1 are pre-grouped by pool quadrant.
    y1 = jnp.dot(p1_ref[...], w1_ref[...], preferred_element_type=f32)
    a1 = _pool4(_bn_relu(y1, gb1_ref[...]))                    # [N*8*8, C1]

    # block 2: in-kernel im2col via constant 0/1 row-gather matmul (MXU),
    # conv3x3 s2 as 9 accumulating matmuls, then BN + ReLU + pool.
    r2 = g2_ref.shape[0] // 9
    p2 = jnp.dot(g2_ref[...], a1.astype(bf16), preferred_element_type=f32)
    y2 = _conv9(p2, w2_ref, r2, w2_ref.shape[0] // 9)
    a2 = _pool4(_bn_relu(y2, gb2_ref[...]))                    # [N*2*2, C2]

    # block 3: conv3x3 s1 + BN + ReLU + pool (same gather-matmul scheme).
    r3 = g3_ref.shape[0] // 9
    p3 = jnp.dot(g3_ref[...], a2.astype(bf16), preferred_element_type=f32)
    cp3.wait()
    y3 = _conv9(p3, w3_vmem, r3, w3_vmem.shape[0] // 9)
    a3 = _pool4(_bn_relu(y3, gb3_ref[...]))                    # [N, C3]

    # blocks 4/5: 1x1 conv + BN + ReLU (all rows resident in vregs).
    cp4.wait()
    a4 = _bn_relu(jnp.dot(a3.astype(bf16), w4_vmem[...],
                          preferred_element_type=f32), gb4_ref[...])
    cp5.wait()
    a5 = _bn_relu(jnp.dot(a4.astype(bf16), w5_vmem[...],
                          preferred_element_type=f32), gb5_ref[...])

    # block 6: final 1x1 conv with bias (lane-dense [N, 128] store).
    o_ref[...] = (jnp.dot(a5.astype(bf16), w6_ref[...],
                          preferred_element_type=f32) + b6_ref[...])


def encoder_call(p1, g2, g3, params, n):
    out_ch = params["w6"].shape[1]
    return pl.pallas_call(
        _encoder_kernel,
        out_shape=jax.ShapeDtypeStruct((n, out_ch), jnp.float32),
        in_specs=[VMEM, VMEM, VMEM,        # p1, w1, gb1
                  VMEM, VMEM, VMEM,        # g2, w2, gb2
                  VMEM, ANY, VMEM,         # g3, w3 (HBM, manual DMA), gb3
                  ANY, VMEM,               # w4 (HBM), gb4
                  ANY, VMEM,               # w5 (HBM), gb5
                  VMEM, VMEM],             # w6, b6
        out_specs=VMEM,
        scratch_shapes=[
            pltpu.VMEM(params["w3"].shape, jnp.bfloat16),
            pltpu.VMEM(params["w4"].shape, jnp.bfloat16),
            pltpu.VMEM(params["w5"].shape, jnp.bfloat16),
            pltpu.SemaphoreType.DMA((3,)),
        ],
    )(p1, params["w1"], params["gb1"],
      g2, params["w2"], params["gb2"],
      g3, params["w3"], params["gb3"],
      params["w4"], params["gb4"],
      params["w5"], params["gb5"],
      params["w6"], params["b6"])


# ------------------------------ host-side glue -------------------------------

def im2col_pooled(x, k, stride, pad):
    """x: [N,H,W,C] -> patches [N*Ho*Wo, k*k*C], rows ordered as the 4
    pool-quadrant groups (dy,dx) x (n,py,px); column order (ky,kx,c)."""
    N, H, W, C = x.shape
    xp = jnp.pad(x, ((0, 0), (pad, pad), (pad, pad), (0, 0)))
    Ho = (H + 2 * pad - k) // stride + 1
    Wo = (W + 2 * pad - k) // stride + 1
    Hq, Wq = Ho // 2, Wo // 2
    step = 2 * stride
    groups = []
    for dy in range(2):
        for dx in range(2):
            cols = []
            for ky in range(k):
                for kx in range(k):
                    y0 = stride * dy + ky
                    x0 = stride * dx + kx
                    cols.append(xp[:, y0:y0 + step * Hq:step,
                                   x0:x0 + step * Wq:step, :])
            g = jnp.stack(cols, axis=3).reshape(N * Hq * Wq, k * k * C)
            groups.append(g)
    return jnp.concatenate(groups, axis=0), (N, Hq, Wq)


def _pool_quadrant_gather(n, hin, win, stride):
    """0/1 row-gather matrix mapping the [n*hin*win, C] activation to the
    stacked conv3x3 (pad=1) patch rows, grouped by 2x2-pool quadrant.
    Shape: [9 * 4 * n*hp*wp, n*hin*win].  Built with numpy at trace time."""
    ho = (hin - 1) // stride + 1
    wo = (win - 1) // stride + 1
    hp, wp = ho // 2, wo // 2
    rows_q = n * hp * wp
    g = np.zeros((9 * 4 * rows_q, n * hin * win), np.float32)
    for ky in range(3):
        for kx in range(3):
            j = ky * 3 + kx
            for q, (dy, dx) in enumerate(((0, 0), (0, 1), (1, 0), (1, 1))):
                for nn in range(n):
                    for py in range(hp):
                        for px in range(wp):
                            r = (j * 4 + q) * rows_q + nn * hp * wp + py * wp + px
                            iy = stride * (2 * py + dy) + ky - 1
                            ix = stride * (2 * px + dx) + kx - 1
                            if 0 <= iy < hin and 0 <= ix < win:
                                g[r, nn * hin * win + iy * win + ix] = 1.0
    return jnp.asarray(g, jnp.bfloat16)


def reacher_encoder_forward(x_nchw, params, output_dim, group_order):
    x = jnp.transpose(x_nchw, (0, 2, 3, 1)).astype(jnp.float32)  # NCHW -> NHWC

    # block-1 im2col on the raw input (the only host-side patch building).
    p1, (n, hq1, wq1) = im2col_pooled(x, 3, 2, 1)
    p1 = p1.astype(jnp.bfloat16)

    # Constant gather matrices for the in-kernel im2col of blocks 2 and 3.
    g2 = _pool_quadrant_gather(n, hq1, wq1, stride=2)
    hq2 = ((hq1 - 1) // 2 + 1) // 2
    wq2 = ((wq1 - 1) // 2 + 1) // 2
    g3 = _pool_quadrant_gather(n, hq2, wq2, stride=1)

    y = encoder_call(p1, g2, g3, params, n)      # [n, output_dim * 2*G]
    # Final spatial is 1x1, so Flatten + Unflatten == this reshape.
    return y.reshape(n, output_dim, 2 * group_order)


# ------------------------- deterministic parameters -------------------------

def init_params(key, input_dim, output_dim, hidden, group_order):
    out_ch = output_dim * 2 * group_order
    shapes = [
        (3 * 3 * input_dim, hidden[0]),
        (3 * 3 * hidden[0], hidden[1]),
        (3 * 3 * hidden[1], hidden[2]),
        (hidden[2], hidden[3]),
        (hidden[3], hidden[4]),
        (hidden[4], out_ch),
    ]
    keys = iter(jax.random.split(key, 24))
    params = {}
    for i, s in enumerate(shapes, start=1):
        w = jax.random.normal(next(keys), s, jnp.float32) / math.sqrt(s[0])
        params[f"w{i}"] = w.astype(jnp.bfloat16)  # bf16 storage halves weight DMA
        cout = s[1]
        if i < 6:
            # conv bias dropped for blocks 1-5: it cancels exactly against the
            # train-mode BatchNorm batch-mean subtraction.
            g = 1.0 + 0.1 * jax.random.normal(next(keys), (cout,), jnp.float32)
            b = 0.1 * jax.random.normal(next(keys), (cout,), jnp.float32)
            params[f"gb{i}"] = jnp.stack([g, b], axis=0)          # (2, C) f32
        else:
            params[f"b{i}"] = (0.01 * jax.random.normal(
                next(keys), (cout,), jnp.float32)).reshape(1, cout)
    return params


# ----------------------------------- main -----------------------------------

if __name__ == "__main__":
    input_dim, output_dim, group_order = 4, 16, 4   # D4 -> regular repr size 8
    hidden = [64, 128, 256, 512, 512]

    key = jax.random.PRNGKey(0)
    kx, kp = jax.random.split(key)
    # NCHW input, 32x32 so the spatial pyramid 32->16->8->4->2->2->1 closes.
    x = jax.random.normal(kx, (2, input_dim, 32, 32), jnp.float32)
    params = init_params(kp, input_dim, output_dim, hidden, group_order)

    fwd = jax.jit(lambda xx: reacher_encoder_forward(xx, params, output_dim,
                                                     group_order))
    y = fwd(x)
    jax.block_until_ready(y)

    assert y.shape == (2, output_dim, 2 * group_order), y.shape
    assert bool(jnp.all(jnp.isfinite(y)))
    print("KERNEL_OK")
</pallas_src>

<mosaic_0001>
module attributes {stable_mosaic.version = 11 : i64} {
  func.func @_encoder_kernel(%arg0: memref<512x36xbf16, #tpu.memory_space<vmem>>, %arg1: memref<36x64xbf16, #tpu.memory_space<vmem>>, %arg2: memref<2x64xf32, #tpu.memory_space<vmem>>, %arg3: memref<288x128xbf16, #tpu.memory_space<vmem>>, %arg4: memref<576x128xbf16, #tpu.memory_space<vmem>>, %arg5: memref<2x128xf32, #tpu.memory_space<vmem>>, %arg6: memref<72x8xbf16, #tpu.memory_space<vmem>>, %arg7: memref<1152x256xbf16, #tpu.memory_space<any>>, %arg8: memref<2x256xf32, #tpu.memory_space<vmem>>, %arg9: memref<256x512xbf16, #tpu.memory_space<any>>, %arg10: memref<2x512xf32, #tpu.memory_space<vmem>>, %arg11: memref<512x512xbf16, #tpu.memory_space<any>>, %arg12: memref<2x512xf32, #tpu.memory_space<vmem>>, %arg13: memref<512x128xbf16, #tpu.memory_space<vmem>>, %arg14: memref<1x128xf32, #tpu.memory_space<vmem>>, %arg15: memref<2x128xf32, #tpu.memory_space<vmem>>, %arg16: memref<1152x256xbf16, #tpu.memory_space<vmem>>, %arg17: memref<256x512xbf16, #tpu.memory_space<vmem>>, %arg18: memref<512x512xbf16, #tpu.memory_space<vmem>>, %arg19: memref<3x!tpu.dma_semaphore, #tpu.memory_space<semaphore_mem>>) attributes {dimension_semantics = [], scalar_prefetch = 0 : i64, scratch_operands = 4 : i64, tpu.core_type = #tpu.core_type<tc>} {
    %c0_i32 = arith.constant 0 : i32
    %0 = tpu.memref_slice %arg19[%c0_i32] : memref<3x!tpu.dma_semaphore, #tpu.memory_space<semaphore_mem>> -> memref<1x!tpu.dma_semaphore, #tpu.memory_space<semaphore_mem>>
    %1 = tpu.memref_squeeze %0 : memref<1x!tpu.dma_semaphore, #tpu.memory_space<semaphore_mem>> -> memref<!tpu.dma_semaphore, #tpu.memory_space<semaphore_mem>>
    tpu.enqueue_dma source(%arg7 : memref<1152x256xbf16, #tpu.memory_space<any>>) target(%arg16 : memref<1152x256xbf16, #tpu.memory_space<vmem>>) target_semaphore(%1 : memref<!tpu.dma_semaphore, #tpu.memory_space<semaphore_mem>>)
    %c1_i32 = arith.constant 1 : i32
    %2 = tpu.memref_slice %arg19[%c1_i32] : memref<3x!tpu.dma_semaphore, #tpu.memory_space<semaphore_mem>> -> memref<1x!tpu.dma_semaphore, #tpu.memory_space<semaphore_mem>>
    %3 = tpu.memref_squeeze %2 : memref<1x!tpu.dma_semaphore, #tpu.memory_space<semaphore_mem>> -> memref<!tpu.dma_semaphore, #tpu.memory_space<semaphore_mem>>
    tpu.enqueue_dma source(%arg9 : memref<256x512xbf16, #tpu.memory_space<any>>) target(%arg17 : memref<256x512xbf16, #tpu.memory_space<vmem>>) target_semaphore(%3 : memref<!tpu.dma_semaphore, #tpu.memory_space<semaphore_mem>>)
    %c2_i32 = arith.constant 2 : i32
    %4 = tpu.memref_slice %arg19[%c2_i32] : memref<3x!tpu.dma_semaphore, #tpu.memory_space<semaphore_mem>> -> memref<1x!tpu.dma_semaphore, #tpu.memory_space<semaphore_mem>>
    %5 = tpu.memref_squeeze %4 : memref<1x!tpu.dma_semaphore, #tpu.memory_space<semaphore_mem>> -> memref<!tpu.dma_semaphore, #tpu.memory_space<semaphore_mem>>
    tpu.enqueue_dma source(%arg11 : memref<512x512xbf16, #tpu.memory_space<any>>) target(%arg18 : memref<512x512xbf16, #tpu.memory_space<vmem>>) target_semaphore(%5 : memref<!tpu.dma_semaphore, #tpu.memory_space<semaphore_mem>>)
    %c0 = arith.constant 0 : index
    %c0_0 = arith.constant 0 : index
    %6 = vector.load %arg0[%c0, %c0_0] : memref<512x36xbf16, #tpu.memory_space<vmem>>, vector<512x36xbf16>
    %c0_1 = arith.constant 0 : index
    %c0_2 = arith.constant 0 : index
    %7 = vector.load %arg1[%c0_1, %c0_2] : memref<36x64xbf16, #tpu.memory_space<vmem>>, vector<36x64xbf16>
    %cst = arith.constant dense<0.000000e+00> : vector<512x64xf32>
    %8 = tpu.matmul %6, %7, %cst {dimension_numbers = #tpu.dot_dimension_numbers<[1], [0], [0], [1], [0, 0, 1, 1], [], []>} : vector<512x36xbf16>, vector<36x64xbf16>, vector<512x64xf32> -> vector<512x64xf32>
    %c0_3 = arith.constant 0 : index
    %c0_4 = arith.constant 0 : index
    %9 = vector.load %arg2[%c0_3, %c0_4] : memref<2x64xf32, #tpu.memory_space<vmem>>, vector<2x64xf32>
    %cst_5 = arith.constant 1.000000e+00 : f32
    %10 = vector.broadcast %cst_5 : f32 to vector<1x512xf32>
    %cst_6 = arith.constant dense<0.000000e+00> : vector<1x64xf32>
    %11 = tpu.matmul %10, %8, %cst_6 {dimension_numbers = #tpu.dot_dimension_numbers<[1], [0], [0], [1], [0, 0, 1, 1], [], []>} : vector<1x512xf32>, vector<512x64xf32>, vector<1x64xf32> -> vector<1x64xf32>
    %12 = arith.mulf %8, %8 : vector<512x64xf32>
    %cst_7 = arith.constant dense<0.000000e+00> : vector<1x64xf32>
    %13 = tpu.matmul %10, %12, %cst_7 {dimension_numbers = #tpu.dot_dimension_numbers<[1], [0], [0], [1], [0, 0, 1, 1], [], []>} : vector<1x512xf32>, vector<512x64xf32>, vector<1x64xf32> -> vector<1x64xf32>
    %cst_8 = arith.constant 0.001953125 : f32
    %14 = vector.broadcast %cst_8 : f32 to vector<1x64xf32>
    %15 = arith.mulf %11, %14 : vector<1x64xf32>
    %cst_9 = arith.constant 0.001953125 : f32
    %16 = vector.broadcast %cst_9 : f32 to vector<1x64xf32>
    %17 = arith.mulf %13, %16 : vector<1x64xf32>
    %18 = arith.mulf %15, %15 : vector<1x64xf32>
    %19 = arith.subf %17, %18 : vector<1x64xf32>
    %cst_10 = arith.constant 0.000000e+00 : f32
    %20 = vector.broadcast %cst_10 : f32 to vector<1x64xf32>
    %21 = arith.maximumf %19, %20 : vector<1x64xf32>
    %cst_11 = arith.constant 9.99999974E-6 : f32
    %22 = vector.broadcast %cst_11 : f32 to vector<1x64xf32>
    %23 = arith.addf %21, %22 : vector<1x64xf32>
    %24 = math.rsqrt %23 : vector<1x64xf32>
    %25 = vector.broadcast %15 : vector<1x64xf32> to vector<512x64xf32>
    %26 = arith.subf %8, %25 : vector<512x64xf32>
    %27 = vector.extract_strided_slice %9 {offsets = [0, 0], sizes = [1, 64], strides = [1, 1]} : vector<2x64xf32> to vector<1x64xf32>
    %28 = arith.mulf %24, %27 : vector<1x64xf32>
    %29 = vector.broadcast %28 : vector<1x64xf32> to vector<512x64xf32>
    %30 = arith.mulf %26, %29 : vector<512x64xf32>
    %31 = vector.extract_strided_slice %9 {offsets = [1, 0], sizes = [1, 64], strides = [1, 1]} : vector<2x64xf32> to vector<1x64xf32>
    %32 = vector.broadcast %31 : vector<1x64xf32> to vector<512x64xf32>
    %33 = arith.addf %30, %32 : vector<512x64xf32>
    %cst_12 = arith.constant 0.000000e+00 : f32
    %34 = vector.broadcast %cst_12 : f32 to vector<512x64xf32>
    %35 = arith.maximumf %33, %34 : vector<512x64xf32>
    %36 = vector.extract_strided_slice %35 {offsets = [0, 0], sizes = [128, 64], strides = [1, 1]} : vector<512x64xf32> to vector<128x64xf32>
    %37 = vector.extract_strided_slice %35 {offsets = [128, 0], sizes = [128, 64], strides = [1, 1]} : vector<512x64xf32> to vector<128x64xf32>
    %38 = arith.maximumf %36, %37 : vector<128x64xf32>
    %39 = vector.extract_strided_slice %35 {offsets = [256, 0], sizes = [128, 64], strides = [1, 1]} : vector<512x64xf32> to vector<128x64xf32>
    %40 = vector.extract_strided_slice %35 {offsets = [384, 0], sizes = [128, 64], strides = [1, 1]} : vector<512x64xf32> to vector<128x64xf32>
    %41 = arith.maximumf %39, %40 : vector<128x64xf32>
    %42 = arith.maximumf %38, %41 : vector<128x64xf32>
    %c0_13 = arith.constant 0 : index
    %c0_14 = arith.constant 0 : index
    %43 = vector.load %arg3[%c0_13, %c0_14] : memref<288x128xbf16, #tpu.memory_space<vmem>>, vector<288x128xbf16>
    %44 = arith.truncf %42 : vector<128x64xf32> to vector<128x64xbf16>
    %cst_15 = arith.constant dense<0.000000e+00> : vector<288x64xf32>
    %45 = tpu.matmul %43, %44, %cst_15 {dimension_numbers = #tpu.dot_dimension_numbers<[1], [0], [0], [1], [0, 0, 1, 1], [], []>} : vector<288x128xbf16>, vector<128x64xbf16>, vector<288x64xf32> -> vector<288x64xf32>
    %cst_16 = arith.constant 0.000000e+00 : f32
    %46 = vector.broadcast %cst_16 : f32 to vector<32x128xf32>
    %47 = vector.extract_strided_slice %45 {offsets = [0, 0], sizes = [32, 64], strides = [1, 1]} : vector<288x64xf32> to vector<32x64xf32>
    %48 = arith.truncf %47 : vector<32x64xf32> to vector<32x64xbf16>
    %c0_17 = arith.constant 0 : index
    %c0_18 = arith.constant 0 : index
    %49 = vector.load %arg4[%c0_17, %c0_18] : memref<576x128xbf16, #tpu.memory_space<vmem>>, vector<64x128xbf16>
    %cst_19 = arith.constant dense<0.000000e+00> : vector<32x128xf32>
    %50 = tpu.matmul %48, %49, %cst_19 {dimension_numbers = #tpu.dot_dimension_numbers<[1], [0], [0], [1], [0, 0, 1, 1], [], []>} : vector<32x64xbf16>, vector<64x128xbf16>, vector<32x128xf32> -> vector<32x128xf32>
    %51 = arith.addf %46, %50 : vector<32x128xf32>
    %52 = vector.extract_strided_slice %45 {offsets = [32, 0], sizes = [32, 64], strides = [1, 1]} : vector<288x64xf32> to vector<32x64xf32>
    %53 = arith.truncf %52 : vector<32x64xf32> to vector<32x64xbf16>
    %c64 = arith.constant 64 : index
    %c0_20 = arith.constant 0 : index
    %54 = vector.load %arg4[%c64, %c0_20] : memref<576x128xbf16, #tpu.memory_space<vmem>>, vector<64x128xbf16>
    %cst_21 = arith.constant dense<0.000000e+00> : vector<32x128xf32>
    %55 = tpu.matmul %53, %54, %cst_21 {dimension_numbers = #tpu.dot_dimension_numbers<[1], [0], [0], [1], [0, 0, 1, 1], [], []>} : vector<32x64xbf16>, vector<64x128xbf16>, vector<32x128xf32> -> vector<32x128xf32>
    %56 = arith.addf %51, %55 : vector<32x128xf32>
    %57 = vector.extract_strided_slice %45 {offsets = [64, 0], sizes = [32, 64], strides = [1, 1]} : vector<288x64xf32> to vector<32x64xf32>
    %58 = arith.truncf %57 : vector<32x64xf32> to vector<32x64xbf16>
    %c128 = arith.constant 128 : index
    %c0_22 = arith.constant 0 : index
    %59 = vector.load %arg4[%c128, %c0_22] : memref<576x128xbf16, #tpu.memory_space<vmem>>, vector<64x128xbf16>
    %cst_23 = arith.constant dense<0.000000e+00> : vector<32x128xf32>
    %60 = tpu.matmul %58, %59, %cst_23 {dimension_numbers = #tpu.dot_dimension_numbers<[1], [0], [0], [1], [0, 0, 1, 1], [], []>} : vector<32x64xbf16>, vector<64x128xbf16>, vector<32x128xf32> -> vector<32x128xf32>
    %61 = arith.addf %56, %60 : vector<32x128xf32>
    %62 = vector.extract_strided_slice %45 {offsets = [96, 0], sizes = [32, 64], strides = [1, 1]} : vector<288x64xf32> to vector<32x64xf32>
    %63 = arith.truncf %62 : vector<32x64xf32> to vector<32x64xbf16>
    %c192 = arith.constant 192 : index
    %c0_24 = arith.constant 0 : index
    %64 = vector.load %arg4[%c192, %c0_24] : memref<576x128xbf16, #tpu.memory_space<vmem>>, vector<64x128xbf16>
    %cst_25 = arith.constant dense<0.000000e+00> : vector<32x128xf32>
    %65 = tpu.matmul %63, %64, %cst_25 {dimension_numbers = #tpu.dot_dimension_numbers<[1], [0], [0], [1], [0, 0, 1, 1], [], []>} : vector<32x64xbf16>, vector<64x128xbf16>, vector<32x128xf32> -> vector<32x128xf32>
    %66 = arith.addf %61, %65 : vector<32x128xf32>
    %67 = vector.extract_strided_slice %45 {offsets = [128, 0], sizes = [32, 64], strides = [1, 1]} : vector<288x64xf32> to vector<32x64xf32>
    %68 = arith.truncf %67 : vector<32x64xf32> to vector<32x64xbf16>
    %c256 = arith.constant 256 : index
    %c0_26 = arith.constant 0 : index
    %69 = vector.load %arg4[%c256, %c0_26] : memref<576x128xbf16, #tpu.memory_space<vmem>>, vector<64x128xbf16>
    %cst_27 = arith.constant dense<0.000000e+00> : vector<32x128xf32>
    %70 = tpu.matmul %68, %69, %cst_27 {dimension_numbers = #tpu.dot_dimension_numbers<[1], [0], [0], [1], [0, 0, 1, 1], [], []>} : vector<32x64xbf16>, vector<64x128xbf16>, vector<32x128xf32> -> vector<32x128xf32>
    %71 = arith.addf %66, %70 : vector<32x128xf32>
    %72 = vector.extract_strided_slice %45 {offsets = [160, 0], sizes = [32, 64], strides = [1, 1]} : vector<288x64xf32> to vector<32x64xf32>
    %73 = arith.truncf %72 : vector<32x64xf32> to vector<32x64xbf16>
    %c320 = arith.constant 320 : index
    %c0_28 = arith.constant 0 : index
    %74 = vector.load %arg4[%c320, %c0_28] : memref<576x128xbf16, #tpu.memory_space<vmem>>, vector<64x128xbf16>
    %cst_29 = arith.constant dense<0.000000e+00> : vector<32x128xf32>
    %75 = tpu.matmul %73, %74, %cst_29 {dimension_numbers = #tpu.dot_dimension_numbers<[1], [0], [0], [1], [0, 0, 1, 1], [], []>} : vector<32x64xbf16>, vector<64x128xbf16>, vector<32x128xf32> -> vector<32x128xf32>
    %76 = arith.addf %71, %75 : vector<32x128xf32>
    %77 = vector.extract_strided_slice %45 {offsets = [192, 0], sizes = [32, 64], strides = [1, 1]} : vector<288x64xf32> to vector<32x64xf32>
    %78 = arith.truncf %77 : vector<32x64xf32> to vector<32x64xbf16>
    %c384 = arith.constant 384 : index
    %c0_30 = arith.constant 0 : index
    %79 = vector.load %arg4[%c384, %c0_30] : memref<576x128xbf16, #tpu.memory_space<vmem>>, vector<64x128xbf16>
    %cst_31 = arith.constant dense<0.000000e+00> : vector<32x128xf32>
    %80 = tpu.matmul %78, %79, %cst_31 {dimension_numbers = #tpu.dot_dimension_numbers<[1], [0], [0], [1], [0, 0, 1, 1], [], []>} : vector<32x64xbf16>, vector<64x128xbf16>, vector<32x128xf32> -> vector<32x128xf32>
    %81 = arith.addf %76, %80 : vector<32x128xf32>
    %82 = vector.extract_strided_slice %45 {offsets = [224, 0], sizes = [32, 64], strides = [1, 1]} : vector<288x64xf32> to vector<32x64xf32>
    %83 = arith.truncf %82 : vector<32x64xf32> to vector<32x64xbf16>
    %c448 = arith.constant 448 : index
    %c0_32 = arith.constant 0 : index
    %84 = vector.load %arg4[%c448, %c0_32] : memref<576x128xbf16, #tpu.memory_space<vmem>>, vector<64x128xbf16>
    %cst_33 = arith.constant dense<0.000000e+00> : vector<32x128xf32>
    %85 = tpu.matmul %83, %84, %cst_33 {dimension_numbers = #tpu.dot_dimension_numbers<[1], [0], [0], [1], [0, 0, 1, 1], [], []>} : vector<32x64xbf16>, vector<64x128xbf16>, vector<32x128xf32> -> vector<32x128xf32>
    %86 = arith.addf %81, %85 : vector<32x128xf32>
    %87 = vector.extract_strided_slice %45 {offsets = [256, 0], sizes = [32, 64], strides = [1, 1]} : vector<288x64xf32> to vector<32x64xf32>
    %88 = arith.truncf %87 : vector<32x64xf32> to vector<32x64xbf16>
    %c512 = arith.constant 512 : index
    %c0_34 = arith.constant 0 : index
    %89 = vector.load %arg4[%c512, %c0_34] : memref<576x128xbf16, #tpu.memory_space<vmem>>, vector<64x128xbf16>
    %cst_35 = arith.constant dense<0.000000e+00> : vector<32x128xf32>
    %90 = tpu.matmul %88, %89, %cst_35 {dimension_numbers = #tpu.dot_dimension_numbers<[1], [0], [0], [1], [0, 0, 1, 1], [], []>} : vector<32x64xbf16>, vector<64x128xbf16>, vector<32x128xf32> -> vector<32x128xf32>
    %91 = arith.addf %86, %90 : vector<32x128xf32>
    %c0_36 = arith.constant 0 : index
    %c0_37 = arith.constant 0 : index
    %92 = vector.load %arg5[%c0_36, %c0_37] : memref<2x128xf32, #tpu.memory_space<vmem>>, vector<2x128xf32>
    %cst_38 = arith.constant 1.000000e+00 : f32
    %93 = vector.broadcast %cst_38 : f32 to vector<1x32xf32>
    %cst_39 = arith.constant dense<0.000000e+00> : vector<1x128xf32>
    %94 = tpu.matmul %93, %91, %cst_39 {dimension_numbers = #tpu.dot_dimension_numbers<[1], [0], [0], [1], [0, 0, 1, 1], [], []>} : vector<1x32xf32>, vector<32x128xf32>, vector<1x128xf32> -> vector<1x128xf32>
    %95 = arith.mulf %91, %91 : vector<32x128xf32>
    %cst_40 = arith.constant dense<0.000000e+00> : vector<1x128xf32>
    %96 = tpu.matmul %93, %95, %cst_40 {dimension_numbers = #tpu.dot_dimension_numbers<[1], [0], [0], [1], [0, 0, 1, 1], [], []>} : vector<1x32xf32>, vector<32x128xf32>, vector<1x128xf32> -> vector<1x128xf32>
    %cst_41 = arith.constant 3.125000e-02 : f32
    %97 = vector.broadcast %cst_41 : f32 to vector<1x128xf32>
    %98 = arith.mulf %94, %97 : vector<1x128xf32>
    %cst_42 = arith.constant 3.125000e-02 : f32
    %99 = vector.broadcast %cst_42 : f32 to vector<1x128xf32>
    %100 = arith.mulf %96, %99 : vector<1x128xf32>
    %101 = arith.mulf %98, %98 : vector<1x128xf32>
    %102 = arith.subf %100, %101 : vector<1x128xf32>
    %cst_43 = arith.constant 0.000000e+00 : f32
    %103 = vector.broadcast %cst_43 : f32 to vector<1x128xf32>
    %104 = arith.maximumf %102, %103 : vector<1x128xf32>
    %cst_44 = arith.constant 9.99999974E-6 : f32
    %105 = vector.broadcast %cst_44 : f32 to vector<1x128xf32>
    %106 = arith.addf %104, %105 : vector<1x128xf32>
    %107 = math.rsqrt %106 : vector<1x128xf32>
    %108 = vector.broadcast %98 : vector<1x128xf32> to vector<32x128xf32>
    %109 = arith.subf %91, %108 : vector<32x128xf32>
    %110 = vector.extract_strided_slice %92 {offsets = [0, 0], sizes = [1, 128], strides = [1, 1]} : vector<2x128xf32> to vector<1x128xf32>
    %111 = arith.mulf %107, %110 : vector<1x128xf32>
    %112 = vector.broadcast %111 : vector<1x128xf32> to vector<32x128xf32>
    %113 = arith.mulf %109, %112 : vector<32x128xf32>
    %114 = vector.extract_strided_slice %92 {offsets = [1, 0], sizes = [1, 128], strides = [1, 1]} : vector<2x128xf32> to vector<1x128xf32>
    %115 = vector.broadcast %114 : vector<1x128xf32> to vector<32x128xf32>
    %116 = arith.addf %113, %115 : vector<32x128xf32>
    %cst_45 = arith.constant 0.000000e+00 : f32
    %117 = vector.broadcast %cst_45 : f32 to vector<32x128xf32>
    %118 = arith.maximumf %116, %117 : vector<32x128xf32>
    %119 = vector.extract_strided_slice %118 {offsets = [0, 0], sizes = [8, 128], strides = [1, 1]} : vector<32x128xf32> to vector<8x128xf32>
    %120 = vector.extract_strided_slice %118 {offsets = [8, 0], sizes = [8, 128], strides = [1, 1]} : vector<32x128xf32> to vector<8x128xf32>
    %121 = arith.maximumf %119, %120 : vector<8x128xf32>
    %122 = vector.extract_strided_slice %118 {offsets = [16, 0], sizes = [8, 128], strides = [1, 1]} : vector<32x128xf32> to vector<8x128xf32>
    %123 = vector.extract_strided_slice %118 {offsets = [24, 0], sizes = [8, 128], strides = [1, 1]} : vector<32x128xf32> to vector<8x128xf32>
    %124 = arith.maximumf %122, %123 : vector<8x128xf32>
    %125 = arith.maximumf %121, %124 : vector<8x128xf32>
    %c0_46 = arith.constant 0 : index
    %c0_47 = arith.constant 0 : index
    %126 = vector.load %arg6[%c0_46, %c0_47] : memref<72x8xbf16, #tpu.memory_space<vmem>>, vector<72x8xbf16>
    %127 = arith.truncf %125 : vector<8x128xf32> to vector<8x128xbf16>
    %cst_48 = arith.constant dense<0.000000e+00> : vector<72x128xf32>
    %128 = tpu.matmul %126, %127, %cst_48 {dimension_numbers = #tpu.dot_dimension_numbers<[1], [0], [0], [1], [0, 0, 1, 1], [], []>} : vector<72x8xbf16>, vector<8x128xbf16>, vector<72x128xf32> -> vector<72x128xf32>
    %c0_i32_49 = arith.constant 0 : i32
    %129 = tpu.memref_slice %arg19[%c0_i32_49] : memref<3x!tpu.dma_semaphore, #tpu.memory_space<semaphore_mem>> -> memref<1x!tpu.dma_semaphore, #tpu.memory_space<semaphore_mem>>
    %130 = tpu.memref_squeeze %129 : memref<1x!tpu.dma_semaphore, #tpu.memory_space<semaphore_mem>> -> memref<!tpu.dma_semaphore, #tpu.memory_space<semaphore_mem>>
    tpu.wait_dma2 semaphore(%130 : memref<!tpu.dma_semaphore, #tpu.memory_space<semaphore_mem>>) src(%arg7 : memref<1152x256xbf16, #tpu.memory_space<any>>) dst(%arg16 : memref<1152x256xbf16, #tpu.memory_space<vmem>>)
    %cst_50 = arith.constant 0.000000e+00 : f32
    %131 = vector.broadcast %cst_50 : f32 to vector<8x256xf32>
    %132 = vector.extract_strided_slice %128 {offsets = [0, 0], sizes = [8, 128], strides = [1, 1]} : vector<72x128xf32> to vector<8x128xf32>
    %133 = arith.truncf %132 : vector<8x128xf32> to vector<8x128xbf16>
    %c0_51 = arith.constant 0 : index
    %c0_52 = arith.constant 0 : index
    %134 = vector.load %arg16[%c0_51, %c0_52] : memref<1152x256xbf16, #tpu.memory_space<vmem>>, vector<128x256xbf16>
    %cst_53 = arith.constant dense<0.000000e+00> : vector<8x256xf32>
    %135 = tpu.matmul %133, %134, %cst_53 {dimension_numbers = #tpu.dot_dimension_numbers<[1], [0], [0], [1], [0, 0, 1, 1], [], []>} : vector<8x128xbf16>, vector<128x256xbf16>, vector<8x256xf32> -> vector<8x256xf32>
    %136 = arith.addf %131, %135 : vector<8x256xf32>
    %137 = vector.extract_strided_slice %128 {offsets = [8, 0], sizes = [8, 128], strides = [1, 1]} : vector<72x128xf32> to vector<8x128xf32>
    %138 = arith.truncf %137 : vector<8x128xf32> to vector<8x128xbf16>
    %c128_54 = arith.constant 128 : index
    %c0_55 = arith.constant 0 : index
    %139 = vector.load %arg16[%c128_54, %c0_55] : memref<1152x256xbf16, #tpu.memory_space<vmem>>, vector<128x256xbf16>
    %cst_56 = arith.constant dense<0.000000e+00> : vector<8x256xf32>
    %140 = tpu.matmul %138, %139, %cst_56 {dimension_numbers = #tpu.dot_dimension_numbers<[1], [0], [0], [1], [0, 0, 1, 1], [], []>} : vector<8x128xbf16>, vector<128x256xbf16>, vector<8x256xf32> -> vector<8x256xf32>
    %141 = arith.addf %136, %140 : vector<8x256xf32>
    %142 = vector.extract_strided_slice %128 {offsets = [16, 0], sizes = [8, 128], strides = [1, 1]} : vector<72x128xf32> to vector<8x128xf32>
    %143 = arith.truncf %142 : vector<8x128xf32> to vector<8x128xbf16>
    %c256_57 = arith.constant 256 : index
    %c0_58 = arith.constant 0 : index
    %144 = vector.load %arg16[%c256_57, %c0_58] : memref<1152x256xbf16, #tpu.memory_space<vmem>>, vector<128x256xbf16>
    %cst_59 = arith.constant dense<0.000000e+00> : vector<8x256xf32>
    %145 = tpu.matmul %143, %144, %cst_59 {dimension_numbers = #tpu.dot_dimension_numbers<[1], [0], [0], [1], [0, 0, 1, 1], [], []>} : vector<8x128xbf16>, vector<128x256xbf16>, vector<8x256xf32> -> vector<8x256xf32>
    %146 = arith.addf %141, %145 : vector<8x256xf32>
    %147 = vector.extract_strided_slice %128 {offsets = [24, 0], sizes = [8, 128], strides = [1, 1]} : vector<72x128xf32> to vector<8x128xf32>
    %148 = arith.truncf %147 : vector<8x128xf32> to vector<8x128xbf16>
    %c384_60 = arith.constant 384 : index
    %c0_61 = arith.constant 0 : index
    %149 = vector.load %arg16[%c384_60, %c0_61] : memref<1152x256xbf16, #tpu.memory_space<vmem>>, vector<128x256xbf16>
    %cst_62 = arith.constant dense<0.000000e+00> : vector<8x256xf32>
    %150 = tpu.matmul %148, %149, %cst_62 {dimension_numbers = #tpu.dot_dimension_numbers<[1], [0], [0], [1], [0, 0, 1, 1], [], []>} : vector<8x128xbf16>, vector<128x256xbf16>, vector<8x256xf32> -> vector<8x256xf32>
    %151 = arith.addf %146, %150 : vector<8x256xf32>
    %152 = vector.extract_strided_slice %128 {offsets = [32, 0], sizes = [8, 128], strides = [1, 1]} : vector<72x128xf32> to vector<8x128xf32>
    %153 = arith.truncf %152 : vector<8x128xf32> to vector<8x128xbf16>
    %c512_63 = arith.constant 512 : index
    %c0_64 = arith.constant 0 : index
    %154 = vector.load %arg16[%c512_63, %c0_64] : memref<1152x256xbf16, #tpu.memory_space<vmem>>, vector<128x256xbf16>
    %cst_65 = arith.constant dense<0.000000e+00> : vector<8x256xf32>
    %155 = tpu.matmul %153, %154, %cst_65 {dimension_numbers = #tpu.dot_dimension_numbers<[1], [0], [0], [1], [0, 0, 1, 1], [], []>} : vector<8x128xbf16>, vector<128x256xbf16>, vector<8x256xf32> -> vector<8x256xf32>
    %156 = arith.addf %151, %155 : vector<8x256xf32>
    %157 = vector.extract_strided_slice %128 {offsets = [40, 0], sizes = [8, 128], strides = [1, 1]} : vector<72x128xf32> to vector<8x128xf32>
    %158 = arith.truncf %157 : vector<8x128xf32> to vector<8x128xbf16>
    %c640 = arith.constant 640 : index
    %c0_66 = arith.constant 0 : index
    %159 = vector.load %arg16[%c640, %c0_66] : memref<1152x256xbf16, #tpu.memory_space<vmem>>, vector<128x256xbf16>
    %cst_67 = arith.constant dense<0.000000e+00> : vector<8x256xf32>
    %160 = tpu.matmul %158, %159, %cst_67 {dimension_numbers = #tpu.dot_dimension_numbers<[1], [0], [0], [1], [0, 0, 1, 1], [], []>} : vector<8x128xbf16>, vector<128x256xbf16>, vector<8x256xf32> -> vector<8x256xf32>
    %161 = arith.addf %156, %160 : vector<8x256xf32>
    %162 = vector.extract_strided_slice %128 {offsets = [48, 0], sizes = [8, 128], strides = [1, 1]} : vector<72x128xf32> to vector<8x128xf32>
    %163 = arith.truncf %162 : vector<8x128xf32> to vector<8x128xbf16>
    %c768 = arith.constant 768 : index
    %c0_68 = arith.constant 0 : index
    %164 = vector.load %arg16[%c768, %c0_68] : memref<1152x256xbf16, #tpu.memory_space<vmem>>, vector<128x256xbf16>
    %cst_69 = arith.constant dense<0.000000e+00> : vector<8x256xf32>
    %165 = tpu.matmul %163, %164, %cst_69 {dimension_numbers = #tpu.dot_dimension_numbers<[1], [0], [0], [1], [0, 0, 1, 1], [], []>} : vector<8x128xbf16>, vector<128x256xbf16>, vector<8x256xf32> -> vector<8x256xf32>
    %166 = arith.addf %161, %165 : vector<8x256xf32>
    %167 = vector.extract_strided_slice %128 {offsets = [56, 0], sizes = [8, 128], strides = [1, 1]} : vector<72x128xf32> to vector<8x128xf32>
    %168 = arith.truncf %167 : vector<8x128xf32> to vector<8x128xbf16>
    %c896 = arith.constant 896 : index
    %c0_70 = arith.constant 0 : index
    %169 = vector.load %arg16[%c896, %c0_70] : memref<1152x256xbf16, #tpu.memory_space<vmem>>, vector<128x256xbf16>
    %cst_71 = arith.constant dense<0.000000e+00> : vector<8x256xf32>
    %170 = tpu.matmul %168, %169, %cst_71 {dimension_numbers = #tpu.dot_dimension_numbers<[1], [0], [0], [1], [0, 0, 1, 1], [], []>} : vector<8x128xbf16>, vector<128x256xbf16>, vector<8x256xf32> -> vector<8x256xf32>
    %171 = arith.addf %166, %170 : vector<8x256xf32>
    %172 = vector.extract_strided_slice %128 {offsets = [64, 0], sizes = [8, 128], strides = [1, 1]} : vector<72x128xf32> to vector<8x128xf32>
    %173 = arith.truncf %172 : vector<8x128xf32> to vector<8x128xbf16>
    %c1024 = arith.constant 1024 : index
    %c0_72 = arith.constant 0 : index
    %174 = vector.load %arg16[%c1024, %c0_72] : memref<1152x256xbf16, #tpu.memory_space<vmem>>, vector<128x256xbf16>
    %cst_73 = arith.constant dense<0.000000e+00> : vector<8x256xf32>
    %175 = tpu.matmul %173, %174, %cst_73 {dimension_numbers = #tpu.dot_dimension_numbers<[1], [0], [0], [1], [0, 0, 1, 1], [], []>} : vector<8x128xbf16>, vector<128x256xbf16>, vector<8x256xf32> -> vector<8x256xf32>
    %176 = arith.addf %171, %175 : vector<8x256xf32>
    %c0_74 = arith.constant 0 : index
    %c0_75 = arith.constant 0 : index
    %177 = vector.load %arg8[%c0_74, %c0_75] : memref<2x256xf32, #tpu.memory_space<vmem>>, vector<2x256xf32>
    %cst_76 = arith.constant dense<0.000000e+00> : vector<256xf32>
    %178 = vector.multi_reduction <add>, %176, %cst_76 [0] : vector<8x256xf32> to vector<256xf32>
    %179 = vector.shape_cast %178 : vector<256xf32> to vector<1x256xf32>
    %180 = arith.mulf %176, %176 : vector<8x256xf32>
    %cst_77 = arith.constant dense<0.000000e+00> : vector<256xf32>
    %181 = vector.multi_reduction <add>, %180, %cst_77 [0] : vector<8x256xf32> to vector<256xf32>
    %182 = vector.shape_cast %181 : vector<256xf32> to vector<1x256xf32>
    %cst_78 = arith.constant 1.250000e-01 : f32
    %183 = vector.broadcast %cst_78 : f32 to vector<1x256xf32>
    %184 = arith.mulf %179, %183 : vector<1x256xf32>
    %cst_79 = arith.constant 1.250000e-01 : f32
    %185 = vector.broadcast %cst_79 : f32 to vector<1x256xf32>
    %186 = arith.mulf %182, %185 : vector<1x256xf32>
    %187 = arith.mulf %184, %184 : vector<1x256xf32>
    %188 = arith.subf %186, %187 : vector<1x256xf32>
    %cst_80 = arith.constant 0.000000e+00 : f32
    %189 = vector.broadcast %cst_80 : f32 to vector<1x256xf32>
    %190 = arith.maximumf %188, %189 : vector<1x256xf32>
    %cst_81 = arith.constant 9.99999974E-6 : f32
    %191 = vector.broadcast %cst_81 : f32 to vector<1x256xf32>
    %192 = arith.addf %190, %191 : vector<1x256xf32>
    %193 = math.rsqrt %192 : vector<1x256xf32>
    %194 = vector.broadcast %184 : vector<1x256xf32> to vector<8x256xf32>
    %195 = arith.subf %176, %194 : vector<8x256xf32>
    %196 = vector.extract_strided_slice %177 {offsets = [0, 0], sizes = [1, 256], strides = [1, 1]} : vector<2x256xf32> to vector<1x256xf32>
    %197 = arith.mulf %193, %196 : vector<1x256xf32>
    %198 = vector.broadcast %197 : vector<1x256xf32> to vector<8x256xf32>
    %199 = arith.mulf %195, %198 : vector<8x256xf32>
    %200 = vector.extract_strided_slice %177 {offsets = [1, 0], sizes = [1, 256], strides = [1, 1]} : vector<2x256xf32> to vector<1x256xf32>
    %201 = vector.broadcast %200 : vector<1x256xf32> to vector<8x256xf32>
    %202 = arith.addf %199, %201 : vector<8x256xf32>
    %cst_82 = arith.constant 0.000000e+00 : f32
    %203 = vector.broadcast %cst_82 : f32 to vector<8x256xf32>
    %204 = arith.maximumf %202, %203 : vector<8x256xf32>
    %205 = vector.extract_strided_slice %204 {offsets = [0, 0], sizes = [2, 256], strides = [1, 1]} : vector<8x256xf32> to vector<2x256xf32>
    %206 = vector.extract_strided_slice %204 {offsets = [2, 0], sizes = [2, 256], strides = [1, 1]} : vector<8x256xf32> to vector<2x256xf32>
    %207 = arith.maximumf %205, %206 : vector<2x256xf32>
    %208 = vector.extract_strided_slice %204 {offsets = [4, 0], sizes = [2, 256], strides = [1, 1]} : vector<8x256xf32> to vector<2x256xf32>
    %209 = vector.extract_strided_slice %204 {offsets = [6, 0], sizes = [2, 256], strides = [1, 1]} : vector<8x256xf32> to vector<2x256xf32>
    %210 = arith.maximumf %208, %209 : vector<2x256xf32>
    %211 = arith.maximumf %207, %210 : vector<2x256xf32>
    %c1_i32_83 = arith.constant 1 : i32
    %212 = tpu.memref_slice %arg19[%c1_i32_83] : memref<3x!tpu.dma_semaphore, #tpu.memory_space<semaphore_mem>> -> memref<1x!tpu.dma_semaphore, #tpu.memory_space<semaphore_mem>>
    %213 = tpu.memref_squeeze %212 : memref<1x!tpu.dma_semaphore, #tpu.memory_space<semaphore_mem>> -> memref<!tpu.dma_semaphore, #tpu.memory_space<semaphore_mem>>
    tpu.wait_dma2 semaphore(%213 : memref<!tpu.dma_semaphore, #tpu.memory_space<semaphore_mem>>) src(%arg9 : memref<256x512xbf16, #tpu.memory_space<any>>) dst(%arg17 : memref<256x512xbf16, #tpu.memory_space<vmem>>)
    %214 = arith.truncf %211 : vector<2x256xf32> to vector<2x256xbf16>
    %c0_84 = arith.constant 0 : index
    %c0_85 = arith.constant 0 : index
    %215 = vector.load %arg17[%c0_84, %c0_85] : memref<256x512xbf16, #tpu.memory_space<vmem>>, vector<256x512xbf16>
    %cst_86 = arith.constant dense<0.000000e+00> : vector<2x512xf32>
    %216 = tpu.matmul %214, %215, %cst_86 {dimension_numbers = #tpu.dot_dimension_numbers<[1], [0], [0], [1], [0, 0, 1, 1], [], []>} : vector<2x256xbf16>, vector<256x512xbf16>, vector<2x512xf32> -> vector<2x512xf32>
    %c0_87 = arith.constant 0 : index
    %c0_88 = arith.constant 0 : index
    %217 = vector.load %arg10[%c0_87, %c0_88] : memref<2x512xf32, #tpu.memory_space<vmem>>, vector<2x512xf32>
    %cst_89 = arith.constant dense<0.000000e+00> : vector<512xf32>
    %218 = vector.multi_reduction <add>, %216, %cst_89 [0] : vector<2x512xf32> to vector<512xf32>
    %219 = vector.shape_cast %218 : vector<512xf32> to vector<1x512xf32>
    %220 = arith.mulf %216, %216 : vector<2x512xf32>
    %cst_90 = arith.constant dense<0.000000e+00> : vector<512xf32>
    %221 = vector.multi_reduction <add>, %220, %cst_90 [0] : vector<2x512xf32> to vector<512xf32>
    %222 = vector.shape_cast %221 : vector<512xf32> to vector<1x512xf32>
    %cst_91 = arith.constant 5.000000e-01 : f32
    %223 = vector.broadcast %cst_91 : f32 to vector<1x512xf32>
    %224 = arith.mulf %219, %223 : vector<1x512xf32>
    %cst_92 = arith.constant 5.000000e-01 : f32
    %225 = vector.broadcast %cst_92 : f32 to vector<1x512xf32>
    %226 = arith.mulf %222, %225 : vector<1x512xf32>
    %227 = arith.mulf %224, %224 : vector<1x512xf32>
    %228 = arith.subf %226, %227 : vector<1x512xf32>
    %cst_93 = arith.constant 0.000000e+00 : f32
    %229 = vector.broadcast %cst_93 : f32 to vector<1x512xf32>
    %230 = arith.maximumf %228, %229 : vector<1x512xf32>
    %cst_94 = arith.constant 9.99999974E-6 : f32
    %231 = vector.broadcast %cst_94 : f32 to vector<1x512xf32>
    %232 = arith.addf %230, %231 : vector<1x512xf32>
    %233 = math.rsqrt %232 : vector<1x512xf32>
    %234 = vector.broadcast %224 : vector<1x512xf32> to vector<2x512xf32>
    %235 = arith.subf %216, %234 : vector<2x512xf32>
    %236 = vector.extract_strided_slice %217 {offsets = [0, 0], sizes = [1, 512], strides = [1, 1]} : vector<2x512xf32> to vector<1x512xf32>
    %237 = arith.mulf %233, %236 : vector<1x512xf32>
    %238 = vector.broadcast %237 : vector<1x512xf32> to vector<2x512xf32>
    %239 = arith.mulf %235, %238 : vector<2x512xf32>
    %240 = vector.extract_strided_slice %217 {offsets = [1, 0], sizes = [1, 512], strides = [1, 1]} : vector<2x512xf32> to vector<1x512xf32>
    %241 = vector.broadcast %240 : vector<1x512xf32> to vector<2x512xf32>
    %242 = arith.addf %239, %241 : vector<2x512xf32>
    %cst_95 = arith.constant 0.000000e+00 : f32
    %243 = vector.broadcast %cst_95 : f32 to vector<2x512xf32>
    %244 = arith.maximumf %242, %243 : vector<2x512xf32>
    %c2_i32_96 = arith.constant 2 : i32
    %245 = tpu.memref_slice %arg19[%c2_i32_96] : memref<3x!tpu.dma_semaphore, #tpu.memory_space<semaphore_mem>> -> memref<1x!tpu.dma_semaphore, #tpu.memory_space<semaphore_mem>>
    %246 = tpu.memref_squeeze %245 : memref<1x!tpu.dma_semaphore, #tpu.memory_space<semaphore_mem>> -> memref<!tpu.dma_semaphore, #tpu.memory_space<semaphore_mem>>
    tpu.wait_dma2 semaphore(%246 : memref<!tpu.dma_semaphore, #tpu.memory_space<semaphore_mem>>) src(%arg11 : memref<512x512xbf16, #tpu.memory_space<any>>) dst(%arg18 : memref<512x512xbf16, #tpu.memory_space<vmem>>)
    %247 = arith.truncf %244 : vector<2x512xf32> to vector<2x512xbf16>
    %c0_97 = arith.constant 0 : index
    %c0_98 = arith.constant 0 : index
    %248 = vector.load %arg18[%c0_97, %c0_98] : memref<512x512xbf16, #tpu.memory_space<vmem>>, vector<512x512xbf16>
    %cst_99 = arith.constant dense<0.000000e+00> : vector<2x512xf32>
    %249 = tpu.matmul %247, %248, %cst_99 {dimension_numbers = #tpu.dot_dimension_numbers<[1], [0], [0], [1], [0, 0, 1, 1], [], []>} : vector<2x512xbf16>, vector<512x512xbf16>, vector<2x512xf32> -> vector<2x512xf32>
    %c0_100 = arith.constant 0 : index
    %c0_101 = arith.constant 0 : index
    %250 = vector.load %arg12[%c0_100, %c0_101] : memref<2x512xf32, #tpu.memory_space<vmem>>, vector<2x512xf32>
    %cst_102 = arith.constant dense<0.000000e+00> : vector<512xf32>
    %251 = vector.multi_reduction <add>, %249, %cst_102 [0] : vector<2x512xf32> to vector<512xf32>
    %252 = vector.shape_cast %251 : vector<512xf32> to vector<1x512xf32>
    %253 = arith.mulf %249, %249 : vector<2x512xf32>
    %cst_103 = arith.constant dense<0.000000e+00> : vector<512xf32>
    %254 = vector.multi_reduction <add>, %253, %cst_103 [0] : vector<2x512xf32> to vector<512xf32>
    %255 = vector.shape_cast %254 : vector<512xf32> to vector<1x512xf32>
    %cst_104 = arith.constant 5.000000e-01 : f32
    %256 = vector.broadcast %cst_104 : f32 to vector<1x512xf32>
    %257 = arith.mulf %252, %256 : vector<1x512xf32>
    %cst_105 = arith.constant 5.000000e-01 : f32
    %258 = vector.broadcast %cst_105 : f32 to vector<1x512xf32>
    %259 = arith.mulf %255, %258 : vector<1x512xf32>
    %260 = arith.mulf %257, %257 : vector<1x512xf32>
    %261 = arith.subf %259, %260 : vector<1x512xf32>
    %cst_106 = arith.constant 0.000000e+00 : f32
    %262 = vector.broadcast %cst_106 : f32 to vector<1x512xf32>
    %263 = arith.maximumf %261, %262 : vector<1x512xf32>
    %cst_107 = arith.constant 9.99999974E-6 : f32
    %264 = vector.broadcast %cst_107 : f32 to vector<1x512xf32>
    %265 = arith.addf %263, %264 : vector<1x512xf32>
    %266 = math.rsqrt %265 : vector<1x512xf32>
    %267 = vector.broadcast %257 : vector<1x512xf32> to vector<2x512xf32>
    %268 = arith.subf %249, %267 : vector<2x512xf32>
    %269 = vector.extract_strided_slice %250 {offsets = [0, 0], sizes = [1, 512], strides = [1, 1]} : vector<2x512xf32> to vector<1x512xf32>
    %270 = arith.mulf %266, %269 : vector<1x512xf32>
    %271 = vector.broadcast %270 : vector<1x512xf32> to vector<2x512xf32>
    %272 = arith.mulf %268, %271 : vector<2x512xf32>
    %273 = vector.extract_strided_slice %250 {offsets = [1, 0], sizes = [1, 512], strides = [1, 1]} : vector<2x512xf32> to vector<1x512xf32>
    %274 = vector.broadcast %273 : vector<1x512xf32> to vector<2x512xf32>
    %275 = arith.addf %272, %274 : vector<2x512xf32>
    %cst_108 = arith.constant 0.000000e+00 : f32
    %276 = vector.broadcast %cst_108 : f32 to vector<2x512xf32>
    %277 = arith.maximumf %275, %276 : vector<2x512xf32>
    %278 = arith.truncf %277 : vector<2x512xf32> to vector<2x512xbf16>
    %c0_109 = arith.constant 0 : index
    %c0_110 = arith.constant 0 : index
    %279 = vector.load %arg13[%c0_109, %c0_110] : memref<512x128xbf16, #tpu.memory_space<vmem>>, vector<512x128xbf16>
    %cst_111 = arith.constant dense<0.000000e+00> : vector<2x128xf32>
    %280 = tpu.matmul %278, %279, %cst_111 {dimension_numbers = #tpu.dot_dimension_numbers<[1], [0], [0], [1], [0, 0, 1, 1], [], []>} : vector<2x512xbf16>, vector<512x128xbf16>, vector<2x128xf32> -> vector<2x128xf32>
    %c0_112 = arith.constant 0 : index
    %c0_113 = arith.constant 0 : index
    %281 = vector.load %arg14[%c0_112, %c0_113] : memref<1x128xf32, #tpu.memory_space<vmem>>, vector<1x128xf32>
    %282 = vector.broadcast %281 : vector<1x128xf32> to vector<2x128xf32>
    %283 = arith.addf %280, %282 : vector<2x128xf32>
    %c0_114 = arith.constant 0 : index
    %c0_115 = arith.constant 0 : index
    %284 = vector.load %arg15[%c0_114, %c0_115] : memref<2x128xf32, #tpu.memory_space<vmem>>, vector<2x128xf32>
    tpu.vector_store %arg15[%c0_114, %c0_115], %283 {strides = array<i32>} : memref<2x128xf32, #tpu.memory_space<vmem>>, vector<2x128xf32>,
    return
  }
}

</mosaic_0001>

<llo_original>
// kernel: _lambda_.1
$region0: #{_lambda_.1}
  #allocation0 [shape = 'u32[]', space=smem, size = 0x4, offset = 0x4, fixed_abs, tag = 'smem constant byte address 0x4 - core index']
  #allocation1 [shape = 'u32[144,128]{1,0:T(1,128)}', space=vmem, size = 0x12000, scoped, tag = 'internal scratch']
  #allocation2 [shape = 'bf16[1152,256]{1,0:T(8,128)(2,1)}', space=vmem, size = 0x90000, scoped, tag = 'scratch operand']
  #allocation3 [shape = 'bf16[256,512]{1,0:T(8,128)(2,1)}', space=vmem, size = 0x40000, scoped, tag = 'scratch operand']
  #allocation4 [shape = 'bf16[512,512]{1,0:T(8,128)(2,1)}', space=vmem, size = 0x80000, scoped, tag = 'scratch operand']
  #allocation5 [shape = 's32[3]{0}', space=sflag, size = 0xc, scoped, tag = 'scratch operand']
  #allocation6 [shape = 's32[]', space=sflag, size = 0x4, offset = 0, fixed_abs, tag = 'sflag constant byte address 0x0 - dummy sync flag']
  #allocation7 [shape = 's32[]', space=sflag, size = 0x4, offset = 0, fixed_abs, tag = 'sflag constant byte address 0x0 - dummy sync flag']
  #allocation8 [shape = 's32[]', space=sflag, size = 0x4, offset = 0, fixed_abs, tag = 'sflag constant byte address 0x0 - dummy sync flag']
  %s0 = inlined_call_operand.vmem [shape: bf16[512,36], index: 0, kind: input, shape index: {}]
  %s1 = inlined_call_operand.vmem [shape: bf16[36,64], index: 1, kind: input, shape index: {}]
  %s2 = inlined_call_operand.vmem [shape: f32[2,64], index: 2, kind: input, shape index: {}]
  %s3 = inlined_call_operand.vmem [shape: bf16[288,128], index: 3, kind: input, shape index: {}]
  %s4 = inlined_call_operand.vmem [shape: bf16[576,128], index: 4, kind: input, shape index: {}]
  %s5 = inlined_call_operand.vmem [shape: f32[2,128], index: 5, kind: input, shape index: {}]
  %s6 = inlined_call_operand.vmem [shape: bf16[72,8], index: 6, kind: input, shape index: {}]
  %s7 = inlined_call_operand.vmem [shape: bf16[1152,256], index: 7, kind: input, shape index: {}]
  %s8 = inlined_call_operand.vmem [shape: f32[2,256], index: 8, kind: input, shape index: {}]
  %s9 = inlined_call_operand.vmem [shape: bf16[256,512], index: 9, kind: input, shape index: {}]
  %s10 = inlined_call_operand.vmem [shape: f32[2,512], index: 10, kind: input, shape index: {}]
  %s11 = inlined_call_operand.vmem [shape: bf16[512,512], index: 11, kind: input, shape index: {}]
  %s12 = inlined_call_operand.vmem [shape: f32[2,512], index: 12, kind: input, shape index: {}]
  %s13 = inlined_call_operand.vmem [shape: bf16[512,128], index: 13, kind: input, shape index: {}]
  %s14 = inlined_call_operand.vmem [shape: f32[1,128], index: 14, kind: input, shape index: {}]
  %s15 = inlined_call_operand.vmem [shape: f32[2,128], index: 15, kind: output, shape index: {}]
  %s16 = sld [smem:[#allocation0]]
  $region160: #{_lambda_.1} parent=0
    _
  %s18 = ssub.s32 1, %s16
  %s19 = scalar_select 0, %s18, %s16
  // Predicated region
  $region2: #{_lambda_.1} parent=0 // pred_check
    _
  $region3: #{_lambda_.1} parent=0 // pred_check_branch
    %21 = sbr.rel (0) target = $region5
  $region4: #{_lambda_.1} parent=0 // pred_region
    _
  $region5: #{_lambda_.1} parent=0 // pred_fallthru
    _
  // Predicated region
  $region6: #{_lambda_.1} parent=0 // pred_check
    _
  $region7: #{_lambda_.1} parent=0 // pred_check_branch
    %23 = sbr.rel (0) target = $region9
  $region8: #{_lambda_.1} parent=0 // pred_region
    _
  $region9: #{_lambda_.1} parent=0 // pred_fallthru
    _
  // Predicated region
  $region10: #{_lambda_.1} parent=0 // pred_check
    _
  $region11: #{_lambda_.1} parent=0 // pred_check_branch
    %25 = sbr.rel (0) target = $region13
  $region12: #{_lambda_.1} parent=0 // pred_region
    _
  $region13: #{_lambda_.1} parent=0 // pred_fallthru
    _
  // Predicated region
  $region14: #{_lambda_.1} parent=0 // pred_check
    _
  $region15: #{_lambda_.1} parent=0 // pred_check_branch
    %27 = sbr.rel (0) target = $region17
  $region16: #{_lambda_.1} parent=0 // pred_region
    _
  $region17: #{_lambda_.1} parent=0 // pred_fallthru
    _
  // Predicated region
  $region18: #{_lambda_.1} parent=0 // pred_check
    _
  $region19: #{_lambda_.1} parent=0 // pred_check_branch
    %29 = sbr.rel (0) target = $region21
  $region20: #{_lambda_.1} parent=0 // pred_region
    _
  $region21: #{_lambda_.1} parent=0 // pred_fallthru
    _
  // Predicated region
  $region22: #{_lambda_.1} parent=0 // pred_check
    _
  $region23: #{_lambda_.1} parent=0 // pred_check_branch
    %31 = sbr.rel (0) target = $region25
  $region24: #{_lambda_.1} parent=0 // pred_region
    _
  $region25: #{_lambda_.1} parent=0 // pred_fallthru
    _
  // Predicated region
  $region26: #{_lambda_.1} parent=0 // pred_check
    _
  $region27: #{_lambda_.1} parent=0 // pred_check_branch
    %33 = sbr.rel (0) target = $region29
  $region28: #{_lambda_.1} parent=0 // pred_region
    _
  $region29: #{_lambda_.1} parent=0 // pred_fallthru
    _
  // Predicated region
  $region30: #{_lambda_.1} parent=0 // pred_check
    _
  $region31: #{_lambda_.1} parent=0 // pred_check_branch
    %35 = sbr.rel (0) target = $region33
  $region32: #{_lambda_.1} parent=0 // pred_region
    _
  $region33: #{_lambda_.1} parent=0 // pred_fallthru
    _
  // Predicated region
  $region34: #{_lambda_.1} parent=0 // pred_check
    _
  $region35: #{_lambda_.1} parent=0 // pred_check_branch
    %37 = sbr.rel (0) target = $region37
  $region36: #{_lambda_.1} parent=0 // pred_region
    _
  $region37: #{_lambda_.1} parent=0 // pred_fallthru
    _
  // Predicated region
  $region38: #{_lambda_.1} parent=0 // pred_check
    _
  $region39: #{_lambda_.1} parent=0 // pred_check_branch
    %39 = sbr.rel (0) target = $region41
  $region40: #{_lambda_.1} parent=0 // pred_region
    _
  $region41: #{_lambda_.1} parent=0 // pred_fallthru
    _
  // Predicated region
  $region42: #{_lambda_.1} parent=0 // pred_check
    _
  $region43: #{_lambda_.1} parent=0 // pred_check_branch
    %41 = sbr.rel (0) target = $region45
  $region44: #{_lambda_.1} parent=0 // pred_region
    _
  $region45: #{_lambda_.1} parent=0 // pred_fallthru
    _
  // Predicated region
  $region46: #{_lambda_.1} parent=0 // pred_check
    _
  $region47: #{_lambda_.1} parent=0 // pred_check_branch
    %43 = sbr.rel (0) target = $region49
  $region48: #{_lambda_.1} parent=0 // pred_region
    _
  $region49: #{_lambda_.1} parent=0 // pred_fallthru
    _
  %p46 = scmp.lt.u32.totalorder 1152, 8
  %p47 = pneg %p46
  // Predicated region
  $region50: #{_lambda_.1} parent=0 // pred_check
    _
  $region51: #{_lambda_.1} parent=0 // pred_check_branch
    %49 = sbr.rel (%p46) target = $region53
  $region52: #{_lambda_.1} parent=0 // pred_region
    %s65 = sand.u32 1152, 7
    %p66 = scmp.eq.s32.totalorder %s65, 0
    // Predicated region
    $region65: #{_lambda_.1} parent=52 // pred_check
      %p67 = pneg %p66
    $region66: #{_lambda_.1} parent=52 // pred_check_branch
      %69 = sbr.rel (%p67) target = $region68
    $region67: #{_lambda_.1} parent=52 // pred_region
      loop: start=0, step=1, limit=1
      $region69: #{_lambda_.1} parent=67 // loop_pre_header
        _
      $region70: #{_lambda_.1} parent=67 // loop_header
        %s71 = sphi 0, %s75
        %p72 = scmp.ge.s32.totalorder %s71, 1
        %s76 = sphi %s7, %s7
        %s77 = sphi [#allocation2], [#allocation2]
      $region71: #{_lambda_.1} parent=67 // loop_header_branch
        %74 = sbr.rel (%p72) target = $region75
      $region72: #{_lambda_.1} parent=67 // loop_body
        %v78 = vld [vmem:[%s76] sm:$0xff]
        %79 = vst [vmem:[%s77] sm:$0xff] %v78
        %v80 = vld [vmem:[%s76 + $0x8] sm:$0xff]
        %81 = vst [vmem:[%s77 + $0x8] sm:$0xff] %v80
        %v82 = vld [vmem:[%s76 + $0x10] sm:$0xff]
        %83 = vst [vmem:[%s77 + $0x10] sm:$0xff] %v82
        %v84 = vld [vmem:[%s76 + $0x18] sm:$0xff]
        %85 = vst [vmem:[%s77 + $0x18] sm:$0xff] %v84
        %v86 = vld [vmem:[%s76 + $0x20] sm:$0xff]
        %87 = vst [vmem:[%s77 + $0x20] sm:$0xff] %v86
        %v88 = vld [vmem:[%s76 + $0x28] sm:$0xff]
        %89 = vst [vmem:[%s77 + $0x28] sm:$0xff] %v88
        %v90 = vld [vmem:[%s76 + $0x30] sm:$0xff]
        %91 = vst [vmem:[%s77 + $0x30] sm:$0xff] %v90
        %v92 = vld [vmem:[%s76 + $0x38] sm:$0xff]
        %93 = vst [vmem:[%s77 + $0x38] sm:$0xff] %v92
        %v94 = vld [vmem:[%s76 + $0x40] sm:$0xff]
        %95 = vst [vmem:[%s77 + $0x40] sm:$0xff] %v94
        %v96 = vld [vmem:[%s76 + $0x48] sm:$0xff]
        %97 = vst [vmem:[%s77 + $0x48] sm:$0xff] %v96
        %v98 = vld [vmem:[%s76 + $0x50] sm:$0xff]
        %99 = vst [vmem:[%s77 + $0x50] sm:$0xff] %v98
        %v100 = vld [vmem:[%s76 + $0x58] sm:$0xff]
        %101 = vst [vmem:[%s77 + $0x58] sm:$0xff] %v100
        %v102 = vld [vmem:[%s76 + $0x60] sm:$0xff]
        %103 = vst [vmem:[%s77 + $0x60] sm:$0xff] %v102
        %v104 = vld [vmem:[%s76 + $0x68] sm:$0xff]
        %105 = vst [vmem:[%s77 + $0x68] sm:$0xff] %v104
        %v106 = vld [vmem:[%s76 + $0x70] sm:$0xff]
        %107 = vst [vmem:[%s77 + $0x70] sm:$0xff] %v106
        %v108 = vld [vmem:[%s76 + $0x78] sm:$0xff]
        %109 = vst [vmem:[%s77 + $0x78] sm:$0xff] %v108
        %v110 = vld [vmem:[%s76 + $0x80] sm:$0xff]
        %111 = vst [vmem:[%s77 + $0x80] sm:$0xff] %v110
        %v112 = vld [vmem:[%s76 + $0x88] sm:$0xff]
        %113 = vst [vmem:[%s77 + $0x88] sm:$0xff] %v112
        %v114 = vld [vmem:[%s76 + $0x90] sm:$0xff]
        %115 = vst [vmem:[%s77 + $0x90] sm:$0xff] %v114
        %v116 = vld [vmem:[%s76 + $0x98] sm:$0xff]
        %117 = vst [vmem:[%s77 + $0x98] sm:$0xff] %v116
        %v118 = vld [vmem:[%s76 + $0xa0] sm:$0xff]
        %119 = vst [vmem:[%s77 + $0xa0] sm:$0xff] %v118
        %v120 = vld [vmem:[%s76 + $0xa8] sm:$0xff]
        %121 = vst [vmem:[%s77 + $0xa8] sm:$0xff] %v120
        %v122 = vld [vmem:[%s76 + $0xb0] sm:$0xff]
        %123 = vst [vmem:[%s77 + $0xb0] sm:$0xff] %v122
        %v124 = vld [vmem:[%s76 + $0xb8] sm:$0xff]
        %125 = vst [vmem:[%s77 + $0xb8] sm:$0xff] %v124
        %v126 = vld [vmem:[%s76 + $0xc0] sm:$0xff]
        %127 = vst [vmem:[%s77 + $0xc0] sm:$0xff] %v126
        %v128 = vld [vmem:[%s76 + $0xc8] sm:$0xff]
        %129 = vst [vmem:[%s77 + $0xc8] sm:$0xff] %v128
        %v130 = vld [vmem:[%s76 + $0xd0] sm:$0xff]
        %131 = vst [vmem:[%s77 + $0xd0] sm:$0xff] %v130
        %v132 = vld [vmem:[%s76 + $0xd8] sm:$0xff]
        %133 = vst [vmem:[%s77 + $0xd8] sm:$0xff] %v132
        %v134 = vld [vmem:[%s76 + $0xe0] sm:$0xff]
        %135 = vst [vmem:[%s77 + $0xe0] sm:$0xff] %v134
        %v136 = vld [vmem:[%s76 + $0xe8] sm:$0xff]
        %137 = vst [vmem:[%s77 + $0xe8] sm:$0xff] %v136
        %v138 = vld [vmem:[%s76 + $0xf0] sm:$0xff]
        %139 = vst [vmem:[%s77 + $0xf0] sm:$0xff] %v138
        %v140 = vld [vmem:[%s76 + $0xf8] sm:$0xff]
        %141 = vst [vmem:[%s77 + $0xf8] sm:$0xff] %v140
        %v142 = vld [vmem:[%s76 + $0x100] sm:$0xff]
        %143 = vst [vmem:[%s77 + $0x100] sm:$0xff] %v142
        %v144 = vld [vmem:[%s76 + $0x108] sm:$0xff]
        %145 = vst [vmem:[%s77 + $0x108] sm:$0xff] %v144
        %v146 = vld [vmem:[%s76 + $0x110] sm:$0xff]
        %147 = vst [vmem:[%s77 + $0x110] sm:$0xff] %v146
        %v148 = vld [vmem:[%s76 + $0x118] sm:$0xff]
        %149 = vst [vmem:[%s77 + $0x118] sm:$0xff] %v148
        %v150 = vld [vmem:[%s76 + $0x120] sm:$0xff]
        %151 = vst [vmem:[%s77 + $0x120] sm:$0xff] %v150
        %v152 = vld [vmem:[%s76 + $0x128] sm:$0xff]
        %153 = vst [vmem:[%s77 + $0x128] sm:$0xff] %v152
        %v154 = vld [vmem:[%s76 + $0x130] sm:$0xff]
        %155 = vst [vmem:[%s77 + $0x130] sm:$0xff] %v154
        %v156 = vld [vmem:[%s76 + $0x138] sm:$0xff]
        %157 = vst [vmem:[%s77 + $0x138] sm:$0xff] %v156
        %v158 = vld [vmem:[%s76 + $0x140] sm:$0xff]
        %159 = vst [vmem:[%s77 + $0x140] sm:$0xff] %v158
        %v160 = vld [vmem:[%s76 + $0x148] sm:$0xff]
        %161 = vst [vmem:[%s77 + $0x148] sm:$0xff] %v160
        %v162 = vld [vmem:[%s76 + $0x150] sm:$0xff]
        %163 = vst [vmem:[%s77 + $0x150] sm:$0xff] %v162
        %v164 = vld [vmem:[%s76 + $0x158] sm:$0xff]
        %165 = vst [vmem:[%s77 + $0x158] sm:$0xff] %v164
        %v166 = vld [vmem:[%s76 + $0x160] sm:$0xff]
        %167 = vst [vmem:[%s77 + $0x160] sm:$0xff] %v166
        %v168 = vld [vmem:[%s76 + $0x168] sm:$0xff]
        %169 = vst [vmem:[%s77 + $0x168] sm:$0xff] %v168
        %v170 = vld [vmem:[%s76 + $0x170] sm:$0xff]
        %171 = vst [vmem:[%s77 + $0x170] sm:$0xff] %v170
        %v172 = vld [vmem:[%s76 + $0x178] sm:$0xff]
        %173 = vst [vmem:[%s77 + $0x178] sm:$0xff] %v172
        %v174 = vld [vmem:[%s76 + $0x180] sm:$0xff]
        %175 = vst [vmem:[%s77 + $0x180] sm:$0xff] %v174
        %v176 = vld [vmem:[%s76 + $0x188] sm:$0xff]
        %177 = vst [vmem:[%s77 + $0x188] sm:$0xff] %v176
        %v178 = vld [vmem:[%s76 + $0x190] sm:$0xff]
        %179 = vst [vmem:[%s77 + $0x190] sm:$0xff] %v178
        %v180 = vld [vmem:[%s76 + $0x198] sm:$0xff]
        %181 = vst [vmem:[%s77 + $0x198] sm:$0xff] %v180
        %v182 = vld [vmem:[%s76 + $0x1a0] sm:$0xff]
        %183 = vst [vmem:[%s77 + $0x1a0] sm:$0xff] %v182
        %v184 = vld [vmem:[%s76 + $0x1a8] sm:$0xff]
        %185 = vst [vmem:[%s77 + $0x1a8] sm:$0xff] %v184
        %v186 = vld [vmem:[%s76 + $0x1b0] sm:$0xff]
        %187 = vst [vmem:[%s77 + $0x1b0] sm:$0xff] %v186
        %v188 = vld [vmem:[%s76 + $0x1b8] sm:$0xff]
        %189 = vst [vmem:[%s77 + $0x1b8] sm:$0xff] %v188
        %v190 = vld [vmem:[%s76 + $0x1c0] sm:$0xff]
        %191 = vst [vmem:[%s77 + $0x1c0] sm:$0xff] %v190
        %v192 = vld [vmem:[%s76 + $0x1c8] sm:$0xff]
        %193 = vst [vmem:[%s77 + $0x1c8] sm:$0xff] %v192
        %v194 = vld [vmem:[%s76 + $0x1d0] sm:$0xff]
        %195 = vst [vmem:[%s77 + $0x1d0] sm:$0xff] %v194
        %v196 = vld [vmem:[%s76 + $0x1d8] sm:$0xff]
        %197 = vst [vmem:[%s77 + $0x1d8] sm:$0xff] %v196
        %v198 = vld [vmem:[%s76 + $0x1e0] sm:$0xff]
        %199 = vst [vmem:[%s77 + $0x1e0] sm:$0xff] %v198
        %v200 = vld [vmem:[%s76 + $0x1e8] sm:$0xff]
        %201 = vst [vmem:[%s77 + $0x1e8] sm:$0xff] %v200
        %v202 = vld [vmem:[%s76 + $0x1f0] sm:$0xff]
        %203 = vst [vmem:[%s77 + $0x1f0] sm:$0xff] %v202
        %v204 = vld [vmem:[%s76 + $0x1f8] sm:$0xff]
        %205 = vst [vmem:[%s77 + $0x1f8] sm:$0xff] %v204
        %v206 = vld [vmem:[%s76 + $0x200] sm:$0xff]
        %207 = vst [vmem:[%s77 + $0x200] sm:$0xff] %v206
        %v208 = vld [vmem:[%s76 + $0x208] sm:$0xff]
        %209 = vst [vmem:[%s77 + $0x208] sm:$0xff] %v208
        %v210 = vld [vmem:[%s76 + $0x210] sm:$0xff]
        %211 = vst [vmem:[%s77 + $0x210] sm:$0xff] %v210
        %v212 = vld [vmem:[%s76 + $0x218] sm:$0xff]
        %213 = vst [vmem:[%s77 + $0x218] sm:$0xff] %v212
        %v214 = vld [vmem:[%s76 + $0x220] sm:$0xff]
        %215 = vst [vmem:[%s77 + $0x220] sm:$0xff] %v214
        %v216 = vld [vmem:[%s76 + $0x228] sm:$0xff]
        %217 = vst [vmem:[%s77 + $0x228] sm:$0xff] %v216
        %v218 = vld [vmem:[%s76 + $0x230] sm:$0xff]
        %219 = vst [vmem:[%s77 + $0x230] sm:$0xff] %v218
        %v220 = vld [vmem:[%s76 + $0x238] sm:$0xff]
        %221 = vst [vmem:[%s77 + $0x238] sm:$0xff] %v220
        %v222 = vld [vmem:[%s76 + $0x240] sm:$0xff]
        %223 = vst [vmem:[%s77 + $0x240] sm:$0xff] %v222
        %v224 = vld [vmem:[%s76 + $0x248] sm:$0xff]
        %225 = vst [vmem:[%s77 + $0x248] sm:$0xff] %v224
        %v226 = vld [vmem:[%s76 + $0x250] sm:$0xff]
        %227 = vst [vmem:[%s77 + $0x250] sm:$0xff] %v226
        %v228 = vld [vmem:[%s76 + $0x258] sm:$0xff]
        %229 = vst [vmem:[%s77 + $0x258] sm:$0xff] %v228
        %v230 = vld [vmem:[%s76 + $0x260] sm:$0xff]
        %231 = vst [vmem:[%s77 + $0x260] sm:$0xff] %v230
        %v232 = vld [vmem:[%s76 + $0x268] sm:$0xff]
        %233 = vst [vmem:[%s77 + $0x268] sm:$0xff] %v232
        %v234 = vld [vmem:[%s76 + $0x270] sm:$0xff]
        %235 = vst [vmem:[%s77 + $0x270] sm:$0xff] %v234
        %v236 = vld [vmem:[%s76 + $0x278] sm:$0xff]
        %237 = vst [vmem:[%s77 + $0x278] sm:$0xff] %v236
        %v238 = vld [vmem:[%s76 + $0x280] sm:$0xff]
        %239 = vst [vmem:[%s77 + $0x280] sm:$0xff] %v238
        %v240 = vld [vmem:[%s76 + $0x288] sm:$0xff]
        %241 = vst [vmem:[%s77 + $0x288] sm:$0xff] %v240
        %v242 = vld [vmem:[%s76 + $0x290] sm:$0xff]
        %243 = vst [vmem:[%s77 + $0x290] sm:$0xff] %v242
        %v244 = vld [vmem:[%s76 + $0x298] sm:$0xff]
        %245 = vst [vmem:[%s77 + $0x298] sm:$0xff] %v244
        %v246 = vld [vmem:[%s76 + $0x2a0] sm:$0xff]
        %247 = vst [vmem:[%s77 + $0x2a0] sm:$0xff] %v246
        %v248 = vld [vmem:[%s76 + $0x2a8] sm:$0xff]
        %249 = vst [vmem:[%s77 + $0x2a8] sm:$0xff] %v248
        %v250 = vld [vmem:[%s76 + $0x2b0] sm:$0xff]
        %251 = vst [vmem:[%s77 + $0x2b0] sm:$0xff] %v250
        %v252 = vld [vmem:[%s76 + $0x2b8] sm:$0xff]
        %253 = vst [vmem:[%s77 + $0x2b8] sm:$0xff] %v252
        %v254 = vld [vmem:[%s76 + $0x2c0] sm:$0xff]
        %255 = vst [vmem:[%s77 + $0x2c0] sm:$0xff] %v254
        %v256 = vld [vmem:[%s76 + $0x2c8] sm:$0xff]
        %257 = vst [vmem:[%s77 + $0x2c8] sm:$0xff] %v256
        %v258 = vld [vmem:[%s76 + $0x2d0] sm:$0xff]
        %259 = vst [vmem:[%s77 + $0x2d0] sm:$0xff] %v258
        %v260 = vld [vmem:[%s76 + $0x2d8] sm:$0xff]
        %261 = vst [vmem:[%s77 + $0x2d8] sm:$0xff] %v260
        %v262 = vld [vmem:[%s76 + $0x2e0] sm:$0xff]
        %263 = vst [vmem:[%s77 + $0x2e0] sm:$0xff] %v262
        %v264 = vld [vmem:[%s76 + $0x2e8] sm:$0xff]
        %265 = vst [vmem:[%s77 + $0x2e8] sm:$0xff] %v264
        %v266 = vld [vmem:[%s76 + $0x2f0] sm:$0xff]
        %267 = vst [vmem:[%s77 + $0x2f0] sm:$0xff] %v266
        %v268 = vld [vmem:[%s76 + $0x2f8] sm:$0xff]
        %269 = vst [vmem:[%s77 + $0x2f8] sm:$0xff] %v268
        %v270 = vld [vmem:[%s76 + $0x300] sm:$0xff]
        %271 = vst [vmem:[%s77 + $0x300] sm:$0xff] %v270
        %v272 = vld [vmem:[%s76 + $0x308] sm:$0xff]
        %273 = vst [vmem:[%s77 + $0x308] sm:$0xff] %v272
        %v274 = vld [vmem:[%s76 + $0x310] sm:$0xff]
        %275 = vst [vmem:[%s77 + $0x310] sm:$0xff] %v274
        %v276 = vld [vmem:[%s76 + $0x318] sm:$0xff]
        %277 = vst [vmem:[%s77 + $0x318] sm:$0xff] %v276
        %v278 = vld [vmem:[%s76 + $0x320] sm:$0xff]
        %279 = vst [vmem:[%s77 + $0x320] sm:$0xff] %v278
        %v280 = vld [vmem:[%s76 + $0x328] sm:$0xff]
        %281 = vst [vmem:[%s77 + $0x328] sm:$0xff] %v280
        %v282 = vld [vmem:[%s76 + $0x330] sm:$0xff]
        %283 = vst [vmem:[%s77 + $0x330] sm:$0xff] %v282
        %v284 = vld [vmem:[%s76 + $0x338] sm:$0xff]
        %285 = vst [vmem:[%s77 + $0x338] sm:$0xff] %v284
        %v286 = vld [vmem:[%s76 + $0x340] sm:$0xff]
        %287 = vst [vmem:[%s77 + $0x340] sm:$0xff] %v286
        %v288 = vld [vmem:[%s76 + $0x348] sm:$0xff]
        %289 = vst [vmem:[%s77 + $0x348] sm:$0xff] %v288
        %v290 = vld [vmem:[%s76 + $0x350] sm:$0xff]
        %291 = vst [vmem:[%s77 + $0x350] sm:$0xff] %v290
        %v292 = vld [vmem:[%s76 + $0x358] sm:$0xff]
        %293 = vst [vmem:[%s77 + $0x358] sm:$0xff] %v292
        %v294 = vld [vmem:[%s76 + $0x360] sm:$0xff]
        %295 = vst [vmem:[%s77 + $0x360] sm:$0xff] %v294
        %v296 = vld [vmem:[%s76 + $0x368] sm:$0xff]
        %297 = vst [vmem:[%s77 + $0x368] sm:$0xff] %v296
        %v298 = vld [vmem:[%s76 + $0x370] sm:$0xff]
        %299 = vst [vmem:[%s77 + $0x370] sm:$0xff] %v298
        %v300 = vld [vmem:[%s76 + $0x378] sm:$0xff]
        %301 = vst [vmem:[%s77 + $0x378] sm:$0xff] %v300
        %v302 = vld [vmem:[%s76 + $0x380] sm:$0xff]
        %303 = vst [vmem:[%s77 + $0x380] sm:$0xff] %v302
        %v304 = vld [vmem:[%s76 + $0x388] sm:$0xff]
        %305 = vst [vmem:[%s77 + $0x388] sm:$0xff] %v304
        %v306 = vld [vmem:[%s76 + $0x390] sm:$0xff]
        %307 = vst [vmem:[%s77 + $0x390] sm:$0xff] %v306
        %v308 = vld [vmem:[%s76 + $0x398] sm:$0xff]
        %309 = vst [vmem:[%s77 + $0x398] sm:$0xff] %v308
        %v310 = vld [vmem:[%s76 + $0x3a0] sm:$0xff]
        %311 = vst [vmem:[%s77 + $0x3a0] sm:$0xff] %v310
        %v312 = vld [vmem:[%s76 + $0x3a8] sm:$0xff]
        %313 = vst [vmem:[%s77 + $0x3a8] sm:$0xff] %v312
        %v314 = vld [vmem:[%s76 + $0x3b0] sm:$0xff]
        %315 = vst [vmem:[%s77 + $0x3b0] sm:$0xff] %v314
        %v316 = vld [vmem:[%s76 + $0x3b8] sm:$0xff]
        %317 = vst [vmem:[%s77 + $0x3b8] sm:$0xff] %v316
        %v318 = vld [vmem:[%s76 + $0x3c0] sm:$0xff]
        %319 = vst [vmem:[%s77 + $0x3c0] sm:$0xff] %v318
        %v320 = vld [vmem:[%s76 + $0x3c8] sm:$0xff]
        %321 = vst [vmem:[%s77 + $0x3c8] sm:$0xff] %v320
        %v322 = vld [vmem:[%s76 + $0x3d0] sm:$0xff]
        %323 = vst [vmem:[%s77 + $0x3d0] sm:$0xff] %v322
        %v324 = vld [vmem:[%s76 + $0x3d8] sm:$0xff]
        %325 = vst [vmem:[%s77 + $0x3d8] sm:$0xff] %v324
        %v326 = vld [vmem:[%s76 + $0x3e0] sm:$0xff]
        %327 = vst [vmem:[%s77 + $0x3e0] sm:$0xff] %v326
        %v328 = vld [vmem:[%s76 + $0x3e8] sm:$0xff]
        %329 = vst [vmem:[%s77 + $0x3e8] sm:$0xff] %v328
        %v330 = vld [vmem:[%s76 + $0x3f0] sm:$0xff]
        %331 = vst [vmem:[%s77 + $0x3f0] sm:$0xff] %v330
        %v332 = vld [vmem:[%s76 + $0x3f8] sm:$0xff]
        %333 = vst [vmem:[%s77 + $0x3f8] sm:$0xff] %v332
        %v334 = vld [vmem:[%s76 + $0x400] sm:$0xff]
        %335 = vst [vmem:[%s77 + $0x400] sm:$0xff] %v334
        %v336 = vld [vmem:[%s76 + $0x408] sm:$0xff]
        %337 = vst [vmem:[%s77 + $0x408] sm:$0xff] %v336
        %v338 = vld [vmem:[%s76 + $0x410] sm:$0xff]
        %339 = vst [vmem:[%s77 + $0x410] sm:$0xff] %v338
        %v340 = vld [vmem:[%s76 + $0x418] sm:$0xff]
        %341 = vst [vmem:[%s77 + $0x418] sm:$0xff] %v340
        %v342 = vld [vmem:[%s76 + $0x420] sm:$0xff]
        %343 = vst [vmem:[%s77 + $0x420] sm:$0xff] %v342
        %v344 = vld [vmem:[%s76 + $0x428] sm:$0xff]
        %345 = vst [vmem:[%s77 + $0x428] sm:$0xff] %v344
        %v346 = vld [vmem:[%s76 + $0x430] sm:$0xff]
        %347 = vst [vmem:[%s77 + $0x430] sm:$0xff] %v346
        %v348 = vld [vmem:[%s76 + $0x438] sm:$0xff]
        %349 = vst [vmem:[%s77 + $0x438] sm:$0xff] %v348
        %v350 = vld [vmem:[%s76 + $0x440] sm:$0xff]
        %351 = vst [vmem:[%s77 + $0x440] sm:$0xff] %v350
        %v352 = vld [vmem:[%s76 + $0x448] sm:$0xff]
        %353 = vst [vmem:[%s77 + $0x448] sm:$0xff] %v352
        %v354 = vld [vmem:[%s76 + $0x450] sm:$0xff]
        %355 = vst [vmem:[%s77 + $0x450] sm:$0xff] %v354
        %v356 = vld [vmem:[%s76 + $0x458] sm:$0xff]
        %357 = vst [vmem:[%s77 + $0x458] sm:$0xff] %v356
        %v358 = vld [vmem:[%s76 + $0x460] sm:$0xff]
        %359 = vst [vmem:[%s77 + $0x460] sm:$0xff] %v358
        %v360 = vld [vmem:[%s76 + $0x468] sm:$0xff]
        %361 = vst [vmem:[%s77 + $0x468] sm:$0xff] %v360
        %v362 = vld [vmem:[%s76 + $0x470] sm:$0xff]
        %363 = vst [vmem:[%s77 + $0x470] sm:$0xff] %v362
        %v364 = vld [vmem:[%s76 + $0x478] sm:$0xff]
        %365 = vst [vmem:[%s77 + $0x478] sm:$0xff] %v364
      $region73: #{_lambda_.1} parent=67 // loop_footer
        %s75 = sadd.s32 1, %s71
      $region74: #{_lambda_.1} parent=67 // loop_footer_branch
        %70 = sbr.rel target = $region70
      $region75: #{_lambda_.1} parent=67 // loop_exit
        _
    $region68: #{_lambda_.1} parent=52 // pred_fallthru
      _
    %p366 = pneg %p66
    // Predicated region
    $region76: #{_lambda_.1} parent=52 // pred_check
      _
    $region77: #{_lambda_.1} parent=52 // pred_check_branch
      %368 = sbr.rel (%p66) target = $region79
    $region78: #{_lambda_.1} parent=52 // pred_region
      %s369 = sand.u32 1152, 7
    $region79: #{_lambda_.1} parent=52 // pred_fallthru
      _
  $region53: #{_lambda_.1} parent=0 // pred_fallthru
    _
  // Predicated region
  $region54: #{_lambda_.1} parent=0 // pred_check
    %p50 = pneg %p46
  $region55: #{_lambda_.1} parent=0 // pred_check_branch
    %52 = sbr.rel (%p50) target = $region57
  $region56: #{_lambda_.1} parent=0 // pred_region
    %s53 = sshll.u32 1, 1152
    %s54 = ssub.s32 %s53, 1
    loop: start=0, step=1, limit=1
    $region58: #{_lambda_.1} parent=56 // loop_pre_header
      _
    $region59: #{_lambda_.1} parent=56 // loop_header
      %s56 = sphi 0, %s60
      %p57 = scmp.ge.s32.totalorder %s56, 1
      %s61 = sphi %s7, %s7
      %s62 = sphi [#allocation2], [#allocation2]
    $region60: #{_lambda_.1} parent=56 // loop_header_branch
      %59 = sbr.rel (%p57) target = $region64
    $region61: #{_lambda_.1} parent=56 // loop_body
      %v63 = vld [vmem:[%s61] sm:%s54]
      %64 = vst [vmem:[%s62] sm:%s54] %v63
    $region62: #{_lambda_.1} parent=56 // loop_footer
      %s60 = sadd.s32 1, %s56
    $region63: #{_lambda_.1} parent=56 // loop_footer_branch
      %55 = sbr.rel target = $region59
    $region64: #{_lambda_.1} parent=56 // loop_exit
      _
  $region57: #{_lambda_.1} parent=0 // pred_fallthru
    _
  // Predicated region
  $region80: #{_lambda_.1} parent=0 // pred_check
    _
  $region81: #{_lambda_.1} parent=0 // pred_check_branch
    %372 = sbr.rel (0) target = $region83
  $region82: #{_lambda_.1} parent=0 // pred_region
    %373 = vsyncadd [#allocation5], 18432
  $region83: #{_lambda_.1} parent=0 // pred_fallthru
    _
  %s374 = scalar_lea.sflag [#allocation5], 1
  %p376 = scmp.lt.u32.totalorder 512, 8
  %p377 = pneg %p376
  // Predicated region
  $region84: #{_lambda_.1} parent=0 // pred_check
    _
  $region85: #{_lambda_.1} parent=0 // pred_check_branch
    %379 = sbr.rel (%p376) target = $region87
  $region86: #{_lambda_.1} parent=0 // pred_region
    %s395 = sand.u32 512, 7
    %p396 = scmp.eq.s32.totalorder %s395, 0
    // Predicated region
    $region99: #{_lambda_.1} parent=86 // pred_check
      %p397 = pneg %p396
    $region100: #{_lambda_.1} parent=86 // pred_check_branch
      %399 = sbr.rel (%p397) target = $region102
    $region101: #{_lambda_.1} parent=86 // pred_region
      loop: start=0, step=1, limit=1
      $region103: #{_lambda_.1} parent=101 // loop_pre_header
        _
      $region104: #{_lambda_.1} parent=101 // loop_header
        %s401 = sphi 0, %s405
        %p402 = scmp.ge.s32.totalorder %s401, 1
        %s406 = sphi %s9, %s9
        %s407 = sphi [#allocation3], [#allocation3]
      $region105: #{_lambda_.1} parent=101 // loop_header_branch
        %404 = sbr.rel (%p402) target = $region109
      $region106: #{_lambda_.1} parent=101 // loop_body
        %v408 = vld [vmem:[%s406] sm:$0xff]
        %409 = vst [vmem:[%s407] sm:$0xff] %v408
        %v410 = vld [vmem:[%s406 + $0x8] sm:$0xff]
        %411 = vst [vmem:[%s407 + $0x8] sm:$0xff] %v410
        %v412 = vld [vmem:[%s406 + $0x10] sm:$0xff]
        %413 = vst [vmem:[%s407 + $0x10] sm:$0xff] %v412
        %v414 = vld [vmem:[%s406 + $0x18] sm:$0xff]
        %415 = vst [vmem:[%s407 + $0x18] sm:$0xff] %v414
        %v416 = vld [vmem:[%s406 + $0x20] sm:$0xff]
        %417 = vst [vmem:[%s407 + $0x20] sm:$0xff] %v416
        %v418 = vld [vmem:[%s406 + $0x28] sm:$0xff]
        %419 = vst [vmem:[%s407 + $0x28] sm:$0xff] %v418
        %v420 = vld [vmem:[%s406 + $0x30] sm:$0xff]
        %421 = vst [vmem:[%s407 + $0x30] sm:$0xff] %v420
        %v422 = vld [vmem:[%s406 + $0x38] sm:$0xff]
        %423 = vst [vmem:[%s407 + $0x38] sm:$0xff] %v422
        %v424 = vld [vmem:[%s406 + $0x40] sm:$0xff]
        %425 = vst [vmem:[%s407 + $0x40] sm:$0xff] %v424
        %v426 = vld [vmem:[%s406 + $0x48] sm:$0xff]
        %427 = vst [vmem:[%s407 + $0x48] sm:$0xff] %v426
        %v428 = vld [vmem:[%s406 + $0x50] sm:$0xff]
        %429 = vst [vmem:[%s407 + $0x50] sm:$0xff] %v428
        %v430 = vld [vmem:[%s406 + $0x58] sm:$0xff]
        %431 = vst [vmem:[%s407 + $0x58] sm:$0xff] %v430
        %v432 = vld [vmem:[%s406 + $0x60] sm:$0xff]
        %433 = vst [vmem:[%s407 + $0x60] sm:$0xff] %v432
        %v434 = vld [vmem:[%s406 + $0x68] sm:$0xff]
        %435 = vst [vmem:[%s407 + $0x68] sm:$0xff] %v434
        %v436 = vld [vmem:[%s406 + $0x70] sm:$0xff]
        %437 = vst [vmem:[%s407 + $0x70] sm:$0xff] %v436
        %v438 = vld [vmem:[%s406 + $0x78] sm:$0xff]
        %439 = vst [vmem:[%s407 + $0x78] sm:$0xff] %v438
        %v440 = vld [vmem:[%s406 + $0x80] sm:$0xff]
        %441 = vst [vmem:[%s407 + $0x80] sm:$0xff] %v440
        %v442 = vld [vmem:[%s406 + $0x88] sm:$0xff]
        %443 = vst [vmem:[%s407 + $0x88] sm:$0xff] %v442
        %v444 = vld [vmem:[%s406 + $0x90] sm:$0xff]
        %445 = vst [vmem:[%s407 + $0x90] sm:$0xff] %v444
        %v446 = vld [vmem:[%s406 + $0x98] sm:$0xff]
        %447 = vst [vmem:[%s407 + $0x98] sm:$0xff] %v446
        %v448 = vld [vmem:[%s406 + $0xa0] sm:$0xff]
        %449 = vst [vmem:[%s407 + $0xa0] sm:$0xff] %v448
        %v450 = vld [vmem:[%s406 + $0xa8] sm:$0xff]
        %451 = vst [vmem:[%s407 + $0xa8] sm:$0xff] %v450
        %v452 = vld [vmem:[%s406 + $0xb0] sm:$0xff]
        %453 = vst [vmem:[%s407 + $0xb0] sm:$0xff] %v452
        %v454 = vld [vmem:[%s406 + $0xb8] sm:$0xff]
        %455 = vst [vmem:[%s407 + $0xb8] sm:$0xff] %v454
        %v456 = vld [vmem:[%s406 + $0xc0] sm:$0xff]
        %457 = vst [vmem:[%s407 + $0xc0] sm:$0xff] %v456
        %v458 = vld [vmem:[%s406 + $0xc8] sm:$0xff]
        %459 = vst [vmem:[%s407 + $0xc8] sm:$0xff] %v458
        %v460 = vld [vmem:[%s406 + $0xd0] sm:$0xff]
        %461 = vst [vmem:[%s407 + $0xd0] sm:$0xff] %v460
        %v462 = vld [vmem:[%s406 + $0xd8] sm:$0xff]
        %463 = vst [vmem:[%s407 + $0xd8] sm:$0xff] %v462
        %v464 = vld [vmem:[%s406 + $0xe0] sm:$0xff]
        %465 = vst [vmem:[%s407 + $0xe0] sm:$0xff] %v464
        %v466 = vld [vmem:[%s406 + $0xe8] sm:$0xff]
        %467 = vst [vmem:[%s407 + $0xe8] sm:$0xff] %v466
        %v468 = vld [vmem:[%s406 + $0xf0] sm:$0xff]
        %469 = vst [vmem:[%s407 + $0xf0] sm:$0xff] %v468
        %v470 = vld [vmem:[%s406 + $0xf8] sm:$0xff]
        %471 = vst [vmem:[%s407 + $0xf8] sm:$0xff] %v470
        %v472 = vld [vmem:[%s406 + $0x100] sm:$0xff]
        %473 = vst [vmem:[%s407 + $0x100] sm:$0xff] %v472
        %v474 = vld [vmem:[%s406 + $0x108] sm:$0xff]
        %475 = vst [vmem:[%s407 + $0x108] sm:$0xff] %v474
        %v476 = vld [vmem:[%s406 + $0x110] sm:$0xff]
        %477 = vst [vmem:[%s407 + $0x110] sm:$0xff] %v476
        %v478 = vld [vmem:[%s406 + $0x118] sm:$0xff]
        %479 = vst [vmem:[%s407 + $0x118] sm:$0xff] %v478
        %v480 = vld [vmem:[%s406 + $0x120] sm:$0xff]
        %481 = vst [vmem:[%s407 + $0x120] sm:$0xff] %v480
        %v482 = vld [vmem:[%s406 + $0x128] sm:$0xff]
        %483 = vst [vmem:[%s407 + $0x128] sm:$0xff] %v482
        %v484 = vld [vmem:[%s406 + $0x130] sm:$0xff]
        %485 = vst [vmem:[%s407 + $0x130] sm:$0xff] %v484
        %v486 = vld [vmem:[%s406 + $0x138] sm:$0xff]
        %487 = vst [vmem:[%s407 + $0x138] sm:$0xff] %v486
        %v488 = vld [vmem:[%s406 + $0x140] sm:$0xff]
        %489 = vst [vmem:[%s407 + $0x140] sm:$0xff] %v488
        %v490 = vld [vmem:[%s406 + $0x148] sm:$0xff]
        %491 = vst [vmem:[%s407 + $0x148] sm:$0xff] %v490
        %v492 = vld [vmem:[%s406 + $0x150] sm:$0xff]
        %493 = vst [vmem:[%s407 + $0x150] sm:$0xff] %v492
        %v494 = vld [vmem:[%s406 + $0x158] sm:$0xff]
        %495 = vst [vmem:[%s407 + $0x158] sm:$0xff] %v494
        %v496 = vld [vmem:[%s406 + $0x160] sm:$0xff]
        %497 = vst [vmem:[%s407 + $0x160] sm:$0xff] %v496
        %v498 = vld [vmem:[%s406 + $0x168] sm:$0xff]
        %499 = vst [vmem:[%s407 + $0x168] sm:$0xff] %v498
        %v500 = vld [vmem:[%s406 + $0x170] sm:$0xff]
        %501 = vst [vmem:[%s407 + $0x170] sm:$0xff] %v500
        %v502 = vld [vmem:[%s406 + $0x178] sm:$0xff]
        %503 = vst [vmem:[%s407 + $0x178] sm:$0xff] %v502
        %v504 = vld [vmem:[%s406 + $0x180] sm:$0xff]
        %505 = vst [vmem:[%s407 + $0x180] sm:$0xff] %v504
        %v506 = vld [vmem:[%s406 + $0x188] sm:$0xff]
        %507 = vst [vmem:[%s407 + $0x188] sm:$0xff] %v506
        %v508 = vld [vmem:[%s406 + $0x190] sm:$0xff]
        %509 = vst [vmem:[%s407 + $0x190] sm:$0xff] %v508
        %v510 = vld [vmem:[%s406 + $0x198] sm:$0xff]
        %511 = vst [vmem:[%s407 + $0x198] sm:$0xff] %v510
        %v512 = vld [vmem:[%s406 + $0x1a0] sm:$0xff]
        %513 = vst [vmem:[%s407 + $0x1a0] sm:$0xff] %v512
        %v514 = vld [vmem:[%s406 + $0x1a8] sm:$0xff]
        %515 = vst [vmem:[%s407 + $0x1a8] sm:$0xff] %v514
        %v516 = vld [vmem:[%s406 + $0x1b0] sm:$0xff]
        %517 = vst [vmem:[%s407 + $0x1b0] sm:$0xff] %v516
        %v518 = vld [vmem:[%s406 + $0x1b8] sm:$0xff]
        %519 = vst [vmem:[%s407 + $0x1b8] sm:$0xff] %v518
        %v520 = vld [vmem:[%s406 + $0x1c0] sm:$0xff]
        %521 = vst [vmem:[%s407 + $0x1c0] sm:$0xff] %v520
        %v522 = vld [vmem:[%s406 + $0x1c8] sm:$0xff]
        %523 = vst [vmem:[%s407 + $0x1c8] sm:$0xff] %v522
        %v524 = vld [vmem:[%s406 + $0x1d0] sm:$0xff]
        %525 = vst [vmem:[%s407 + $0x1d0] sm:$0xff] %v524
        %v526 = vld [vmem:[%s406 + $0x1d8] sm:$0xff]
        %527 = vst [vmem:[%s407 + $0x1d8] sm:$0xff] %v526
        %v528 = vld [vmem:[%s406 + $0x1e0] sm:$0xff]
        %529 = vst [vmem:[%s407 + $0x1e0] sm:$0xff] %v528
        %v530 = vld [vmem:[%s406 + $0x1e8] sm:$0xff]
        %531 = vst [vmem:[%s407 + $0x1e8] sm:$0xff] %v530
        %v532 = vld [vmem:[%s406 + $0x1f0] sm:$0xff]
        %533 = vst [vmem:[%s407 + $0x1f0] sm:$0xff] %v532
        %v534 = vld [vmem:[%s406 + $0x1f8] sm:$0xff]
        %535 = vst [vmem:[%s407 + $0x1f8] sm:$0xff] %v534
      $region107: #{_lambda_.1} parent=101 // loop_footer
        %s405 = sadd.s32 1, %s401
      $region108: #{_lambda_.1} parent=101 // loop_footer_branch
        %400 = sbr.rel target = $region104
      $region109: #{_lambda_.1} parent=101 // loop_exit
        _
    $region102: #{_lambda_.1} parent=86 // pred_fallthru
      _
    %p536 = pneg %p396
    // Predicated region
    $region110: #{_lambda_.1} parent=86 // pred_check
      _
    $region111: #{_lambda_.1} parent=86 // pred_check_branch
      %538 = sbr.rel (%p396) target = $region113
    $region112: #{_lambda_.1} parent=86 // pred_region
      %s539 = sand.u32 512, 7
    $region113: #{_lambda_.1} parent=86 // pred_fallthru
      _
  $region87: #{_lambda_.1} parent=0 // pred_fallthru
    _
  // Predicated region
  $region88: #{_lambda_.1} parent=0 // pred_check
    %p380 = pneg %p376
  $region89: #{_lambda_.1} parent=0 // pred_check_branch
    %382 = sbr.rel (%p380) target = $region91
  $region90: #{_lambda_.1} parent=0 // pred_region
    %s383 = sshll.u32 1, 512
    %s384 = ssub.s32 %s383, 1
    loop: start=0, step=1, limit=1
    $region92: #{_lambda_.1} parent=90 // loop_pre_header
      _
    $region93: #{_lambda_.1} parent=90 // loop_header
      %s386 = sphi 0, %s390
      %p387 = scmp.ge.s32.totalorder %s386, 1
      %s391 = sphi %s9, %s9
      %s392 = sphi [#allocation3], [#allocation3]
    $region94: #{_lambda_.1} parent=90 // loop_header_branch
      %389 = sbr.rel (%p387) target = $region98
    $region95: #{_lambda_.1} parent=90 // loop_body
      %v393 = vld [vmem:[%s391] sm:%s384]
      %394 = vst [vmem:[%s392] sm:%s384] %v393
    $region96: #{_lambda_.1} parent=90 // loop_footer
      %s390 = sadd.s32 1, %s386
    $region97: #{_lambda_.1} parent=90 // loop_footer_branch
      %385 = sbr.rel target = $region93
    $region98: #{_lambda_.1} parent=90 // loop_exit
      _
  $region91: #{_lambda_.1} parent=0 // pred_fallthru
    _
  // Predicated region
  $region114: #{_lambda_.1} parent=0 // pred_check
    _
  $region115: #{_lambda_.1} parent=0 // pred_check_branch
    %542 = sbr.rel (0) target = $region117
  $region116: #{_lambda_.1} parent=0 // pred_region
    %543 = vsyncadd %s374, 8192
  $region117: #{_lambda_.1} parent=0 // pred_fallthru
    _
  %s544 = scalar_lea.sflag [#allocation5], 2
  %p546 = scmp.lt.u32.totalorder 1024, 8
  %p547 = pneg %p546
  // Predicated region
  $region118: #{_lambda_.1} parent=0 // pred_check
    _
  $region119: #{_lambda_.1} parent=0 // pred_check_branch
    %549 = sbr.rel (%p546) target = $region121
  $region120: #{_lambda_.1} parent=0 // pred_region
    %s565 = sand.u32 1024, 7
    %p566 = scmp.eq.s32.totalorder %s565, 0
    // Predicated region
    $region133: #{_lambda_.1} parent=120 // pred_check
      %p567 = pneg %p566
    $region134: #{_lambda_.1} parent=120 // pred_check_branch
      %569 = sbr.rel (%p567) target = $region136
    $region135: #{_lambda_.1} parent=120 // pred_region
      loop: start=0, step=1, limit=1
      $region137: #{_lambda_.1} parent=135 // loop_pre_header
        _
      $region138: #{_lambda_.1} parent=135 // loop_header
        %s571 = sphi 0, %s575
        %p572 = scmp.ge.s32.totalorder %s571, 1
        %s576 = sphi %s11, %s11
        %s577 = sphi [#allocation4], [#allocation4]
      $region139: #{_lambda_.1} parent=135 // loop_header_branch
        %574 = sbr.rel (%p572) target = $region143
      $region140: #{_lambda_.1} parent=135 // loop_body
        %v578 = vld [vmem:[%s576] sm:$0xff]
        %579 = vst [vmem:[%s577] sm:$0xff] %v578
        %v580 = vld [vmem:[%s576 + $0x8] sm:$0xff]
        %581 = vst [vmem:[%s577 + $0x8] sm:$0xff] %v580
        %v582 = vld [vmem:[%s576 + $0x10] sm:$0xff]
        %583 = vst [vmem:[%s577 + $0x10] sm:$0xff] %v582
        %v584 = vld [vmem:[%s576 + $0x18] sm:$0xff]
        %585 = vst [vmem:[%s577 + $0x18] sm:$0xff] %v584
        %v586 = vld [vmem:[%s576 + $0x20] sm:$0xff]
        %587 = vst [vmem:[%s577 + $0x20] sm:$0xff] %v586
        %v588 = vld [vmem:[%s576 + $0x28] sm:$0xff]
        %589 = vst [vmem:[%s577 + $0x28] sm:$0xff] %v588
        %v590 = vld [vmem:[%s576 + $0x30] sm:$0xff]
        %591 = vst [vmem:[%s577 + $0x30] sm:$0xff] %v590
        %v592 = vld [vmem:[%s576 + $0x38] sm:$0xff]
        %593 = vst [vmem:[%s577 + $0x38] sm:$0xff] %v592
        %v594 = vld [vmem:[%s576 + $0x40] sm:$0xff]
        %595 = vst [vmem:[%s577 + $0x40] sm:$0xff] %v594
        %v596 = vld [vmem:[%s576 + $0x48] sm:$0xff]
        %597 = vst [vmem:[%s577 + $0x48] sm:$0xff] %v596
        %v598 = vld [vmem:[%s576 + $0x50] sm:$0xff]
        %599 = vst [vmem:[%s577 + $0x50] sm:$0xff] %v598
        %v600 = vld [vmem:[%s576 + $0x58] sm:$0xff]
        %601 = vst [vmem:[%s577 + $0x58] sm:$0xff] %v600
        %v602 = vld [vmem:[%s576 + $0x60] sm:$0xff]
        %603 = vst [vmem:[%s577 + $0x60] sm:$0xff] %v602
        %v604 = vld [vmem:[%s576 + $0x68] sm:$0xff]
        %605 = vst [vmem:[%s577 + $0x68] sm:$0xff] %v604
        %v606 = vld [vmem:[%s576 + $0x70] sm:$0xff]
        %607 = vst [vmem:[%s577 + $0x70] sm:$0xff] %v606
        %v608 = vld [vmem:[%s576 + $0x78] sm:$0xff]
        %609 = vst [vmem:[%s577 + $0x78] sm:$0xff] %v608
        %v610 = vld [vmem:[%s576 + $0x80] sm:$0xff]
        %611 = vst [vmem:[%s577 + $0x80] sm:$0xff] %v610
        %v612 = vld [vmem:[%s576 + $0x88] sm:$0xff]
        %613 = vst [vmem:[%s577 + $0x88] sm:$0xff] %v612
        %v614 = vld [vmem:[%s576 + $0x90] sm:$0xff]
        %615 = vst [vmem:[%s577 + $0x90] sm:$0xff] %v614
        %v616 = vld [vmem:[%s576 + $0x98] sm:$0xff]
        %617 = vst [vmem:[%s577 + $0x98] sm:$0xff] %v616
        %v618 = vld [vmem:[%s576 + $0xa0] sm:$0xff]
        %619 = vst [vmem:[%s577 + $0xa0] sm:$0xff] %v618
        %v620 = vld [vmem:[%s576 + $0xa8] sm:$0xff]
        %621 = vst [vmem:[%s577 + $0xa8] sm:$0xff] %v620
        %v622 = vld [vmem:[%s576 + $0xb0] sm:$0xff]
        %623 = vst [vmem:[%s577 + $0xb0] sm:$0xff] %v622
        %v624 = vld [vmem:[%s576 + $0xb8] sm:$0xff]
        %625 = vst [vmem:[%s577 + $0xb8] sm:$0xff] %v624
        %v626 = vld [vmem:[%s576 + $0xc0] sm:$0xff]
        %627 = vst [vmem:[%s577 + $0xc0] sm:$0xff] %v626
        %v628 = vld [vmem:[%s576 + $0xc8] sm:$0xff]
        %629 = vst [vmem:[%s577 + $0xc8] sm:$0xff] %v628
        %v630 = vld [vmem:[%s576 + $0xd0] sm:$0xff]
        %631 = vst [vmem:[%s577 + $0xd0] sm:$0xff] %v630
        %v632 = vld [vmem:[%s576 + $0xd8] sm:$0xff]
        %633 = vst [vmem:[%s577 + $0xd8] sm:$0xff] %v632
        %v634 = vld [vmem:[%s576 + $0xe0] sm:$0xff]
        %635 = vst [vmem:[%s577 + $0xe0] sm:$0xff] %v634
        %v636 = vld [vmem:[%s576 + $0xe8] sm:$0xff]
        %637 = vst [vmem:[%s577 + $0xe8] sm:$0xff] %v636
        %v638 = vld [vmem:[%s576 + $0xf0] sm:$0xff]
        %639 = vst [vmem:[%s577 + $0xf0] sm:$0xff] %v638
        %v640 = vld [vmem:[%s576 + $0xf8] sm:$0xff]
        %641 = vst [vmem:[%s577 + $0xf8] sm:$0xff] %v640
        %v642 = vld [vmem:[%s576 + $0x100] sm:$0xff]
        %643 = vst [vmem:[%s577 + $0x100] sm:$0xff] %v642
        %v644 = vld [vmem:[%s576 + $0x108] sm:$0xff]
        %645 = vst [vmem:[%s577 + $0x108] sm:$0xff] %v644
        %v646 = vld [vmem:[%s576 + $0x110] sm:$0xff]
        %647 = vst [vmem:[%s577 + $0x110] sm:$0xff] %v646
        %v648 = vld [vmem:[%s576 + $0x118] sm:$0xff]
        %649 = vst [vmem:[%s577 + $0x118] sm:$0xff] %v648
        %v650 = vld [vmem:[%s576 + $0x120] sm:$0xff]
        %651 = vst [vmem:[%s577 + $0x120] sm:$0xff] %v650
        %v652 = vld [vmem:[%s576 + $0x128] sm:$0xff]
        %653 = vst [vmem:[%s577 + $0x128] sm:$0xff] %v652
        %v654 = vld [vmem:[%s576 + $0x130] sm:$0xff]
        %655 = vst [vmem:[%s577 + $0x130] sm:$0xff] %v654
        %v656 = vld [vmem:[%s576 + $0x138] sm:$0xff]
        %657 = vst [vmem:[%s577 + $0x138] sm:$0xff] %v656
        %v658 = vld [vmem:[%s576 + $0x140] sm:$0xff]
        %659 = vst [vmem:[%s577 + $0x140] sm:$0xff] %v658
        %v660 = vld [vmem:[%s576 + $0x148] sm:$0xff]
        %661 = vst [vmem:[%s577 + $0x148] sm:$0xff] %v660
        %v662 = vld [vmem:[%s576 + $0x150] sm:$0xff]
        %663 = vst [vmem:[%s577 + $0x150] sm:$0xff] %v662
        %v664 = vld [vmem:[%s576 + $0x158] sm:$0xff]
        %665 = vst [vmem:[%s577 + $0x158] sm:$0xff] %v664
        %v666 = vld [vmem:[%s576 + $0x160] sm:$0xff]
        %667 = vst [vmem:[%s577 + $0x160] sm:$0xff] %v666
        %v668 = vld [vmem:[%s576 + $0x168] sm:$0xff]
        %669 = vst [vmem:[%s577 + $0x168] sm:$0xff] %v668
        %v670 = vld [vmem:[%s576 + $0x170] sm:$0xff]
        %671 = vst [vmem:[%s577 + $0x170] sm:$0xff] %v670
        %v672 = vld [vmem:[%s576 + $0x178] sm:$0xff]
        %673 = vst [vmem:[%s577 + $0x178] sm:$0xff] %v672
        %v674 = vld [vmem:[%s576 + $0x180] sm:$0xff]
        %675 = vst [vmem:[%s577 + $0x180] sm:$0xff] %v674
        %v676 = vld [vmem:[%s576 + $0x188] sm:$0xff]
        %677 = vst [vmem:[%s577 + $0x188] sm:$0xff] %v676
        %v678 = vld [vmem:[%s576 + $0x190] sm:$0xff]
        %679 = vst [vmem:[%s577 + $0x190] sm:$0xff] %v678
        %v680 = vld [vmem:[%s576 + $0x198] sm:$0xff]
        %681 = vst [vmem:[%s577 + $0x198] sm:$0xff] %v680
        %v682 = vld [vmem:[%s576 + $0x1a0] sm:$0xff]
        %683 = vst [vmem:[%s577 + $0x1a0] sm:$0xff] %v682
        %v684 = vld [vmem:[%s576 + $0x1a8] sm:$0xff]
        %685 = vst [vmem:[%s577 + $0x1a8] sm:$0xff] %v684
        %v686 = vld [vmem:[%s576 + $0x1b0] sm:$0xff]
        %687 = vst [vmem:[%s577 + $0x1b0] sm:$0xff] %v686
        %v688 = vld [vmem:[%s576 + $0x1b8] sm:$0xff]
        %689 = vst [vmem:[%s577 + $0x1b8] sm:$0xff] %v688
        %v690 = vld [vmem:[%s576 + $0x1c0] sm:$0xff]
        %691 = vst [vmem:[%s577 + $0x1c0] sm:$0xff] %v690
        %v692 = vld [vmem:[%s576 + $0x1c8] sm:$0xff]
        %693 = vst [vmem:[%s577 + $0x1c8] sm:$0xff] %v692
        %v694 = vld [vmem:[%s576 + $0x1d0] sm:$0xff]
        %695 = vst [vmem:[%s577 + $0x1d0] sm:$0xff] %v694
        %v696 = vld [vmem:[%s576 + $0x1d8] sm:$0xff]
        %697 = vst [vmem:[%s577 + $0x1d8] sm:$0xff] %v696
        %v698 = vld [vmem:[%s576 + $0x1e0] sm:$0xff]
        %699 = vst [vmem:[%s577 + $0x1e0] sm:$0xff] %v698
        %v700 = vld [vmem:[%s576 + $0x1e8] sm:$0xff]
        %701 = vst [vmem:[%s577 + $0x1e8] sm:$0xff] %v700
        %v702 = vld [vmem:[%s576 + $0x1f0] sm:$0xff]
        %703 = vst [vmem:[%s577 + $0x1f0] sm:$0xff] %v702
        %v704 = vld [vmem:[%s576 + $0x1f8] sm:$0xff]
        %705 = vst [vmem:[%s577 + $0x1f8] sm:$0xff] %v704
        %v706 = vld [vmem:[%s576 + $0x200] sm:$0xff]
        %707 = vst [vmem:[%s577 + $0x200] sm:$0xff] %v706
        %v708 = vld [vmem:[%s576 + $0x208] sm:$0xff]
        %709 = vst [vmem:[%s577 + $0x208] sm:$0xff] %v708
        %v710 = vld [vmem:[%s576 + $0x210] sm:$0xff]
        %711 = vst [vmem:[%s577 + $0x210] sm:$0xff] %v710
        %v712 = vld [vmem:[%s576 + $0x218] sm:$0xff]
        %713 = vst [vmem:[%s577 + $0x218] sm:$0xff] %v712
        %v714 = vld [vmem:[%s576 + $0x220] sm:$0xff]
        %715 = vst [vmem:[%s577 + $0x220] sm:$0xff] %v714
        %v716 = vld [vmem:[%s576 + $0x228] sm:$0xff]
        %717 = vst [vmem:[%s577 + $0x228] sm:$0xff] %v716
        %v718 = vld [vmem:[%s576 + $0x230] sm:$0xff]
        %719 = vst [vmem:[%s577 + $0x230] sm:$0xff] %v718
        %v720 = vld [vmem:[%s576 + $0x238] sm:$0xff]
        %721 = vst [vmem:[%s577 + $0x238] sm:$0xff] %v720
        %v722 = vld [vmem:[%s576 + $0x240] sm:$0xff]
        %723 = vst [vmem:[%s577 + $0x240] sm:$0xff] %v722
        %v724 = vld [vmem:[%s576 + $0x248] sm:$0xff]
        %725 = vst [vmem:[%s577 + $0x248] sm:$0xff] %v724
        %v726 = vld [vmem:[%s576 + $0x250] sm:$0xff]
        %727 = vst [vmem:[%s577 + $0x250] sm:$0xff] %v726
        %v728 = vld [vmem:[%s576 + $0x258] sm:$0xff]
        %729 = vst [vmem:[%s577 + $0x258] sm:$0xff] %v728
        %v730 = vld [vmem:[%s576 + $0x260] sm:$0xff]
        %731 = vst [vmem:[%s577 + $0x260] sm:$0xff] %v730
        %v732 = vld [vmem:[%s576 + $0x268] sm:$0xff]
        %733 = vst [vmem:[%s577 + $0x268] sm:$0xff] %v732
        %v734 = vld [vmem:[%s576 + $0x270] sm:$0xff]
        %735 = vst [vmem:[%s577 + $0x270] sm:$0xff] %v734
        %v736 = vld [vmem:[%s576 + $0x278] sm:$0xff]
        %737 = vst [vmem:[%s577 + $0x278] sm:$0xff] %v736
        %v738 = vld [vmem:[%s576 + $0x280] sm:$0xff]
        %739 = vst [vmem:[%s577 + $0x280] sm:$0xff] %v738
        %v740 = vld [vmem:[%s576 + $0x288] sm:$0xff]
        %741 = vst [vmem:[%s577 + $0x288] sm:$0xff] %v740
        %v742 = vld [vmem:[%s576 + $0x290] sm:$0xff]
        %743 = vst [vmem:[%s577 + $0x290] sm:$0xff] %v742
        %v744 = vld [vmem:[%s576 + $0x298] sm:$0xff]
        %745 = vst [vmem:[%s577 + $0x298] sm:$0xff] %v744
        %v746 = vld [vmem:[%s576 + $0x2a0] sm:$0xff]
        %747 = vst [vmem:[%s577 + $0x2a0] sm:$0xff] %v746
        %v748 = vld [vmem:[%s576 + $0x2a8] sm:$0xff]
        %749 = vst [vmem:[%s577 + $0x2a8] sm:$0xff] %v748
        %v750 = vld [vmem:[%s576 + $0x2b0] sm:$0xff]
        %751 = vst [vmem:[%s577 + $0x2b0] sm:$0xff] %v750
        %v752 = vld [vmem:[%s576 + $0x2b8] sm:$0xff]
        %753 = vst [vmem:[%s577 + $0x2b8] sm:$0xff] %v752
        %v754 = vld [vmem:[%s576 + $0x2c0] sm:$0xff]
        %755 = vst [vmem:[%s577 + $0x2c0] sm:$0xff] %v754
        %v756 = vld [vmem:[%s576 + $0x2c8] sm:$0xff]
        %757 = vst [vmem:[%s577 + $0x2c8] sm:$0xff] %v756
        %v758 = vld [vmem:[%s576 + $0x2d0] sm:$0xff]
        %759 = vst [vmem:[%s577 + $0x2d0] sm:$0xff] %v758
        %v760 = vld [vmem:[%s576 + $0x2d8] sm:$0xff]
        %761 = vst [vmem:[%s577 + $0x2d8] sm:$0xff] %v760
        %v762 = vld [vmem:[%s576 + $0x2e0] sm:$0xff]
        %763 = vst [vmem:[%s577 + $0x2e0] sm:$0xff] %v762
        %v764 = vld [vmem:[%s576 + $0x2e8] sm:$0xff]
        %765 = vst [vmem:[%s577 + $0x2e8] sm:$0xff] %v764
        %v766 = vld [vmem:[%s576 + $0x2f0] sm:$0xff]
        %767 = vst [vmem:[%s577 + $0x2f0] sm:$0xff] %v766
        %v768 = vld [vmem:[%s576 + $0x2f8] sm:$0xff]
        %769 = vst [vmem:[%s577 + $0x2f8] sm:$0xff] %v768
        %v770 = vld [vmem:[%s576 + $0x300] sm:$0xff]
        %771 = vst [vmem:[%s577 + $0x300] sm:$0xff] %v770
        %v772 = vld [vmem:[%s576 + $0x308] sm:$0xff]
        %773 = vst [vmem:[%s577 + $0x308] sm:$0xff] %v772
        %v774 = vld [vmem:[%s576 + $0x310] sm:$0xff]
        %775 = vst [vmem:[%s577 + $0x310] sm:$0xff] %v774
        %v776 = vld [vmem:[%s576 + $0x318] sm:$0xff]
        %777 = vst [vmem:[%s577 + $0x318] sm:$0xff] %v776
        %v778 = vld [vmem:[%s576 + $0x320] sm:$0xff]
        %779 = vst [vmem:[%s577 + $0x320] sm:$0xff] %v778
        %v780 = vld [vmem:[%s576 + $0x328] sm:$0xff]
        %781 = vst [vmem:[%s577 + $0x328] sm:$0xff] %v780
        %v782 = vld [vmem:[%s576 + $0x330] sm:$0xff]
        %783 = vst [vmem:[%s577 + $0x330] sm:$0xff] %v782
        %v784 = vld [vmem:[%s576 + $0x338] sm:$0xff]
        %785 = vst [vmem:[%s577 + $0x338] sm:$0xff] %v784
        %v786 = vld [vmem:[%s576 + $0x340] sm:$0xff]
        %787 = vst [vmem:[%s577 + $0x340] sm:$0xff] %v786
        %v788 = vld [vmem:[%s576 + $0x348] sm:$0xff]
        %789 = vst [vmem:[%s577 + $0x348] sm:$0xff] %v788
        %v790 = vld [vmem:[%s576 + $0x350] sm:$0xff]
        %791 = vst [vmem:[%s577 + $0x350] sm:$0xff] %v790
        %v792 = vld [vmem:[%s576 + $0x358] sm:$0xff]
        %793 = vst [vmem:[%s577 + $0x358] sm:$0xff] %v792
        %v794 = vld [vmem:[%s576 + $0x360] sm:$0xff]
        %795 = vst [vmem:[%s577 + $0x360] sm:$0xff] %v794
        %v796 = vld [vmem:[%s576 + $0x368] sm:$0xff]
        %797 = vst [vmem:[%s577 + $0x368] sm:$0xff] %v796
        %v798 = vld [vmem:[%s576 + $0x370] sm:$0xff]
        %799 = vst [vmem:[%s577 + $0x370] sm:$0xff] %v798
        %v800 = vld [vmem:[%s576 + $0x378] sm:$0xff]
        %801 = vst [vmem:[%s577 + $0x378] sm:$0xff] %v800
        %v802 = vld [vmem:[%s576 + $0x380] sm:$0xff]
        %803 = vst [vmem:[%s577 + $0x380] sm:$0xff] %v802
        %v804 = vld [vmem:[%s576 + $0x388] sm:$0xff]
        %805 = vst [vmem:[%s577 + $0x388] sm:$0xff] %v804
        %v806 = vld [vmem:[%s576 + $0x390] sm:$0xff]
        %807 = vst [vmem:[%s577 + $0x390] sm:$0xff] %v806
        %v808 = vld [vmem:[%s576 + $0x398] sm:$0xff]
        %809 = vst [vmem:[%s577 + $0x398] sm:$0xff] %v808
        %v810 = vld [vmem:[%s576 + $0x3a0] sm:$0xff]
        %811 = vst [vmem:[%s577 + $0x3a0] sm:$0xff] %v810
        %v812 = vld [vmem:[%s576 + $0x3a8] sm:$0xff]
        %813 = vst [vmem:[%s577 + $0x3a8] sm:$0xff] %v812
        %v814 = vld [vmem:[%s576 + $0x3b0] sm:$0xff]
        %815 = vst [vmem:[%s577 + $0x3b0] sm:$0xff] %v814
        %v816 = vld [vmem:[%s576 + $0x3b8] sm:$0xff]
        %817 = vst [vmem:[%s577 + $0x3b8] sm:$0xff] %v816
        %v818 = vld [vmem:[%s576 + $0x3c0] sm:$0xff]
        %819 = vst [vmem:[%s577 + $0x3c0] sm:$0xff] %v818
        %v820 = vld [vmem:[%s576 + $0x3c8] sm:$0xff]
        %821 = vst [vmem:[%s577 + $0x3c8] sm:$0xff] %v820
        %v822 = vld [vmem:[%s576 + $0x3d0] sm:$0xff]
        %823 = vst [vmem:[%s577 + $0x3d0] sm:$0xff] %v822
        %v824 = vld [vmem:[%s576 + $0x3d8] sm:$0xff]
        %825 = vst [vmem:[%s577 + $0x3d8] sm:$0xff] %v824
        %v826 = vld [vmem:[%s576 + $0x3e0] sm:$0xff]
        %827 = vst [vmem:[%s577 + $0x3e0] sm:$0xff] %v826
        %v828 = vld [vmem:[%s576 + $0x3e8] sm:$0xff]
        %829 = vst [vmem:[%s577 + $0x3e8] sm:$0xff] %v828
        %v830 = vld [vmem:[%s576 + $0x3f0] sm:$0xff]
        %831 = vst [vmem:[%s577 + $0x3f0] sm:$0xff] %v830
        %v832 = vld [vmem:[%s576 + $0x3f8] sm:$0xff]
        %833 = vst [vmem:[%s577 + $0x3f8] sm:$0xff] %v832
      $region141: #{_lambda_.1} parent=135 // loop_footer
        %s575 = sadd.s32 1, %s571
      $region142: #{_lambda_.1} parent=135 // loop_footer_branch
        %570 = sbr.rel target = $region138
      $region143: #{_lambda_.1} parent=135 // loop_exit
        _
    $region136: #{_lambda_.1} parent=120 // pred_fallthru
      _
    %p834 = pneg %p566
    // Predicated region
    $region144: #{_lambda_.1} parent=120 // pred_check
      _
    $region145: #{_lambda_.1} parent=120 // pred_check_branch
      %836 = sbr.rel (%p566) target = $region147
    $region146: #{_lambda_.1} parent=120 // pred_region
      %s837 = sand.u32 1024, 7
    $region147: #{_lambda_.1} parent=120 // pred_fallthru
      _
  $region121: #{_lambda_.1} parent=0 // pred_fallthru
    _
  // Predicated region
  $region122: #{_lambda_.1} parent=0 // pred_check
    %p550 = pneg %p546
  $region123: #{_lambda_.1} parent=0 // pred_check_branch
    %552 = sbr.rel (%p550) target = $region125
  $region124: #{_lambda_.1} parent=0 // pred_region
    %s553 = sshll.u32 1, 1024
    %s554 = ssub.s32 %s553, 1
    loop: start=0, step=1, limit=1
    $region126: #{_lambda_.1} parent=124 // loop_pre_header
      _
    $region127: #{_lambda_.1} parent=124 // loop_header
      %s556 = sphi 0, %s560
      %p557 = scmp.ge.s32.totalorder %s556, 1
      %s561 = sphi %s11, %s11
      %s562 = sphi [#allocation4], [#allocation4]
    $region128: #{_lambda_.1} parent=124 // loop_header_branch
      %559 = sbr.rel (%p557) target = $region132
    $region129: #{_lambda_.1} parent=124 // loop_body
      %v563 = vld [vmem:[%s561] sm:%s554]
      %564 = vst [vmem:[%s562] sm:%s554] %v563
    $region130: #{_lambda_.1} parent=124 // loop_footer
      %s560 = sadd.s32 1, %s556
    $region131: #{_lambda_.1} parent=124 // loop_footer_branch
      %555 = sbr.rel target = $region127
    $region132: #{_lambda_.1} parent=124 // loop_exit
      _
  $region125: #{_lambda_.1} parent=0 // pred_fallthru
    _
  // Predicated region
  $region148: #{_lambda_.1} parent=0 // pred_check
    _
  $region149: #{_lambda_.1} parent=0 // pred_check_branch
    %840 = sbr.rel (0) target = $region151
  $region150: #{_lambda_.1} parent=0 // pred_region
    %841 = vsyncadd %s544, 16384
  $region151: #{_lambda_.1} parent=0 // pred_fallthru
    _
  %v842 = vld [vmem:[%s0] sm:$0xf]
  %v843 = vld [vmem:[%s0 + $0x4] sm:$0xf]
  %v844 = vld [vmem:[%s0 + $0x8] sm:$0xf]
  %v845 = vld [vmem:[%s0 + $0xc] sm:$0xf]
  %v846 = vld [vmem:[%s0 + $0x10] sm:$0xf]
  %v847 = vld [vmem:[%s0 + $0x14] sm:$0xf]
  %v848 = vld [vmem:[%s0 + $0x18] sm:$0xf]
  %v849 = vld [vmem:[%s0 + $0x1c] sm:$0xf]
  %v850 = vld [vmem:[%s0 + $0x20] sm:$0xf]
  %v851 = vld [vmem:[%s0 + $0x24] sm:$0xf]
  %v852 = vld [vmem:[%s0 + $0x28] sm:$0xf]
  %v853 = vld [vmem:[%s0 + $0x2c] sm:$0xf]
  %v854 = vld [vmem:[%s0 + $0x30] sm:$0xf]
  %v855 = vld [vmem:[%s0 + $0x34] sm:$0xf]
  %v856 = vld [vmem:[%s0 + $0x38] sm:$0xf]
  %v857 = vld [vmem:[%s0 + $0x3c] sm:$0xf]
  %v858 = vld [vmem:[%s0 + $0x40] sm:$0xf]
  %v859 = vld [vmem:[%s0 + $0x44] sm:$0xf]
  %v860 = vld [vmem:[%s0 + $0x48] sm:$0xf]
  %v861 = vld [vmem:[%s0 + $0x4c] sm:$0xf]
  %v862 = vld [vmem:[%s0 + $0x50] sm:$0xf]
  %v863 = vld [vmem:[%s0 + $0x54] sm:$0xf]
  %v864 = vld [vmem:[%s0 + $0x58] sm:$0xf]
  %v865 = vld [vmem:[%s0 + $0x5c] sm:$0xf]
  %v866 = vld [vmem:[%s0 + $0x60] sm:$0xf]
  %v867 = vld [vmem:[%s0 + $0x64] sm:$0xf]
  %v868 = vld [vmem:[%s0 + $0x68] sm:$0xf]
  %v869 = vld [vmem:[%s0 + $0x6c] sm:$0xf]
  %v870 = vld [vmem:[%s0 + $0x70] sm:$0xf]
  %v871 = vld [vmem:[%s0 + $0x74] sm:$0xf]
  %v872 = vld [vmem:[%s0 + $0x78] sm:$0xf]
  %v873 = vld [vmem:[%s0 + $0x7c] sm:$0xf]
  %v874 = vld [vmem:[%s0 + $0x80] sm:$0xf]
  %v875 = vld [vmem:[%s0 + $0x84] sm:$0xf]
  %v876 = vld [vmem:[%s0 + $0x88] sm:$0xf]
  %v877 = vld [vmem:[%s0 + $0x8c] sm:$0xf]
  %v878 = vld [vmem:[%s0 + $0x90] sm:$0xf]
  %v879 = vld [vmem:[%s0 + $0x94] sm:$0xf]
  %v880 = vld [vmem:[%s0 + $0x98] sm:$0xf]
  %v881 = vld [vmem:[%s0 + $0x9c] sm:$0xf]
  %v882 = vld [vmem:[%s0 + $0xa0] sm:$0xf]
  %v883 = vld [vmem:[%s0 + $0xa4] sm:$0xf]
  %v884 = vld [vmem:[%s0 + $0xa8] sm:$0xf]
  %v885 = vld [vmem:[%s0 + $0xac] sm:$0xf]
  %v886 = vld [vmem:[%s0 + $0xb0] sm:$0xf]
  %v887 = vld [vmem:[%s0 + $0xb4] sm:$0xf]
  %v888 = vld [vmem:[%s0 + $0xb8] sm:$0xf]
  %v889 = vld [vmem:[%s0 + $0xbc] sm:$0xf]
  %v890 = vld [vmem:[%s0 + $0xc0] sm:$0xf]
  %v891 = vld [vmem:[%s0 + $0xc4] sm:$0xf]
  %v892 = vld [vmem:[%s0 + $0xc8] sm:$0xf]
  %v893 = vld [vmem:[%s0 + $0xcc] sm:$0xf]
  %v894 = vld [vmem:[%s0 + $0xd0] sm:$0xf]
  %v895 = vld [vmem:[%s0 + $0xd4] sm:$0xf]
  %v896 = vld [vmem:[%s0 + $0xd8] sm:$0xf]
  %v897 = vld [vmem:[%s0 + $0xdc] sm:$0xf]
  %v898 = vld [vmem:[%s0 + $0xe0] sm:$0xf]
  %v899 = vld [vmem:[%s0 + $0xe4] sm:$0xf]
  %v900 = vld [vmem:[%s0 + $0xe8] sm:$0xf]
  %v901 = vld [vmem:[%s0 + $0xec] sm:$0xf]
  %v902 = vld [vmem:[%s0 + $0xf0] sm:$0xf]
  %v903 = vld [vmem:[%s0 + $0xf4] sm:$0xf]
  %v904 = vld [vmem:[%s0 + $0xf8] sm:$0xf]
  %v905 = vld [vmem:[%s0 + $0xfc] sm:$0xf]
  %v906 = vld [vmem:[%s1] sm:$0xf]
  %v907 = vld [vmem:[%s1 + $0x4] sm:$0xf]
  %v908 = vld [vmem:[%s1 + $0x8] sm:$0xf]
  %v909 = vld [vmem:[%s1 + $0xc] sm:$0xf]
  %v910 = vld [vmem:[%s1 + $0x10] sm:$0x3]
  %v975 = vunpack.c.l.b16 %v842
  %v976 = vunpack.c.l.b16 %v843
  %v977 = vunpack.c.l.b16 %v844
  %v978 = vunpack.c.l.b16 %v845
  %v979 = vunpack.c.l.b16 %v846
  %v980 = vunpack.c.l.b16 %v847
  %v981 = vunpack.c.l.b16 %v848
  %v982 = vunpack.c.l.b16 %v849
  %v983 = vunpack.c.l.b16 %v850
  %v984 = vunpack.c.l.b16 %v851
  %v985 = vunpack.c.l.b16 %v852
  %v986 = vunpack.c.l.b16 %v853
  %v987 = vunpack.c.l.b16 %v854
  %v988 = vunpack.c.l.b16 %v855
  %v989 = vunpack.c.l.b16 %v856
  %v990 = vunpack.c.l.b16 %v857
  %v991 = vunpack.c.l.b16 %v858
  %v992 = vunpack.c.l.b16 %v859
  %v993 = vunpack.c.l.b16 %v860
  %v994 = vunpack.c.l.b16 %v861
  %v995 = vunpack.c.l.b16 %v862
  %v996 = vunpack.c.l.b16 %v863
  %v997 = vunpack.c.l.b16 %v864
  %v998 = vunpack.c.l.b16 %v865
  %v999 = vunpack.c.l.b16 %v866
  %v1000 = vunpack.c.l.b16 %v867
  %v1001 = vunpack.c.l.b16 %v868
  %v1002 = vunpack.c.l.b16 %v869
  %v1003 = vunpack.c.l.b16 %v870
  %v1004 = vunpack.c.l.b16 %v871
  %v1005 = vunpack.c.l.b16 %v872
  %v1006 = vunpack.c.l.b16 %v873
  %v1007 = vunpack.c.l.b16 %v874
  %v1008 = vunpack.c.l.b16 %v875
  %v1009 = vunpack.c.l.b16 %v876
  %v1010 = vunpack.c.l.b16 %v877
  %v1011 = vunpack.c.l.b16 %v878
  %v1012 = vunpack.c.l.b16 %v879
  %v1013 = vunpack.c.l.b16 %v880
  %v1014 = vunpack.c.l.b16 %v881
  %v1015 = vunpack.c.l.b16 %v882
  %v1016 = vunpack.c.l.b16 %v883
  %v1017 = vunpack.c.l.b16 %v884
  %v1018 = vunpack.c.l.b16 %v885
  %v1019 = vunpack.c.l.b16 %v886
  %v1020 = vunpack.c.l.b16 %v887
  %v1021 = vunpack.c.l.b16 %v888
  %v1022 = vunpack.c.l.b16 %v889
  %v1023 = vunpack.c.l.b16 %v890
  %v1024 = vunpack.c.l.b16 %v891
  %v1025 = vunpack.c.l.b16 %v892
  %v1026 = vunpack.c.l.b16 %v893
  %v1027 = vunpack.c.l.b16 %v894
  %v1028 = vunpack.c.l.b16 %v895
  %v1029 = vunpack.c.l.b16 %v896
  %v1030 = vunpack.c.l.b16 %v897
  %v1031 = vunpack.c.l.b16 %v898
  %v1032 = vunpack.c.l.b16 %v899
  %v1033 = vunpack.c.l.b16 %v900
  %v1034 = vunpack.c.l.b16 %v901
  %v1035 = vunpack.c.l.b16 %v902
  %v1036 = vunpack.c.l.b16 %v903
  %v1037 = vunpack.c.l.b16 %v904
  %v1038 = vunpack.c.l.b16 %v905
  %v1039 = vpack.c.b16 %v976, %v975
  %v1040 = vpack.c.b16 %v978, %v977
  %v1041 = vpack.c.b16 %v980, %v979
  %v1042 = vpack.c.b16 %v982, %v981
  %v1043 = vpack.c.b16 %v984, %v983
  %v1044 = vpack.c.b16 %v986, %v985
  %v1045 = vpack.c.b16 %v988, %v987
  %v1046 = vpack.c.b16 %v990, %v989
  %v1047 = vpack.c.b16 %v992, %v991
  %v1048 = vpack.c.b16 %v994, %v993
  %v1049 = vpack.c.b16 %v996, %v995
  %v1050 = vpack.c.b16 %v998, %v997
  %v1051 = vpack.c.b16 %v1000, %v999
  %v1052 = vpack.c.b16 %v1002, %v1001
  %v1053 = vpack.c.b16 %v1004, %v1003
  %v1054 = vpack.c.b16 %v1006, %v1005
  %v1055 = vpack.c.b16 %v1008, %v1007
  %v1056 = vpack.c.b16 %v1010, %v1009
  %v1057 = vpack.c.b16 %v1012, %v1011
  %v1058 = vpack.c.b16 %v1014, %v1013
  %v1059 = vpack.c.b16 %v1016, %v1015
  %v1060 = vpack.c.b16 %v1018, %v1017
  %v1061 = vpack.c.b16 %v1020, %v1019
  %v1062 = vpack.c.b16 %v1022, %v1021
  %v1063 = vpack.c.b16 %v1024, %v1023
  %v1064 = vpack.c.b16 %v1026, %v1025
  %v1065 = vpack.c.b16 %v1028, %v1027
  %v1066 = vpack.c.b16 %v1030, %v1029
  %v1067 = vpack.c.b16 %v1032, %v1031
  %v1068 = vpack.c.b16 %v1034, %v1033
  %v1069 = vpack.c.b16 %v1036, %v1035
  %v1070 = vpack.c.b16 %v1038, %v1037
  %v1076 = vunpack.c.l.b16 %v906
  %v1077 = vunpack.c.l.b16 %v907
  %v1078 = vunpack.c.l.b16 %v908
  %v1079 = vunpack.c.l.b16 %v909
  %v1080 = vunpack.c.l.b16 %v910
  %v1081 = vpack.c.b16 %v1077, %v1076
  %v1082 = vpack.c.b16 %v1079, %v1078
  %v1083 = vpack.c.b16 %v1080, %v1080
  %vm1086 = vcmask 293888
  %v1088 = vsel %vm1086, %v1039, 0
  %v1091 = vsel %vm1086, %v1040, 0
  %v1094 = vsel %vm1086, %v1041, 0
  %v1097 = vsel %vm1086, %v1042, 0
  %v1100 = vsel %vm1086, %v1043, 0
  %v1103 = vsel %vm1086, %v1044, 0
  %v1106 = vsel %vm1086, %v1045, 0
  %v1109 = vsel %vm1086, %v1046, 0
  %v1112 = vsel %vm1086, %v1047, 0
  %v1115 = vsel %vm1086, %v1048, 0
  %v1118 = vsel %vm1086, %v1049, 0
  %v1121 = vsel %vm1086, %v1050, 0
  %v1124 = vsel %vm1086, %v1051, 0
  %v1127 = vsel %vm1086, %v1052, 0
  %v1130 = vsel %vm1086, %v1053, 0
  %v1133 = vsel %vm1086, %v1054, 0
  %v1136 = vsel %vm1086, %v1055, 0
  %v1139 = vsel %vm1086, %v1056, 0
  %v1142 = vsel %vm1086, %v1057, 0
  %v1145 = vsel %vm1086, %v1058, 0
  %v1148 = vsel %vm1086, %v1059, 0
  %v1151 = vsel %vm1086, %v1060, 0
  %v1154 = vsel %vm1086, %v1061, 0
  %v1157 = vsel %vm1086, %v1062, 0
  %v1160 = vsel %vm1086, %v1063, 0
  %v1163 = vsel %vm1086, %v1064, 0
  %v1166 = vsel %vm1086, %v1065, 0
  %v1169 = vsel %vm1086, %v1066, 0
  %v1172 = vsel %vm1086, %v1067, 0
  %v1175 = vsel %vm1086, %v1068, 0
  %v1178 = vsel %vm1086, %v1069, 0
  %v1181 = vsel %vm1086, %v1070, 0
  %vm1183 = vcmask 1041408
  %v1185 = vsel %vm1183, %v1083, 0
  %1187 = vmatprep.subr.bf16.mxu0 0
  %1188 = vmatpush1.bf16.msra.mxu0 0
  %1189 = vmatprep.subr.bf16.mxu0 0
  %1190 = vmatpush1.bf16.msra.mxu0 0
  %1191 = vmatprep.subr.bf16.mxu0 0
  %1192 = vmatpush1.bf16.msra.mxu0 0
  %1193 = vmatprep.subr.bf16.mxu0 0
  %1194 = vmatpush1.bf16.msra.mxu0 0
  %1195 = vmatprep.subr.bf16.mxu0 0
  %1196 = vmatpush1.bf16.msra.mxu0 0
  %1197 = vmatprep.subr.bf16.mxu0 0
  %1198 = vmatpush1.bf16.msra.mxu0 %v1185
  %1199 = vmatprep.subr.bf16.mxu0 0
  %1200 = vmatpush1.bf16.msra.mxu0 %v1082
  %1201 = vmatprep.subr.bf16.mxu0 0
  %1202 = vmatpush1.bf16.msra.mxu0 %v1081
  %1203 = vmatprep.subr.bf16.mxu0 0
  %1204 = vmatpush2.bf16.msra.mxu0 0
  %1205 = vmatprep.subr.bf16.mxu0 0
  %1206 = vmatpush2.bf16.msra.mxu0 0
  %1207 = vmatprep.subr.bf16.mxu0 0
  %1208 = vmatpush2.bf16.msra.mxu0 0
  %1209 = vmatprep.subr.bf16.mxu0 0
  %1210 = vmatpush2.bf16.msra.mxu0 0
  %1211 = vmatprep.subr.bf16.mxu0 0
  %1212 = vmatpush2.bf16.msra.mxu0 0
  %1213 = vmatprep.subr.bf16.mxu0 0
  %1214 = vmatpush2.bf16.msra.mxu0 0
  %1215 = vmatprep.subr.bf16.mxu0 0
  %1216 = vmatpush2.bf16.msra.mxu0 0
  %1217 = vmatprep.subr.bf16.mxu0 0
  %1218 = vmatpush2.bf16.msra.mxu0 0
  %1219 = vmatprep.mubr.bf16.mxu0 0
  %1220 = vmatmul.mubr.bf16.gmra.mxu0 %v1088
  %v1221 = vpop.f32.mrf.mxu0
  %v1222 = vadd.f32 0.0, %v1221
  %v1223 = vpop.f32.mrf.mxu0
  %v1224 = vpop.f32.mrf.mxu0
  %v1225 = vadd.f32 0.0, %v1224
  %v1226 = vpop.f32.mrf.mxu0
  %1227 = vmatprep.mubr.bf16.mxu0 0
  %1228 = vmatmul.mubr.bf16.gmra.mxu0 %v1091
  %v1229 = vpop.f32.mrf.mxu0
  %v1230 = vadd.f32 0.0, %v1229
  %v1231 = vpop.f32.mrf.mxu0
  %v1232 = vpop.f32.mrf.mxu0
  %v1233 = vadd.f32 0.0, %v1232
  %v1234 = vpop.f32.mrf.mxu0
  %1235 = vmatprep.mubr.bf16.mxu0 0
  %1236 = vmatmul.mubr.bf16.gmra.mxu0 %v1094
  %v1237 = vpop.f32.mrf.mxu0
  %v1238 = vadd.f32 0.0, %v1237
  %v1239 = vpop.f32.mrf.mxu0
  %v1240 = vpop.f32.mrf.mxu0
  %v1241 = vadd.f32 0.0, %v1240
  %v1242 = vpop.f32.mrf.mxu0
  %1243 = vmatprep.mubr.bf16.mxu0 0
  %1244 = vmatmul.mubr.bf16.gmra.mxu0 %v1097
  %v1245 = vpop.f32.mrf.mxu0
  %v1246 = vadd.f32 0.0, %v1245
  %v1247 = vpop.f32.mrf.mxu0
  %v1248 = vpop.f32.mrf.mxu0
  %v1249 = vadd.f32 0.0, %v1248
  %v1250 = vpop.f32.mrf.mxu0
  %1251 = vmatprep.mubr.bf16.mxu0 0
  %1252 = vmatmul.mubr.bf16.gmra.mxu0 %v1100
  %v1253 = vpop.f32.mrf.mxu0
  %v1254 = vadd.f32 0.0, %v1253
  %v1255 = vpop.f32.mrf.mxu0
  %v1256 = vpop.f32.mrf.mxu0
  %v1257 = vadd.f32 0.0, %v1256
  %v1258 = vpop.f32.mrf.mxu0
  %1259 = vmatprep.mubr.bf16.mxu0 0
  %1260 = vmatmul.mubr.bf16.gmra.mxu0 %v1103
  %v1261 = vpop.f32.mrf.mxu0
  %v1262 = vadd.f32 0.0, %v1261
  %v1263 = vpop.f32.mrf.mxu0
  %v1264 = vpop.f32.mrf.mxu0
  %v1265 = vadd.f32 0.0, %v1264
  %v1266 = vpop.f32.mrf.mxu0
  %1267 = vmatprep.mubr.bf16.mxu0 0
  %1268 = vmatmul.mubr.bf16.gmra.mxu0 %v1106
  %v1269 = vpop.f32.mrf.mxu0
  %v1270 = vadd.f32 0.0, %v1269
  %v1271 = vpop.f32.mrf.mxu0
  %v1272 = vpop.f32.mrf.mxu0
  %v1273 = vadd.f32 0.0, %v1272
  %v1274 = vpop.f32.mrf.mxu0
  %1275 = vmatprep.mubr.bf16.mxu0 0
  %1276 = vmatmul.mubr.bf16.gmra.mxu0 %v1109
  %v1277 = vpop.f32.mrf.mxu0
  %v1278 = vadd.f32 0.0, %v1277
  %v1279 = vpop.f32.mrf.mxu0
  %v1280 = vpop.f32.mrf.mxu0
  %v1281 = vadd.f32 0.0, %v1280
  %v1282 = vpop.f32.mrf.mxu0
  %1283 = vmatprep.mubr.bf16.mxu0 0
  %1284 = vmatmul.mubr.bf16.gmra.mxu0 %v1112
  %v1285 = vpop.f32.mrf.mxu0
  %v1286 = vadd.f32 0.0, %v1285
  %v1287 = vpop.f32.mrf.mxu0
  %v1288 = vpop.f32.mrf.mxu0
  %v1289 = vadd.f32 0.0, %v1288
  %v1290 = vpop.f32.mrf.mxu0
  %1291 = vmatprep.mubr.bf16.mxu0 0
  %1292 = vmatmul.mubr.bf16.gmra.mxu0 %v1115
  %v1293 = vpop.f32.mrf.mxu0
  %v1294 = vadd.f32 0.0, %v1293
  %v1295 = vpop.f32.mrf.mxu0
  %v1296 = vpop.f32.mrf.mxu0
  %v1297 = vadd.f32 0.0, %v1296
  %v1298 = vpop.f32.mrf.mxu0
  %1299 = vmatprep.mubr.bf16.mxu0 0
  %1300 = vmatmul.mubr.bf16.gmra.mxu0 %v1118
  %v1301 = vpop.f32.mrf.mxu0
  %v1302 = vadd.f32 0.0, %v1301
  %v1303 = vpop.f32.mrf.mxu0
  %v1304 = vpop.f32.mrf.mxu0
  %v1305 = vadd.f32 0.0, %v1304
  %v1306 = vpop.f32.mrf.mxu0
  %1307 = vmatprep.mubr.bf16.mxu0 0
  %1308 = vmatmul.mubr.bf16.gmra.mxu0 %v1121
  %v1309 = vpop.f32.mrf.mxu0
  %v1310 = vadd.f32 0.0, %v1309
  %v1311 = vpop.f32.mrf.mxu0
  %v1312 = vpop.f32.mrf.mxu0
  %v1313 = vadd.f32 0.0, %v1312
  %v1314 = vpop.f32.mrf.mxu0
  %1315 = vmatprep.mubr.bf16.mxu0 0
  %1316 = vmatmul.mubr.bf16.gmra.mxu0 %v1124
  %v1317 = vpop.f32.mrf.mxu0
  %v1318 = vadd.f32 0.0, %v1317
  %v1319 = vpop.f32.mrf.mxu0
  %v1320 = vpop.f32.mrf.mxu0
  %v1321 = vadd.f32 0.0, %v1320
  %v1322 = vpop.f32.mrf.mxu0
  %1323 = vmatprep.mubr.bf16.mxu0 0
  %1324 = vmatmul.mubr.bf16.gmra.mxu0 %v1127
  %v1325 = vpop.f32.mrf.mxu0
  %v1326 = vadd.f32 0.0, %v1325
  %v1327 = vpop.f32.mrf.mxu0
  %v1328 = vpop.f32.mrf.mxu0
  %v1329 = vadd.f32 0.0, %v1328
  %v1330 = vpop.f32.mrf.mxu0
  %1331 = vmatprep.mubr.bf16.mxu0 0
  %1332 = vmatmul.mubr.bf16.gmra.mxu0 %v1130
  %v1333 = vpop.f32.mrf.mxu0
  %v1334 = vadd.f32 0.0, %v1333
  %v1335 = vpop.f32.mrf.mxu0
  %v1336 = vpop.f32.mrf.mxu0
  %v1337 = vadd.f32 0.0, %v1336
  %v1338 = vpop.f32.mrf.mxu0
  %1339 = vmatprep.mubr.bf16.mxu0 0
  %1340 = vmatmul.mubr.bf16.gmra.mxu0 %v1133
  %v1341 = vpop.f32.mrf.mxu0
  %v1342 = vadd.f32 0.0, %v1341
  %v1343 = vpop.f32.mrf.mxu0
  %v1344 = vpop.f32.mrf.mxu0
  %v1345 = vadd.f32 0.0, %v1344
  %v1346 = vpop.f32.mrf.mxu0
  %1347 = vmatprep.mubr.bf16.mxu0 0
  %1348 = vmatmul.mubr.bf16.gmra.mxu0 %v1136
  %v1349 = vpop.f32.mrf.mxu0
  %v1350 = vadd.f32 0.0, %v1349
  %v1351 = vpop.f32.mrf.mxu0
  %v1352 = vpop.f32.mrf.mxu0
  %v1353 = vadd.f32 0.0, %v1352
  %v1354 = vpop.f32.mrf.mxu0
  %1355 = vmatprep.mubr.bf16.mxu0 0
  %1356 = vmatmul.mubr.bf16.gmra.mxu0 %v1139
  %v1357 = vpop.f32.mrf.mxu0
  %v1358 = vadd.f32 0.0, %v1357
  %v1359 = vpop.f32.mrf.mxu0
  %v1360 = vpop.f32.mrf.mxu0
  %v1361 = vadd.f32 0.0, %v1360
  %v1362 = vpop.f32.mrf.mxu0
  %1363 = vmatprep.mubr.bf16.mxu0 0
  %1364 = vmatmul.mubr.bf16.gmra.mxu0 %v1142
  %v1365 = vpop.f32.mrf.mxu0
  %v1366 = vadd.f32 0.0, %v1365
  %v1367 = vpop.f32.mrf.mxu0
  %v1368 = vpop.f32.mrf.mxu0
  %v1369 = vadd.f32 0.0, %v1368
  %v1370 = vpop.f32.mrf.mxu0
  %1371 = vmatprep.mubr.bf16.mxu0 0
  %1372 = vmatmul.mubr.bf16.gmra.mxu0 %v1145
  %v1373 = vpop.f32.mrf.mxu0
  %v1374 = vadd.f32 0.0, %v1373
  %v1375 = vpop.f32.mrf.mxu0
  %v1376 = vpop.f32.mrf.mxu0
  %v1377 = vadd.f32 0.0, %v1376
  %v1378 = vpop.f32.mrf.mxu0
  %1379 = vmatprep.mubr.bf16.mxu0 0
  %1380 = vmatmul.mubr.bf16.gmra.mxu0 %v1148
  %v1381 = vpop.f32.mrf.mxu0
  %v1382 = vadd.f32 0.0, %v1381
  %v1383 = vpop.f32.mrf.mxu0
  %v1384 = vpop.f32.mrf.mxu0
  %v1385 = vadd.f32 0.0, %v1384
  %v1386 = vpop.f32.mrf.mxu0
  %1387 = vmatprep.mubr.bf16.mxu0 0
  %1388 = vmatmul.mubr.bf16.gmra.mxu0 %v1151
  %v1389 = vpop.f32.mrf.mxu0
  %v1390 = vadd.f32 0.0, %v1389
  %v1391 = vpop.f32.mrf.mxu0
  %v1392 = vpop.f32.mrf.mxu0
  %v1393 = vadd.f32 0.0, %v1392
  %v1394 = vpop.f32.mrf.mxu0
  %1395 = vmatprep.mubr.bf16.mxu0 0
  %1396 = vmatmul.mubr.bf16.gmra.mxu0 %v1154
  %v1397 = vpop.f32.mrf.mxu0
  %v1398 = vadd.f32 0.0, %v1397
  %v1399 = vpop.f32.mrf.mxu0
  %v1400 = vpop.f32.mrf.mxu0
  %v1401 = vadd.f32 0.0, %v1400
  %v1402 = vpop.f32.mrf.mxu0
  %1403 = vmatprep.mubr.bf16.mxu0 0
  %1404 = vmatmul.mubr.bf16.gmra.mxu0 %v1157
  %v1405 = vpop.f32.mrf.mxu0
  %v1406 = vadd.f32 0.0, %v1405
  %v1407 = vpop.f32.mrf.mxu0
  %v1408 = vpop.f32.mrf.mxu0
  %v1409 = vadd.f32 0.0, %v1408
  %v1410 = vpop.f32.mrf.mxu0
  %1411 = vmatprep.mubr.bf16.mxu0 0
  %1412 = vmatmul.mubr.bf16.gmra.mxu0 %v1160
  %v1413 = vpop.f32.mrf.mxu0
  %v1414 = vadd.f32 0.0, %v1413
  %v1415 = vpop.f32.mrf.mxu0
  %v1416 = vpop.f32.mrf.mxu0
  %v1417 = vadd.f32 0.0, %v1416
  %v1418 = vpop.f32.mrf.mxu0
  %1419 = vmatprep.mubr.bf16.mxu0 0
  %1420 = vmatmul.mubr.bf16.gmra.mxu0 %v1163
  %v1421 = vpop.f32.mrf.mxu0
  %v1422 = vadd.f32 0.0, %v1421
  %v1423 = vpop.f32.mrf.mxu0
  %v1424 = vpop.f32.mrf.mxu0
  %v1425 = vadd.f32 0.0, %v1424
  %v1426 = vpop.f32.mrf.mxu0
  %1427 = vmatprep.mubr.bf16.mxu0 0
  %1428 = vmatmul.mubr.bf16.gmra.mxu0 %v1166
  %v1429 = vpop.f32.mrf.mxu0
  %v1430 = vadd.f32 0.0, %v1429
  %v1431 = vpop.f32.mrf.mxu0
  %v1432 = vpop.f32.mrf.mxu0
  %v1433 = vadd.f32 0.0, %v1432
  %v1434 = vpop.f32.mrf.mxu0
  %1435 = vmatprep.mubr.bf16.mxu0 0
  %1436 = vmatmul.mubr.bf16.gmra.mxu0 %v1169
  %v1437 = vpop.f32.mrf.mxu0
  %v1438 = vadd.f32 0.0, %v1437
  %v1439 = vpop.f32.mrf.mxu0
  %v1440 = vpop.f32.mrf.mxu0
  %v1441 = vadd.f32 0.0, %v1440
  %v1442 = vpop.f32.mrf.mxu0
  %1443 = vmatprep.mubr.bf16.mxu0 0
  %1444 = vmatmul.mubr.bf16.gmra.mxu0 %v1172
  %v1445 = vpop.f32.mrf.mxu0
  %v1446 = vadd.f32 0.0, %v1445
  %v1447 = vpop.f32.mrf.mxu0
  %v1448 = vpop.f32.mrf.mxu0
  %v1449 = vadd.f32 0.0, %v1448
  %v1450 = vpop.f32.mrf.mxu0
  %1451 = vmatprep.mubr.bf16.mxu0 0
  %1452 = vmatmul.mubr.bf16.gmra.mxu0 %v1175
  %v1453 = vpop.f32.mrf.mxu0
  %v1454 = vadd.f32 0.0, %v1453
  %v1455 = vpop.f32.mrf.mxu0
  %v1456 = vpop.f32.mrf.mxu0
  %v1457 = vadd.f32 0.0, %v1456
  %v1458 = vpop.f32.mrf.mxu0
  %1459 = vmatprep.mubr.bf16.mxu0 0
  %1460 = vmatmul.mubr.bf16.gmra.mxu0 %v1178
  %v1461 = vpop.f32.mrf.mxu0
  %v1462 = vadd.f32 0.0, %v1461
  %v1463 = vpop.f32.mrf.mxu0
  %v1464 = vpop.f32.mrf.mxu0
  %v1465 = vadd.f32 0.0, %v1464
  %v1466 = vpop.f32.mrf.mxu0
  %1467 = vmatprep.mubr.bf16.mxu0 0
  %1468 = vmatmul.mubr.bf16.gmra.mxu0 %v1181
  %v1469 = vpop.f32.mrf.mxu0
  %v1470 = vadd.f32 0.0, %v1469
  %v1471 = vpop.f32.mrf.mxu0
  %v1472 = vpop.f32.mrf.mxu0
  %v1473 = vadd.f32 0.0, %v1472
  %v1474 = vpop.f32.mrf.mxu0
  %1475 = vdwg.mxu0
  %v1476 = vld [vmem:[%s2] sm:$0x3]
  %1477 = vmatprep.subr.mxu0 0.0
  %1478 = vmatpush1.msra.mxu0 %v1281
  %1479 = vmatprep.subr.mxu0 0.0
  %1480 = vmatpush1.msra.mxu0 %v1278
  %1481 = vmatprep.subr.mxu0 0.0
  %1482 = vmatpush1.msra.mxu0 %v1273
  %1483 = vmatprep.subr.mxu0 0.0
  %1484 = vmatpush1.msra.mxu0 %v1270
  %1485 = vmatprep.subr.mxu0 0.0
  %1486 = vmatpush1.msra.mxu0 %v1265
  %1487 = vmatprep.subr.mxu0 0.0
  %1488 = vmatpush1.msra.mxu0 %v1262
  %1489 = vmatprep.subr.mxu0 0.0
  %1490 = vmatpush1.msra.mxu0 %v1257
  %1491 = vmatprep.subr.mxu0 0.0
  %1492 = vmatpush1.msra.mxu0 %v1254
  %1493 = vmatprep.subr.mxu0 0.0
  %1494 = vmatpush1.msra.mxu0 %v1249
  %1495 = vmatprep.subr.mxu0 0.0
  %1496 = vmatpush1.msra.mxu0 %v1246
  %1497 = vmatprep.subr.mxu0 0.0
  %1498 = vmatpush1.msra.mxu0 %v1241
  %1499 = vmatprep.subr.mxu0 0.0
  %1500 = vmatpush1.msra.mxu0 %v1238
  %1501 = vmatprep.subr.mxu0 0.0
  %1502 = vmatpush1.msra.mxu0 %v1233
  %1503 = vmatprep.subr.mxu0 0.0
  %1504 = vmatpush1.msra.mxu0 %v1230
  %1505 = vmatprep.subr.mxu0 0.0
  %1506 = vmatpush1.msra.mxu0 %v1225
  %1507 = vmatprep.subr.mxu0 0.0
  %1508 = vmatpush1.msra.mxu0 %v1222
  %1509 = vmatprep.subr.mxu0 0.0
  %1510 = vmatpush2.msra.mxu0 %v1345
  %1511 = vmatprep.subr.mxu0 0.0
  %1512 = vmatpush2.msra.mxu0 %v1342
  %1513 = vmatprep.subr.mxu0 0.0
  %1514 = vmatpush2.msra.mxu0 %v1337
  %1515 = vmatprep.subr.mxu0 0.0
  %1516 = vmatpush2.msra.mxu0 %v1334
  %1517 = vmatprep.subr.mxu0 0.0
  %1518 = vmatpush2.msra.mxu0 %v1329
  %1519 = vmatprep.subr.mxu0 0.0
  %1520 = vmatpush2.msra.mxu0 %v1326
  %1521 = vmatprep.subr.mxu0 0.0
  %1522 = vmatpush2.msra.mxu0 %v1321
  %1523 = vmatprep.subr.mxu0 0.0
  %1524 = vmatpush2.msra.mxu0 %v1318
  %1525 = vmatprep.subr.mxu0 0.0
  %1526 = vmatpush2.msra.mxu0 %v1313
  %1527 = vmatprep.subr.mxu0 0.0
  %1528 = vmatpush2.msra.mxu0 %v1310
  %1529 = vmatprep.subr.mxu0 0.0
  %1530 = vmatpush2.msra.mxu0 %v1305
  %1531 = vmatprep.subr.mxu0 0.0
  %1532 = vmatpush2.msra.mxu0 %v1302
  %1533 = vmatprep.subr.mxu0 0.0
  %1534 = vmatpush2.msra.mxu0 %v1297
  %1535 = vmatprep.subr.mxu0 0.0
  %1536 = vmatpush2.msra.mxu0 %v1294
  %1537 = vmatprep.subr.mxu0 0.0
  %1538 = vmatpush2.msra.mxu0 %v1289
  %1539 = vmatprep.subr.mxu0 0.0
  %1540 = vmatpush2.msra.mxu0 %v1286
  %1541 = vmatprep.mubr.f32.mxu0 1.0
  %1542 = vmatmul.mubr.f32.gmra.mxu0 1.0
  %v1543 = vpop.f32.mrf.mxu0
  %v1544 = vadd.f32 0.0, %v1543
  %v1545 = vpop.f32.mrf.mxu0
  %1546 = vdwg.mxu0
  %1547 = vmatprep.subr.mxu0 0.0
  %1548 = vmatpush1.msra.mxu0 %v1409
  %1549 = vmatprep.subr.mxu0 0.0
  %1550 = vmatpush1.msra.mxu0 %v1406
  %1551 = vmatprep.subr.mxu0 0.0
  %1552 = vmatpush1.msra.mxu0 %v1401
  %1553 = vmatprep.subr.mxu0 0.0
  %1554 = vmatpush1.msra.mxu0 %v1398
  %1555 = vmatprep.subr.mxu0 0.0
  %1556 = vmatpush1.msra.mxu0 %v1393
  %1557 = vmatprep.subr.mxu0 0.0
  %1558 = vmatpush1.msra.mxu0 %v1390
  %1559 = vmatprep.subr.mxu0 0.0
  %1560 = vmatpush1.msra.mxu0 %v1385
  %1561 = vmatprep.subr.mxu0 0.0
  %1562 = vmatpush1.msra.mxu0 %v1382
  %1563 = vmatprep.subr.mxu0 0.0
  %1564 = vmatpush1.msra.mxu0 %v1377
  %1565 = vmatprep.subr.mxu0 0.0
  %1566 = vmatpush1.msra.mxu0 %v1374
  %1567 = vmatprep.subr.mxu0 0.0
  %1568 = vmatpush1.msra.mxu0 %v1369
  %1569 = vmatprep.subr.mxu0 0.0
  %1570 = vmatpush1.msra.mxu0 %v1366
  %1571 = vmatprep.subr.mxu0 0.0
  %1572 = vmatpush1.msra.mxu0 %v1361
  %1573 = vmatprep.subr.mxu0 0.0
  %1574 = vmatpush1.msra.mxu0 %v1358
  %1575 = vmatprep.subr.mxu0 0.0
  %1576 = vmatpush1.msra.mxu0 %v1353
  %1577 = vmatprep.subr.mxu0 0.0
  %1578 = vmatpush1.msra.mxu0 %v1350
  %1579 = vmatprep.subr.mxu0 0.0
  %1580 = vmatpush2.msra.mxu0 %v1473
  %1581 = vmatprep.subr.mxu0 0.0
  %1582 = vmatpush2.msra.mxu0 %v1470
  %1583 = vmatprep.subr.mxu0 0.0
  %1584 = vmatpush2.msra.mxu0 %v1465
  %1585 = vmatprep.subr.mxu0 0.0
  %1586 = vmatpush2.msra.mxu0 %v1462
  %1587 = vmatprep.subr.mxu0 0.0
  %1588 = vmatpush2.msra.mxu0 %v1457
  %1589 = vmatprep.subr.mxu0 0.0
  %1590 = vmatpush2.msra.mxu0 %v1454
  %1591 = vmatprep.subr.mxu0 0.0
  %1592 = vmatpush2.msra.mxu0 %v1449
  %1593 = vmatprep.subr.mxu0 0.0
  %1594 = vmatpush2.msra.mxu0 %v1446
  %1595 = vmatprep.subr.mxu0 0.0
  %1596 = vmatpush2.msra.mxu0 %v1441
  %1597 = vmatprep.subr.mxu0 0.0
  %1598 = vmatpush2.msra.mxu0 %v1438
  %1599 = vmatprep.subr.mxu0 0.0
  %1600 = vmatpush2.msra.mxu0 %v1433
  %1601 = vmatprep.subr.mxu0 0.0
  %1602 = vmatpush2.msra.mxu0 %v1430
  %1603 = vmatprep.subr.mxu0 0.0
  %1604 = vmatpush2.msra.mxu0 %v1425
  %1605 = vmatprep.subr.mxu0 0.0
  %1606 = vmatpush2.msra.mxu0 %v1422
  %1607 = vmatprep.subr.mxu0 0.0
  %1608 = vmatpush2.msra.mxu0 %v1417
  %1609 = vmatprep.subr.mxu0 0.0
  %1610 = vmatpush2.msra.mxu0 %v1414
  %1611 = vmatprep.mubr.f32.mxu0 1.0
  %1612 = vmatmul.mubr.f32.gmra.mxu0 1.0
  %v1613 = vpop.f32.mrf.mxu0
  %v1614 = vadd.f32 %v1544, %v1613
  %v1615 = vpop.f32.mrf.mxu0
  %1616 = vdwg.mxu0
  %v1617 = vmul.f32 %v1222, %v1222
  %v1618 = vmul.f32 %v1225, %v1225
  %v1619 = vmul.f32 %v1230, %v1230
  %v1620 = vmul.f32 %v1233, %v1233
  %v1621 = vmul.f32 %v1238, %v1238
  %v1622 = vmul.f32 %v1241, %v1241
  %v1623 = vmul.f32 %v1246, %v1246
  %v1624 = vmul.f32 %v1249, %v1249
  %v1625 = vmul.f32 %v1254, %v1254
  %v1626 = vmul.f32 %v1257, %v1257
  %v1627 = vmul.f32 %v1262, %v1262
  %v1628 = vmul.f32 %v1265, %v1265
  %v1629 = vmul.f32 %v1270, %v1270
  %v1630 = vmul.f32 %v1273, %v1273
  %v1631 = vmul.f32 %v1278, %v1278
  %v1632 = vmul.f32 %v1281, %v1281
  %v1633 = vmul.f32 %v1286, %v1286
  %v1634 = vmul.f32 %v1289, %v1289
  %v1635 = vmul.f32 %v1294, %v1294
  %v1636 = vmul.f32 %v1297, %v1297
  %v1637 = vmul.f32 %v1302, %v1302
  %v1638 = vmul.f32 %v1305, %v1305
  %v1639 = vmul.f32 %v1310, %v1310
  %v1640 = vmul.f32 %v1313, %v1313
  %v1641 = vmul.f32 %v1318, %v1318
  %v1642 = vmul.f32 %v1321, %v1321
  %v1643 = vmul.f32 %v1326, %v1326
  %v1644 = vmul.f32 %v1329, %v1329
  %v1645 = vmul.f32 %v1334, %v1334
  %v1646 = vmul.f32 %v1337, %v1337
  %v1647 = vmul.f32 %v1342, %v1342
  %v1648 = vmul.f32 %v1345, %v1345
  %v1649 = vmul.f32 %v1350, %v1350
  %v1650 = vmul.f32 %v1353, %v1353
  %v1651 = vmul.f32 %v1358, %v1358
  %v1652 = vmul.f32 %v1361, %v1361
  %v1653 = vmul.f32 %v1366, %v1366
  %v1654 = vmul.f32 %v1369, %v1369
  %v1655 = vmul.f32 %v1374, %v1374
  %v1656 = vmul.f32 %v1377, %v1377
  %v1657 = vmul.f32 %v1382, %v1382
  %v1658 = vmul.f32 %v1385, %v1385
  %v1659 = vmul.f32 %v1390, %v1390
  %v1660 = vmul.f32 %v1393, %v1393
  %v1661 = vmul.f32 %v1398, %v1398
  %v1662 = vmul.f32 %v1401, %v1401
  %v1663 = vmul.f32 %v1406, %v1406
  %v1664 = vmul.f32 %v1409, %v1409
  %v1665 = vmul.f32 %v1414, %v1414
  %v1666 = vmul.f32 %v1417, %v1417
  %v1667 = vmul.f32 %v1422, %v1422
  %v1668 = vmul.f32 %v1425, %v1425
  %v1669 = vmul.f32 %v1430, %v1430
  %v1670 = vmul.f32 %v1433, %v1433
  %v1671 = vmul.f32 %v1438, %v1438
  %v1672 = vmul.f32 %v1441, %v1441
  %v1673 = vmul.f32 %v1446, %v1446
  %v1674 = vmul.f32 %v1449, %v1449
  %v1675 = vmul.f32 %v1454, %v1454
  %v1676 = vmul.f32 %v1457, %v1457
  %v1677 = vmul.f32 %v1462, %v1462
  %v1678 = vmul.f32 %v1465, %v1465
  %v1679 = vmul.f32 %v1470, %v1470
  %v1680 = vmul.f32 %v1473, %v1473
  %1681 = vmatprep.subr.mxu0 0.0
  %1682 = vmatpush1.msra.mxu0 %v1632
  %1683 = vmatprep.subr.mxu0 0.0
  %1684 = vmatpush1.msra.mxu0 %v1631
  %1685 = vmatprep.subr.mxu0 0.0
  %1686 = vmatpush1.msra.mxu0 %v1630
  %1687 = vmatprep.subr.mxu0 0.0
  %1688 = vmatpush1.msra.mxu0 %v1629
  %1689 = vmatprep.subr.mxu0 0.0
  %1690 = vmatpush1.msra.mxu0 %v1628
  %1691 = vmatprep.subr.mxu0 0.0
  %1692 = vmatpush1.msra.mxu0 %v1627
  %1693 = vmatprep.subr.mxu0 0.0
  %1694 = vmatpush1.msra.mxu0 %v1626
  %1695 = vmatprep.subr.mxu0 0.0
  %1696 = vmatpush1.msra.mxu0 %v1625
  %1697 = vmatprep.subr.mxu0 0.0
  %1698 = vmatpush1.msra.mxu0 %v1624
  %1699 = vmatprep.subr.mxu0 0.0
  %1700 = vmatpush1.msra.mxu0 %v1623
  %1701 = vmatprep.subr.mxu0 0.0
  %1702 = vmatpush1.msra.mxu0 %v1622
  %1703 = vmatprep.subr.mxu0 0.0
  %1704 = vmatpush1.msra.mxu0 %v1621
  %1705 = vmatprep.subr.mxu0 0.0
  %1706 = vmatpush1.msra.mxu0 %v1620
  %1707 = vmatprep.subr.mxu0 0.0
  %1708 = vmatpush1.msra.mxu0 %v1619
  %1709 = vmatprep.subr.mxu0 0.0
  %1710 = vmatpush1.msra.mxu0 %v1618
  %1711 = vmatprep.subr.mxu0 0.0
  %1712 = vmatpush1.msra.mxu0 %v1617
  %1713 = vmatprep.subr.mxu0 0.0
  %1714 = vmatpush2.msra.mxu0 %v1648
  %1715 = vmatprep.subr.mxu0 0.0
  %1716 = vmatpush2.msra.mxu0 %v1647
  %1717 = vmatprep.subr.mxu0 0.0
  %1718 = vmatpush2.msra.mxu0 %v1646
  %1719 = vmatprep.subr.mxu0 0.0
  %1720 = vmatpush2.msra.mxu0 %v1645
  %1721 = vmatprep.subr.mxu0 0.0
  %1722 = vmatpush2.msra.mxu0 %v1644
  %1723 = vmatprep.subr.mxu0 0.0
  %1724 = vmatpush2.msra.mxu0 %v1643
  %1725 = vmatprep.subr.mxu0 0.0
  %1726 = vmatpush2.msra.mxu0 %v1642
  %1727 = vmatprep.subr.mxu0 0.0
  %1728 = vmatpush2.msra.mxu0 %v1641
  %1729 = vmatprep.subr.mxu0 0.0
  %1730 = vmatpush2.msra.mxu0 %v1640
  %1731 = vmatprep.subr.mxu0 0.0
  %1732 = vmatpush2.msra.mxu0 %v1639
  %1733 = vmatprep.subr.mxu0 0.0
  %1734 = vmatpush2.msra.mxu0 %v1638
  %1735 = vmatprep.subr.mxu0 0.0
  %1736 = vmatpush2.msra.mxu0 %v1637
  %1737 = vmatprep.subr.mxu0 0.0
  %1738 = vmatpush2.msra.mxu0 %v1636
  %1739 = vmatprep.subr.mxu0 0.0
  %1740 = vmatpush2.msra.mxu0 %v1635
  %1741 = vmatprep.subr.mxu0 0.0
  %1742 = vmatpush2.msra.mxu0 %v1634
  %1743 = vmatprep.subr.mxu0 0.0
  %1744 = vmatpush2.msra.mxu0 %v1633
  %1745 = vmatprep.mubr.f32.mxu0 1.0
  %1746 = vmatmul.mubr.f32.gmra.mxu0 1.0
  %v1747 = vpop.f32.mrf.mxu0
  %v1748 = vadd.f32 0.0, %v1747
  %v1749 = vpop.f32.mrf.mxu0
  %1750 = vdwg.mxu0
  %1751 = vmatprep.subr.mxu0 0.0
  %1752 = vmatpush1.msra.mxu0 %v1664
  %1753 = vmatprep.subr.mxu0 0.0
  %1754 = vmatpush1.msra.mxu0 %v1663
  %1755 = vmatprep.subr.mxu0 0.0
  %1756 = vmatpush1.msra.mxu0 %v1662
  %1757 = vmatprep.subr.mxu0 0.0
  %1758 = vmatpush1.msra.mxu0 %v1661
  %1759 = vmatprep.subr.mxu0 0.0
  %1760 = vmatpush1.msra.mxu0 %v1660
  %1761 = vmatprep.subr.mxu0 0.0
  %1762 = vmatpush1.msra.mxu0 %v1659
  %1763 = vmatprep.subr.mxu0 0.0
  %1764 = vmatpush1.msra.mxu0 %v1658
  %1765 = vmatprep.subr.mxu0 0.0
  %1766 = vmatpush1.msra.mxu0 %v1657
  %1767 = vmatprep.subr.mxu0 0.0
  %1768 = vmatpush1.msra.mxu0 %v1656
  %1769 = vmatprep.subr.mxu0 0.0
  %1770 = vmatpush1.msra.mxu0 %v1655
  %1771 = vmatprep.subr.mxu0 0.0
  %1772 = vmatpush1.msra.mxu0 %v1654
  %1773 = vmatprep.subr.mxu0 0.0
  %1774 = vmatpush1.msra.mxu0 %v1653
  %1775 = vmatprep.subr.mxu0 0.0
  %1776 = vmatpush1.msra.mxu0 %v1652
  %1777 = vmatprep.subr.mxu0 0.0
  %1778 = vmatpush1.msra.mxu0 %v1651
  %1779 = vmatprep.subr.mxu0 0.0
  %1780 = vmatpush1.msra.mxu0 %v1650
  %1781 = vmatprep.subr.mxu0 0.0
  %1782 = vmatpush1.msra.mxu0 %v1649
  %1783 = vmatprep.subr.mxu0 0.0
  %1784 = vmatpush2.msra.mxu0 %v1680
  %1785 = vmatprep.subr.mxu0 0.0
  %1786 = vmatpush2.msra.mxu0 %v1679
  %1787 = vmatprep.subr.mxu0 0.0
  %1788 = vmatpush2.msra.mxu0 %v1678
  %1789 = vmatprep.subr.mxu0 0.0
  %1790 = vmatpush2.msra.mxu0 %v1677
  %1791 = vmatprep.subr.mxu0 0.0
  %1792 = vmatpush2.msra.mxu0 %v1676
  %1793 = vmatprep.subr.mxu0 0.0
  %1794 = vmatpush2.msra.mxu0 %v1675
  %1795 = vmatprep.subr.mxu0 0.0
  %1796 = vmatpush2.msra.mxu0 %v1674
  %1797 = vmatprep.subr.mxu0 0.0
  %1798 = vmatpush2.msra.mxu0 %v1673
  %1799 = vmatprep.subr.mxu0 0.0
  %1800 = vmatpush2.msra.mxu0 %v1672
  %1801 = vmatprep.subr.mxu0 0.0
  %1802 = vmatpush2.msra.mxu0 %v1671
  %1803 = vmatprep.subr.mxu0 0.0
  %1804 = vmatpush2.msra.mxu0 %v1670
  %1805 = vmatprep.subr.mxu0 0.0
  %1806 = vmatpush2.msra.mxu0 %v1669
  %1807 = vmatprep.subr.mxu0 0.0
  %1808 = vmatpush2.msra.mxu0 %v1668
  %1809 = vmatprep.subr.mxu0 0.0
  %1810 = vmatpush2.msra.mxu0 %v1667
  %1811 = vmatprep.subr.mxu0 0.0
  %1812 = vmatpush2.msra.mxu0 %v1666
  %1813 = vmatprep.subr.mxu0 0.0
  %1814 = vmatpush2.msra.mxu0 %v1665
  %1815 = vmatprep.mubr.f32.mxu0 1.0
  %1816 = vmatmul.mubr.f32.gmra.mxu0 1.0
  %v1817 = vpop.f32.mrf.mxu0
  %v1818 = vadd.f32 %v1748, %v1817
  %v1819 = vpop.f32.mrf.mxu0
  %1820 = vdwg.mxu0
  %v1821 = vmul.f32 %v1614, 0.001953125
  %v1822 = vmul.f32 %v1818, 0.001953125
  %v1823 = vmul.f32 %v1821, %v1821
  %v1824 = vsub.f32 %v1822, %v1823
  %v1825 = vmax.f32 %v1824, 0.0
  %v1826 = vadd.f32 %v1825, 1e-05
  %v1827 = vrsqrt.pop %v1826
  %v1828 = vlaneseq
  %v1829 = vshrl.u32 %v1828, 7
  %v1830 = vsub.s32 0, %v1829
  %v1831 = vrot.slane %v1821, %v1830
  %v1832 = vsub.f32 %v1222, %v1831
  %v1833 = vsub.f32 %v1225, %v1831
  %v1834 = vsub.f32 %v1230, %v1831
  %v1835 = vsub.f32 %v1233, %v1831
  %v1836 = vsub.f32 %v1238, %v1831
  %v1837 = vsub.f32 %v1241, %v1831
  %v1838 = vsub.f32 %v1246, %v1831
  %v1839 = vsub.f32 %v1249, %v1831
  %v1840 = vsub.f32 %v1254, %v1831
  %v1841 = vsub.f32 %v1257, %v1831
  %v1842 = vsub.f32 %v1262, %v1831
  %v1843 = vsub.f32 %v1265, %v1831
  %v1844 = vsub.f32 %v1270, %v1831
  %v1845 = vsub.f32 %v1273, %v1831
  %v1846 = vsub.f32 %v1278, %v1831
  %v1847 = vsub.f32 %v1281, %v1831
  %v1848 = vsub.f32 %v1286, %v1831
  %v1849 = vsub.f32 %v1289, %v1831
  %v1850 = vsub.f32 %v1294, %v1831
  %v1851 = vsub.f32 %v1297, %v1831
  %v1852 = vsub.f32 %v1302, %v1831
  %v1853 = vsub.f32 %v1305, %v1831
  %v1854 = vsub.f32 %v1310, %v1831
  %v1855 = vsub.f32 %v1313, %v1831
  %v1856 = vsub.f32 %v1318, %v1831
  %v1857 = vsub.f32 %v1321, %v1831
  %v1858 = vsub.f32 %v1326, %v1831
  %v1859 = vsub.f32 %v1329, %v1831
  %v1860 = vsub.f32 %v1334, %v1831
  %v1861 = vsub.f32 %v1337, %v1831
  %v1862 = vsub.f32 %v1342, %v1831
  %v1863 = vsub.f32 %v1345, %v1831
  %v1864 = vsub.f32 %v1350, %v1831
  %v1865 = vsub.f32 %v1353, %v1831
  %v1866 = vsub.f32 %v1358, %v1831
  %v1867 = vsub.f32 %v1361, %v1831
  %v1868 = vsub.f32 %v1366, %v1831
  %v1869 = vsub.f32 %v1369, %v1831
  %v1870 = vsub.f32 %v1374, %v1831
  %v1871 = vsub.f32 %v1377, %v1831
  %v1872 = vsub.f32 %v1382, %v1831
  %v1873 = vsub.f32 %v1385, %v1831
  %v1874 = vsub.f32 %v1390, %v1831
  %v1875 = vsub.f32 %v1393, %v1831
  %v1876 = vsub.f32 %v1398, %v1831
  %v1877 = vsub.f32 %v1401, %v1831
  %v1878 = vsub.f32 %v1406, %v1831
  %v1879 = vsub.f32 %v1409, %v1831
  %v1880 = vsub.f32 %v1414, %v1831
  %v1881 = vsub.f32 %v1417, %v1831
  %v1882 = vsub.f32 %v1422, %v1831
  %v1883 = vsub.f32 %v1425, %v1831
  %v1884 = vsub.f32 %v1430, %v1831
  %v1885 = vsub.f32 %v1433, %v1831
  %v1886 = vsub.f32 %v1438, %v1831
  %v1887 = vsub.f32 %v1441, %v1831
  %v1888 = vsub.f32 %v1446, %v1831
  %v1889 = vsub.f32 %v1449, %v1831
  %v1890 = vsub.f32 %v1454, %v1831
  %v1891 = vsub.f32 %v1457, %v1831
  %v1892 = vsub.f32 %v1462, %v1831
  %v1893 = vsub.f32 %v1465, %v1831
  %v1894 = vsub.f32 %v1470, %v1831
  %v1895 = vsub.f32 %v1473, %v1831
  %v1896 = vmul.f32 %v1827, %v1476
  %v1897 = vlaneseq
  %v1898 = vshrl.u32 %v1897, 7
  %v1899 = vsub.s32 0, %v1898
  %v1900 = vrot.slane %v1896, %v1899
  %v1901 = vmul.f32 %v1832, %v1900
  %v1902 = vmul.f32 %v1833, %v1900
  %v1903 = vmul.f32 %v1834, %v1900
  %v1904 = vmul.f32 %v1835, %v1900
  %v1905 = vmul.f32 %v1836, %v1900
  %v1906 = vmul.f32 %v1837, %v1900
  %v1907 = vmul.f32 %v1838, %v1900
  %v1908 = vmul.f32 %v1839, %v1900
  %v1909 = vmul.f32 %v1840, %v1900
  %v1910 = vmul.f32 %v1841, %v1900
  %v1911 = vmul.f32 %v1842, %v1900
  %v1912 = vmul.f32 %v1843, %v1900
  %v1913 = vmul.f32 %v1844, %v1900
  %v1914 = vmul.f32 %v1845, %v1900
  %v1915 = vmul.f32 %v1846, %v1900
  %v1916 = vmul.f32 %v1847, %v1900
  %v1917 = vmul.f32 %v1848, %v1900
  %v1918 = vmul.f32 %v1849, %v1900
  %v1919 = vmul.f32 %v1850, %v1900
  %v1920 = vmul.f32 %v1851, %v1900
  %v1921 = vmul.f32 %v1852, %v1900
  %v1922 = vmul.f32 %v1853, %v1900
  %v1923 = vmul.f32 %v1854, %v1900
  %v1924 = vmul.f32 %v1855, %v1900
  %v1925 = vmul.f32 %v1856, %v1900
  %v1926 = vmul.f32 %v1857, %v1900
  %v1927 = vmul.f32 %v1858, %v1900
  %v1928 = vmul.f32 %v1859, %v1900
  %v1929 = vmul.f32 %v1860, %v1900
  %v1930 = vmul.f32 %v1861, %v1900
  %v1931 = vmul.f32 %v1862, %v1900
  %v1932 = vmul.f32 %v1863, %v1900
  %v1933 = vmul.f32 %v1864, %v1900
  %v1934 = vmul.f32 %v1865, %v1900
  %v1935 = vmul.f32 %v1866, %v1900
  %v1936 = vmul.f32 %v1867, %v1900
  %v1937 = vmul.f32 %v1868, %v1900
  %v1938 = vmul.f32 %v1869, %v1900
  %v1939 = vmul.f32 %v1870, %v1900
  %v1940 = vmul.f32 %v1871, %v1900
  %v1941 = vmul.f32 %v1872, %v1900
  %v1942 = vmul.f32 %v1873, %v1900
  %v1943 = vmul.f32 %v1874, %v1900
  %v1944 = vmul.f32 %v1875, %v1900
  %v1945 = vmul.f32 %v1876, %v1900
  %v1946 = vmul.f32 %v1877, %v1900
  %v1947 = vmul.f32 %v1878, %v1900
  %v1948 = vmul.f32 %v1879, %v1900
  %v1949 = vmul.f32 %v1880, %v1900
  %v1950 = vmul.f32 %v1881, %v1900
  %v1951 = vmul.f32 %v1882, %v1900
  %v1952 = vmul.f32 %v1883, %v1900
  %v1953 = vmul.f32 %v1884, %v1900
  %v1954 = vmul.f32 %v1885, %v1900
  %v1955 = vmul.f32 %v1886, %v1900
  %v1956 = vmul.f32 %v1887, %v1900
  %v1957 = vmul.f32 %v1888, %v1900
  %v1958 = vmul.f32 %v1889, %v1900
  %v1959 = vmul.f32 %v1890, %v1900
  %v1960 = vmul.f32 %v1891, %v1900
  %v1961 = vmul.f32 %v1892, %v1900
  %v1962 = vmul.f32 %v1893, %v1900
  %v1963 = vmul.f32 %v1894, %v1900
  %v1964 = vmul.f32 %v1895, %v1900
  %v1965 = vlaneseq
  %v1966 = vshrl.u32 %v1965, 7
  %v1967 = vsub.s32 1, %v1966
  %v1968 = vrot.slane %v1476, %v1967
  %v1969 = vadd.f32 %v1901, %v1968
  %v1970 = vadd.f32 %v1902, %v1968
  %v1971 = vadd.f32 %v1903, %v1968
  %v1972 = vadd.f32 %v1904, %v1968
  %v1973 = vadd.f32 %v1905, %v1968
  %v1974 = vadd.f32 %v1906, %v1968
  %v1975 = vadd.f32 %v1907, %v1968
  %v1976 = vadd.f32 %v1908, %v1968
  %v1977 = vadd.f32 %v1909, %v1968
  %v1978 = vadd.f32 %v1910, %v1968
  %v1979 = vadd.f32 %v1911, %v1968
  %v1980 = vadd.f32 %v1912, %v1968
  %v1981 = vadd.f32 %v1913, %v1968
  %v1982 = vadd.f32 %v1914, %v1968
  %v1983 = vadd.f32 %v1915, %v1968
  %v1984 = vadd.f32 %v1916, %v1968
  %v1985 = vadd.f32 %v1917, %v1968
  %v1986 = vadd.f32 %v1918, %v1968
  %v1987 = vadd.f32 %v1919, %v1968
  %v1988 = vadd.f32 %v1920, %v1968
  %v1989 = vadd.f32 %v1921, %v1968
  %v1990 = vadd.f32 %v1922, %v1968
  %v1991 = vadd.f32 %v1923, %v1968
  %v1992 = vadd.f32 %v1924, %v1968
  %v1993 = vadd.f32 %v1925, %v1968
  %v1994 = vadd.f32 %v1926, %v1968
  %v1995 = vadd.f32 %v1927, %v1968
  %v1996 = vadd.f32 %v1928, %v1968
  %v1997 = vadd.f32 %v1929, %v1968
  %v1998 = vadd.f32 %v1930, %v1968
  %v1999 = vadd.f32 %v1931, %v1968
  %v2000 = vadd.f32 %v1932, %v1968
  %v2001 = vadd.f32 %v1933, %v1968
  %v2002 = vadd.f32 %v1934, %v1968
  %v2003 = vadd.f32 %v1935, %v1968
  %v2004 = vadd.f32 %v1936, %v1968
  %v2005 = vadd.f32 %v1937, %v1968
  %v2006 = vadd.f32 %v1938, %v1968
  %v2007 = vadd.f32 %v1939, %v1968
  %v2008 = vadd.f32 %v1940, %v1968
  %v2009 = vadd.f32 %v1941, %v1968
  %v2010 = vadd.f32 %v1942, %v1968
  %v2011 = vadd.f32 %v1943, %v1968
  %v2012 = vadd.f32 %v1944, %v1968
  %v2013 = vadd.f32 %v1945, %v1968
  %v2014 = vadd.f32 %v1946, %v1968
  %v2015 = vadd.f32 %v1947, %v1968
  %v2016 = vadd.f32 %v1948, %v1968
  %v2017 = vadd.f32 %v1949, %v1968
  %v2018 = vadd.f32 %v1950, %v1968
  %v2019 = vadd.f32 %v1951, %v1968
  %v2020 = vadd.f32 %v1952, %v1968
  %v2021 = vadd.f32 %v1953, %v1968
  %v2022 = vadd.f32 %v1954, %v1968
  %v2023 = vadd.f32 %v1955, %v1968
  %v2024 = vadd.f32 %v1956, %v1968
  %v2025 = vadd.f32 %v1957, %v1968
  %v2026 = vadd.f32 %v1958, %v1968
  %v2027 = vadd.f32 %v1959, %v1968
  %v2028 = vadd.f32 %v1960, %v1968
  %v2029 = vadd.f32 %v1961, %v1968
  %v2030 = vadd.f32 %v1962, %v1968
  %v2031 = vadd.f32 %v1963, %v1968
  %v2032 = vadd.f32 %v1964, %v1968
  %v2033 = vmax.f32 %v1969, 0.0
  %v2034 = vmax.f32 %v1970, 0.0
  %v2035 = vmax.f32 %v1971, 0.0
  %v2036 = vmax.f32 %v1972, 0.0
  %v2037 = vmax.f32 %v1973, 0.0
  %v2038 = vmax.f32 %v1974, 0.0
  %v2039 = vmax.f32 %v1975, 0.0
  %v2040 = vmax.f32 %v1976, 0.0
  %v2041 = vmax.f32 %v1977, 0.0
  %v2042 = vmax.f32 %v1978, 0.0
  %v2043 = vmax.f32 %v1979, 0.0
  %v2044 = vmax.f32 %v1980, 0.0
  %v2045 = vmax.f32 %v1981, 0.0
  %v2046 = vmax.f32 %v1982, 0.0
  %v2047 = vmax.f32 %v1983, 0.0
  %v2048 = vmax.f32 %v1984, 0.0
  %v2049 = vmax.f32 %v1985, 0.0
  %v2050 = vmax.f32 %v1986, 0.0
  %v2051 = vmax.f32 %v1987, 0.0
  %v2052 = vmax.f32 %v1988, 0.0
  %v2053 = vmax.f32 %v1989, 0.0
  %v2054 = vmax.f32 %v1990, 0.0
  %v2055 = vmax.f32 %v1991, 0.0
  %v2056 = vmax.f32 %v1992, 0.0
  %v2057 = vmax.f32 %v1993, 0.0
  %v2058 = vmax.f32 %v1994, 0.0
  %v2059 = vmax.f32 %v1995, 0.0
  %v2060 = vmax.f32 %v1996, 0.0
  %v2061 = vmax.f32 %v1997, 0.0
  %v2062 = vmax.f32 %v1998, 0.0
  %v2063 = vmax.f32 %v1999, 0.0
  %v2064 = vmax.f32 %v2000, 0.0
  %v2065 = vmax.f32 %v2001, 0.0
  %v2066 = vmax.f32 %v2002, 0.0
  %v2067 = vmax.f32 %v2003, 0.0
  %v2068 = vmax.f32 %v2004, 0.0
  %v2069 = vmax.f32 %v2005, 0.0
  %v2070 = vmax.f32 %v2006, 0.0
  %v2071 = vmax.f32 %v2007, 0.0
  %v2072 = vmax.f32 %v2008, 0.0
  %v2073 = vmax.f32 %v2009, 0.0
  %v2074 = vmax.f32 %v2010, 0.0
  %v2075 = vmax.f32 %v2011, 0.0
  %v2076 = vmax.f32 %v2012, 0.0
  %v2077 = vmax.f32 %v2013, 0.0
  %v2078 = vmax.f32 %v2014, 0.0
  %v2079 = vmax.f32 %v2015, 0.0
  %v2080 = vmax.f32 %v2016, 0.0
  %v2081 = vmax.f32 %v2017, 0.0
  %v2082 = vmax.f32 %v2018, 0.0
  %v2083 = vmax.f32 %v2019, 0.0
  %v2084 = vmax.f32 %v2020, 0.0
  %v2085 = vmax.f32 %v2021, 0.0
  %v2086 = vmax.f32 %v2022, 0.0
  %v2087 = vmax.f32 %v2023, 0.0
  %v2088 = vmax.f32 %v2024, 0.0
  %v2089 = vmax.f32 %v2025, 0.0
  %v2090 = vmax.f32 %v2026, 0.0
  %v2091 = vmax.f32 %v2027, 0.0
  %v2092 = vmax.f32 %v2028, 0.0
  %v2093 = vmax.f32 %v2029, 0.0
  %v2094 = vmax.f32 %v2030, 0.0
  %v2095 = vmax.f32 %v2031, 0.0
  %v2096 = vmax.f32 %v2032, 0.0
  %v2097 = vmax.f32 %v2033, %v2049
  %v2098 = vmax.f32 %v2034, %v2050
  %v2099 = vmax.f32 %v2035, %v2051
  %v2100 = vmax.f32 %v2036, %v2052
  %v2101 = vmax.f32 %v2037, %v2053
  %v2102 = vmax.f32 %v2038, %v2054
  %v2103 = vmax.f32 %v2039, %v2055
  %v2104 = vmax.f32 %v2040, %v2056
  %v2105 = vmax.f32 %v2041, %v2057
  %v2106 = vmax.f32 %v2042, %v2058
  %v2107 = vmax.f32 %v2043, %v2059
  %v2108 = vmax.f32 %v2044, %v2060
  %v2109 = vmax.f32 %v2045, %v2061
  %v2110 = vmax.f32 %v2046, %v2062
  %v2111 = vmax.f32 %v2047, %v2063
  %v2112 = vmax.f32 %v2048, %v2064
  %v2113 = vmax.f32 %v2065, %v2081
  %v2114 = vmax.f32 %v2066, %v2082
  %v2115 = vmax.f32 %v2067, %v2083
  %v2116 = vmax.f32 %v2068, %v2084
  %v2117 = vmax.f32 %v2069, %v2085
  %v2118 = vmax.f32 %v2070, %v2086
  %v2119 = vmax.f32 %v2071, %v2087
  %v2120 = vmax.f32 %v2072, %v2088
  %v2121 = vmax.f32 %v2073, %v2089
  %v2122 = vmax.f32 %v2074, %v2090
  %v2123 = vmax.f32 %v2075, %v2091
  %v2124 = vmax.f32 %v2076, %v2092
  %v2125 = vmax.f32 %v2077, %v2093
  %v2126 = vmax.f32 %v2078, %v2094
  %v2127 = vmax.f32 %v2079, %v2095
  %v2128 = vmax.f32 %v2080, %v2096
  %v2129 = vmax.f32 %v2097, %v2113
  %v2130 = vmax.f32 %v2098, %v2114
  %v2131 = vmax.f32 %v2099, %v2115
  %v2132 = vmax.f32 %v2100, %v2116
  %v2133 = vmax.f32 %v2101, %v2117
  %v2134 = vmax.f32 %v2102, %v2118
  %v2135 = vmax.f32 %v2103, %v2119
  %v2136 = vmax.f32 %v2104, %v2120
  %v2137 = vmax.f32 %v2105, %v2121
  %v2138 = vmax.f32 %v2106, %v2122
  %v2139 = vmax.f32 %v2107, %v2123
  %v2140 = vmax.f32 %v2108, %v2124
  %v2141 = vmax.f32 %v2109, %v2125
  %v2142 = vmax.f32 %v2110, %v2126
  %v2143 = vmax.f32 %v2111, %v2127
  %v2144 = vmax.f32 %v2112, %v2128
  %v2145 = vld [vmem:[%s3] sm:$0xf]
  %v2146 = vld [vmem:[%s3 + $0x4] sm:$0xf]
  %v2147 = vld [vmem:[%s3 + $0x8] sm:$0xf]
  %v2148 = vld [vmem:[%s3 + $0xc] sm:$0xf]
  %v2149 = vld [vmem:[%s3 + $0x10] sm:$0xf]
  %v2150 = vld [vmem:[%s3 + $0x14] sm:$0xf]
  %v2151 = vld [vmem:[%s3 + $0x18] sm:$0xf]
  %v2152 = vld [vmem:[%s3 + $0x1c] sm:$0xf]
  %v2153 = vld [vmem:[%s3 + $0x20] sm:$0xf]
  %v2154 = vld [vmem:[%s3 + $0x24] sm:$0xf]
  %v2155 = vld [vmem:[%s3 + $0x28] sm:$0xf]
  %v2156 = vld [vmem:[%s3 + $0x2c] sm:$0xf]
  %v2157 = vld [vmem:[%s3 + $0x30] sm:$0xf]
  %v2158 = vld [vmem:[%s3 + $0x34] sm:$0xf]
  %v2159 = vld [vmem:[%s3 + $0x38] sm:$0xf]
  %v2160 = vld [vmem:[%s3 + $0x3c] sm:$0xf]
  %v2161 = vld [vmem:[%s3 + $0x40] sm:$0xf]
  %v2162 = vld [vmem:[%s3 + $0x44] sm:$0xf]
  %v2163 = vld [vmem:[%s3 + $0x48] sm:$0xf]
  %v2164 = vld [vmem:[%s3 + $0x4c] sm:$0xf]
  %v2165 = vld [vmem:[%s3 + $0x50] sm:$0xf]
  %v2166 = vld [vmem:[%s3 + $0x54] sm:$0xf]
  %v2167 = vld [vmem:[%s3 + $0x58] sm:$0xf]
  %v2168 = vld [vmem:[%s3 + $0x5c] sm:$0xf]
  %v2169 = vld [vmem:[%s3 + $0x60] sm:$0xf]
  %v2170 = vld [vmem:[%s3 + $0x64] sm:$0xf]
  %v2171 = vld [vmem:[%s3 + $0x68] sm:$0xf]
  %v2172 = vld [vmem:[%s3 + $0x6c] sm:$0xf]
  %v2173 = vld [vmem:[%s3 + $0x70] sm:$0xf]
  %v2174 = vld [vmem:[%s3 + $0x74] sm:$0xf]
  %v2175 = vld [vmem:[%s3 + $0x78] sm:$0xf]
  %v2176 = vld [vmem:[%s3 + $0x7c] sm:$0xf]
  %v2177 = vld [vmem:[%s3 + $0x80] sm:$0xf]
  %v2178 = vld [vmem:[%s3 + $0x84] sm:$0xf]
  %v2179 = vld [vmem:[%s3 + $0x88] sm:$0xf]
  %v2180 = vld [vmem:[%s3 + $0x8c] sm:$0xf]
  %v2181 = vpack.c.bf16 %v2130, %v2129
  %v2182 = vpack.c.bf16 %v2132, %v2131
  %v2183 = vpack.c.bf16 %v2134, %v2133
  %v2184 = vpack.c.bf16 %v2136, %v2135
  %v2185 = vpack.c.bf16 %v2138, %v2137
  %v2186 = vpack.c.bf16 %v2140, %v2139
  %v2187 = vpack.c.bf16 %v2142, %v2141
  %v2188 = vpack.c.bf16 %v2144, %v2143
  %v2225 = vunpack.c.l.b16 %v2145
  %v2226 = vunpack.c.l.b16 %v2146
  %v2227 = vunpack.c.l.b16 %v2147
  %v2228 = vunpack.c.l.b16 %v2148
  %v2229 = vunpack.c.l.b16 %v2149
  %v2230 = vunpack.c.l.b16 %v2150
  %v2231 = vunpack.c.l.b16 %v2151
  %v2232 = vunpack.c.l.b16 %v2152
  %v2233 = vunpack.c.l.b16 %v2153
  %v2234 = vunpack.c.l.b16 %v2154
  %v2235 = vunpack.c.l.b16 %v2155
  %v2236 = vunpack.c.l.b16 %v2156
  %v2237 = vunpack.c.l.b16 %v2157
  %v2238 = vunpack.c.l.b16 %v2158
  %v2239 = vunpack.c.l.b16 %v2159
  %v2240 = vunpack.c.l.b16 %v2160
  %v2241 = vunpack.c.l.b16 %v2161
  %v2242 = vunpack.c.l.b16 %v2162
  %v2243 = vunpack.c.l.b16 %v2163
  %v2244 = vunpack.c.l.b16 %v2164
  %v2245 = vunpack.c.l.b16 %v2165
  %v2246 = vunpack.c.l.b16 %v2166
  %v2247 = vunpack.c.l.b16 %v2167
  %v2248 = vunpack.c.l.b16 %v2168
  %v2249 = vunpack.c.l.b16 %v2169
  %v2250 = vunpack.c.l.b16 %v2170
  %v2251 = vunpack.c.l.b16 %v2171
  %v2252 = vunpack.c.l.b16 %v2172
  %v2253 = vunpack.c.l.b16 %v2173
  %v2254 = vunpack.c.l.b16 %v2174
  %v2255 = vunpack.c.l.b16 %v2175
  %v2256 = vunpack.c.l.b16 %v2176
  %v2257 = vunpack.c.l.b16 %v2177
  %v2258 = vunpack.c.l.b16 %v2178
  %v2259 = vunpack.c.l.b16 %v2179
  %v2260 = vunpack.c.l.b16 %v2180
  %v2261 = vpack.c.b16 %v2226, %v2225
  %v2262 = vpack.c.b16 %v2228, %v2227
  %v2263 = vpack.c.b16 %v2230, %v2229
  %v2264 = vpack.c.b16 %v2232, %v2231
  %v2265 = vpack.c.b16 %v2234, %v2233
  %v2266 = vpack.c.b16 %v2236, %v2235
  %v2267 = vpack.c.b16 %v2238, %v2237
  %v2268 = vpack.c.b16 %v2240, %v2239
  %v2269 = vpack.c.b16 %v2242, %v2241
  %v2270 = vpack.c.b16 %v2244, %v2243
  %v2271 = vpack.c.b16 %v2246, %v2245
  %v2272 = vpack.c.b16 %v2248, %v2247
  %v2273 = vpack.c.b16 %v2250, %v2249
  %v2274 = vpack.c.b16 %v2252, %v2251
  %v2275 = vpack.c.b16 %v2254, %v2253
  %v2276 = vpack.c.b16 %v2256, %v2255
  %v2277 = vpack.c.b16 %v2258, %v2257
  %v2278 = vpack.c.b16 %v2260, %v2259
  %2297 = vmatprep.subr.bf16.mxu0 0
  %2298 = vmatpush1.bf16.msra.mxu0 %v2188
  %2299 = vmatprep.subr.bf16.mxu0 0
  %2300 = vmatpush1.bf16.msra.mxu0 %v2187
  %2301 = vmatprep.subr.bf16.mxu0 0
  %2302 = vmatpush1.bf16.msra.mxu0 %v2186
  %2303 = vmatprep.subr.bf16.mxu0 0
  %2304 = vmatpush1.bf16.msra.mxu0 %v2185
  %2305 = vmatprep.subr.bf16.mxu0 0
  %2306 = vmatpush1.bf16.msra.mxu0 %v2184
  %2307 = vmatprep.subr.bf16.mxu0 0
  %2308 = vmatpush1.bf16.msra.mxu0 %v2183
  %2309 = vmatprep.subr.bf16.mxu0 0
  %2310 = vmatpush1.bf16.msra.mxu0 %v2182
  %2311 = vmatprep.subr.bf16.mxu0 0
  %2312 = vmatpush1.bf16.msra.mxu0 %v2181
  %2313 = vmatprep.subr.bf16.mxu0 0
  %2314 = vmatpush2.bf16.msra.mxu0 0
  %2315 = vmatprep.subr.bf16.mxu0 0
  %2316 = vmatpush2.bf16.msra.mxu0 0
  %2317 = vmatprep.subr.bf16.mxu0 0
  %2318 = vmatpush2.bf16.msra.mxu0 0
  %2319 = vmatprep.subr.bf16.mxu0 0
  %2320 = vmatpush2.bf16.msra.mxu0 0
  %2321 = vmatprep.subr.bf16.mxu0 0
  %2322 = vmatpush2.bf16.msra.mxu0 0
  %2323 = vmatprep.subr.bf16.mxu0 0
  %2324 = vmatpush2.bf16.msra.mxu0 0
  %2325 = vmatprep.subr.bf16.mxu0 0
  %2326 = vmatpush2.bf16.msra.mxu0 0
  %2327 = vmatprep.subr.bf16.mxu0 0
  %2328 = vmatpush2.bf16.msra.mxu0 0
  %2329 = vmatprep.mubr.bf16.mxu0 0
  %2330 = vmatmul.mubr.bf16.gmra.mxu0 %v2261
  %v2331 = vpop.f32.mrf.mxu0
  %v2332 = vadd.f32 0.0, %v2331
  %v2333 = vpop.f32.mrf.mxu0
  %v2334 = vpop.f32.mrf.mxu0
  %v2335 = vadd.f32 0.0, %v2334
  %v2336 = vpop.f32.mrf.mxu0
  %2337 = vmatprep.mubr.bf16.mxu0 0
  %2338 = vmatmul.mubr.bf16.gmra.mxu0 %v2262
  %v2339 = vpop.f32.mrf.mxu0
  %v2340 = vadd.f32 0.0, %v2339
  %v2341 = vpop.f32.mrf.mxu0
  %v2342 = vpop.f32.mrf.mxu0
  %v2343 = vadd.f32 0.0, %v2342
  %v2344 = vpop.f32.mrf.mxu0
  %2345 = vmatprep.mubr.bf16.mxu0 0
  %2346 = vmatmul.mubr.bf16.gmra.mxu0 %v2263
  %v2347 = vpop.f32.mrf.mxu0
  %v2348 = vadd.f32 0.0, %v2347
  %v2349 = vpop.f32.mrf.mxu0
  %v2350 = vpop.f32.mrf.mxu0
  %v2351 = vadd.f32 0.0, %v2350
  %v2352 = vpop.f32.mrf.mxu0
  %2353 = vmatprep.mubr.bf16.mxu0 0
  %2354 = vmatmul.mubr.bf16.gmra.mxu0 %v2264
  %v2355 = vpop.f32.mrf.mxu0
  %v2356 = vadd.f32 0.0, %v2355
  %v2357 = vpop.f32.mrf.mxu0
  %v2358 = vpop.f32.mrf.mxu0
  %v2359 = vadd.f32 0.0, %v2358
  %v2360 = vpop.f32.mrf.mxu0
  %2361 = vmatprep.mubr.bf16.mxu0 0
  %2362 = vmatmul.mubr.bf16.gmra.mxu0 %v2265
  %v2363 = vpop.f32.mrf.mxu0
  %v2364 = vadd.f32 0.0, %v2363
  %v2365 = vpop.f32.mrf.mxu0
  %v2366 = vpop.f32.mrf.mxu0
  %v2367 = vadd.f32 0.0, %v2366
  %v2368 = vpop.f32.mrf.mxu0
  %2369 = vmatprep.mubr.bf16.mxu0 0
  %2370 = vmatmul.mubr.bf16.gmra.mxu0 %v2266
  %v2371 = vpop.f32.mrf.mxu0
  %v2372 = vadd.f32 0.0, %v2371
  %v2373 = vpop.f32.mrf.mxu0
  %v2374 = vpop.f32.mrf.mxu0
  %v2375 = vadd.f32 0.0, %v2374
  %v2376 = vpop.f32.mrf.mxu0
  %2377 = vmatprep.mubr.bf16.mxu0 0
  %2378 = vmatmul.mubr.bf16.gmra.mxu0 %v2267
  %v2379 = vpop.f32.mrf.mxu0
  %v2380 = vadd.f32 0.0, %v2379
  %v2381 = vpop.f32.mrf.mxu0
  %v2382 = vpop.f32.mrf.mxu0
  %v2383 = vadd.f32 0.0, %v2382
  %v2384 = vpop.f32.mrf.mxu0
  %2385 = vmatprep.mubr.bf16.mxu0 0
  %2386 = vmatmul.mubr.bf16.gmra.mxu0 %v2268
  %v2387 = vpop.f32.mrf.mxu0
  %v2388 = vadd.f32 0.0, %v2387
  %v2389 = vpop.f32.mrf.mxu0
  %v2390 = vpop.f32.mrf.mxu0
  %v2391 = vadd.f32 0.0, %v2390
  %v2392 = vpop.f32.mrf.mxu0
  %2393 = vmatprep.mubr.bf16.mxu0 0
  %2394 = vmatmul.mubr.bf16.gmra.mxu0 %v2269
  %v2395 = vpop.f32.mrf.mxu0
  %v2396 = vadd.f32 0.0, %v2395
  %v2397 = vpop.f32.mrf.mxu0
  %v2398 = vpop.f32.mrf.mxu0
  %v2399 = vadd.f32 0.0, %v2398
  %v2400 = vpop.f32.mrf.mxu0
  %2401 = vmatprep.mubr.bf16.mxu0 0
  %2402 = vmatmul.mubr.bf16.gmra.mxu0 %v2270
  %v2403 = vpop.f32.mrf.mxu0
  %v2404 = vadd.f32 0.0, %v2403
  %v2405 = vpop.f32.mrf.mxu0
  %v2406 = vpop.f32.mrf.mxu0
  %v2407 = vadd.f32 0.0, %v2406
  %v2408 = vpop.f32.mrf.mxu0
  %2409 = vmatprep.mubr.bf16.mxu0 0
  %2410 = vmatmul.mubr.bf16.gmra.mxu0 %v2271
  %v2411 = vpop.f32.mrf.mxu0
  %v2412 = vadd.f32 0.0, %v2411
  %v2413 = vpop.f32.mrf.mxu0
  %v2414 = vpop.f32.mrf.mxu0
  %v2415 = vadd.f32 0.0, %v2414
  %v2416 = vpop.f32.mrf.mxu0
  %2417 = vmatprep.mubr.bf16.mxu0 0
  %2418 = vmatmul.mubr.bf16.gmra.mxu0 %v2272
  %v2419 = vpop.f32.mrf.mxu0
  %v2420 = vadd.f32 0.0, %v2419
  %v2421 = vpop.f32.mrf.mxu0
  %v2422 = vpop.f32.mrf.mxu0
  %v2423 = vadd.f32 0.0, %v2422
  %v2424 = vpop.f32.mrf.mxu0
  %2425 = vmatprep.mubr.bf16.mxu0 0
  %2426 = vmatmul.mubr.bf16.gmra.mxu0 %v2273
  %v2427 = vpop.f32.mrf.mxu0
  %v2428 = vadd.f32 0.0, %v2427
  %v2429 = vpop.f32.mrf.mxu0
  %v2430 = vpop.f32.mrf.mxu0
  %v2431 = vadd.f32 0.0, %v2430
  %v2432 = vpop.f32.mrf.mxu0
  %2433 = vmatprep.mubr.bf16.mxu0 0
  %2434 = vmatmul.mubr.bf16.gmra.mxu0 %v2274
  %v2435 = vpop.f32.mrf.mxu0
  %v2436 = vadd.f32 0.0, %v2435
  %v2437 = vpop.f32.mrf.mxu0
  %v2438 = vpop.f32.mrf.mxu0
  %v2439 = vadd.f32 0.0, %v2438
  %v2440 = vpop.f32.mrf.mxu0
  %2441 = vmatprep.mubr.bf16.mxu0 0
  %2442 = vmatmul.mubr.bf16.gmra.mxu0 %v2275
  %v2443 = vpop.f32.mrf.mxu0
  %v2444 = vadd.f32 0.0, %v2443
  %v2445 = vpop.f32.mrf.mxu0
  %v2446 = vpop.f32.mrf.mxu0
  %v2447 = vadd.f32 0.0, %v2446
  %v2448 = vpop.f32.mrf.mxu0
  %2449 = vmatprep.mubr.bf16.mxu0 0
  %2450 = vmatmul.mubr.bf16.gmra.mxu0 %v2276
  %v2451 = vpop.f32.mrf.mxu0
  %v2452 = vadd.f32 0.0, %v2451
  %v2453 = vpop.f32.mrf.mxu0
  %v2454 = vpop.f32.mrf.mxu0
  %v2455 = vadd.f32 0.0, %v2454
  %v2456 = vpop.f32.mrf.mxu0
  %2457 = vmatprep.mubr.bf16.mxu0 0
  %2458 = vmatmul.mubr.bf16.gmra.mxu0 %v2277
  %v2459 = vpop.f32.mrf.mxu0
  %v2460 = vadd.f32 0.0, %v2459
  %v2461 = vpop.f32.mrf.mxu0
  %v2462 = vpop.f32.mrf.mxu0
  %v2463 = vadd.f32 0.0, %v2462
  %v2464 = vpop.f32.mrf.mxu0
  %2465 = vmatprep.mubr.bf16.mxu0 0
  %2466 = vmatmul.mubr.bf16.gmra.mxu0 %v2278
  %v2467 = vpop.f32.mrf.mxu0
  %v2468 = vadd.f32 0.0, %v2467
  %v2469 = vpop.f32.mrf.mxu0
  %v2470 = vpop.f32.mrf.mxu0
  %v2471 = vadd.f32 0.0, %v2470
  %v2472 = vpop.f32.mrf.mxu0
  %2473 = vdwg.mxu0
  %v2474 = vpack.c.bf16 %v2335, %v2332
  %v2475 = vpack.c.bf16 %v2343, %v2340
  %v2476 = vld [vmem:[%s4] sm:$0xf]
  %v2477 = vld [vmem:[%s4 + $0x4] sm:$0xf]
  %v2478 = vld [vmem:[%s4 + $0x8] sm:$0xf]
  %v2479 = vld [vmem:[%s4 + $0xc] sm:$0xf]
  %v2480 = vld [vmem:[%s4 + $0x10] sm:$0xf]
  %v2481 = vld [vmem:[%s4 + $0x14] sm:$0xf]
  %v2482 = vld [vmem:[%s4 + $0x18] sm:$0xf]
  %v2483 = vld [vmem:[%s4 + $0x1c] sm:$0xf]
  %v2484 = vpack.c.bf16 %v2351, %v2348
  %v2485 = vpack.c.bf16 %v2359, %v2356
  %v2486 = vld [vmem:[%s4 + $0x20] sm:$0xf]
  %v2487 = vld [vmem:[%s4 + $0x24] sm:$0xf]
  %v2488 = vld [vmem:[%s4 + $0x28] sm:$0xf]
  %v2489 = vld [vmem:[%s4 + $0x2c] sm:$0xf]
  %v2490 = vld [vmem:[%s4 + $0x30] sm:$0xf]
  %v2491 = vld [vmem:[%s4 + $0x34] sm:$0xf]
  %v2492 = vld [vmem:[%s4 + $0x38] sm:$0xf]
  %v2493 = vld [vmem:[%s4 + $0x3c] sm:$0xf]
  %v2502 = vunpack.c.l.b16 %v2486
  %v2503 = vunpack.c.l.b16 %v2487
  %v2504 = vunpack.c.l.b16 %v2488
  %v2505 = vunpack.c.l.b16 %v2489
  %v2506 = vunpack.c.l.b16 %v2490
  %v2507 = vunpack.c.l.b16 %v2491
  %v2508 = vunpack.c.l.b16 %v2492
  %v2509 = vunpack.c.l.b16 %v2493
  %v2510 = vpack.c.b16 %v2503, %v2502
  %v2511 = vpack.c.b16 %v2505, %v2504
  %v2512 = vpack.c.b16 %v2507, %v2506
  %v2513 = vpack.c.b16 %v2509, %v2508
  %vm2518 = vcmask 523264
  %v2520 = vsel %vm2518, %v2484, 0
  %v2523 = vsel %vm2518, %v2485, 0
  %2525 = vmatprep.subr.bf16.mxu0 0
  %2526 = vmatpush1.bf16.msra.mxu0 0
  %2527 = vmatprep.subr.bf16.mxu0 0
  %2528 = vmatpush1.bf16.msra.mxu0 0
  %2529 = vmatprep.subr.bf16.mxu0 0
  %2530 = vmatpush1.bf16.msra.mxu0 0
  %2531 = vmatprep.subr.bf16.mxu0 0
  %2532 = vmatpush1.bf16.msra.mxu0 0
  %2533 = vmatprep.subr.bf16.mxu0 0
  %2534 = vmatpush1.bf16.msra.mxu0 %v2513
  %2535 = vmatprep.subr.bf16.mxu0 0
  %2536 = vmatpush1.bf16.msra.mxu0 %v2512
  %2537 = vmatprep.subr.bf16.mxu0 0
  %2538 = vmatpush1.bf16.msra.mxu0 %v2511
  %2539 = vmatprep.subr.bf16.mxu0 0
  %2540 = vmatpush1.bf16.msra.mxu0 %v2510
  %2541 = vmatprep.subr.bf16.mxu0 0
  %2542 = vmatpush2.bf16.msra.mxu0 0
  %2543 = vmatprep.subr.bf16.mxu0 0
  %2544 = vmatpush2.bf16.msra.mxu0 0
  %2545 = vmatprep.subr.bf16.mxu0 0
  %2546 = vmatpush2.bf16.msra.mxu0 0
  %2547 = vmatprep.subr.bf16.mxu0 0
  %2548 = vmatpush2.bf16.msra.mxu0 0
  %2549 = vmatprep.subr.bf16.mxu0 0
  %2550 = vmatpush2.bf16.msra.mxu0 0
  %2551 = vmatprep.subr.bf16.mxu0 0
  %2552 = vmatpush2.bf16.msra.mxu0 0
  %2553 = vmatprep.subr.bf16.mxu0 0
  %2554 = vmatpush2.bf16.msra.mxu0 0
  %2555 = vmatprep.subr.bf16.mxu0 0
  %2556 = vmatpush2.bf16.msra.mxu0 0
  %2557 = vmatprep.mubr.bf16.mxu0 0
  %2558 = vmatmul.mubr.bf16.gmra.mxu0 %v2520
  %v2559 = vpop.f32.mrf.mxu0
  %v2560 = vadd.f32 0.0, %v2559
  %v2561 = vpop.f32.mrf.mxu0
  %v2562 = vpop.f32.mrf.mxu0
  %v2563 = vadd.f32 0.0, %v2562
  %v2564 = vpop.f32.mrf.mxu0
  %2565 = vmatprep.mubr.bf16.mxu0 0
  %2566 = vmatmul.mubr.bf16.gmra.mxu0 %v2523
  %v2567 = vpop.f32.mrf.mxu0
  %v2568 = vadd.f32 0.0, %v2567
  %v2569 = vpop.f32.mrf.mxu0
  %v2570 = vpop.f32.mrf.mxu0
  %v2571 = vadd.f32 0.0, %v2570
  %v2572 = vpop.f32.mrf.mxu0
  %2573 = vdwg.mxu0
  %v2582 = vunpack.c.l.b16 %v2476
  %v2583 = vunpack.c.l.b16 %v2477
  %v2584 = vunpack.c.l.b16 %v2478
  %v2585 = vunpack.c.l.b16 %v2479
  %v2586 = vunpack.c.l.b16 %v2480
  %v2587 = vunpack.c.l.b16 %v2481
  %v2588 = vunpack.c.l.b16 %v2482
  %v2589 = vunpack.c.l.b16 %v2483
  %v2590 = vpack.c.b16 %v2583, %v2582
  %v2591 = vpack.c.b16 %v2585, %v2584
  %v2592 = vpack.c.b16 %v2587, %v2586
  %v2593 = vpack.c.b16 %v2589, %v2588
  %v2599 = vsel %vm2518, %v2474, 0
  %v2602 = vsel %vm2518, %v2475, 0
  %2604 = vmatprep.subr.bf16.mxu0 0
  %2605 = vmatpush1.bf16.msra.mxu0 0
  %2606 = vmatprep.subr.bf16.mxu0 0
  %2607 = vmatpush1.bf16.msra.mxu0 0
  %2608 = vmatprep.subr.bf16.mxu0 0
  %2609 = vmatpush1.bf16.msra.mxu0 0
  %2610 = vmatprep.subr.bf16.mxu0 0
  %2611 = vmatpush1.bf16.msra.mxu0 0
  %2612 = vmatprep.subr.bf16.mxu0 0
  %2613 = vmatpush1.bf16.msra.mxu0 %v2593
  %2614 = vmatprep.subr.bf16.mxu0 0
  %2615 = vmatpush1.bf16.msra.mxu0 %v2592
  %2616 = vmatprep.subr.bf16.mxu0 0
  %2617 = vmatpush1.bf16.msra.mxu0 %v2591
  %2618 = vmatprep.subr.bf16.mxu0 0
  %2619 = vmatpush1.bf16.msra.mxu0 %v2590
  %2620 = vmatprep.subr.bf16.mxu0 0
  %2621 = vmatpush2.bf16.msra.mxu0 0
  %2622 = vmatprep.subr.bf16.mxu0 0
  %2623 = vmatpush2.bf16.msra.mxu0 0
  %2624 = vmatprep.subr.bf16.mxu0 0
  %2625 = vmatpush2.bf16.msra.mxu0 0
  %2626 = vmatprep.subr.bf16.mxu0 0
  %2627 = vmatpush2.bf16.msra.mxu0 0
  %2628 = vmatprep.subr.bf16.mxu0 0
  %2629 = vmatpush2.bf16.msra.mxu0 0
  %2630 = vmatprep.subr.bf16.mxu0 0
  %2631 = vmatpush2.bf16.msra.mxu0 0
  %2632 = vmatprep.subr.bf16.mxu0 0
  %2633 = vmatpush2.bf16.msra.mxu0 0
  %2634 = vmatprep.subr.bf16.mxu0 0
  %2635 = vmatpush2.bf16.msra.mxu0 0
  %2636 = vmatprep.mubr.bf16.mxu0 0
  %2637 = vmatmul.mubr.bf16.gmra.mxu0 %v2599
  %v2638 = vpop.f32.mrf.mxu0
  %v2639 = vadd.f32 %v2560, %v2638
  %v2640 = vpop.f32.mrf.mxu0
  %v2641 = vpop.f32.mrf.mxu0
  %v2642 = vadd.f32 %v2563, %v2641
  %v2643 = vpop.f32.mrf.mxu0
  %2644 = vmatprep.mubr.bf16.mxu0 0
  %2645 = vmatmul.mubr.bf16.gmra.mxu0 %v2602
  %v2646 = vpop.f32.mrf.mxu0
  %v2647 = vadd.f32 %v2568, %v2646
  %v2648 = vpop.f32.mrf.mxu0
  %v2649 = vpop.f32.mrf.mxu0
  %v2650 = vadd.f32 %v2571, %v2649
  %v2651 = vpop.f32.mrf.mxu0
  %2652 = vdwg.mxu0
  %v2653 = vpack.c.bf16 %v2367, %v2364
  %v2654 = vpack.c.bf16 %v2375, %v2372
  %v2655 = vld [vmem:[%s4 + $0x40] sm:$0xf]
  %v2656 = vld [vmem:[%s4 + $0x44] sm:$0xf]
  %v2657 = vld [vmem:[%s4 + $0x48] sm:$0xf]
  %v2658 = vld [vmem:[%s4 + $0x4c] sm:$0xf]
  %v2659 = vld [vmem:[%s4 + $0x50] sm:$0xf]
  %v2660 = vld [vmem:[%s4 + $0x54] sm:$0xf]
  %v2661 = vld [vmem:[%s4 + $0x58] sm:$0xf]
  %v2662 = vld [vmem:[%s4 + $0x5c] sm:$0xf]
  %v2671 = vunpack.c.l.b16 %v2655
  %v2672 = vunpack.c.l.b16 %v2656
  %v2673 = vunpack.c.l.b16 %v2657
  %v2674 = vunpack.c.l.b16 %v2658
  %v2675 = vunpack.c.l.b16 %v2659
  %v2676 = vunpack.c.l.b16 %v2660
  %v2677 = vunpack.c.l.b16 %v2661
  %v2678 = vunpack.c.l.b16 %v2662
  %v2679 = vpack.c.b16 %v2672, %v2671
  %v2680 = vpack.c.b16 %v2674, %v2673
  %v2681 = vpack.c.b16 %v2676, %v2675
  %v2682 = vpack.c.b16 %v2678, %v2677
  %v2688 = vsel %vm2518, %v2653, 0
  %v2691 = vsel %vm2518, %v2654, 0
  %2693 = vmatprep.subr.bf16.mxu0 0
  %2694 = vmatpush1.bf16.msra.mxu0 0
  %2695 = vmatprep.subr.bf16.mxu0 0
  %2696 = vmatpush1.bf16.msra.mxu0 0
  %2697 = vmatprep.subr.bf16.mxu0 0
  %2698 = vmatpush1.bf16.msra.mxu0 0
  %2699 = vmatprep.subr.bf16.mxu0 0
  %2700 = vmatpush1.bf16.msra.mxu0 0
  %2701 = vmatprep.subr.bf16.mxu0 0
  %2702 = vmatpush1.bf16.msra.mxu0 %v2682
  %2703 = vmatprep.subr.bf16.mxu0 0
  %2704 = vmatpush1.bf16.msra.mxu0 %v2681
  %2705 = vmatprep.subr.bf16.mxu0 0
  %2706 = vmatpush1.bf16.msra.mxu0 %v2680
  %2707 = vmatprep.subr.bf16.mxu0 0
  %2708 = vmatpush1.bf16.msra.mxu0 %v2679
  %2709 = vmatprep.subr.bf16.mxu0 0
  %2710 = vmatpush2.bf16.msra.mxu0 0
  %2711 = vmatprep.subr.bf16.mxu0 0
  %2712 = vmatpush2.bf16.msra.mxu0 0
  %2713 = vmatprep.subr.bf16.mxu0 0
  %2714 = vmatpush2.bf16.msra.mxu0 0
  %2715 = vmatprep.subr.bf16.mxu0 0
  %2716 = vmatpush2.bf16.msra.mxu0 0
  %2717 = vmatprep.subr.bf16.mxu0 0
  %2718 = vmatpush2.bf16.msra.mxu0 0
  %2719 = vmatprep.subr.bf16.mxu0 0
  %2720 = vmatpush2.bf16.msra.mxu0 0
  %2721 = vmatprep.subr.bf16.mxu0 0
  %2722 = vmatpush2.bf16.msra.mxu0 0
  %2723 = vmatprep.subr.bf16.mxu0 0
  %2724 = vmatpush2.bf16.msra.mxu0 0
  %2725 = vmatprep.mubr.bf16.mxu0 0
  %2726 = vmatmul.mubr.bf16.gmra.mxu0 %v2688
  %v2727 = vpop.f32.mrf.mxu0
  %v2728 = vadd.f32 0.0, %v2727
  %v2729 = vpop.f32.mrf.mxu0
  %v2730 = vpop.f32.mrf.mxu0
  %v2731 = vadd.f32 0.0, %v2730
  %v2732 = vpop.f32.mrf.mxu0
  %2733 = vmatprep.mubr.bf16.mxu0 0
  %2734 = vmatmul.mubr.bf16.gmra.mxu0 %v2691
  %v2735 = vpop.f32.mrf.mxu0
  %v2736 = vadd.f32 0.0, %v2735
  %v2737 = vpop.f32.mrf.mxu0
  %v2738 = vpop.f32.mrf.mxu0
  %v2739 = vadd.f32 0.0, %v2738
  %v2740 = vpop.f32.mrf.mxu0
  %2741 = vdwg.mxu0
  %v2742 = vadd.f32 %v2639, %v2728
  %v2743 = vadd.f32 %v2642, %v2731
  %v2744 = vadd.f32 %v2647, %v2736
  %v2745 = vadd.f32 %v2650, %v2739
  %v2746 = vpack.c.bf16 %v2383, %v2380
  %v2747 = vpack.c.bf16 %v2391, %v2388
  %v2748 = vld [vmem:[%s4 + $0x60] sm:$0xf]
  %v2749 = vld [vmem:[%s4 + $0x64] sm:$0xf]
  %v2750 = vld [vmem:[%s4 + $0x68] sm:$0xf]
  %v2751 = vld [vmem:[%s4 + $0x6c] sm:$0xf]
  %v2752 = vld [vmem:[%s4 + $0x70] sm:$0xf]
  %v2753 = vld [vmem:[%s4 + $0x74] sm:$0xf]
  %v2754 = vld [vmem:[%s4 + $0x78] sm:$0xf]
  %v2755 = vld [vmem:[%s4 + $0x7c] sm:$0xf]
  %v2764 = vunpack.c.l.b16 %v2748
  %v2765 = vunpack.c.l.b16 %v2749
  %v2766 = vunpack.c.l.b16 %v2750
  %v2767 = vunpack.c.l.b16 %v2751
  %v2768 = vunpack.c.l.b16 %v2752
  %v2769 = vunpack.c.l.b16 %v2753
  %v2770 = vunpack.c.l.b16 %v2754
  %v2771 = vunpack.c.l.b16 %v2755
  %v2772 = vpack.c.b16 %v2765, %v2764
  %v2773 = vpack.c.b16 %v2767, %v2766
  %v2774 = vpack.c.b16 %v2769, %v2768
  %v2775 = vpack.c.b16 %v2771, %v2770
  %v2781 = vsel %vm2518, %v2746, 0
  %v2784 = vsel %vm2518, %v2747, 0
  %2786 = vmatprep.subr.bf16.mxu0 0
  %2787 = vmatpush1.bf16.msra.mxu0 0
  %2788 = vmatprep.subr.bf16.mxu0 0
  %2789 = vmatpush1.bf16.msra.mxu0 0
  %2790 = vmatprep.subr.bf16.mxu0 0
  %2791 = vmatpush1.bf16.msra.mxu0 0
  %2792 = vmatprep.subr.bf16.mxu0 0
  %2793 = vmatpush1.bf16.msra.mxu0 0
  %2794 = vmatprep.subr.bf16.mxu0 0
  %2795 = vmatpush1.bf16.msra.mxu0 %v2775
  %2796 = vmatprep.subr.bf16.mxu0 0
  %2797 = vmatpush1.bf16.msra.mxu0 %v2774
  %2798 = vmatprep.subr.bf16.mxu0 0
  %2799 = vmatpush1.bf16.msra.mxu0 %v2773
  %2800 = vmatprep.subr.bf16.mxu0 0
  %2801 = vmatpush1.bf16.msra.mxu0 %v2772
  %2802 = vmatprep.subr.bf16.mxu0 0
  %2803 = vmatpush2.bf16.msra.mxu0 0
  %2804 = vmatprep.subr.bf16.mxu0 0
  %2805 = vmatpush2.bf16.msra.mxu0 0
  %2806 = vmatprep.subr.bf16.mxu0 0
  %2807 = vmatpush2.bf16.msra.mxu0 0
  %2808 = vmatprep.subr.bf16.mxu0 0
  %2809 = vmatpush2.bf16.msra.mxu0 0
  %2810 = vmatprep.subr.bf16.mxu0 0
  %2811 = vmatpush2.bf16.msra.mxu0 0
  %2812 = vmatprep.subr.bf16.mxu0 0
  %2813 = vmatpush2.bf16.msra.mxu0 0
  %2814 = vmatprep.subr.bf16.mxu0 0
  %2815 = vmatpush2.bf16.msra.mxu0 0
  %2816 = vmatprep.subr.bf16.mxu0 0
  %2817 = vmatpush2.bf16.msra.mxu0 0
  %2818 = vmatprep.mubr.bf16.mxu0 0
  %2819 = vmatmul.mubr.bf16.gmra.mxu0 %v2781
  %v2820 = vpop.f32.mrf.mxu0
  %v2821 = vadd.f32 0.0, %v2820
  %v2822 = vpop.f32.mrf.mxu0
  %v2823 = vpop.f32.mrf.mxu0
  %v2824 = vadd.f32 0.0, %v2823
  %v2825 = vpop.f32.mrf.mxu0
  %2826 = vmatprep.mubr.bf16.mxu0 0
  %2827 = vmatmul.mubr.bf16.gmra.mxu0 %v2784
  %v2828 = vpop.f32.mrf.mxu0
  %v2829 = vadd.f32 0.0, %v2828
  %v2830 = vpop.f32.mrf.mxu0
  %v2831 = vpop.f32.mrf.mxu0
  %v2832 = vadd.f32 0.0, %v2831
  %v2833 = vpop.f32.mrf.mxu0
  %2834 = vdwg.mxu0
  %v2835 = vadd.f32 %v2742, %v2821
  %v2836 = vadd.f32 %v2743, %v2824
  %v2837 = vadd.f32 %v2744, %v2829
  %v2838 = vadd.f32 %v2745, %v2832
  %v2839 = vpack.c.bf16 %v2399, %v2396
  %v2840 = vpack.c.bf16 %v2407, %v2404
  %v2841 = vld [vmem:[%s4 + $0x80] sm:$0xf]
  %v2842 = vld [vmem:[%s4 + $0x84] sm:$0xf]
  %v2843 = vld [vmem:[%s4 + $0x88] sm:$0xf]
  %v2844 = vld [vmem:[%s4 + $0x8c] sm:$0xf]
  %v2845 = vld [vmem:[%s4 + $0x90] sm:$0xf]
  %v2846 = vld [vmem:[%s4 + $0x94] sm:$0xf]
  %v2847 = vld [vmem:[%s4 + $0x98] sm:$0xf]
  %v2848 = vld [vmem:[%s4 + $0x9c] sm:$0xf]
  %v2857 = vunpack.c.l.b16 %v2841
  %v2858 = vunpack.c.l.b16 %v2842
  %v2859 = vunpack.c.l.b16 %v2843
  %v2860 = vunpack.c.l.b16 %v2844
  %v2861 = vunpack.c.l.b16 %v2845
  %v2862 = vunpack.c.l.b16 %v2846
  %v2863 = vunpack.c.l.b16 %v2847
  %v2864 = vunpack.c.l.b16 %v2848
  %v2865 = vpack.c.b16 %v2858, %v2857
  %v2866 = vpack.c.b16 %v2860, %v2859
  %v2867 = vpack.c.b16 %v2862, %v2861
  %v2868 = vpack.c.b16 %v2864, %v2863
  %v2874 = vsel %vm2518, %v2839, 0
  %v2877 = vsel %vm2518, %v2840, 0
  %2879 = vmatprep.subr.bf16.mxu0 0
  %2880 = vmatpush1.bf16.msra.mxu0 0
  %2881 = vmatprep.subr.bf16.mxu0 0
  %2882 = vmatpush1.bf16.msra.mxu0 0
  %2883 = vmatprep.subr.bf16.mxu0 0
  %2884 = vmatpush1.bf16.msra.mxu0 0
  %2885 = vmatprep.subr.bf16.mxu0 0
  %2886 = vmatpush1.bf16.msra.mxu0 0
  %2887 = vmatprep.subr.bf16.mxu0 0
  %2888 = vmatpush1.bf16.msra.mxu0 %v2868
  %2889 = vmatprep.subr.bf16.mxu0 0
  %2890 = vmatpush1.bf16.msra.mxu0 %v2867
  %2891 = vmatprep.subr.bf16.mxu0 0
  %2892 = vmatpush1.bf16.msra.mxu0 %v2866
  %2893 = vmatprep.subr.bf16.mxu0 0
  %2894 = vmatpush1.bf16.msra.mxu0 %v2865
  %2895 = vmatprep.subr.bf16.mxu0 0
  %2896 = vmatpush2.bf16.msra.mxu0 0
  %2897 = vmatprep.subr.bf16.mxu0 0
  %2898 = vmatpush2.bf16.msra.mxu0 0
  %2899 = vmatprep.subr.bf16.mxu0 0
  %2900 = vmatpush2.bf16.msra.mxu0 0
  %2901 = vmatprep.subr.bf16.mxu0 0
  %2902 = vmatpush2.bf16.msra.mxu0 0
  %2903 = vmatprep.subr.bf16.mxu0 0
  %2904 = vmatpush2.bf16.msra.mxu0 0
  %2905 = vmatprep.subr.bf16.mxu0 0
  %2906 = vmatpush2.bf16.msra.mxu0 0
  %2907 = vmatprep.subr.bf16.mxu0 0
  %2908 = vmatpush2.bf16.msra.mxu0 0
  %2909 = vmatprep.subr.bf16.mxu0 0
  %2910 = vmatpush2.bf16.msra.mxu0 0
  %2911 = vmatprep.mubr.bf16.mxu0 0
  %2912 = vmatmul.mubr.bf16.gmra.mxu0 %v2874
  %v2913 = vpop.f32.mrf.mxu0
  %v2914 = vadd.f32 0.0, %v2913
  %v2915 = vpop.f32.mrf.mxu0
  %v2916 = vpop.f32.mrf.mxu0
  %v2917 = vadd.f32 0.0, %v2916
  %v2918 = vpop.f32.mrf.mxu0
  %2919 = vmatprep.mubr.bf16.mxu0 0
  %2920 = vmatmul.mubr.bf16.gmra.mxu0 %v2877
  %v2921 = vpop.f32.mrf.mxu0
  %v2922 = vadd.f32 0.0, %v2921
  %v2923 = vpop.f32.mrf.mxu0
  %v2924 = vpop.f32.mrf.mxu0
  %v2925 = vadd.f32 0.0, %v2924
  %v2926 = vpop.f32.mrf.mxu0
  %2927 = vdwg.mxu0
  %v2928 = vadd.f32 %v2835, %v2914
  %v2929 = vadd.f32 %v2836, %v2917
  %v2930 = vadd.f32 %v2837, %v2922
  %v2931 = vadd.f32 %v2838, %v2925
  %v2932 = vpack.c.bf16 %v2415, %v2412
  %v2933 = vpack.c.bf16 %v2423, %v2420
  %v2934 = vld [vmem:[%s4 + $0xa0] sm:$0xf]
  %v2935 = vld [vmem:[%s4 + $0xa4] sm:$0xf]
  %v2936 = vld [vmem:[%s4 + $0xa8] sm:$0xf]
  %v2937 = vld [vmem:[%s4 + $0xac] sm:$0xf]
  %v2938 = vld [vmem:[%s4 + $0xb0] sm:$0xf]
  %v2939 = vld [vmem:[%s4 + $0xb4] sm:$0xf]
  %v2940 = vld [vmem:[%s4 + $0xb8] sm:$0xf]
  %v2941 = vld [vmem:[%s4 + $0xbc] sm:$0xf]
  %v2950 = vunpack.c.l.b16 %v2934
  %v2951 = vunpack.c.l.b16 %v2935
  %v2952 = vunpack.c.l.b16 %v2936
  %v2953 = vunpack.c.l.b16 %v2937
  %v2954 = vunpack.c.l.b16 %v2938
  %v2955 = vunpack.c.l.b16 %v2939
  %v2956 = vunpack.c.l.b16 %v2940
  %v2957 = vunpack.c.l.b16 %v2941
  %v2958 = vpack.c.b16 %v2951, %v2950
  %v2959 = vpack.c.b16 %v2953, %v2952
  %v2960 = vpack.c.b16 %v2955, %v2954
  %v2961 = vpack.c.b16 %v2957, %v2956
  %v2967 = vsel %vm2518, %v2932, 0
  %v2970 = vsel %vm2518, %v2933, 0
  %2972 = vmatprep.subr.bf16.mxu0 0
  %2973 = vmatpush1.bf16.msra.mxu0 0
  %2974 = vmatprep.subr.bf16.mxu0 0
  %2975 = vmatpush1.bf16.msra.mxu0 0
  %2976 = vmatprep.subr.bf16.mxu0 0
  %2977 = vmatpush1.bf16.msra.mxu0 0
  %2978 = vmatprep.subr.bf16.mxu0 0
  %2979 = vmatpush1.bf16.msra.mxu0 0
  %2980 = vmatprep.subr.bf16.mxu0 0
  %2981 = vmatpush1.bf16.msra.mxu0 %v2961
  %2982 = vmatprep.subr.bf16.mxu0 0
  %2983 = vmatpush1.bf16.msra.mxu0 %v2960
  %2984 = vmatprep.subr.bf16.mxu0 0
  %2985 = vmatpush1.bf16.msra.mxu0 %v2959
  %2986 = vmatprep.subr.bf16.mxu0 0
  %2987 = vmatpush1.bf16.msra.mxu0 %v2958
  %2988 = vmatprep.subr.bf16.mxu0 0
  %2989 = vmatpush2.bf16.msra.mxu0 0
  %2990 = vmatprep.subr.bf16.mxu0 0
  %2991 = vmatpush2.bf16.msra.mxu0 0
  %2992 = vmatprep.subr.bf16.mxu0 0
  %2993 = vmatpush2.bf16.msra.mxu0 0
  %2994 = vmatprep.subr.bf16.mxu0 0
  %2995 = vmatpush2.bf16.msra.mxu0 0
  %2996 = vmatprep.subr.bf16.mxu0 0
  %2997 = vmatpush2.bf16.msra.mxu0 0
  %2998 = vmatprep.subr.bf16.mxu0 0
  %2999 = vmatpush2.bf16.msra.mxu0 0
  %3000 = vmatprep.subr.bf16.mxu0 0
  %3001 = vmatpush2.bf16.msra.mxu0 0
  %3002 = vmatprep.subr.bf16.mxu0 0
  %3003 = vmatpush2.bf16.msra.mxu0 0
  %3004 = vmatprep.mubr.bf16.mxu0 0
  %3005 = vmatmul.mubr.bf16.gmra.mxu0 %v2967
  %v3006 = vpop.f32.mrf.mxu0
  %v3007 = vadd.f32 0.0, %v3006
  %v3008 = vpop.f32.mrf.mxu0
  %v3009 = vpop.f32.mrf.mxu0
  %v3010 = vadd.f32 0.0, %v3009
  %v3011 = vpop.f32.mrf.mxu0
  %3012 = vmatprep.mubr.bf16.mxu0 0
  %3013 = vmatmul.mubr.bf16.gmra.mxu0 %v2970
  %v3014 = vpop.f32.mrf.mxu0
  %v3015 = vadd.f32 0.0, %v3014
  %v3016 = vpop.f32.mrf.mxu0
  %v3017 = vpop.f32.mrf.mxu0
  %v3018 = vadd.f32 0.0, %v3017
  %v3019 = vpop.f32.mrf.mxu0
  %3020 = vdwg.mxu0
  %v3021 = vadd.f32 %v2928, %v3007
  %v3022 = vadd.f32 %v2929, %v3010
  %v3023 = vadd.f32 %v2930, %v3015
  %v3024 = vadd.f32 %v2931, %v3018
  %v3025 = vpack.c.bf16 %v2431, %v2428
  %v3026 = vpack.c.bf16 %v2439, %v2436
  %v3027 = vld [vmem:[%s4 + $0xc0] sm:$0xf]
  %v3028 = vld [vmem:[%s4 + $0xc4] sm:$0xf]
  %v3029 = vld [vmem:[%s4 + $0xc8] sm:$0xf]
  %v3030 = vld [vmem:[%s4 + $0xcc] sm:$0xf]
  %v3031 = vld [vmem:[%s4 + $0xd0] sm:$0xf]
  %v3032 = vld [vmem:[%s4 + $0xd4] sm:$0xf]
  %v3033 = vld [vmem:[%s4 + $0xd8] sm:$0xf]
  %v3034 = vld [vmem:[%s4 + $0xdc] sm:$0xf]
  %v3043 = vunpack.c.l.b16 %v3027
  %v3044 = vunpack.c.l.b16 %v3028
  %v3045 = vunpack.c.l.b16 %v3029
  %v3046 = vunpack.c.l.b16 %v3030
  %v3047 = vunpack.c.l.b16 %v3031
  %v3048 = vunpack.c.l.b16 %v3032
  %v3049 = vunpack.c.l.b16 %v3033
  %v3050 = vunpack.c.l.b16 %v3034
  %v3051 = vpack.c.b16 %v3044, %v3043
  %v3052 = vpack.c.b16 %v3046, %v3045
  %v3053 = vpack.c.b16 %v3048, %v3047
  %v3054 = vpack.c.b16 %v3050, %v3049
  %v3060 = vsel %vm2518, %v3025, 0
  %v3063 = vsel %vm2518, %v3026, 0
  %3065 = vmatprep.subr.bf16.mxu0 0
  %3066 = vmatpush1.bf16.msra.mxu0 0
  %3067 = vmatprep.subr.bf16.mxu0 0
  %3068 = vmatpush1.bf16.msra.mxu0 0
  %3069 = vmatprep.subr.bf16.mxu0 0
  %3070 = vmatpush1.bf16.msra.mxu0 0
  %3071 = vmatprep.subr.bf16.mxu0 0
  %3072 = vmatpush1.bf16.msra.mxu0 0
  %3073 = vmatprep.subr.bf16.mxu0 0
  %3074 = vmatpush1.bf16.msra.mxu0 %v3054
  %3075 = vmatprep.subr.bf16.mxu0 0
  %3076 = vmatpush1.bf16.msra.mxu0 %v3053
  %3077 = vmatprep.subr.bf16.mxu0 0
  %3078 = vmatpush1.bf16.msra.mxu0 %v3052
  %3079 = vmatprep.subr.bf16.mxu0 0
  %3080 = vmatpush1.bf16.msra.mxu0 %v3051
  %3081 = vmatprep.subr.bf16.mxu0 0
  %3082 = vmatpush2.bf16.msra.mxu0 0
  %3083 = vmatprep.subr.bf16.mxu0 0
  %3084 = vmatpush2.bf16.msra.mxu0 0
  %3085 = vmatprep.subr.bf16.mxu0 0
  %3086 = vmatpush2.bf16.msra.mxu0 0
  %3087 = vmatprep.subr.bf16.mxu0 0
  %3088 = vmatpush2.bf16.msra.mxu0 0
  %3089 = vmatprep.subr.bf16.mxu0 0
  %3090 = vmatpush2.bf16.msra.mxu0 0
  %3091 = vmatprep.subr.bf16.mxu0 0
  %3092 = vmatpush2.bf16.msra.mxu0 0
  %3093 = vmatprep.subr.bf16.mxu0 0
  %3094 = vmatpush2.bf16.msra.mxu0 0
  %3095 = vmatprep.subr.bf16.mxu0 0
  %3096 = vmatpush2.bf16.msra.mxu0 0
  %3097 = vmatprep.mubr.bf16.mxu0 0
  %3098 = vmatmul.mubr.bf16.gmra.mxu0 %v3060
  %v3099 = vpop.f32.mrf.mxu0
  %v3100 = vadd.f32 0.0, %v3099
  %v3101 = vpop.f32.mrf.mxu0
  %v3102 = vpop.f32.mrf.mxu0
  %v3103 = vadd.f32 0.0, %v3102
  %v3104 = vpop.f32.mrf.mxu0
  %3105 = vmatprep.mubr.bf16.mxu0 0
  %3106 = vmatmul.mubr.bf16.gmra.mxu0 %v3063
  %v3107 = vpop.f32.mrf.mxu0
  %v3108 = vadd.f32 0.0, %v3107
  %v3109 = vpop.f32.mrf.mxu0
  %v3110 = vpop.f32.mrf.mxu0
  %v3111 = vadd.f32 0.0, %v3110
  %v3112 = vpop.f32.mrf.mxu0
  %3113 = vdwg.mxu0
  %v3114 = vadd.f32 %v3021, %v3100
  %v3115 = vadd.f32 %v3022, %v3103
  %v3116 = vadd.f32 %v3023, %v3108
  %v3117 = vadd.f32 %v3024, %v3111
  %v3118 = vpack.c.bf16 %v2447, %v2444
  %v3119 = vpack.c.bf16 %v2455, %v2452
  %v3120 = vld [vmem:[%s4 + $0xe0] sm:$0xf]
  %v3121 = vld [vmem:[%s4 + $0xe4] sm:$0xf]
  %v3122 = vld [vmem:[%s4 + $0xe8] sm:$0xf]
  %v3123 = vld [vmem:[%s4 + $0xec] sm:$0xf]
  %v3124 = vld [vmem:[%s4 + $0xf0] sm:$0xf]
  %v3125 = vld [vmem:[%s4 + $0xf4] sm:$0xf]
  %v3126 = vld [vmem:[%s4 + $0xf8] sm:$0xf]
  %v3127 = vld [vmem:[%s4 + $0xfc] sm:$0xf]
  %v3136 = vunpack.c.l.b16 %v3120
  %v3137 = vunpack.c.l.b16 %v3121
  %v3138 = vunpack.c.l.b16 %v3122
  %v3139 = vunpack.c.l.b16 %v3123
  %v3140 = vunpack.c.l.b16 %v3124
  %v3141 = vunpack.c.l.b16 %v3125
  %v3142 = vunpack.c.l.b16 %v3126
  %v3143 = vunpack.c.l.b16 %v3127
  %v3144 = vpack.c.b16 %v3137, %v3136
  %v3145 = vpack.c.b16 %v3139, %v3138
  %v3146 = vpack.c.b16 %v3141, %v3140
  %v3147 = vpack.c.b16 %v3143, %v3142
  %v3153 = vsel %vm2518, %v3118, 0
  %v3156 = vsel %vm2518, %v3119, 0
  %3158 = vmatprep.subr.bf16.mxu0 0
  %3159 = vmatpush1.bf16.msra.mxu0 0
  %3160 = vmatprep.subr.bf16.mxu0 0
  %3161 = vmatpush1.bf16.msra.mxu0 0
  %3162 = vmatprep.subr.bf16.mxu0 0
  %3163 = vmatpush1.bf16.msra.mxu0 0
  %3164 = vmatprep.subr.bf16.mxu0 0
  %3165 = vmatpush1.bf16.msra.mxu0 0
  %3166 = vmatprep.subr.bf16.mxu0 0
  %3167 = vmatpush1.bf16.msra.mxu0 %v3147
  %3168 = vmatprep.subr.bf16.mxu0 0
  %3169 = vmatpush1.bf16.msra.mxu0 %v3146
  %3170 = vmatprep.subr.bf16.mxu0 0
  %3171 = vmatpush1.bf16.msra.mxu0 %v3145
  %3172 = vmatprep.subr.bf16.mxu0 0
  %3173 = vmatpush1.bf16.msra.mxu0 %v3144
  %3174 = vmatprep.subr.bf16.mxu0 0
  %3175 = vmatpush2.bf16.msra.mxu0 0
  %3176 = vmatprep.subr.bf16.mxu0 0
  %3177 = vmatpush2.bf16.msra.mxu0 0
  %3178 = vmatprep.subr.bf16.mxu0 0
  %3179 = vmatpush2.bf16.msra.mxu0 0
  %3180 = vmatprep.subr.bf16.mxu0 0
  %3181 = vmatpush2.bf16.msra.mxu0 0
  %3182 = vmatprep.subr.bf16.mxu0 0
  %3183 = vmatpush2.bf16.msra.mxu0 0
  %3184 = vmatprep.subr.bf16.mxu0 0
  %3185 = vmatpush2.bf16.msra.mxu0 0
  %3186 = vmatprep.subr.bf16.mxu0 0
  %3187 = vmatpush2.bf16.msra.mxu0 0
  %3188 = vmatprep.subr.bf16.mxu0 0
  %3189 = vmatpush2.bf16.msra.mxu0 0
  %3190 = vmatprep.mubr.bf16.mxu0 0
  %3191 = vmatmul.mubr.bf16.gmra.mxu0 %v3153
  %v3192 = vpop.f32.mrf.mxu0
  %v3193 = vadd.f32 0.0, %v3192
  %v3194 = vpop.f32.mrf.mxu0
  %v3195 = vpop.f32.mrf.mxu0
  %v3196 = vadd.f32 0.0, %v3195
  %v3197 = vpop.f32.mrf.mxu0
  %3198 = vmatprep.mubr.bf16.mxu0 0
  %3199 = vmatmul.mubr.bf16.gmra.mxu0 %v3156
  %v3200 = vpop.f32.mrf.mxu0
  %v3201 = vadd.f32 0.0, %v3200
  %v3202 = vpop.f32.mrf.mxu0
  %v3203 = vpop.f32.mrf.mxu0
  %v3204 = vadd.f32 0.0, %v3203
  %v3205 = vpop.f32.mrf.mxu0
  %3206 = vdwg.mxu0
  %v3207 = vadd.f32 %v3114, %v3193
  %v3208 = vadd.f32 %v3115, %v3196
  %v3209 = vadd.f32 %v3116, %v3201
  %v3210 = vadd.f32 %v3117, %v3204
  %v3211 = vpack.c.bf16 %v2463, %v2460
  %v3212 = vpack.c.bf16 %v2471, %v2468
  %v3213 = vld [vmem:[%s4 + $0x100] sm:$0xf]
  %v3214 = vld [vmem:[%s4 + $0x104] sm:$0xf]
  %v3215 = vld [vmem:[%s4 + $0x108] sm:$0xf]
  %v3216 = vld [vmem:[%s4 + $0x10c] sm:$0xf]
  %v3217 = vld [vmem:[%s4 + $0x110] sm:$0xf]
  %v3218 = vld [vmem:[%s4 + $0x114] sm:$0xf]
  %v3219 = vld [vmem:[%s4 + $0x118] sm:$0xf]
  %v3220 = vld [vmem:[%s4 + $0x11c] sm:$0xf]
  %v3229 = vunpack.c.l.b16 %v3213
  %v3230 = vunpack.c.l.b16 %v3214
  %v3231 = vunpack.c.l.b16 %v3215
  %v3232 = vunpack.c.l.b16 %v3216
  %v3233 = vunpack.c.l.b16 %v3217
  %v3234 = vunpack.c.l.b16 %v3218
  %v3235 = vunpack.c.l.b16 %v3219
  %v3236 = vunpack.c.l.b16 %v3220
  %v3237 = vpack.c.b16 %v3230, %v3229
  %v3238 = vpack.c.b16 %v3232, %v3231
  %v3239 = vpack.c.b16 %v3234, %v3233
  %v3240 = vpack.c.b16 %v3236, %v3235
  %v3246 = vsel %vm2518, %v3211, 0
  %v3249 = vsel %vm2518, %v3212, 0
  %3251 = vmatprep.subr.bf16.mxu0 0
  %3252 = vmatpush1.bf16.msra.mxu0 0
  %3253 = vmatprep.subr.bf16.mxu0 0
  %3254 = vmatpush1.bf16.msra.mxu0 0
  %3255 = vmatprep.subr.bf16.mxu0 0
  %3256 = vmatpush1.bf16.msra.mxu0 0
  %3257 = vmatprep.subr.bf16.mxu0 0
  %3258 = vmatpush1.bf16.msra.mxu0 0
  %3259 = vmatprep.subr.bf16.mxu0 0
  %3260 = vmatpush1.bf16.msra.mxu0 %v3240
  %3261 = vmatprep.subr.bf16.mxu0 0
  %3262 = vmatpush1.bf16.msra.mxu0 %v3239
  %3263 = vmatprep.subr.bf16.mxu0 0
  %3264 = vmatpush1.bf16.msra.mxu0 %v3238
  %3265 = vmatprep.subr.bf16.mxu0 0
  %3266 = vmatpush1.bf16.msra.mxu0 %v3237
  %3267 = vmatprep.subr.bf16.mxu0 0
  %3268 = vmatpush2.bf16.msra.mxu0 0
  %3269 = vmatprep.subr.bf16.mxu0 0
  %3270 = vmatpush2.bf16.msra.mxu0 0
  %3271 = vmatprep.subr.bf16.mxu0 0
  %3272 = vmatpush2.bf16.msra.mxu0 0
  %3273 = vmatprep.subr.bf16.mxu0 0
  %3274 = vmatpush2.bf16.msra.mxu0 0
  %3275 = vmatprep.subr.bf16.mxu0 0
  %3276 = vmatpush2.bf16.msra.mxu0 0
  %3277 = vmatprep.subr.bf16.mxu0 0
  %3278 = vmatpush2.bf16.msra.mxu0 0
  %3279 = vmatprep.subr.bf16.mxu0 0
  %3280 = vmatpush2.bf16.msra.mxu0 0
  %3281 = vmatprep.subr.bf16.mxu0 0
  %3282 = vmatpush2.bf16.msra.mxu0 0
  %3283 = vmatprep.mubr.bf16.mxu0 0
  %3284 = vmatmul.mubr.bf16.gmra.mxu0 %v3246
  %v3285 = vpop.f32.mrf.mxu0
  %v3286 = vadd.f32 0.0, %v3285
  %v3287 = vpop.f32.mrf.mxu0
  %v3288 = vpop.f32.mrf.mxu0
  %v3289 = vadd.f32 0.0, %v3288
  %v3290 = vpop.f32.mrf.mxu0
  %3291 = vmatprep.mubr.bf16.mxu0 0
  %3292 = vmatmul.mubr.bf16.gmra.mxu0 %v3249
  %v3293 = vpop.f32.mrf.mxu0
  %v3294 = vadd.f32 0.0, %v3293
  %v3295 = vpop.f32.mrf.mxu0
  %v3296 = vpop.f32.mrf.mxu0
  %v3297 = vadd.f32 0.0, %v3296
  %v3298 = vpop.f32.mrf.mxu0
  %3299 = vdwg.mxu0
  %v3300 = vadd.f32 %v3207, %v3286
  %v3301 = vadd.f32 %v3208, %v3289
  %v3302 = vadd.f32 %v3209, %v3294
  %v3303 = vadd.f32 %v3210, %v3297
  %v3304 = vld [vmem:[%s5] sm:$0x3]
  %vm3305 = vcmask 261120
  %v3307 = vsel %vm3305, 1.0, 0
  %3309 = vmatprep.subr.mxu0 0.0
  %3310 = vmatpush1.msra.mxu0 0.0
  %3311 = vmatprep.subr.mxu0 0.0
  %3312 = vmatpush1.msra.mxu0 0.0
  %3313 = vmatprep.subr.mxu0 0.0
  %3314 = vmatpush1.msra.mxu0 0.0
  %3315 = vmatprep.subr.mxu0 0.0
  %3316 = vmatpush1.msra.mxu0 0.0
  %3317 = vmatprep.subr.mxu0 0.0
  %3318 = vmatpush1.msra.mxu0 0.0
  %3319 = vmatprep.subr.mxu0 0.0
  %3320 = vmatpush1.msra.mxu0 0.0
  %3321 = vmatprep.subr.mxu0 0.0
  %3322 = vmatpush1.msra.mxu0 0.0
  %3323 = vmatprep.subr.mxu0 0.0
  %3324 = vmatpush1.msra.mxu0 0.0
  %3325 = vmatprep.subr.mxu0 0.0
  %3326 = vmatpush1.msra.mxu0 0.0
  %3327 = vmatprep.subr.mxu0 0.0
  %3328 = vmatpush1.msra.mxu0 0.0
  %3329 = vmatprep.subr.mxu0 0.0
  %3330 = vmatpush1.msra.mxu0 0.0
  %3331 = vmatprep.subr.mxu0 0.0
  %3332 = vmatpush1.msra.mxu0 0.0
  %3333 = vmatprep.subr.mxu0 0.0
  %3334 = vmatpush1.msra.mxu0 %v3303
  %3335 = vmatprep.subr.mxu0 0.0
  %3336 = vmatpush1.msra.mxu0 %v3302
  %3337 = vmatprep.subr.mxu0 0.0
  %3338 = vmatpush1.msra.mxu0 %v3301
  %3339 = vmatprep.subr.mxu0 0.0
  %3340 = vmatpush1.msra.mxu0 %v3300
  %3341 = vmatprep.subr.mxu0 0.0
  %3342 = vmatpush2.msra.mxu0 0.0
  %3343 = vmatprep.subr.mxu0 0.0
  %3344 = vmatpush2.msra.mxu0 0.0
  %3345 = vmatprep.subr.mxu0 0.0
  %3346 = vmatpush2.msra.mxu0 0.0
  %3347 = vmatprep.subr.mxu0 0.0
  %3348 = vmatpush2.msra.mxu0 0.0
  %3349 = vmatprep.subr.mxu0 0.0
  %3350 = vmatpush2.msra.mxu0 0.0
  %3351 = vmatprep.subr.mxu0 0.0
  %3352 = vmatpush2.msra.mxu0 0.0
  %3353 = vmatprep.subr.mxu0 0.0
  %3354 = vmatpush2.msra.mxu0 0.0
  %3355 = vmatprep.subr.mxu0 0.0
  %3356 = vmatpush2.msra.mxu0 0.0
  %3357 = vmatprep.subr.mxu0 0.0
  %3358 = vmatpush2.msra.mxu0 0.0
  %3359 = vmatprep.subr.mxu0 0.0
  %3360 = vmatpush2.msra.mxu0 0.0
  %3361 = vmatprep.subr.mxu0 0.0
  %3362 = vmatpush2.msra.mxu0 0.0
  %3363 = vmatprep.subr.mxu0 0.0
  %3364 = vmatpush2.msra.mxu0 0.0
  %3365 = vmatprep.subr.mxu0 0.0
  %3366 = vmatpush2.msra.mxu0 0.0
  %3367 = vmatprep.subr.mxu0 0.0
  %3368 = vmatpush2.msra.mxu0 0.0
  %3369 = vmatprep.subr.mxu0 0.0
  %3370 = vmatpush2.msra.mxu0 0.0
  %3371 = vmatprep.subr.mxu0 0.0
  %3372 = vmatpush2.msra.mxu0 0.0
  %3373 = vmatprep.mubr.f32.mxu0 0.0
  %3374 = vmatmul.mubr.f32.gmra.mxu0 %v3307
  %v3375 = vpop.f32.mrf.mxu0
  %v3376 = vadd.f32 0.0, %v3375
  %v3377 = vpop.f32.mrf.mxu0
  %3378 = vdwg.mxu0
  %v3379 = vmul.f32 %v3300, %v3300
  %v3380 = vmul.f32 %v3301, %v3301
  %v3381 = vmul.f32 %v3302, %v3302
  %v3382 = vmul.f32 %v3303, %v3303
  %3383 = vmatprep.subr.mxu0 0.0
  %3384 = vmatpush1.msra.mxu0 0.0
  %3385 = vmatprep.subr.mxu0 0.0
  %3386 = vmatpush1.msra.mxu0 0.0
  %3387 = vmatprep.subr.mxu0 0.0
  %3388 = vmatpush1.msra.mxu0 0.0
  %3389 = vmatprep.subr.mxu0 0.0
  %3390 = vmatpush1.msra.mxu0 0.0
  %3391 = vmatprep.subr.mxu0 0.0
  %3392 = vmatpush1.msra.mxu0 0.0
  %3393 = vmatprep.subr.mxu0 0.0
  %3394 = vmatpush1.msra.mxu0 0.0
  %3395 = vmatprep.subr.mxu0 0.0
  %3396 = vmatpush1.msra.mxu0 0.0
  %3397 = vmatprep.subr.mxu0 0.0
  %3398 = vmatpush1.msra.mxu0 0.0
  %3399 = vmatprep.subr.mxu0 0.0
  %3400 = vmatpush1.msra.mxu0 0.0
  %3401 = vmatprep.subr.mxu0 0.0
  %3402 = vmatpush1.msra.mxu0 0.0
  %3403 = vmatprep.subr.mxu0 0.0
  %3404 = vmatpush1.msra.mxu0 0.0
  %3405 = vmatprep.subr.mxu0 0.0
  %3406 = vmatpush1.msra.mxu0 0.0
  %3407 = vmatprep.subr.mxu0 0.0
  %3408 = vmatpush1.msra.mxu0 %v3382
  %3409 = vmatprep.subr.mxu0 0.0
  %3410 = vmatpush1.msra.mxu0 %v3381
  %3411 = vmatprep.subr.mxu0 0.0
  %3412 = vmatpush1.msra.mxu0 %v3380
  %3413 = vmatprep.subr.mxu0 0.0
  %3414 = vmatpush1.msra.mxu0 %v3379
  %3415 = vmatprep.subr.mxu0 0.0
  %3416 = vmatpush2.msra.mxu0 0.0
  %3417 = vmatprep.subr.mxu0 0.0
  %3418 = vmatpush2.msra.mxu0 0.0
  %3419 = vmatprep.subr.mxu0 0.0
  %3420 = vmatpush2.msra.mxu0 0.0
  %3421 = vmatprep.subr.mxu0 0.0
  %3422 = vmatpush2.msra.mxu0 0.0
  %3423 = vmatprep.subr.mxu0 0.0
  %3424 = vmatpush2.msra.mxu0 0.0
  %3425 = vmatprep.subr.mxu0 0.0
  %3426 = vmatpush2.msra.mxu0 0.0
  %3427 = vmatprep.subr.mxu0 0.0
  %3428 = vmatpush2.msra.mxu0 0.0
  %3429 = vmatprep.subr.mxu0 0.0
  %3430 = vmatpush2.msra.mxu0 0.0
  %3431 = vmatprep.subr.mxu0 0.0
  %3432 = vmatpush2.msra.mxu0 0.0
  %3433 = vmatprep.subr.mxu0 0.0
  %3434 = vmatpush2.msra.mxu0 0.0
  %3435 = vmatprep.subr.mxu0 0.0
  %3436 = vmatpush2.msra.mxu0 0.0
  %3437 = vmatprep.subr.mxu0 0.0
  %3438 = vmatpush2.msra.mxu0 0.0
  %3439 = vmatprep.subr.mxu0 0.0
  %3440 = vmatpush2.msra.mxu0 0.0
  %3441 = vmatprep.subr.mxu0 0.0
  %3442 = vmatpush2.msra.mxu0 0.0
  %3443 = vmatprep.subr.mxu0 0.0
  %3444 = vmatpush2.msra.mxu0 0.0
  %3445 = vmatprep.subr.mxu0 0.0
  %3446 = vmatpush2.msra.mxu0 0.0
  %3447 = vmatprep.mubr.f32.mxu0 0.0
  %3448 = vmatmul.mubr.f32.gmra.mxu0 %v3307
  %v3449 = vpop.f32.mrf.mxu0
  %v3450 = vadd.f32 0.0, %v3449
  %v3451 = vpop.f32.mrf.mxu0
  %3452 = vdwg.mxu0
  %v3453 = vmul.f32 %v3376, 0.03125
  %v3454 = vmul.f32 %v3450, 0.03125
  %v3455 = vmul.f32 %v3453, %v3453
  %v3456 = vsub.f32 %v3454, %v3455
  %v3457 = vmax.f32 %v3456, 0.0
  %v3458 = vadd.f32 %v3457, 1e-05
  %v3459 = vrsqrt.pop %v3458
  %v3460 = vlaneseq
  %v3461 = vshrl.u32 %v3460, 7
  %v3462 = vsub.s32 0, %v3461
  %v3463 = vrot.slane %v3453, %v3462
  %v3464 = vsub.f32 %v3300, %v3463
  %v3465 = vsub.f32 %v3301, %v3463
  %v3466 = vsub.f32 %v3302, %v3463
  %v3467 = vsub.f32 %v3303, %v3463
  %v3468 = vmul.f32 %v3459, %v3304
  %v3469 = vlaneseq
  %v3470 = vshrl.u32 %v3469, 7
  %v3471 = vsub.s32 0, %v3470
  %v3472 = vrot.slane %v3468, %v3471
  %v3473 = vmul.f32 %v3464, %v3472
  %v3474 = vmul.f32 %v3465, %v3472
  %v3475 = vmul.f32 %v3466, %v3472
  %v3476 = vmul.f32 %v3467, %v3472
  %v3477 = vlaneseq
  %v3478 = vshrl.u32 %v3477, 7
  %v3479 = vsub.s32 1, %v3478
  %v3480 = vrot.slane %v3304, %v3479
  %v3481 = vadd.f32 %v3473, %v3480
  %v3482 = vadd.f32 %v3474, %v3480
  %v3483 = vadd.f32 %v3475, %v3480
  %v3484 = vadd.f32 %v3476, %v3480
  %v3485 = vmax.f32 %v3481, 0.0
  %v3486 = vmax.f32 %v3482, 0.0
  %v3487 = vmax.f32 %v3483, 0.0
  %v3488 = vmax.f32 %v3484, 0.0
  %v3489 = vmax.f32 %v3485, %v3486
  %v3490 = vmax.f32 %v3487, %v3488
  %v3491 = vmax.f32 %v3489, %v3490
  %v3492 = vld [vmem:[%s6] sm:$0xf]
  %v3493 = vld [vmem:[%s6 + $0x4] sm:$0xf]
  %v3494 = vld [vmem:[%s6 + $0x8] sm:$0xf]
  %v3495 = vld [vmem:[%s6 + $0xc] sm:$0xf]
  %v3496 = vld [vmem:[%s6 + $0x10] sm:$0xf]
  %v3497 = vld [vmem:[%s6 + $0x14] sm:$0xf]
  %v3498 = vld [vmem:[%s6 + $0x18] sm:$0xf]
  %v3499 = vld [vmem:[%s6 + $0x1c] sm:$0xf]
  %v3500 = vld [vmem:[%s6 + $0x20] sm:$0xf]
  %v3501 = vpack.c.bf16 %v3491, %v3491
  %v3511 = vunpack.c.l.b16 %v3492
  %v3512 = vunpack.c.l.b16 %v3493
  %v3513 = vunpack.c.l.b16 %v3494
  %v3514 = vunpack.c.l.b16 %v3495
  %v3515 = vunpack.c.l.b16 %v3496
  %v3516 = vunpack.c.l.b16 %v3497
  %v3517 = vunpack.c.l.b16 %v3498
  %v3518 = vunpack.c.l.b16 %v3499
  %v3519 = vunpack.c.l.b16 %v3500
  %v3520 = vpack.c.b16 %v3512, %v3511
  %v3521 = vpack.c.b16 %v3514, %v3513
  %v3522 = vpack.c.b16 %v3516, %v3515
  %v3523 = vpack.c.b16 %v3518, %v3517
  %v3524 = vpack.c.b16 %v3519, %v3519
  %vm3525 = vcmask 64512
  %v3527 = vsel %vm3525, %v3520, 0
  %v3530 = vsel %vm3525, %v3521, 0
  %v3533 = vsel %vm3525, %v3522, 0
  %v3536 = vsel %vm3525, %v3523, 0
  %v3539 = vsel %vm3525, %v3524, 0
  %vm3541 = vcmask 1043456
  %v3543 = vsel %vm3541, %v3501, 0
  %3545 = vmatprep.subr.bf16.mxu0 0
  %3546 = vmatpush1.bf16.msra.mxu0 0
  %3547 = vmatprep.subr.bf16.mxu0 0
  %3548 = vmatpush1.bf16.msra.mxu0 0
  %3549 = vmatprep.subr.bf16.mxu0 0
  %3550 = vmatpush1.bf16.msra.mxu0 0
  %3551 = vmatprep.subr.bf16.mxu0 0
  %3552 = vmatpush1.bf16.msra.mxu0 0
  %3553 = vmatprep.subr.bf16.mxu0 0
  %3554 = vmatpush1.bf16.msra.mxu0 0
  %3555 = vmatprep.subr.bf16.mxu0 0
  %3556 = vmatpush1.bf16.msra.mxu0 0
  %3557 = vmatprep.subr.bf16.mxu0 0
  %3558 = vmatpush1.bf16.msra.mxu0 0
  %3559 = vmatprep.subr.bf16.mxu0 0
  %3560 = vmatpush1.bf16.msra.mxu0 %v3543
  %3561 = vmatprep.subr.bf16.mxu0 0
  %3562 = vmatpush2.bf16.msra.mxu0 0
  %3563 = vmatprep.subr.bf16.mxu0 0
  %3564 = vmatpush2.bf16.msra.mxu0 0
  %3565 = vmatprep.subr.bf16.mxu0 0
  %3566 = vmatpush2.bf16.msra.mxu0 0
  %3567 = vmatprep.subr.bf16.mxu0 0
  %3568 = vmatpush2.bf16.msra.mxu0 0
  %3569 = vmatprep.subr.bf16.mxu0 0
  %3570 = vmatpush2.bf16.msra.mxu0 0
  %3571 = vmatprep.subr.bf16.mxu0 0
  %3572 = vmatpush2.bf16.msra.mxu0 0
  %3573 = vmatprep.subr.bf16.mxu0 0
  %3574 = vmatpush2.bf16.msra.mxu0 0
  %3575 = vmatprep.subr.bf16.mxu0 0
  %3576 = vmatpush2.bf16.msra.mxu0 0
  %3577 = vmatprep.mubr.bf16.mxu0 0
  %3578 = vmatmul.mubr.bf16.gmra.mxu0 %v3527
  %v3579 = vpop.f32.mrf.mxu0
  %v3580 = vadd.f32 0.0, %v3579
  %v3581 = vpop.f32.mrf.mxu0
  %v3582 = vpop.f32.mrf.mxu0
  %v3583 = vadd.f32 0.0, %v3582
  %v3584 = vpop.f32.mrf.mxu0
  %3585 = vmatprep.mubr.bf16.mxu0 0
  %3586 = vmatmul.mubr.bf16.gmra.mxu0 %v3530
  %v3587 = vpop.f32.mrf.mxu0
  %v3588 = vadd.f32 0.0, %v3587
  %v3589 = vpop.f32.mrf.mxu0
  %v3590 = vpop.f32.mrf.mxu0
  %v3591 = vadd.f32 0.0, %v3590
  %v3592 = vpop.f32.mrf.mxu0
  %3593 = vmatprep.mubr.bf16.mxu0 0
  %3594 = vmatmul.mubr.bf16.gmra.mxu0 %v3533
  %v3595 = vpop.f32.mrf.mxu0
  %v3596 = vadd.f32 0.0, %v3595
  %v3597 = vpop.f32.mrf.mxu0
  %v3598 = vpop.f32.mrf.mxu0
  %v3599 = vadd.f32 0.0, %v3598
  %v3600 = vpop.f32.mrf.mxu0
  %3601 = vmatprep.mubr.bf16.mxu0 0
  %3602 = vmatmul.mubr.bf16.gmra.mxu0 %v3536
  %v3603 = vpop.f32.mrf.mxu0
  %v3604 = vadd.f32 0.0, %v3603
  %v3605 = vpop.f32.mrf.mxu0
  %v3606 = vpop.f32.mrf.mxu0
  %v3607 = vadd.f32 0.0, %v3606
  %v3608 = vpop.f32.mrf.mxu0
  %3609 = vmatprep.mubr.bf16.mxu0 0
  %3610 = vmatmul.mubr.bf16.gmra.mxu0 %v3539
  %v3611 = vpop.f32.mrf.mxu0
  %v3612 = vadd.f32 0.0, %v3611
  %v3613 = vpop.f32.mrf.mxu0
  %v3614 = vpop.f32.mrf.mxu0
  %v3615 = vpop.f32.mrf.mxu0
  %3616 = vdwg.mxu0
  %s3617 = smul.u32 4, 144
  %s3618 = smul.u32 %s3617, 2
  %s3619 = sshll.u32 %s3618, 4
  %3620 = dma.done [#allocation5], %s3619
  %v3621 = vpack.c.bf16 %v3580, %v3580
  %v3622 = vld [vmem:[#allocation2] sm:$0xff]
  %v3623 = vld [vmem:[#allocation2 + $0x8] sm:$0xff]
  %v3624 = vld [vmem:[#allocation2 + $0x10] sm:$0xff]
  %v3625 = vld [vmem:[#allocation2 + $0x18] sm:$0xff]
  %v3626 = vld [vmem:[#allocation2 + $0x20] sm:$0xff]
  %v3627 = vld [vmem:[#allocation2 + $0x28] sm:$0xff]
  %v3628 = vld [vmem:[#allocation2 + $0x30] sm:$0xff]
  %v3629 = vld [vmem:[#allocation2 + $0x38] sm:$0xff]
  %v3630 = vld [vmem:[#allocation2 + $0x40] sm:$0xff]
  %v3631 = vld [vmem:[#allocation2 + $0x48] sm:$0xff]
  %v3632 = vld [vmem:[#allocation2 + $0x50] sm:$0xff]
  %v3633 = vld [vmem:[#allocation2 + $0x58] sm:$0xff]
  %v3634 = vld [vmem:[#allocation2 + $0x60] sm:$0xff]
  %v3635 = vld [vmem:[#allocation2 + $0x68] sm:$0xff]
  %v3636 = vld [vmem:[#allocation2 + $0x70] sm:$0xff]
  %v3637 = vld [vmem:[#allocation2 + $0x78] sm:$0xff]
  %v3638 = vpack.c.bf16 %v3583, %v3583
  %v3639 = vld [vmem:[#allocation2 + $0x80] sm:$0xff]
  %v3640 = vld [vmem:[#allocation2 + $0x88] sm:$0xff]
  %v3641 = vld [vmem:[#allocation2 + $0x90] sm:$0xff]
  %v3642 = vld [vmem:[#allocation2 + $0x98] sm:$0xff]
  %v3643 = vld [vmem:[#allocation2 + $0xa0] sm:$0xff]
  %v3644 = vld [vmem:[#allocation2 + $0xa8] sm:$0xff]
  %v3645 = vld [vmem:[#allocation2 + $0xb0] sm:$0xff]
  %v3646 = vld [vmem:[#allocation2 + $0xb8] sm:$0xff]
  %v3647 = vld [vmem:[#allocation2 + $0xc0] sm:$0xff]
  %v3648 = vld [vmem:[#allocation2 + $0xc8] sm:$0xff]
  %v3649 = vld [vmem:[#allocation2 + $0xd0] sm:$0xff]
  %v3650 = vld [vmem:[#allocation2 + $0xd8] sm:$0xff]
  %v3651 = vld [vmem:[#allocation2 + $0xe0] sm:$0xff]
  %v3652 = vld [vmem:[#allocation2 + $0xe8] sm:$0xff]
  %v3653 = vld [vmem:[#allocation2 + $0xf0] sm:$0xff]
  %v3654 = vld [vmem:[#allocation2 + $0xf8] sm:$0xff]
  %v3671 = vunpack.c.l.b16 %v3639
  %v3672 = vunpack.c.h.b16 %v3639
  %v3673 = vunpack.c.l.b16 %v3640
  %v3674 = vunpack.c.h.b16 %v3640
  %v3675 = vunpack.c.l.b16 %v3641
  %v3676 = vunpack.c.h.b16 %v3641
  %v3677 = vunpack.c.l.b16 %v3642
  %v3678 = vunpack.c.h.b16 %v3642
  %v3679 = vunpack.c.l.b16 %v3643
  %v3680 = vunpack.c.h.b16 %v3643
  %v3681 = vunpack.c.l.b16 %v3644
  %v3682 = vunpack.c.h.b16 %v3644
  %v3683 = vunpack.c.l.b16 %v3645
  %v3684 = vunpack.c.h.b16 %v3645
  %v3685 = vunpack.c.l.b16 %v3646
  %v3686 = vunpack.c.h.b16 %v3646
  %v3687 = vunpack.c.l.b16 %v3647
  %v3688 = vunpack.c.h.b16 %v3647
  %v3689 = vunpack.c.l.b16 %v3648
  %v3690 = vunpack.c.h.b16 %v3648
  %v3691 = vunpack.c.l.b16 %v3649
  %v3692 = vunpack.c.h.b16 %v3649
  %v3693 = vunpack.c.l.b16 %v3650
  %v3694 = vunpack.c.h.b16 %v3650
  %v3695 = vunpack.c.l.b16 %v3651
  %v3696 = vunpack.c.h.b16 %v3651
  %v3697 = vunpack.c.l.b16 %v3652
  %v3698 = vunpack.c.h.b16 %v3652
  %v3699 = vunpack.c.l.b16 %v3653
  %v3700 = vunpack.c.h.b16 %v3653
  %v3701 = vunpack.c.l.b16 %v3654
  %v3702 = vunpack.c.h.b16 %v3654
  %v3703 = vpack.c.b16 %v3673, %v3671
  %v3704 = vpack.c.b16 %v3674, %v3672
  %v3705 = vpack.c.b16 %v3677, %v3675
  %v3706 = vpack.c.b16 %v3678, %v3676
  %v3707 = vpack.c.b16 %v3681, %v3679
  %v3708 = vpack.c.b16 %v3682, %v3680
  %v3709 = vpack.c.b16 %v3685, %v3683
  %v3710 = vpack.c.b16 %v3686, %v3684
  %v3711 = vpack.c.b16 %v3689, %v3687
  %v3712 = vpack.c.b16 %v3690, %v3688
  %v3713 = vpack.c.b16 %v3693, %v3691
  %v3714 = vpack.c.b16 %v3694, %v3692
  %v3715 = vpack.c.b16 %v3697, %v3695
  %v3716 = vpack.c.b16 %v3698, %v3696
  %v3717 = vpack.c.b16 %v3701, %v3699
  %v3718 = vpack.c.b16 %v3702, %v3700
  %3735 = vmatprep.subr.bf16.mxu0 %v3718
  %3736 = vmatpush1.bf16.msra.mxu0 %v3717
  %3737 = vmatprep.subr.bf16.mxu0 %v3716
  %3738 = vmatpush1.bf16.msra.mxu0 %v3715
  %3739 = vmatprep.subr.bf16.mxu0 %v3714
  %3740 = vmatpush1.bf16.msra.mxu0 %v3713
  %3741 = vmatprep.subr.bf16.mxu0 %v3712
  %3742 = vmatpush1.bf16.msra.mxu0 %v3711
  %3743 = vmatprep.subr.bf16.mxu0 %v3710
  %3744 = vmatpush1.bf16.msra.mxu0 %v3709
  %3745 = vmatprep.subr.bf16.mxu0 %v3708
  %3746 = vmatpush1.bf16.msra.mxu0 %v3707
  %3747 = vmatprep.subr.bf16.mxu0 %v3706
  %3748 = vmatpush1.bf16.msra.mxu0 %v3705
  %3749 = vmatprep.subr.bf16.mxu0 %v3704
  %3750 = vmatpush1.bf16.msra.mxu0 %v3703
  %3751 = vmatprep.subr.bf16.mxu0 0
  %3752 = vmatpush2.bf16.msra.mxu0 0
  %3753 = vmatprep.subr.bf16.mxu0 0
  %3754 = vmatpush2.bf16.msra.mxu0 0
  %3755 = vmatprep.subr.bf16.mxu0 0
  %3756 = vmatpush2.bf16.msra.mxu0 0
  %3757 = vmatprep.subr.bf16.mxu0 0
  %3758 = vmatpush2.bf16.msra.mxu0 0
  %3759 = vmatprep.subr.bf16.mxu0 0
  %3760 = vmatpush2.bf16.msra.mxu0 0
  %3761 = vmatprep.subr.bf16.mxu0 0
  %3762 = vmatpush2.bf16.msra.mxu0 0
  %3763 = vmatprep.subr.bf16.mxu0 0
  %3764 = vmatpush2.bf16.msra.mxu0 0
  %3765 = vmatprep.subr.bf16.mxu0 0
  %3766 = vmatpush2.bf16.msra.mxu0 0
  %3767 = vmatprep.mubr.bf16.mxu0 0
  %3768 = vmatmul.mubr.bf16.gmra.mxu0 %v3638
  %v3769 = vpop.f32.mrf.mxu0
  %v3770 = vadd.f32 0.0, %v3769
  %v3771 = vpop.f32.mrf.mxu0
  %v3772 = vadd.f32 0.0, %v3771
  %v3773 = vpop.f32.mrf.mxu0
  %v3774 = vpop.f32.mrf.mxu0
  %3775 = vdwg.mxu0
  %v3792 = vunpack.c.l.b16 %v3622
  %v3793 = vunpack.c.h.b16 %v3622
  %v3794 = vunpack.c.l.b16 %v3623
  %v3795 = vunpack.c.h.b16 %v3623
  %v3796 = vunpack.c.l.b16 %v3624
  %v3797 = vunpack.c.h.b16 %v3624
  %v3798 = vunpack.c.l.b16 %v3625
  %v3799 = vunpack.c.h.b16 %v3625
  %v3800 = vunpack.c.l.b16 %v3626
  %v3801 = vunpack.c.h.b16 %v3626
  %v3802 = vunpack.c.l.b16 %v3627
  %v3803 = vunpack.c.h.b16 %v3627
  %v3804 = vunpack.c.l.b16 %v3628
  %v3805 = vunpack.c.h.b16 %v3628
  %v3806 = vunpack.c.l.b16 %v3629
  %v3807 = vunpack.c.h.b16 %v3629
  %v3808 = vunpack.c.l.b16 %v3630
  %v3809 = vunpack.c.h.b16 %v3630
  %v3810 = vunpack.c.l.b16 %v3631
  %v3811 = vunpack.c.h.b16 %v3631
  %v3812 = vunpack.c.l.b16 %v3632
  %v3813 = vunpack.c.h.b16 %v3632
  %v3814 = vunpack.c.l.b16 %v3633
  %v3815 = vunpack.c.h.b16 %v3633
  %v3816 = vunpack.c.l.b16 %v3634
  %v3817 = vunpack.c.h.b16 %v3634
  %v3818 = vunpack.c.l.b16 %v3635
  %v3819 = vunpack.c.h.b16 %v3635
  %v3820 = vunpack.c.l.b16 %v3636
  %v3821 = vunpack.c.h.b16 %v3636
  %v3822 = vunpack.c.l.b16 %v3637
  %v3823 = vunpack.c.h.b16 %v3637
  %v3824 = vpack.c.b16 %v3794, %v3792
  %v3825 = vpack.c.b16 %v3795, %v3793
  %v3826 = vpack.c.b16 %v3798, %v3796
  %v3827 = vpack.c.b16 %v3799, %v3797
  %v3828 = vpack.c.b16 %v3802, %v3800
  %v3829 = vpack.c.b16 %v3803, %v3801
  %v3830 = vpack.c.b16 %v3806, %v3804
  %v3831 = vpack.c.b16 %v3807, %v3805
  %v3832 = vpack.c.b16 %v3810, %v3808
  %v3833 = vpack.c.b16 %v3811, %v3809
  %v3834 = vpack.c.b16 %v3814, %v3812
  %v3835 = vpack.c.b16 %v3815, %v3813
  %v3836 = vpack.c.b16 %v3818, %v3816
  %v3837 = vpack.c.b16 %v3819, %v3817
  %v3838 = vpack.c.b16 %v3822, %v3820
  %v3839 = vpack.c.b16 %v3823, %v3821
  %3856 = vmatprep.subr.bf16.mxu0 %v3839
  %3857 = vmatpush1.bf16.msra.mxu0 %v3838
  %3858 = vmatprep.subr.bf16.mxu0 %v3837
  %3859 = vmatpush1.bf16.msra.mxu0 %v3836
  %3860 = vmatprep.subr.bf16.mxu0 %v3835
  %3861 = vmatpush1.bf16.msra.mxu0 %v3834
  %3862 = vmatprep.subr.bf16.mxu0 %v3833
  %3863 = vmatpush1.bf16.msra.mxu0 %v3832
  %3864 = vmatprep.subr.bf16.mxu0 %v3831
  %3865 = vmatpush1.bf16.msra.mxu0 %v3830
  %3866 = vmatprep.subr.bf16.mxu0 %v3829
  %3867 = vmatpush1.bf16.msra.mxu0 %v3828
  %3868 = vmatprep.subr.bf16.mxu0 %v3827
  %3869 = vmatpush1.bf16.msra.mxu0 %v3826
  %3870 = vmatprep.subr.bf16.mxu0 %v3825
  %3871 = vmatpush1.bf16.msra.mxu0 %v3824
  %3872 = vmatprep.subr.bf16.mxu0 0
  %3873 = vmatpush2.bf16.msra.mxu0 0
  %3874 = vmatprep.subr.bf16.mxu0 0
  %3875 = vmatpush2.bf16.msra.mxu0 0
  %3876 = vmatprep.subr.bf16.mxu0 0
  %3877 = vmatpush2.bf16.msra.mxu0 0
  %3878 = vmatprep.subr.bf16.mxu0 0
  %3879 = vmatpush2.bf16.msra.mxu0 0
  %3880 = vmatprep.subr.bf16.mxu0 0
  %3881 = vmatpush2.bf16.msra.mxu0 0
  %3882 = vmatprep.subr.bf16.mxu0 0
  %3883 = vmatpush2.bf16.msra.mxu0 0
  %3884 = vmatprep.subr.bf16.mxu0 0
  %3885 = vmatpush2.bf16.msra.mxu0 0
  %3886 = vmatprep.subr.bf16.mxu0 0
  %3887 = vmatpush2.bf16.msra.mxu0 0
  %3888 = vmatprep.mubr.bf16.mxu0 0
  %3889 = vmatmul.mubr.bf16.gmra.mxu0 %v3621
  %v3890 = vpop.f32.mrf.mxu0
  %v3891 = vadd.f32 %v3770, %v3890
  %v3892 = vpop.f32.mrf.mxu0
  %v3893 = vadd.f32 %v3772, %v3892
  %v3894 = vpop.f32.mrf.mxu0
  %v3895 = vpop.f32.mrf.mxu0
  %3896 = vdwg.mxu0
  %v3897 = vpack.c.bf16 %v3588, %v3588
  %v3898 = vld [vmem:[#allocation2 + $0x100] sm:$0xff]
  %v3899 = vld [vmem:[#allocation2 + $0x108] sm:$0xff]
  %v3900 = vld [vmem:[#allocation2 + $0x110] sm:$0xff]
  %v3901 = vld [vmem:[#allocation2 + $0x118] sm:$0xff]
  %v3902 = vld [vmem:[#allocation2 + $0x120] sm:$0xff]
  %v3903 = vld [vmem:[#allocation2 + $0x128] sm:$0xff]
  %v3904 = vld [vmem:[#allocation2 + $0x130] sm:$0xff]
  %v3905 = vld [vmem:[#allocation2 + $0x138] sm:$0xff]
  %v3906 = vld [vmem:[#allocation2 + $0x140] sm:$0xff]
  %v3907 = vld [vmem:[#allocation2 + $0x148] sm:$0xff]
  %v3908 = vld [vmem:[#allocation2 + $0x150] sm:$0xff]
  %v3909 = vld [vmem:[#allocation2 + $0x158] sm:$0xff]
  %v3910 = vld [vmem:[#allocation2 + $0x160] sm:$0xff]
  %v3911 = vld [vmem:[#allocation2 + $0x168] sm:$0xff]
  %v3912 = vld [vmem:[#allocation2 + $0x170] sm:$0xff]
  %v3913 = vld [vmem:[#allocation2 + $0x178] sm:$0xff]
  %v3930 = vunpack.c.l.b16 %v3898
  %v3931 = vunpack.c.h.b16 %v3898
  %v3932 = vunpack.c.l.b16 %v3899
  %v3933 = vunpack.c.h.b16 %v3899
  %v3934 = vunpack.c.l.b16 %v3900
  %v3935 = vunpack.c.h.b16 %v3900
  %v3936 = vunpack.c.l.b16 %v3901
  %v3937 = vunpack.c.h.b16 %v3901
  %v3938 = vunpack.c.l.b16 %v3902
  %v3939 = vunpack.c.h.b16 %v3902
  %v3940 = vunpack.c.l.b16 %v3903
  %v3941 = vunpack.c.h.b16 %v3903
  %v3942 = vunpack.c.l.b16 %v3904
  %v3943 = vunpack.c.h.b16 %v3904
  %v3944 = vunpack.c.l.b16 %v3905
  %v3945 = vunpack.c.h.b16 %v3905
  %v3946 = vunpack.c.l.b16 %v3906
  %v3947 = vunpack.c.h.b16 %v3906
  %v3948 = vunpack.c.l.b16 %v3907
  %v3949 = vunpack.c.h.b16 %v3907
  %v3950 = vunpack.c.l.b16 %v3908
  %v3951 = vunpack.c.h.b16 %v3908
  %v3952 = vunpack.c.l.b16 %v3909
  %v3953 = vunpack.c.h.b16 %v3909
  %v3954 = vunpack.c.l.b16 %v3910
  %v3955 = vunpack.c.h.b16 %v3910
  %v3956 = vunpack.c.l.b16 %v3911
  %v3957 = vunpack.c.h.b16 %v3911
  %v3958 = vunpack.c.l.b16 %v3912
  %v3959 = vunpack.c.h.b16 %v3912
  %v3960 = vunpack.c.l.b16 %v3913
  %v3961 = vunpack.c.h.b16 %v3913
  %v3962 = vpack.c.b16 %v3932, %v3930
  %v3963 = vpack.c.b16 %v3933, %v3931
  %v3964 = vpack.c.b16 %v3936, %v3934
  %v3965 = vpack.c.b16 %v3937, %v3935
  %v3966 = vpack.c.b16 %v3940, %v3938
  %v3967 = vpack.c.b16 %v3941, %v3939
  %v3968 = vpack.c.b16 %v3944, %v3942
  %v3969 = vpack.c.b16 %v3945, %v3943
  %v3970 = vpack.c.b16 %v3948, %v3946
  %v3971 = vpack.c.b16 %v3949, %v3947
  %v3972 = vpack.c.b16 %v3952, %v3950
  %v3973 = vpack.c.b16 %v3953, %v3951
  %v3974 = vpack.c.b16 %v3956, %v3954
  %v3975 = vpack.c.b16 %v3957, %v3955
  %v3976 = vpack.c.b16 %v3960, %v3958
  %v3977 = vpack.c.b16 %v3961, %v3959
  %3994 = vmatprep.subr.bf16.mxu0 %v3977
  %3995 = vmatpush1.bf16.msra.mxu0 %v3976
  %3996 = vmatprep.subr.bf16.mxu0 %v3975
  %3997 = vmatpush1.bf16.msra.mxu0 %v3974
  %3998 = vmatprep.subr.bf16.mxu0 %v3973
  %3999 = vmatpush1.bf16.msra.mxu0 %v3972
  %4000 = vmatprep.subr.bf16.mxu0 %v3971
  %4001 = vmatpush1.bf16.msra.mxu0 %v3970
  %4002 = vmatprep.subr.bf16.mxu0 %v3969
  %4003 = vmatpush1.bf16.msra.mxu0 %v3968
  %4004 = vmatprep.subr.bf16.mxu0 %v3967
  %4005 = vmatpush1.bf16.msra.mxu0 %v3966
  %4006 = vmatprep.subr.bf16.mxu0 %v3965
  %4007 = vmatpush1.bf16.msra.mxu0 %v3964
  %4008 = vmatprep.subr.bf16.mxu0 %v3963
  %4009 = vmatpush1.bf16.msra.mxu0 %v3962
  %4010 = vmatprep.subr.bf16.mxu0 0
  %4011 = vmatpush2.bf16.msra.mxu0 0
  %4012 = vmatprep.subr.bf16.mxu0 0
  %4013 = vmatpush2.bf16.msra.mxu0 0
  %4014 = vmatprep.subr.bf16.mxu0 0
  %4015 = vmatpush2.bf16.msra.mxu0 0
  %4016 = vmatprep.subr.bf16.mxu0 0
  %4017 = vmatpush2.bf16.msra.mxu0 0
  %4018 = vmatprep.subr.bf16.mxu0 0
  %4019 = vmatpush2.bf16.msra.mxu0 0
  %4020 = vmatprep.subr.bf16.mxu0 0
  %4021 = vmatpush2.bf16.msra.mxu0 0
  %4022 = vmatprep.subr.bf16.mxu0 0
  %4023 = vmatpush2.bf16.msra.mxu0 0
  %4024 = vmatprep.subr.bf16.mxu0 0
  %4025 = vmatpush2.bf16.msra.mxu0 0
  %4026 = vmatprep.mubr.bf16.mxu0 0
  %4027 = vmatmul.mubr.bf16.gmra.mxu0 %v3897
  %v4028 = vpop.f32.mrf.mxu0
  %v4029 = vadd.f32 0.0, %v4028
  %v4030 = vpop.f32.mrf.mxu0
  %v4031 = vadd.f32 0.0, %v4030
  %v4032 = vpop.f32.mrf.mxu0
  %v4033 = vpop.f32.mrf.mxu0
  %4034 = vdwg.mxu0
  %v4035 = vadd.f32 %v3891, %v4029
  %v4036 = vadd.f32 %v3893, %v4031
  %v4037 = vpack.c.bf16 %v3591, %v3591
  %v4038 = vld [vmem:[#allocation2 + $0x180] sm:$0xff]
  %v4039 = vld [vmem:[#allocation2 + $0x188] sm:$0xff]
  %v4040 = vld [vmem:[#allocation2 + $0x190] sm:$0xff]
  %v4041 = vld [vmem:[#allocation2 + $0x198] sm:$0xff]
  %v4042 = vld [vmem:[#allocation2 + $0x1a0] sm:$0xff]
  %v4043 = vld [vmem:[#allocation2 + $0x1a8] sm:$0xff]
  %v4044 = vld [vmem:[#allocation2 + $0x1b0] sm:$0xff]
  %v4045 = vld [vmem:[#allocation2 + $0x1b8] sm:$0xff]
  %v4046 = vld [vmem:[#allocation2 + $0x1c0] sm:$0xff]
  %v4047 = vld [vmem:[#allocation2 + $0x1c8] sm:$0xff]
  %v4048 = vld [vmem:[#allocation2 + $0x1d0] sm:$0xff]
  %v4049 = vld [vmem:[#allocation2 + $0x1d8] sm:$0xff]
  %v4050 = vld [vmem:[#allocation2 + $0x1e0] sm:$0xff]
  %v4051 = vld [vmem:[#allocation2 + $0x1e8] sm:$0xff]
  %v4052 = vld [vmem:[#allocation2 + $0x1f0] sm:$0xff]
  %v4053 = vld [vmem:[#allocation2 + $0x1f8] sm:$0xff]
  %v4070 = vunpack.c.l.b16 %v4038
  %v4071 = vunpack.c.h.b16 %v4038
  %v4072 = vunpack.c.l.b16 %v4039
  %v4073 = vunpack.c.h.b16 %v4039
  %v4074 = vunpack.c.l.b16 %v4040
  %v4075 = vunpack.c.h.b16 %v4040
  %v4076 = vunpack.c.l.b16 %v4041
  %v4077 = vunpack.c.h.b16 %v4041
  %v4078 = vunpack.c.l.b16 %v4042
  %v4079 = vunpack.c.h.b16 %v4042
  %v4080 = vunpack.c.l.b16 %v4043
  %v4081 = vunpack.c.h.b16 %v4043
  %v4082 = vunpack.c.l.b16 %v4044
  %v4083 = vunpack.c.h.b16 %v4044
  %v4084 = vunpack.c.l.b16 %v4045
  %v4085 = vunpack.c.h.b16 %v4045
  %v4086 = vunpack.c.l.b16 %v4046
  %v4087 = vunpack.c.h.b16 %v4046
  %v4088 = vunpack.c.l.b16 %v4047
  %v4089 = vunpack.c.h.b16 %v4047
  %v4090 = vunpack.c.l.b16 %v4048
  %v4091 = vunpack.c.h.b16 %v4048
  %v4092 = vunpack.c.l.b16 %v4049
  %v4093 = vunpack.c.h.b16 %v4049
  %v4094 = vunpack.c.l.b16 %v4050
  %v4095 = vunpack.c.h.b16 %v4050
  %v4096 = vunpack.c.l.b16 %v4051
  %v4097 = vunpack.c.h.b16 %v4051
  %v4098 = vunpack.c.l.b16 %v4052
  %v4099 = vunpack.c.h.b16 %v4052
  %v4100 = vunpack.c.l.b16 %v4053
  %v4101 = vunpack.c.h.b16 %v4053
  %v4102 = vpack.c.b16 %v4072, %v4070
  %v4103 = vpack.c.b16 %v4073, %v4071
  %v4104 = vpack.c.b16 %v4076, %v4074
  %v4105 = vpack.c.b16 %v4077, %v4075
  %v4106 = vpack.c.b16 %v4080, %v4078
  %v4107 = vpack.c.b16 %v4081, %v4079
  %v4108 = vpack.c.b16 %v4084, %v4082
  %v4109 = vpack.c.b16 %v4085, %v4083
  %v4110 = vpack.c.b16 %v4088, %v4086
  %v4111 = vpack.c.b16 %v4089, %v4087
  %v4112 = vpack.c.b16 %v4092, %v4090
  %v4113 = vpack.c.b16 %v4093, %v4091
  %v4114 = vpack.c.b16 %v4096, %v4094
  %v4115 = vpack.c.b16 %v4097, %v4095
  %v4116 = vpack.c.b16 %v4100, %v4098
  %v4117 = vpack.c.b16 %v4101, %v4099
  %4134 = vmatprep.subr.bf16.mxu0 %v4117
  %4135 = vmatpush1.bf16.msra.mxu0 %v4116
  %4136 = vmatprep.subr.bf16.mxu0 %v4115
  %4137 = vmatpush1.bf16.msra.mxu0 %v4114
  %4138 = vmatprep.subr.bf16.mxu0 %v4113
  %4139 = vmatpush1.bf16.msra.mxu0 %v4112
  %4140 = vmatprep.subr.bf16.mxu0 %v4111
  %4141 = vmatpush1.bf16.msra.mxu0 %v4110
  %4142 = vmatprep.subr.bf16.mxu0 %v4109
  %4143 = vmatpush1.bf16.msra.mxu0 %v4108
  %4144 = vmatprep.subr.bf16.mxu0 %v4107
  %4145 = vmatpush1.bf16.msra.mxu0 %v4106
  %4146 = vmatprep.subr.bf16.mxu0 %v4105
  %4147 = vmatpush1.bf16.msra.mxu0 %v4104
  %4148 = vmatprep.subr.bf16.mxu0 %v4103
  %4149 = vmatpush1.bf16.msra.mxu0 %v4102
  %4150 = vmatprep.subr.bf16.mxu0 0
  %4151 = vmatpush2.bf16.msra.mxu0 0
  %4152 = vmatprep.subr.bf16.mxu0 0
  %4153 = vmatpush2.bf16.msra.mxu0 0
  %4154 = vmatprep.subr.bf16.mxu0 0
  %4155 = vmatpush2.bf16.msra.mxu0 0
  %4156 = vmatprep.subr.bf16.mxu0 0
  %4157 = vmatpush2.bf16.msra.mxu0 0
  %4158 = vmatprep.subr.bf16.mxu0 0
  %4159 = vmatpush2.bf16.msra.mxu0 0
  %4160 = vmatprep.subr.bf16.mxu0 0
  %4161 = vmatpush2.bf16.msra.mxu0 0
  %4162 = vmatprep.subr.bf16.mxu0 0
  %4163 = vmatpush2.bf16.msra.mxu0 0
  %4164 = vmatprep.subr.bf16.mxu0 0
  %4165 = vmatpush2.bf16.msra.mxu0 0
  %4166 = vmatprep.mubr.bf16.mxu0 0
  %4167 = vmatmul.mubr.bf16.gmra.mxu0 %v4037
  %v4168 = vpop.f32.mrf.mxu0
  %v4169 = vadd.f32 0.0, %v4168
  %v4170 = vpop.f32.mrf.mxu0
  %v4171 = vadd.f32 0.0, %v4170
  %v4172 = vpop.f32.mrf.mxu0
  %v4173 = vpop.f32.mrf.mxu0
  %4174 = vdwg.mxu0
  %v4175 = vadd.f32 %v4035, %v4169
  %v4176 = vadd.f32 %v4036, %v4171
  %v4177 = vpack.c.bf16 %v3596, %v3596
  %v4178 = vld [vmem:[#allocation2 + $0x200] sm:$0xff]
  %v4179 = vld [vmem:[#allocation2 + $0x208] sm:$0xff]
  %v4180 = vld [vmem:[#allocation2 + $0x210] sm:$0xff]
  %v4181 = vld [vmem:[#allocation2 + $0x218] sm:$0xff]
  %v4182 = vld [vmem:[#allocation2 + $0x220] sm:$0xff]
  %v4183 = vld [vmem:[#allocation2 + $0x228] sm:$0xff]
  %v4184 = vld [vmem:[#allocation2 + $0x230] sm:$0xff]
  %v4185 = vld [vmem:[#allocation2 + $0x238] sm:$0xff]
  %v4186 = vld [vmem:[#allocation2 + $0x240] sm:$0xff]
  %v4187 = vld [vmem:[#allocation2 + $0x248] sm:$0xff]
  %v4188 = vld [vmem:[#allocation2 + $0x250] sm:$0xff]
  %v4189 = vld [vmem:[#allocation2 + $0x258] sm:$0xff]
  %v4190 = vld [vmem:[#allocation2 + $0x260] sm:$0xff]
  %v4191 = vld [vmem:[#allocation2 + $0x268] sm:$0xff]
  %v4192 = vld [vmem:[#allocation2 + $0x270] sm:$0xff]
  %v4193 = vld [vmem:[#allocation2 + $0x278] sm:$0xff]
  %v4210 = vunpack.c.l.b16 %v4178
  %v4211 = vunpack.c.h.b16 %v4178
  %v4212 = vunpack.c.l.b16 %v4179
  %v4213 = vunpack.c.h.b16 %v4179
  %v4214 = vunpack.c.l.b16 %v4180
  %v4215 = vunpack.c.h.b16 %v4180
  %v4216 = vunpack.c.l.b16 %v4181
  %v4217 = vunpack.c.h.b16 %v4181
  %v4218 = vunpack.c.l.b16 %v4182
  %v4219 = vunpack.c.h.b16 %v4182
  %v4220 = vunpack.c.l.b16 %v4183
  %v4221 = vunpack.c.h.b16 %v4183
  %v4222 = vunpack.c.l.b16 %v4184
  %v4223 = vunpack.c.h.b16 %v4184
  %v4224 = vunpack.c.l.b16 %v4185
  %v4225 = vunpack.c.h.b16 %v4185
  %v4226 = vunpack.c.l.b16 %v4186
  %v4227 = vunpack.c.h.b16 %v4186
  %v4228 = vunpack.c.l.b16 %v4187
  %v4229 = vunpack.c.h.b16 %v4187
  %v4230 = vunpack.c.l.b16 %v4188
  %v4231 = vunpack.c.h.b16 %v4188
  %v4232 = vunpack.c.l.b16 %v4189
  %v4233 = vunpack.c.h.b16 %v4189
  %v4234 = vunpack.c.l.b16 %v4190
  %v4235 = vunpack.c.h.b16 %v4190
  %v4236 = vunpack.c.l.b16 %v4191
  %v4237 = vunpack.c.h.b16 %v4191
  %v4238 = vunpack.c.l.b16 %v4192
  %v4239 = vunpack.c.h.b16 %v4192
  %v4240 = vunpack.c.l.b16 %v4193
  %v4241 = vunpack.c.h.b16 %v4193
  %v4242 = vpack.c.b16 %v4212, %v4210
  %v4243 = vpack.c.b16 %v4213, %v4211
  %v4244 = vpack.c.b16 %v4216, %v4214
  %v4245 = vpack.c.b16 %v4217, %v4215
  %v4246 = vpack.c.b16 %v4220, %v4218
  %v4247 = vpack.c.b16 %v4221, %v4219
  %v4248 = vpack.c.b16 %v4224, %v4222
  %v4249 = vpack.c.b16 %v4225, %v4223
  %v4250 = vpack.c.b16 %v4228, %v4226
  %v4251 = vpack.c.b16 %v4229, %v4227
  %v4252 = vpack.c.b16 %v4232, %v4230
  %v4253 = vpack.c.b16 %v4233, %v4231
  %v4254 = vpack.c.b16 %v4236, %v4234
  %v4255 = vpack.c.b16 %v4237, %v4235
  %v4256 = vpack.c.b16 %v4240, %v4238
  %v4257 = vpack.c.b16 %v4241, %v4239
  %4274 = vmatprep.subr.bf16.mxu0 %v4257
  %4275 = vmatpush1.bf16.msra.mxu0 %v4256
  %4276 = vmatprep.subr.bf16.mxu0 %v4255
  %4277 = vmatpush1.bf16.msra.mxu0 %v4254
  %4278 = vmatprep.subr.bf16.mxu0 %v4253
  %4279 = vmatpush1.bf16.msra.mxu0 %v4252
  %4280 = vmatprep.subr.bf16.mxu0 %v4251
  %4281 = vmatpush1.bf16.msra.mxu0 %v4250
  %4282 = vmatprep.subr.bf16.mxu0 %v4249
  %4283 = vmatpush1.bf16.msra.mxu0 %v4248
  %4284 = vmatprep.subr.bf16.mxu0 %v4247
  %4285 = vmatpush1.bf16.msra.mxu0 %v4246
  %4286 = vmatprep.subr.bf16.mxu0 %v4245
  %4287 = vmatpush1.bf16.msra.mxu0 %v4244
  %4288 = vmatprep.subr.bf16.mxu0 %v4243
  %4289 = vmatpush1.bf16.msra.mxu0 %v4242
  %4290 = vmatprep.subr.bf16.mxu0 0
  %4291 = vmatpush2.bf16.msra.mxu0 0
  %4292 = vmatprep.subr.bf16.mxu0 0
  %4293 = vmatpush2.bf16.msra.mxu0 0
  %4294 = vmatprep.subr.bf16.mxu0 0
  %4295 = vmatpush2.bf16.msra.mxu0 0
  %4296 = vmatprep.subr.bf16.mxu0 0
  %4297 = vmatpush2.bf16.msra.mxu0 0
  %4298 = vmatprep.subr.bf16.mxu0 0
  %4299 = vmatpush2.bf16.msra.mxu0 0
  %4300 = vmatprep.subr.bf16.mxu0 0
  %4301 = vmatpush2.bf16.msra.mxu0 0
  %4302 = vmatprep.subr.bf16.mxu0 0
  %4303 = vmatpush2.bf16.msra.mxu0 0
  %4304 = vmatprep.subr.bf16.mxu0 0
  %4305 = vmatpush2.bf16.msra.mxu0 0
  %4306 = vmatprep.mubr.bf16.mxu0 0
  %4307 = vmatmul.mubr.bf16.gmra.mxu0 %v4177
  %v4308 = vpop.f32.mrf.mxu0
  %v4309 = vadd.f32 0.0, %v4308
  %v4310 = vpop.f32.mrf.mxu0
  %v4311 = vadd.f32 0.0, %v4310
  %v4312 = vpop.f32.mrf.mxu0
  %v4313 = vpop.f32.mrf.mxu0
  %4314 = vdwg.mxu0
  %v4315 = vadd.f32 %v4175, %v4309
  %v4316 = vadd.f32 %v4176, %v4311
  %v4317 = vpack.c.bf16 %v3599, %v3599
  %v4318 = vld [vmem:[#allocation2 + $0x280] sm:$0xff]
  %v4319 = vld [vmem:[#allocation2 + $0x288] sm:$0xff]
  %v4320 = vld [vmem:[#allocation2 + $0x290] sm:$0xff]
  %v4321 = vld [vmem:[#allocation2 + $0x298] sm:$0xff]
  %v4322 = vld [vmem:[#allocation2 + $0x2a0] sm:$0xff]
  %v4323 = vld [vmem:[#allocation2 + $0x2a8] sm:$0xff]
  %v4324 = vld [vmem:[#allocation2 + $0x2b0] sm:$0xff]
  %v4325 = vld [vmem:[#allocation2 + $0x2b8] sm:$0xff]
  %v4326 = vld [vmem:[#allocation2 + $0x2c0] sm:$0xff]
  %v4327 = vld [vmem:[#allocation2 + $0x2c8] sm:$0xff]
  %v4328 = vld [vmem:[#allocation2 + $0x2d0] sm:$0xff]
  %v4329 = vld [vmem:[#allocation2 + $0x2d8] sm:$0xff]
  %v4330 = vld [vmem:[#allocation2 + $0x2e0] sm:$0xff]
  %v4331 = vld [vmem:[#allocation2 + $0x2e8] sm:$0xff]
  %v4332 = vld [vmem:[#allocation2 + $0x2f0] sm:$0xff]
  %v4333 = vld [vmem:[#allocation2 + $0x2f8] sm:$0xff]
  %v4350 = vunpack.c.l.b16 %v4318
  %v4351 = vunpack.c.h.b16 %v4318
  %v4352 = vunpack.c.l.b16 %v4319
  %v4353 = vunpack.c.h.b16 %v4319
  %v4354 = vunpack.c.l.b16 %v4320
  %v4355 = vunpack.c.h.b16 %v4320
  %v4356 = vunpack.c.l.b16 %v4321
  %v4357 = vunpack.c.h.b16 %v4321
  %v4358 = vunpack.c.l.b16 %v4322
  %v4359 = vunpack.c.h.b16 %v4322
  %v4360 = vunpack.c.l.b16 %v4323
  %v4361 = vunpack.c.h.b16 %v4323
  %v4362 = vunpack.c.l.b16 %v4324
  %v4363 = vunpack.c.h.b16 %v4324
  %v4364 = vunpack.c.l.b16 %v4325
  %v4365 = vunpack.c.h.b16 %v4325
  %v4366 = vunpack.c.l.b16 %v4326
  %v4367 = vunpack.c.h.b16 %v4326
  %v4368 = vunpack.c.l.b16 %v4327
  %v4369 = vunpack.c.h.b16 %v4327
  %v4370 = vunpack.c.l.b16 %v4328
  %v4371 = vunpack.c.h.b16 %v4328
  %v4372 = vunpack.c.l.b16 %v4329
  %v4373 = vunpack.c.h.b16 %v4329
  %v4374 = vunpack.c.l.b16 %v4330
  %v4375 = vunpack.c.h.b16 %v4330
  %v4376 = vunpack.c.l.b16 %v4331
  %v4377 = vunpack.c.h.b16 %v4331
  %v4378 = vunpack.c.l.b16 %v4332
  %v4379 = vunpack.c.h.b16 %v4332
  %v4380 = vunpack.c.l.b16 %v4333
  %v4381 = vunpack.c.h.b16 %v4333
  %v4382 = vpack.c.b16 %v4352, %v4350
  %v4383 = vpack.c.b16 %v4353, %v4351
  %v4384 = vpack.c.b16 %v4356, %v4354
  %v4385 = vpack.c.b16 %v4357, %v4355
  %v4386 = vpack.c.b16 %v4360, %v4358
  %v4387 = vpack.c.b16 %v4361, %v4359
  %v4388 = vpack.c.b16 %v4364, %v4362
  %v4389 = vpack.c.b16 %v4365, %v4363
  %v4390 = vpack.c.b16 %v4368, %v4366
  %v4391 = vpack.c.b16 %v4369, %v4367
  %v4392 = vpack.c.b16 %v4372, %v4370
  %v4393 = vpack.c.b16 %v4373, %v4371
  %v4394 = vpack.c.b16 %v4376, %v4374
  %v4395 = vpack.c.b16 %v4377, %v4375
  %v4396 = vpack.c.b16 %v4380, %v4378
  %v4397 = vpack.c.b16 %v4381, %v4379
  %4414 = vmatprep.subr.bf16.mxu0 %v4397
  %4415 = vmatpush1.bf16.msra.mxu0 %v4396
  %4416 = vmatprep.subr.bf16.mxu0 %v4395
  %4417 = vmatpush1.bf16.msra.mxu0 %v4394
  %4418 = vmatprep.subr.bf16.mxu0 %v4393
  %4419 = vmatpush1.bf16.msra.mxu0 %v4392
  %4420 = vmatprep.subr.bf16.mxu0 %v4391
  %4421 = vmatpush1.bf16.msra.mxu0 %v4390
  %4422 = vmatprep.subr.bf16.mxu0 %v4389
  %4423 = vmatpush1.bf16.msra.mxu0 %v4388
  %4424 = vmatprep.subr.bf16.mxu0 %v4387
  %4425 = vmatpush1.bf16.msra.mxu0 %v4386
  %4426 = vmatprep.subr.bf16.mxu0 %v4385
  %4427 = vmatpush1.bf16.msra.mxu0 %v4384
  %4428 = vmatprep.subr.bf16.mxu0 %v4383
  %4429 = vmatpush1.bf16.msra.mxu0 %v4382
  %4430 = vmatprep.subr.bf16.mxu0 0
  %4431 = vmatpush2.bf16.msra.mxu0 0
  %4432 = vmatprep.subr.bf16.mxu0 0
  %4433 = vmatpush2.bf16.msra.mxu0 0
  %4434 = vmatprep.subr.bf16.mxu0 0
  %4435 = vmatpush2.bf16.msra.mxu0 0
  %4436 = vmatprep.subr.bf16.mxu0 0
  %4437 = vmatpush2.bf16.msra.mxu0 0
  %4438 = vmatprep.subr.bf16.mxu0 0
  %4439 = vmatpush2.bf16.msra.mxu0 0
  %4440 = vmatprep.subr.bf16.mxu0 0
  %4441 = vmatpush2.bf16.msra.mxu0 0
  %4442 = vmatprep.subr.bf16.mxu0 0
  %4443 = vmatpush2.bf16.msra.mxu0 0
  %4444 = vmatprep.subr.bf16.mxu0 0
  %4445 = vmatpush2.bf16.msra.mxu0 0
  %4446 = vmatprep.mubr.bf16.mxu0 0
  %4447 = vmatmul.mubr.bf16.gmra.mxu0 %v4317
  %v4448 = vpop.f32.mrf.mxu0
  %v4449 = vadd.f32 0.0, %v4448
  %v4450 = vpop.f32.mrf.mxu0
  %v4451 = vadd.f32 0.0, %v4450
  %v4452 = vpop.f32.mrf.mxu0
  %v4453 = vpop.f32.mrf.mxu0
  %4454 = vdwg.mxu0
  %v4455 = vadd.f32 %v4315, %v4449
  %v4456 = vadd.f32 %v4316, %v4451
  %v4457 = vpack.c.bf16 %v3604, %v3604
  %v4458 = vld [vmem:[#allocation2 + $0x300] sm:$0xff]
  %v4459 = vld [vmem:[#allocation2 + $0x308] sm:$0xff]
  %v4460 = vld [vmem:[#allocation2 + $0x310] sm:$0xff]
  %v4461 = vld [vmem:[#allocation2 + $0x318] sm:$0xff]
  %v4462 = vld [vmem:[#allocation2 + $0x320] sm:$0xff]
  %v4463 = vld [vmem:[#allocation2 + $0x328] sm:$0xff]
  %v4464 = vld [vmem:[#allocation2 + $0x330] sm:$0xff]
  %v4465 = vld [vmem:[#allocation2 + $0x338] sm:$0xff]
  %v4466 = vld [vmem:[#allocation2 + $0x340] sm:$0xff]
  %v4467 = vld [vmem:[#allocation2 + $0x348] sm:$0xff]
  %v4468 = vld [vmem:[#allocation2 + $0x350] sm:$0xff]
  %v4469 = vld [vmem:[#allocation2 + $0x358] sm:$0xff]
  %v4470 = vld [vmem:[#allocation2 + $0x360] sm:$0xff]
  %v4471 = vld [vmem:[#allocation2 + $0x368] sm:$0xff]
  %v4472 = vld [vmem:[#allocation2 + $0x370] sm:$0xff]
  %v4473 = vld [vmem:[#allocation2 + $0x378] sm:$0xff]
  %v4490 = vunpack.c.l.b16 %v4458
  %v4491 = vunpack.c.h.b16 %v4458
  %v4492 = vunpack.c.l.b16 %v4459
  %v4493 = vunpack.c.h.b16 %v4459
  %v4494 = vunpack.c.l.b16 %v4460
  %v4495 = vunpack.c.h.b16 %v4460
  %v4496 = vunpack.c.l.b16 %v4461
  %v4497 = vunpack.c.h.b16 %v4461
  %v4498 = vunpack.c.l.b16 %v4462
  %v4499 = vunpack.c.h.b16 %v4462
  %v4500 = vunpack.c.l.b16 %v4463
  %v4501 = vunpack.c.h.b16 %v4463
  %v4502 = vunpack.c.l.b16 %v4464
  %v4503 = vunpack.c.h.b16 %v4464
  %v4504 = vunpack.c.l.b16 %v4465
  %v4505 = vunpack.c.h.b16 %v4465
  %v4506 = vunpack.c.l.b16 %v4466
  %v4507 = vunpack.c.h.b16 %v4466
  %v4508 = vunpack.c.l.b16 %v4467
  %v4509 = vunpack.c.h.b16 %v4467
  %v4510 = vunpack.c.l.b16 %v4468
  %v4511 = vunpack.c.h.b16 %v4468
  %v4512 = vunpack.c.l.b16 %v4469
  %v4513 = vunpack.c.h.b16 %v4469
  %v4514 = vunpack.c.l.b16 %v4470
  %v4515 = vunpack.c.h.b16 %v4470
  %v4516 = vunpack.c.l.b16 %v4471
  %v4517 = vunpack.c.h.b16 %v4471
  %v4518 = vunpack.c.l.b16 %v4472
  %v4519 = vunpack.c.h.b16 %v4472
  %v4520 = vunpack.c.l.b16 %v4473
  %v4521 = vunpack.c.h.b16 %v4473
  %v4522 = vpack.c.b16 %v4492, %v4490
  %v4523 = vpack.c.b16 %v4493, %v4491
  %v4524 = vpack.c.b16 %v4496, %v4494
  %v4525 = vpack.c.b16 %v4497, %v4495
  %v4526 = vpack.c.b16 %v4500, %v4498
  %v4527 = vpack.c.b16 %v4501, %v4499
  %v4528 = vpack.c.b16 %v4504, %v4502
  %v4529 = vpack.c.b16 %v4505, %v4503
  %v4530 = vpack.c.b16 %v4508, %v4506
  %v4531 = vpack.c.b16 %v4509, %v4507
  %v4532 = vpack.c.b16 %v4512, %v4510
  %v4533 = vpack.c.b16 %v4513, %v4511
  %v4534 = vpack.c.b16 %v4516, %v4514
  %v4535 = vpack.c.b16 %v4517, %v4515
  %v4536 = vpack.c.b16 %v4520, %v4518
  %v4537 = vpack.c.b16 %v4521, %v4519
  %4554 = vmatprep.subr.bf16.mxu0 %v4537
  %4555 = vmatpush1.bf16.msra.mxu0 %v4536
  %4556 = vmatprep.subr.bf16.mxu0 %v4535
  %4557 = vmatpush1.bf16.msra.mxu0 %v4534
  %4558 = vmatprep.subr.bf16.mxu0 %v4533
  %4559 = vmatpush1.bf16.msra.mxu0 %v4532
  %4560 = vmatprep.subr.bf16.mxu0 %v4531
  %4561 = vmatpush1.bf16.msra.mxu0 %v4530
  %4562 = vmatprep.subr.bf16.mxu0 %v4529
  %4563 = vmatpush1.bf16.msra.mxu0 %v4528
  %4564 = vmatprep.subr.bf16.mxu0 %v4527
  %4565 = vmatpush1.bf16.msra.mxu0 %v4526
  %4566 = vmatprep.subr.bf16.mxu0 %v4525
  %4567 = vmatpush1.bf16.msra.mxu0 %v4524
  %4568 = vmatprep.subr.bf16.mxu0 %v4523
  %4569 = vmatpush1.bf16.msra.mxu0 %v4522
  %4570 = vmatprep.subr.bf16.mxu0 0
  %4571 = vmatpush2.bf16.msra.mxu0 0
  %4572 = vmatprep.subr.bf16.mxu0 0
  %4573 = vmatpush2.bf16.msra.mxu0 0
  %4574 = vmatprep.subr.bf16.mxu0 0
  %4575 = vmatpush2.bf16.msra.mxu0 0
  %4576 = vmatprep.subr.bf16.mxu0 0
  %4577 = vmatpush2.bf16.msra.mxu0 0
  %4578 = vmatprep.subr.bf16.mxu0 0
  %4579 = vmatpush2.bf16.msra.mxu0 0
  %4580 = vmatprep.subr.bf16.mxu0 0
  %4581 = vmatpush2.bf16.msra.mxu0 0
  %4582 = vmatprep.subr.bf16.mxu0 0
  %4583 = vmatpush2.bf16.msra.mxu0 0
  %4584 = vmatprep.subr.bf16.mxu0 0
  %4585 = vmatpush2.bf16.msra.mxu0 0
  %4586 = vmatprep.mubr.bf16.mxu0 0
  %4587 = vmatmul.mubr.bf16.gmra.mxu0 %v4457
  %v4588 = vpop.f32.mrf.mxu0
  %v4589 = vadd.f32 0.0, %v4588
  %v4590 = vpop.f32.mrf.mxu0
  %v4591 = vadd.f32 0.0, %v4590
  %v4592 = vpop.f32.mrf.mxu0
  %v4593 = vpop.f32.mrf.mxu0
  %4594 = vdwg.mxu0
  %v4595 = vadd.f32 %v4455, %v4589
  %v4596 = vadd.f32 %v4456, %v4591
  %v4597 = vpack.c.bf16 %v3607, %v3607
  %v4598 = vld [vmem:[#allocation2 + $0x380] sm:$0xff]
  %v4599 = vld [vmem:[#allocation2 + $0x388] sm:$0xff]
  %v4600 = vld [vmem:[#allocation2 + $0x390] sm:$0xff]
  %v4601 = vld [vmem:[#allocation2 + $0x398] sm:$0xff]
  %v4602 = vld [vmem:[#allocation2 + $0x3a0] sm:$0xff]
  %v4603 = vld [vmem:[#allocation2 + $0x3a8] sm:$0xff]
  %v4604 = vld [vmem:[#allocation2 + $0x3b0] sm:$0xff]
  %v4605 = vld [vmem:[#allocation2 + $0x3b8] sm:$0xff]
  %v4606 = vld [vmem:[#allocation2 + $0x3c0] sm:$0xff]
  %v4607 = vld [vmem:[#allocation2 + $0x3c8] sm:$0xff]
  %v4608 = vld [vmem:[#allocation2 + $0x3d0] sm:$0xff]
  %v4609 = vld [vmem:[#allocation2 + $0x3d8] sm:$0xff]
  %v4610 = vld [vmem:[#allocation2 + $0x3e0] sm:$0xff]
  %v4611 = vld [vmem:[#allocation2 + $0x3e8] sm:$0xff]
  %v4612 = vld [vmem:[#allocation2 + $0x3f0] sm:$0xff]
  %v4613 = vld [vmem:[#allocation2 + $0x3f8] sm:$0xff]
  %v4630 = vunpack.c.l.b16 %v4598
  %v4631 = vunpack.c.h.b16 %v4598
  %v4632 = vunpack.c.l.b16 %v4599
  %v4633 = vunpack.c.h.b16 %v4599
  %v4634 = vunpack.c.l.b16 %v4600
  %v4635 = vunpack.c.h.b16 %v4600
  %v4636 = vunpack.c.l.b16 %v4601
  %v4637 = vunpack.c.h.b16 %v4601
  %v4638 = vunpack.c.l.b16 %v4602
  %v4639 = vunpack.c.h.b16 %v4602
  %v4640 = vunpack.c.l.b16 %v4603
  %v4641 = vunpack.c.h.b16 %v4603
  %v4642 = vunpack.c.l.b16 %v4604
  %v4643 = vunpack.c.h.b16 %v4604
  %v4644 = vunpack.c.l.b16 %v4605
  %v4645 = vunpack.c.h.b16 %v4605
  %v4646 = vunpack.c.l.b16 %v4606
  %v4647 = vunpack.c.h.b16 %v4606
  %v4648 = vunpack.c.l.b16 %v4607
  %v4649 = vunpack.c.h.b16 %v4607
  %v4650 = vunpack.c.l.b16 %v4608
  %v4651 = vunpack.c.h.b16 %v4608
  %v4652 = vunpack.c.l.b16 %v4609
  %v4653 = vunpack.c.h.b16 %v4609
  %v4654 = vunpack.c.l.b16 %v4610
  %v4655 = vunpack.c.h.b16 %v4610
  %v4656 = vunpack.c.l.b16 %v4611
  %v4657 = vunpack.c.h.b16 %v4611
  %v4658 = vunpack.c.l.b16 %v4612
  %v4659 = vunpack.c.h.b16 %v4612
  %v4660 = vunpack.c.l.b16 %v4613
  %v4661 = vunpack.c.h.b16 %v4613
  %v4662 = vpack.c.b16 %v4632, %v4630
  %v4663 = vpack.c.b16 %v4633, %v4631
  %v4664 = vpack.c.b16 %v4636, %v4634
  %v4665 = vpack.c.b16 %v4637, %v4635
  %v4666 = vpack.c.b16 %v4640, %v4638
  %v4667 = vpack.c.b16 %v4641, %v4639
  %v4668 = vpack.c.b16 %v4644, %v4642
  %v4669 = vpack.c.b16 %v4645, %v4643
  %v4670 = vpack.c.b16 %v4648, %v4646
  %v4671 = vpack.c.b16 %v4649, %v4647
  %v4672 = vpack.c.b16 %v4652, %v4650
  %v4673 = vpack.c.b16 %v4653, %v4651
  %v4674 = vpack.c.b16 %v4656, %v4654
  %v4675 = vpack.c.b16 %v4657, %v4655
  %v4676 = vpack.c.b16 %v4660, %v4658
  %v4677 = vpack.c.b16 %v4661, %v4659
  %4694 = vmatprep.subr.bf16.mxu0 %v4677
  %4695 = vmatpush1.bf16.msra.mxu0 %v4676
  %4696 = vmatprep.subr.bf16.mxu0 %v4675
  %4697 = vmatpush1.bf16.msra.mxu0 %v4674
  %4698 = vmatprep.subr.bf16.mxu0 %v4673
  %4699 = vmatpush1.bf16.msra.mxu0 %v4672
  %4700 = vmatprep.subr.bf16.mxu0 %v4671
  %4701 = vmatpush1.bf16.msra.mxu0 %v4670
  %4702 = vmatprep.subr.bf16.mxu0 %v4669
  %4703 = vmatpush1.bf16.msra.mxu0 %v4668
  %4704 = vmatprep.subr.bf16.mxu0 %v4667
  %4705 = vmatpush1.bf16.msra.mxu0 %v4666
  %4706 = vmatprep.subr.bf16.mxu0 %v4665
  %4707 = vmatpush1.bf16.msra.mxu0 %v4664
  %4708 = vmatprep.subr.bf16.mxu0 %v4663
  %4709 = vmatpush1.bf16.msra.mxu0 %v4662
  %4710 = vmatprep.subr.bf16.mxu0 0
  %4711 = vmatpush2.bf16.msra.mxu0 0
  %4712 = vmatprep.subr.bf16.mxu0 0
  %4713 = vmatpush2.bf16.msra.mxu0 0
  %4714 = vmatprep.subr.bf16.mxu0 0
  %4715 = vmatpush2.bf16.msra.mxu0 0
  %4716 = vmatprep.subr.bf16.mxu0 0
  %4717 = vmatpush2.bf16.msra.mxu0 0
  %4718 = vmatprep.subr.bf16.mxu0 0
  %4719 = vmatpush2.bf16.msra.mxu0 0
  %4720 = vmatprep.subr.bf16.mxu0 0
  %4721 = vmatpush2.bf16.msra.mxu0 0
  %4722 = vmatprep.subr.bf16.mxu0 0
  %4723 = vmatpush2.bf16.msra.mxu0 0
  %4724 = vmatprep.subr.bf16.mxu0 0
  %4725 = vmatpush2.bf16.msra.mxu0 0
  %4726 = vmatprep.mubr.bf16.mxu0 0
  %4727 = vmatmul.mubr.bf16.gmra.mxu0 %v4597
  %v4728 = vpop.f32.mrf.mxu0
  %v4729 = vadd.f32 0.0, %v4728
  %v4730 = vpop.f32.mrf.mxu0
  %v4731 = vadd.f32 0.0, %v4730
  %v4732 = vpop.f32.mrf.mxu0
  %v4733 = vpop.f32.mrf.mxu0
  %4734 = vdwg.mxu0
  %v4735 = vadd.f32 %v4595, %v4729
  %v4736 = vadd.f32 %v4596, %v4731
  %v4737 = vpack.c.bf16 %v3612, %v3612
  %v4738 = vld [vmem:[#allocation2 + $0x400] sm:$0xff]
  %v4739 = vld [vmem:[#allocation2 + $0x408] sm:$0xff]
  %v4740 = vld [vmem:[#allocation2 + $0x410] sm:$0xff]
  %v4741 = vld [vmem:[#allocation2 + $0x418] sm:$0xff]
  %v4742 = vld [vmem:[#allocation2 + $0x420] sm:$0xff]
  %v4743 = vld [vmem:[#allocation2 + $0x428] sm:$0xff]
  %v4744 = vld [vmem:[#allocation2 + $0x430] sm:$0xff]
  %v4745 = vld [vmem:[#allocation2 + $0x438] sm:$0xff]
  %v4746 = vld [vmem:[#allocation2 + $0x440] sm:$0xff]
  %v4747 = vld [vmem:[#allocation2 + $0x448] sm:$0xff]
  %v4748 = vld [vmem:[#allocation2 + $0x450] sm:$0xff]
  %v4749 = vld [vmem:[#allocation2 + $0x458] sm:$0xff]
  %v4750 = vld [vmem:[#allocation2 + $0x460] sm:$0xff]
  %v4751 = vld [vmem:[#allocation2 + $0x468] sm:$0xff]
  %v4752 = vld [vmem:[#allocation2 + $0x470] sm:$0xff]
  %v4753 = vld [vmem:[#allocation2 + $0x478] sm:$0xff]
  %v4770 = vunpack.c.l.b16 %v4738
  %v4771 = vunpack.c.h.b16 %v4738
  %v4772 = vunpack.c.l.b16 %v4739
  %v4773 = vunpack.c.h.b16 %v4739
  %v4774 = vunpack.c.l.b16 %v4740
  %v4775 = vunpack.c.h.b16 %v4740
  %v4776 = vunpack.c.l.b16 %v4741
  %v4777 = vunpack.c.h.b16 %v4741
  %v4778 = vunpack.c.l.b16 %v4742
  %v4779 = vunpack.c.h.b16 %v4742
  %v4780 = vunpack.c.l.b16 %v4743
  %v4781 = vunpack.c.h.b16 %v4743
  %v4782 = vunpack.c.l.b16 %v4744
  %v4783 = vunpack.c.h.b16 %v4744
  %v4784 = vunpack.c.l.b16 %v4745
  %v4785 = vunpack.c.h.b16 %v4745
  %v4786 = vunpack.c.l.b16 %v4746
  %v4787 = vunpack.c.h.b16 %v4746
  %v4788 = vunpack.c.l.b16 %v4747
  %v4789 = vunpack.c.h.b16 %v4747
  %v4790 = vunpack.c.l.b16 %v4748
  %v4791 = vunpack.c.h.b16 %v4748
  %v4792 = vunpack.c.l.b16 %v4749
  %v4793 = vunpack.c.h.b16 %v4749
  %v4794 = vunpack.c.l.b16 %v4750
  %v4795 = vunpack.c.h.b16 %v4750
  %v4796 = vunpack.c.l.b16 %v4751
  %v4797 = vunpack.c.h.b16 %v4751
  %v4798 = vunpack.c.l.b16 %v4752
  %v4799 = vunpack.c.h.b16 %v4752
  %v4800 = vunpack.c.l.b16 %v4753
  %v4801 = vunpack.c.h.b16 %v4753
  %v4802 = vpack.c.b16 %v4772, %v4770
  %v4803 = vpack.c.b16 %v4773, %v4771
  %v4804 = vpack.c.b16 %v4776, %v4774
  %v4805 = vpack.c.b16 %v4777, %v4775
  %v4806 = vpack.c.b16 %v4780, %v4778
  %v4807 = vpack.c.b16 %v4781, %v4779
  %v4808 = vpack.c.b16 %v4784, %v4782
  %v4809 = vpack.c.b16 %v4785, %v4783
  %v4810 = vpack.c.b16 %v4788, %v4786
  %v4811 = vpack.c.b16 %v4789, %v4787
  %v4812 = vpack.c.b16 %v4792, %v4790
  %v4813 = vpack.c.b16 %v4793, %v4791
  %v4814 = vpack.c.b16 %v4796, %v4794
  %v4815 = vpack.c.b16 %v4797, %v4795
  %v4816 = vpack.c.b16 %v4800, %v4798
  %v4817 = vpack.c.b16 %v4801, %v4799
  %4834 = vmatprep.subr.bf16.mxu0 %v4817
  %4835 = vmatpush1.bf16.msra.mxu0 %v4816
  %4836 = vmatprep.subr.bf16.mxu0 %v4815
  %4837 = vmatpush1.bf16.msra.mxu0 %v4814
  %4838 = vmatprep.subr.bf16.mxu0 %v4813
  %4839 = vmatpush1.bf16.msra.mxu0 %v4812
  %4840 = vmatprep.subr.bf16.mxu0 %v4811
  %4841 = vmatpush1.bf16.msra.mxu0 %v4810
  %4842 = vmatprep.subr.bf16.mxu0 %v4809
  %4843 = vmatpush1.bf16.msra.mxu0 %v4808
  %4844 = vmatprep.subr.bf16.mxu0 %v4807
  %4845 = vmatpush1.bf16.msra.mxu0 %v4806
  %4846 = vmatprep.subr.bf16.mxu0 %v4805
  %4847 = vmatpush1.bf16.msra.mxu0 %v4804
  %4848 = vmatprep.subr.bf16.mxu0 %v4803
  %4849 = vmatpush1.bf16.msra.mxu0 %v4802
  %4850 = vmatprep.subr.bf16.mxu0 0
  %4851 = vmatpush2.bf16.msra.mxu0 0
  %4852 = vmatprep.subr.bf16.mxu0 0
  %4853 = vmatpush2.bf16.msra.mxu0 0
  %4854 = vmatprep.subr.bf16.mxu0 0
  %4855 = vmatpush2.bf16.msra.mxu0 0
  %4856 = vmatprep.subr.bf16.mxu0 0
  %4857 = vmatpush2.bf16.msra.mxu0 0
  %4858 = vmatprep.subr.bf16.mxu0 0
  %4859 = vmatpush2.bf16.msra.mxu0 0
  %4860 = vmatprep.subr.bf16.mxu0 0
  %4861 = vmatpush2.bf16.msra.mxu0 0
  %4862 = vmatprep.subr.bf16.mxu0 0
  %4863 = vmatpush2.bf16.msra.mxu0 0
  %4864 = vmatprep.subr.bf16.mxu0 0
  %4865 = vmatpush2.bf16.msra.mxu0 0
  %4866 = vmatprep.mubr.bf16.mxu0 0
  %4867 = vmatmul.mubr.bf16.gmra.mxu0 %v4737
  %v4868 = vpop.f32.mrf.mxu0
  %v4869 = vadd.f32 0.0, %v4868
  %v4870 = vpop.f32.mrf.mxu0
  %v4871 = vadd.f32 0.0, %v4870
  %v4872 = vpop.f32.mrf.mxu0
  %v4873 = vpop.f32.mrf.mxu0
  %4874 = vdwg.mxu0
  %v4875 = vadd.f32 %v4735, %v4869
  %v4876 = vadd.f32 %v4736, %v4871
  %v4877 = vld [vmem:[%s8] sm:$0xf]
  %v4878 = vrot.slane %v4875, 4
  %v4879 = vadd.f32 %v4875, %v4878
  %v4880 = vrot.slane %v4879, 2
  %v4881 = vadd.f32 %v4879, %v4880
  %v4882 = vrot.slane %v4881, 1
  %v4883 = vadd.f32 %v4881, %v4882
  %v4884 = vrot.slane %v4876, 4
  %v4885 = vadd.f32 %v4876, %v4884
  %v4886 = vrot.slane %v4885, 2
  %v4887 = vadd.f32 %v4885, %v4886
  %v4888 = vrot.slane %v4887, 1
  %v4889 = vadd.f32 %v4887, %v4888
  %v4890 = vmul.f32 %v4875, %v4875
  %v4891 = vmul.f32 %v4876, %v4876
  %v4892 = vrot.slane %v4890, 4
  %v4893 = vadd.f32 %v4890, %v4892
  %v4894 = vrot.slane %v4893, 2
  %v4895 = vadd.f32 %v4893, %v4894
  %v4896 = vrot.slane %v4895, 1
  %v4897 = vadd.f32 %v4895, %v4896
  %v4898 = vrot.slane %v4891, 4
  %v4899 = vadd.f32 %v4891, %v4898
  %v4900 = vrot.slane %v4899, 2
  %v4901 = vadd.f32 %v4899, %v4900
  %v4902 = vrot.slane %v4901, 1
  %v4903 = vadd.f32 %v4901, %v4902
  %v4904 = vmul.f32 %v4883, 0.125
  %v4905 = vmul.f32 %v4889, 0.125
  %v4906 = vmul.f32 %v4897, 0.125
  %v4907 = vmul.f32 %v4903, 0.125
  %v4908 = vmul.f32 %v4904, %v4904
  %v4909 = vmul.f32 %v4905, %v4905
  %v4910 = vsub.f32 %v4906, %v4908
  %v4911 = vsub.f32 %v4907, %v4909
  %v4912 = vmax.f32 %v4910, 0.0
  %v4913 = vmax.f32 %v4911, 0.0
  %v4914 = vadd.f32 %v4912, 1e-05
  %v4915 = vadd.f32 %v4913, 1e-05
  %v4916 = vrsqrt.pop %v4914
  %v4917 = vrsqrt.pop %v4915
  %v4918 = vsub.f32 %v4875, %v4904
  %v4919 = vsub.f32 %v4876, %v4905
  %v4921 = vlaneseq
  %v4922 = vshrl.u32 %v4921, 7
  %v4923 = vsub.s32 0, %v4922
  %v4924 = vrot.slane %v4877, %v4923
  %v4925 = vlaneseq
  %v4926 = vshrl.u32 %v4925, 7
  %v4927 = vsub.s32 2, %v4926
  %v4928 = vrot.slane %v4877, %v4927
  %v4931 = vmul.f32 %v4916, %v4924
  %v4932 = vmul.f32 %v4917, %v4928
  %v4933 = vlaneseq
  %v4934 = vshrl.u32 %v4933, 7
  %v4935 = vsub.s32 0, %v4934
  %v4936 = vrot.slane %v4931, %v4935
  %v4937 = vlaneseq
  %v4938 = vshrl.u32 %v4937, 7
  %v4939 = vsub.s32 0, %v4938
  %v4940 = vrot.slane %v4932, %v4939
  %v4941 = vmul.f32 %v4918, %v4936
  %v4942 = vmul.f32 %v4919, %v4940
  %v4943 = vlaneseq
  %v4944 = vshrl.u32 %v4943, 7
  %v4945 = vsub.s32 1, %v4944
  %v4946 = vrot.slane %v4877, %v4945
  %v4947 = vlaneseq
  %v4948 = vshrl.u32 %v4947, 7
  %v4949 = vsub.s32 3, %v4948
  %v4950 = vrot.slane %v4877, %v4949
  %v4953 = vlaneseq
  %v4954 = vshrl.u32 %v4953, 7
  %v4955 = vsub.s32 1, %v4954
  %v4956 = vrot.slane %v4946, %v4955
  %v4957 = vlaneseq
  %v4958 = vshrl.u32 %v4957, 7
  %v4959 = vsub.s32 1, %v4958
  %v4960 = vrot.slane %v4950, %v4959
  %v4961 = vadd.f32 %v4941, %v4956
  %v4962 = vadd.f32 %v4942, %v4960
  %v4963 = vmax.f32 %v4961, 0.0
  %v4964 = vmax.f32 %v4962, 0.0
  %v4967 = vrot.slane %v4963, 2
  %v4968 = vrot.slane %v4964, 2
  %v4971 = vmax.f32 %v4963, %v4967
  %v4972 = vmax.f32 %v4964, %v4968
  %v4975 = vrot.slane %v4971, 4
  %v4976 = vrot.slane %v4972, 4
  %v4979 = vmax.f32 %v4971, %v4975
  %v4980 = vmax.f32 %v4972, %v4976
  %s4981 = smul.u32 4, 32
  %s4982 = smul.u32 %s4981, 4
  %s4983 = sshll.u32 %s4982, 4
  %4984 = dma.done %s374, %s4983
  %v4985 = vpack.c.bf16 %v4979, %v4979
  %v4986 = vpack.c.bf16 %v4980, %v4980
  %v4987 = vld [vmem:[#allocation3] sm:$0xff]
  %v4988 = vld [vmem:[#allocation3 + $0x8] sm:$0xff]
  %v4989 = vld [vmem:[#allocation3 + $0x10] sm:$0xff]
  %v4990 = vld [vmem:[#allocation3 + $0x18] sm:$0xff]
  %v4991 = vld [vmem:[#allocation3 + $0x20] sm:$0xff]
  %v4992 = vld [vmem:[#allocation3 + $0x28] sm:$0xff]
  %v4993 = vld [vmem:[#allocation3 + $0x30] sm:$0xff]
  %v4994 = vld [vmem:[#allocation3 + $0x38] sm:$0xff]
  %v4995 = vld [vmem:[#allocation3 + $0x40] sm:$0xff]
  %v4996 = vld [vmem:[#allocation3 + $0x48] sm:$0xff]
  %v4997 = vld [vmem:[#allocation3 + $0x50] sm:$0xff]
  %v4998 = vld [vmem:[#allocation3 + $0x58] sm:$0xff]
  %v4999 = vld [vmem:[#allocation3 + $0x60] sm:$0xff]
  %v5000 = vld [vmem:[#allocation3 + $0x68] sm:$0xff]
  %v5001 = vld [vmem:[#allocation3 + $0x70] sm:$0xff]
  %v5002 = vld [vmem:[#allocation3 + $0x78] sm:$0xff]
  %v5003 = vld [vmem:[#allocation3 + $0x80] sm:$0xff]
  %v5004 = vld [vmem:[#allocation3 + $0x88] sm:$0xff]
  %v5005 = vld [vmem:[#allocation3 + $0x90] sm:$0xff]
  %v5006 = vld [vmem:[#allocation3 + $0x98] sm:$0xff]
  %v5007 = vld [vmem:[#allocation3 + $0xa0] sm:$0xff]
  %v5008 = vld [vmem:[#allocation3 + $0xa8] sm:$0xff]
  %v5009 = vld [vmem:[#allocation3 + $0xb0] sm:$0xff]
  %v5010 = vld [vmem:[#allocation3 + $0xb8] sm:$0xff]
  %v5011 = vld [vmem:[#allocation3 + $0xc0] sm:$0xff]
  %v5012 = vld [vmem:[#allocation3 + $0xc8] sm:$0xff]
  %v5013 = vld [vmem:[#allocation3 + $0xd0] sm:$0xff]
  %v5014 = vld [vmem:[#allocation3 + $0xd8] sm:$0xff]
  %v5015 = vld [vmem:[#allocation3 + $0xe0] sm:$0xff]
  %v5016 = vld [vmem:[#allocation3 + $0xe8] sm:$0xff]
  %v5017 = vld [vmem:[#allocation3 + $0xf0] sm:$0xff]
  %v5018 = vld [vmem:[#allocation3 + $0xf8] sm:$0xff]
  %v5019 = vld [vmem:[#allocation3 + $0x100] sm:$0xff]
  %v5020 = vld [vmem:[#allocation3 + $0x108] sm:$0xff]
  %v5021 = vld [vmem:[#allocation3 + $0x110] sm:$0xff]
  %v5022 = vld [vmem:[#allocation3 + $0x118] sm:$0xff]
  %v5023 = vld [vmem:[#allocation3 + $0x120] sm:$0xff]
  %v5024 = vld [vmem:[#allocation3 + $0x128] sm:$0xff]
  %v5025 = vld [vmem:[#allocation3 + $0x130] sm:$0xff]
  %v5026 = vld [vmem:[#allocation3 + $0x138] sm:$0xff]
  %v5027 = vld [vmem:[#allocation3 + $0x140] sm:$0xff]
  %v5028 = vld [vmem:[#allocation3 + $0x148] sm:$0xff]
  %v5029 = vld [vmem:[#allocation3 + $0x150] sm:$0xff]
  %v5030 = vld [vmem:[#allocation3 + $0x158] sm:$0xff]
  %v5031 = vld [vmem:[#allocation3 + $0x160] sm:$0xff]
  %v5032 = vld [vmem:[#allocation3 + $0x168] sm:$0xff]
  %v5033 = vld [vmem:[#allocation3 + $0x170] sm:$0xff]
  %v5034 = vld [vmem:[#allocation3 + $0x178] sm:$0xff]
  %v5035 = vld [vmem:[#allocation3 + $0x180] sm:$0xff]
  %v5036 = vld [vmem:[#allocation3 + $0x188] sm:$0xff]
  %v5037 = vld [vmem:[#allocation3 + $0x190] sm:$0xff]
  %v5038 = vld [vmem:[#allocation3 + $0x198] sm:$0xff]
  %v5039 = vld [vmem:[#allocation3 + $0x1a0] sm:$0xff]
  %v5040 = vld [vmem:[#allocation3 + $0x1a8] sm:$0xff]
  %v5041 = vld [vmem:[#allocation3 + $0x1b0] sm:$0xff]
  %v5042 = vld [vmem:[#allocation3 + $0x1b8] sm:$0xff]
  %v5043 = vld [vmem:[#allocation3 + $0x1c0] sm:$0xff]
  %v5044 = vld [vmem:[#allocation3 + $0x1c8] sm:$0xff]
  %v5045 = vld [vmem:[#allocation3 + $0x1d0] sm:$0xff]
  %v5046 = vld [vmem:[#allocation3 + $0x1d8] sm:$0xff]
  %v5047 = vld [vmem:[#allocation3 + $0x1e0] sm:$0xff]
  %v5048 = vld [vmem:[#allocation3 + $0x1e8] sm:$0xff]
  %v5049 = vld [vmem:[#allocation3 + $0x1f0] sm:$0xff]
  %v5050 = vld [vmem:[#allocation3 + $0x1f8] sm:$0xff]
  %v5115 = vunpack.c.l.b16 %v4987
  %v5116 = vunpack.c.h.b16 %v4987
  %v5117 = vunpack.c.l.b16 %v4988
  %v5118 = vunpack.c.h.b16 %v4988
  %v5119 = vunpack.c.l.b16 %v4989
  %v5120 = vunpack.c.h.b16 %v4989
  %v5121 = vunpack.c.l.b16 %v4990
  %v5122 = vunpack.c.h.b16 %v4990
  %v5123 = vunpack.c.l.b16 %v4991
  %v5124 = vunpack.c.h.b16 %v4991
  %v5125 = vunpack.c.l.b16 %v4992
  %v5126 = vunpack.c.h.b16 %v4992
  %v5127 = vunpack.c.l.b16 %v4993
  %v5128 = vunpack.c.h.b16 %v4993
  %v5129 = vunpack.c.l.b16 %v4994
  %v5130 = vunpack.c.h.b16 %v4994
  %v5131 = vunpack.c.l.b16 %v4995
  %v5132 = vunpack.c.h.b16 %v4995
  %v5133 = vunpack.c.l.b16 %v4996
  %v5134 = vunpack.c.h.b16 %v4996
  %v5135 = vunpack.c.l.b16 %v4997
  %v5136 = vunpack.c.h.b16 %v4997
  %v5137 = vunpack.c.l.b16 %v4998
  %v5138 = vunpack.c.h.b16 %v4998
  %v5139 = vunpack.c.l.b16 %v4999
  %v5140 = vunpack.c.h.b16 %v4999
  %v5141 = vunpack.c.l.b16 %v5000
  %v5142 = vunpack.c.h.b16 %v5000
  %v5143 = vunpack.c.l.b16 %v5001
  %v5144 = vunpack.c.h.b16 %v5001
  %v5145 = vunpack.c.l.b16 %v5002
  %v5146 = vunpack.c.h.b16 %v5002
  %v5147 = vunpack.c.l.b16 %v5003
  %v5148 = vunpack.c.h.b16 %v5003
  %v5149 = vunpack.c.l.b16 %v5004
  %v5150 = vunpack.c.h.b16 %v5004
  %v5151 = vunpack.c.l.b16 %v5005
  %v5152 = vunpack.c.h.b16 %v5005
  %v5153 = vunpack.c.l.b16 %v5006
  %v5154 = vunpack.c.h.b16 %v5006
  %v5155 = vunpack.c.l.b16 %v5007
  %v5156 = vunpack.c.h.b16 %v5007
  %v5157 = vunpack.c.l.b16 %v5008
  %v5158 = vunpack.c.h.b16 %v5008
  %v5159 = vunpack.c.l.b16 %v5009
  %v5160 = vunpack.c.h.b16 %v5009
  %v5161 = vunpack.c.l.b16 %v5010
  %v5162 = vunpack.c.h.b16 %v5010
  %v5163 = vunpack.c.l.b16 %v5011
  %v5164 = vunpack.c.h.b16 %v5011
  %v5165 = vunpack.c.l.b16 %v5012
  %v5166 = vunpack.c.h.b16 %v5012
  %v5167 = vunpack.c.l.b16 %v5013
  %v5168 = vunpack.c.h.b16 %v5013
  %v5169 = vunpack.c.l.b16 %v5014
  %v5170 = vunpack.c.h.b16 %v5014
  %v5171 = vunpack.c.l.b16 %v5015
  %v5172 = vunpack.c.h.b16 %v5015
  %v5173 = vunpack.c.l.b16 %v5016
  %v5174 = vunpack.c.h.b16 %v5016
  %v5175 = vunpack.c.l.b16 %v5017
  %v5176 = vunpack.c.h.b16 %v5017
  %v5177 = vunpack.c.l.b16 %v5018
  %v5178 = vunpack.c.h.b16 %v5018
  %v5179 = vunpack.c.l.b16 %v5019
  %v5180 = vunpack.c.h.b16 %v5019
  %v5181 = vunpack.c.l.b16 %v5020
  %v5182 = vunpack.c.h.b16 %v5020
  %v5183 = vunpack.c.l.b16 %v5021
  %v5184 = vunpack.c.h.b16 %v5021
  %v5185 = vunpack.c.l.b16 %v5022
  %v5186 = vunpack.c.h.b16 %v5022
  %v5187 = vunpack.c.l.b16 %v5023
  %v5188 = vunpack.c.h.b16 %v5023
  %v5189 = vunpack.c.l.b16 %v5024
  %v5190 = vunpack.c.h.b16 %v5024
  %v5191 = vunpack.c.l.b16 %v5025
  %v5192 = vunpack.c.h.b16 %v5025
  %v5193 = vunpack.c.l.b16 %v5026
  %v5194 = vunpack.c.h.b16 %v5026
  %v5195 = vunpack.c.l.b16 %v5027
  %v5196 = vunpack.c.h.b16 %v5027
  %v5197 = vunpack.c.l.b16 %v5028
  %v5198 = vunpack.c.h.b16 %v5028
  %v5199 = vunpack.c.l.b16 %v5029
  %v5200 = vunpack.c.h.b16 %v5029
  %v5201 = vunpack.c.l.b16 %v5030
  %v5202 = vunpack.c.h.b16 %v5030
  %v5203 = vunpack.c.l.b16 %v5031
  %v5204 = vunpack.c.h.b16 %v5031
  %v5205 = vunpack.c.l.b16 %v5032
  %v5206 = vunpack.c.h.b16 %v5032
  %v5207 = vunpack.c.l.b16 %v5033
  %v5208 = vunpack.c.h.b16 %v5033
  %v5209 = vunpack.c.l.b16 %v5034
  %v5210 = vunpack.c.h.b16 %v5034
  %v5211 = vunpack.c.l.b16 %v5035
  %v5212 = vunpack.c.h.b16 %v5035
  %v5213 = vunpack.c.l.b16 %v5036
  %v5214 = vunpack.c.h.b16 %v5036
  %v5215 = vunpack.c.l.b16 %v5037
  %v5216 = vunpack.c.h.b16 %v5037
  %v5217 = vunpack.c.l.b16 %v5038
  %v5218 = vunpack.c.h.b16 %v5038
  %v5219 = vunpack.c.l.b16 %v5039
  %v5220 = vunpack.c.h.b16 %v5039
  %v5221 = vunpack.c.l.b16 %v5040
  %v5222 = vunpack.c.h.b16 %v5040
  %v5223 = vunpack.c.l.b16 %v5041
  %v5224 = vunpack.c.h.b16 %v5041
  %v5225 = vunpack.c.l.b16 %v5042
  %v5226 = vunpack.c.h.b16 %v5042
  %v5227 = vunpack.c.l.b16 %v5043
  %v5228 = vunpack.c.h.b16 %v5043
  %v5229 = vunpack.c.l.b16 %v5044
  %v5230 = vunpack.c.h.b16 %v5044
  %v5231 = vunpack.c.l.b16 %v5045
  %v5232 = vunpack.c.h.b16 %v5045
  %v5233 = vunpack.c.l.b16 %v5046
  %v5234 = vunpack.c.h.b16 %v5046
  %v5235 = vunpack.c.l.b16 %v5047
  %v5236 = vunpack.c.h.b16 %v5047
  %v5237 = vunpack.c.l.b16 %v5048
  %v5238 = vunpack.c.h.b16 %v5048
  %v5239 = vunpack.c.l.b16 %v5049
  %v5240 = vunpack.c.h.b16 %v5049
  %v5241 = vunpack.c.l.b16 %v5050
  %v5242 = vunpack.c.h.b16 %v5050
  %v5243 = vpack.c.b16 %v5119, %v5115
  %v5244 = vpack.c.b16 %v5120, %v5116
  %v5245 = vpack.c.b16 %v5121, %v5117
  %v5246 = vpack.c.b16 %v5122, %v5118
  %v5247 = vpack.c.b16 %v5127, %v5123
  %v5248 = vpack.c.b16 %v5128, %v5124
  %v5249 = vpack.c.b16 %v5129, %v5125
  %v5250 = vpack.c.b16 %v5130, %v5126
  %v5251 = vpack.c.b16 %v5135, %v5131
  %v5252 = vpack.c.b16 %v5136, %v5132
  %v5253 = vpack.c.b16 %v5137, %v5133
  %v5254 = vpack.c.b16 %v5138, %v5134
  %v5255 = vpack.c.b16 %v5143, %v5139
  %v5256 = vpack.c.b16 %v5144, %v5140
  %v5257 = vpack.c.b16 %v5145, %v5141
  %v5258 = vpack.c.b16 %v5146, %v5142
  %v5259 = vpack.c.b16 %v5151, %v5147
  %v5260 = vpack.c.b16 %v5152, %v5148
  %v5261 = vpack.c.b16 %v5153, %v5149
  %v5262 = vpack.c.b16 %v5154, %v5150
  %v5263 = vpack.c.b16 %v5159, %v5155
  %v5264 = vpack.c.b16 %v5160, %v5156
  %v5265 = vpack.c.b16 %v5161, %v5157
  %v5266 = vpack.c.b16 %v5162, %v5158
  %v5267 = vpack.c.b16 %v5167, %v5163
  %v5268 = vpack.c.b16 %v5168, %v5164
  %v5269 = vpack.c.b16 %v5169, %v5165
  %v5270 = vpack.c.b16 %v5170, %v5166
  %v5271 = vpack.c.b16 %v5175, %v5171
  %v5272 = vpack.c.b16 %v5176, %v5172
  %v5273 = vpack.c.b16 %v5177, %v5173
  %v5274 = vpack.c.b16 %v5178, %v5174
  %v5275 = vpack.c.b16 %v5183, %v5179
  %v5276 = vpack.c.b16 %v5184, %v5180
  %v5277 = vpack.c.b16 %v5185, %v5181
  %v5278 = vpack.c.b16 %v5186, %v5182
  %v5279 = vpack.c.b16 %v5191, %v5187
  %v5280 = vpack.c.b16 %v5192, %v5188
  %v5281 = vpack.c.b16 %v5193, %v5189
  %v5282 = vpack.c.b16 %v5194, %v5190
  %v5283 = vpack.c.b16 %v5199, %v5195
  %v5284 = vpack.c.b16 %v5200, %v5196
  %v5285 = vpack.c.b16 %v5201, %v5197
  %v5286 = vpack.c.b16 %v5202, %v5198
  %v5287 = vpack.c.b16 %v5207, %v5203
  %v5288 = vpack.c.b16 %v5208, %v5204
  %v5289 = vpack.c.b16 %v5209, %v5205
  %v5290 = vpack.c.b16 %v5210, %v5206
  %v5291 = vpack.c.b16 %v5215, %v5211
  %v5292 = vpack.c.b16 %v5216, %v5212
  %v5293 = vpack.c.b16 %v5217, %v5213
  %v5294 = vpack.c.b16 %v5218, %v5214
  %v5295 = vpack.c.b16 %v5223, %v5219
  %v5296 = vpack.c.b16 %v5224, %v5220
  %v5297 = vpack.c.b16 %v5225, %v5221
  %v5298 = vpack.c.b16 %v5226, %v5222
  %v5299 = vpack.c.b16 %v5231, %v5227
  %v5300 = vpack.c.b16 %v5232, %v5228
  %v5301 = vpack.c.b16 %v5233, %v5229
  %v5302 = vpack.c.b16 %v5234, %v5230
  %v5303 = vpack.c.b16 %v5239, %v5235
  %v5304 = vpack.c.b16 %v5240, %v5236
  %v5305 = vpack.c.b16 %v5241, %v5237
  %v5306 = vpack.c.b16 %v5242, %v5238
  %5371 = vmatprep.subr.bf16.mxu0 %v5272
  %5372 = vmatpush1.bf16.msra.mxu0 %v5271
  %5373 = vmatprep.subr.bf16.mxu0 %v5268
  %5374 = vmatpush1.bf16.msra.mxu0 %v5267
  %5375 = vmatprep.subr.bf16.mxu0 %v5264
  %5376 = vmatpush1.bf16.msra.mxu0 %v5263
  %5377 = vmatprep.subr.bf16.mxu0 %v5260
  %5378 = vmatpush1.bf16.msra.mxu0 %v5259
  %5379 = vmatprep.subr.bf16.mxu0 %v5256
  %5380 = vmatpush1.bf16.msra.mxu0 %v5255
  %5381 = vmatprep.subr.bf16.mxu0 %v5252
  %5382 = vmatpush1.bf16.msra.mxu0 %v5251
  %5383 = vmatprep.subr.bf16.mxu0 %v5248
  %5384 = vmatpush1.bf16.msra.mxu0 %v5247
  %5385 = vmatprep.subr.bf16.mxu0 %v5244
  %5386 = vmatpush1.bf16.msra.mxu0 %v5243
  %5387 = vmatprep.subr.bf16.mxu0 %v5304
  %5388 = vmatpush2.bf16.msra.mxu0 %v5303
  %5389 = vmatprep.subr.bf16.mxu0 %v5300
  %5390 = vmatpush2.bf16.msra.mxu0 %v5299
  %5391 = vmatprep.subr.bf16.mxu0 %v5296
  %5392 = vmatpush2.bf16.msra.mxu0 %v5295
  %5393 = vmatprep.subr.bf16.mxu0 %v5292
  %5394 = vmatpush2.bf16.msra.mxu0 %v5291
  %5395 = vmatprep.subr.bf16.mxu0 %v5288
  %5396 = vmatpush2.bf16.msra.mxu0 %v5287
  %5397 = vmatprep.subr.bf16.mxu0 %v5284
  %5398 = vmatpush2.bf16.msra.mxu0 %v5283
  %5399 = vmatprep.subr.bf16.mxu0 %v5280
  %5400 = vmatpush2.bf16.msra.mxu0 %v5279
  %5401 = vmatprep.subr.bf16.mxu0 %v5276
  %5402 = vmatpush2.bf16.msra.mxu0 %v5275
  %5403 = vmatprep.mubr.bf16.mxu0 %v4986
  %5404 = vmatmul.mubr.bf16.gmra.mxu0 %v4985
  %v5405 = vpop.f32.mrf.mxu0
  %v5406 = vadd.f32 0.0, %v5405
  %v5407 = vpop.f32.mrf.mxu0
  %v5408 = vadd.f32 0.0, %v5407
  %v5409 = vpop.f32.mrf.mxu0
  %v5410 = vpop.f32.mrf.mxu0
  %5411 = vdwg.mxu0
  %5412 = vmatprep.subr.bf16.mxu0 %v5274
  %5413 = vmatpush1.bf16.msra.mxu0 %v5273
  %5414 = vmatprep.subr.bf16.mxu0 %v5270
  %5415 = vmatpush1.bf16.msra.mxu0 %v5269
  %5416 = vmatprep.subr.bf16.mxu0 %v5266
  %5417 = vmatpush1.bf16.msra.mxu0 %v5265
  %5418 = vmatprep.subr.bf16.mxu0 %v5262
  %5419 = vmatpush1.bf16.msra.mxu0 %v5261
  %5420 = vmatprep.subr.bf16.mxu0 %v5258
  %5421 = vmatpush1.bf16.msra.mxu0 %v5257
  %5422 = vmatprep.subr.bf16.mxu0 %v5254
  %5423 = vmatpush1.bf16.msra.mxu0 %v5253
  %5424 = vmatprep.subr.bf16.mxu0 %v5250
  %5425 = vmatpush1.bf16.msra.mxu0 %v5249
  %5426 = vmatprep.subr.bf16.mxu0 %v5246
  %5427 = vmatpush1.bf16.msra.mxu0 %v5245
  %5428 = vmatprep.subr.bf16.mxu0 %v5306
  %5429 = vmatpush2.bf16.msra.mxu0 %v5305
  %5430 = vmatprep.subr.bf16.mxu0 %v5302
  %5431 = vmatpush2.bf16.msra.mxu0 %v5301
  %5432 = vmatprep.subr.bf16.mxu0 %v5298
  %5433 = vmatpush2.bf16.msra.mxu0 %v5297
  %5434 = vmatprep.subr.bf16.mxu0 %v5294
  %5435 = vmatpush2.bf16.msra.mxu0 %v5293
  %5436 = vmatprep.subr.bf16.mxu0 %v5290
  %5437 = vmatpush2.bf16.msra.mxu0 %v5289
  %5438 = vmatprep.subr.bf16.mxu0 %v5286
  %5439 = vmatpush2.bf16.msra.mxu0 %v5285
  %5440 = vmatprep.subr.bf16.mxu0 %v5282
  %5441 = vmatpush2.bf16.msra.mxu0 %v5281
  %5442 = vmatprep.subr.bf16.mxu0 %v5278
  %5443 = vmatpush2.bf16.msra.mxu0 %v5277
  %5444 = vmatprep.mubr.bf16.mxu0 %v4986
  %5445 = vmatmul.mubr.bf16.gmra.mxu0 %v4985
  %v5446 = vpop.f32.mrf.mxu0
  %v5447 = vadd.f32 0.0, %v5446
  %v5448 = vpop.f32.mrf.mxu0
  %v5449 = vadd.f32 0.0, %v5448
  %v5450 = vpop.f32.mrf.mxu0
  %v5451 = vpop.f32.mrf.mxu0
  %5452 = vdwg.mxu0
  %v5453 = vld [vmem:[%s10] sm:$0xff]
  %v5454 = vsel %vm1183, %v5406, 0.0
  %v5455 = vrot.slane %v5454, 4
  %v5456 = vadd.f32 %v5454, %v5455
  %v5457 = vrot.slane %v5456, 2
  %v5458 = vadd.f32 %v5456, %v5457
  %v5459 = vrot.slane %v5458, 1
  %v5460 = vadd.f32 %v5458, %v5459
  %v5461 = vsel %vm1183, %v5408, 0.0
  %v5462 = vrot.slane %v5461, 4
  %v5463 = vadd.f32 %v5461, %v5462
  %v5464 = vrot.slane %v5463, 2
  %v5465 = vadd.f32 %v5463, %v5464
  %v5466 = vrot.slane %v5465, 1
  %v5467 = vadd.f32 %v5465, %v5466
  %v5468 = vsel %vm1183, %v5447, 0.0
  %v5469 = vrot.slane %v5468, 4
  %v5470 = vadd.f32 %v5468, %v5469
  %v5471 = vrot.slane %v5470, 2
  %v5472 = vadd.f32 %v5470, %v5471
  %v5473 = vrot.slane %v5472, 1
  %v5474 = vadd.f32 %v5472, %v5473
  %v5475 = vsel %vm1183, %v5449, 0.0
  %v5476 = vrot.slane %v5475, 4
  %v5477 = vadd.f32 %v5475, %v5476
  %v5478 = vrot.slane %v5477, 2
  %v5479 = vadd.f32 %v5477, %v5478
  %v5480 = vrot.slane %v5479, 1
  %v5481 = vadd.f32 %v5479, %v5480
  %v5482 = vmul.f32 %v5406, %v5406
  %v5483 = vmul.f32 %v5408, %v5408
  %v5484 = vmul.f32 %v5447, %v5447
  %v5485 = vmul.f32 %v5449, %v5449
  %v5486 = vsel %vm1183, %v5482, 0.0
  %v5487 = vrot.slane %v5486, 4
  %v5488 = vadd.f32 %v5486, %v5487
  %v5489 = vrot.slane %v5488, 2
  %v5490 = vadd.f32 %v5488, %v5489
  %v5491 = vrot.slane %v5490, 1
  %v5492 = vadd.f32 %v5490, %v5491
  %v5493 = vsel %vm1183, %v5483, 0.0
  %v5494 = vrot.slane %v5493, 4
  %v5495 = vadd.f32 %v5493, %v5494
  %v5496 = vrot.slane %v5495, 2
  %v5497 = vadd.f32 %v5495, %v5496
  %v5498 = vrot.slane %v5497, 1
  %v5499 = vadd.f32 %v5497, %v5498
  %v5500 = vsel %vm1183, %v5484, 0.0
  %v5501 = vrot.slane %v5500, 4
  %v5502 = vadd.f32 %v5500, %v5501
  %v5503 = vrot.slane %v5502, 2
  %v5504 = vadd.f32 %v5502, %v5503
  %v5505 = vrot.slane %v5504, 1
  %v5506 = vadd.f32 %v5504, %v5505
  %v5507 = vsel %vm1183, %v5485, 0.0
  %v5508 = vrot.slane %v5507, 4
  %v5509 = vadd.f32 %v5507, %v5508
  %v5510 = vrot.slane %v5509, 2
  %v5511 = vadd.f32 %v5509, %v5510
  %v5512 = vrot.slane %v5511, 1
  %v5513 = vadd.f32 %v5511, %v5512
  %v5514 = vmul.f32 %v5460, 0.5
  %v5515 = vmul.f32 %v5467, 0.5
  %v5516 = vmul.f32 %v5474, 0.5
  %v5517 = vmul.f32 %v5481, 0.5
  %v5518 = vmul.f32 %v5492, 0.5
  %v5519 = vmul.f32 %v5499, 0.5
  %v5520 = vmul.f32 %v5506, 0.5
  %v5521 = vmul.f32 %v5513, 0.5
  %v5522 = vmul.f32 %v5514, %v5514
  %v5523 = vmul.f32 %v5515, %v5515
  %v5524 = vmul.f32 %v5516, %v5516
  %v5525 = vmul.f32 %v5517, %v5517
  %v5526 = vsub.f32 %v5518, %v5522
  %v5527 = vsub.f32 %v5519, %v5523
  %v5528 = vsub.f32 %v5520, %v5524
  %v5529 = vsub.f32 %v5521, %v5525
  %v5530 = vmax.f32 %v5526, 0.0
  %v5531 = vmax.f32 %v5527, 0.0
  %v5532 = vmax.f32 %v5528, 0.0
  %v5533 = vmax.f32 %v5529, 0.0
  %v5534 = vadd.f32 %v5530, 1e-05
  %v5535 = vadd.f32 %v5531, 1e-05
  %v5536 = vadd.f32 %v5532, 1e-05
  %v5537 = vadd.f32 %v5533, 1e-05
  %v5538 = vrsqrt.pop %v5534
  %v5539 = vrsqrt.pop %v5535
  %v5540 = vrsqrt.pop %v5536
  %v5541 = vrsqrt.pop %v5537
  %v5542 = vsub.f32 %v5406, %v5514
  %v5543 = vsub.f32 %v5408, %v5515
  %v5544 = vsub.f32 %v5447, %v5516
  %v5545 = vsub.f32 %v5449, %v5517
  %v5547 = vlaneseq
  %v5548 = vshrl.u32 %v5547, 7
  %v5549 = vsub.s32 0, %v5548
  %v5550 = vrot.slane %v5453, %v5549
  %v5551 = vlaneseq
  %v5552 = vshrl.u32 %v5551, 7
  %v5553 = vsub.s32 2, %v5552
  %v5554 = vrot.slane %v5453, %v5553
  %v5555 = vlaneseq
  %v5556 = vshrl.u32 %v5555, 7
  %v5557 = vsub.s32 4, %v5556
  %v5558 = vrot.slane %v5453, %v5557
  %v5559 = vlaneseq
  %v5560 = vshrl.u32 %v5559, 7
  %v5561 = vsub.s32 6, %v5560
  %v5562 = vrot.slane %v5453, %v5561
  %v5567 = vmul.f32 %v5538, %v5550
  %v5568 = vmul.f32 %v5539, %v5554
  %v5569 = vmul.f32 %v5540, %v5558
  %v5570 = vmul.f32 %v5541, %v5562
  %v5571 = vlaneseq
  %v5572 = vshrl.u32 %v5571, 7
  %v5573 = vsub.s32 0, %v5572
  %v5574 = vrot.slane %v5567, %v5573
  %v5575 = vlaneseq
  %v5576 = vshrl.u32 %v5575, 7
  %v5577 = vsub.s32 0, %v5576
  %v5578 = vrot.slane %v5568, %v5577
  %v5579 = vlaneseq
  %v5580 = vshrl.u32 %v5579, 7
  %v5581 = vsub.s32 0, %v5580
  %v5582 = vrot.slane %v5569, %v5581
  %v5583 = vlaneseq
  %v5584 = vshrl.u32 %v5583, 7
  %v5585 = vsub.s32 0, %v5584
  %v5586 = vrot.slane %v5570, %v5585
  %v5587 = vmul.f32 %v5542, %v5574
  %v5588 = vmul.f32 %v5543, %v5578
  %v5589 = vmul.f32 %v5544, %v5582
  %v5590 = vmul.f32 %v5545, %v5586
  %v5591 = vlaneseq
  %v5592 = vshrl.u32 %v5591, 7
  %v5593 = vsub.s32 1, %v5592
  %v5594 = vrot.slane %v5453, %v5593
  %v5595 = vlaneseq
  %v5596 = vshrl.u32 %v5595, 7
  %v5597 = vsub.s32 3, %v5596
  %v5598 = vrot.slane %v5453, %v5597
  %v5599 = vlaneseq
  %v5600 = vshrl.u32 %v5599, 7
  %v5601 = vsub.s32 5, %v5600
  %v5602 = vrot.slane %v5453, %v5601
  %v5603 = vlaneseq
  %v5604 = vshrl.u32 %v5603, 7
  %v5605 = vsub.s32 7, %v5604
  %v5606 = vrot.slane %v5453, %v5605
  %v5611 = vlaneseq
  %v5612 = vshrl.u32 %v5611, 7
  %v5613 = vsub.s32 1, %v5612
  %v5614 = vrot.slane %v5594, %v5613
  %v5615 = vlaneseq
  %v5616 = vshrl.u32 %v5615, 7
  %v5617 = vsub.s32 1, %v5616
  %v5618 = vrot.slane %v5598, %v5617
  %v5619 = vlaneseq
  %v5620 = vshrl.u32 %v5619, 7
  %v5621 = vsub.s32 1, %v5620
  %v5622 = vrot.slane %v5602, %v5621
  %v5623 = vlaneseq
  %v5624 = vshrl.u32 %v5623, 7
  %v5625 = vsub.s32 1, %v5624
  %v5626 = vrot.slane %v5606, %v5625
  %v5627 = vadd.f32 %v5587, %v5614
  %v5628 = vadd.f32 %v5588, %v5618
  %v5629 = vadd.f32 %v5589, %v5622
  %v5630 = vadd.f32 %v5590, %v5626
  %v5631 = vmax.f32 %v5627, 0.0
  %v5632 = vmax.f32 %v5628, 0.0
  %v5633 = vmax.f32 %v5629, 0.0
  %v5634 = vmax.f32 %v5630, 0.0
  %s5635 = smul.u32 4, 64
  %s5636 = smul.u32 %s5635, 4
  %s5637 = sshll.u32 %s5636, 4
  %5638 = dma.done %s544, %s5637
  %v5639 = vpack.c.bf16 %v5631, %v5631
  %v5640 = vpack.c.bf16 %v5632, %v5632
  %v5641 = vpack.c.bf16 %v5633, %v5633
  %v5642 = vpack.c.bf16 %v5634, %v5634
  %v5643 = vld [vmem:[#allocation4] sm:$0xff]
  %v5644 = vld [vmem:[#allocation4 + $0x8] sm:$0xff]
  %v5645 = vld [vmem:[#allocation4 + $0x10] sm:$0xff]
  %v5646 = vld [vmem:[#allocation4 + $0x18] sm:$0xff]
  %v5647 = vld [vmem:[#allocation4 + $0x20] sm:$0xff]
  %v5648 = vld [vmem:[#allocation4 + $0x28] sm:$0xff]
  %v5649 = vld [vmem:[#allocation4 + $0x30] sm:$0xff]
  %v5650 = vld [vmem:[#allocation4 + $0x38] sm:$0xff]
  %v5651 = vld [vmem:[#allocation4 + $0x40] sm:$0xff]
  %v5652 = vld [vmem:[#allocation4 + $0x48] sm:$0xff]
  %v5653 = vld [vmem:[#allocation4 + $0x50] sm:$0xff]
  %v5654 = vld [vmem:[#allocation4 + $0x58] sm:$0xff]
  %v5655 = vld [vmem:[#allocation4 + $0x60] sm:$0xff]
  %v5656 = vld [vmem:[#allocation4 + $0x68] sm:$0xff]
  %v5657 = vld [vmem:[#allocation4 + $0x70] sm:$0xff]
  %v5658 = vld [vmem:[#allocation4 + $0x78] sm:$0xff]
  %v5659 = vld [vmem:[#allocation4 + $0x80] sm:$0xff]
  %v5660 = vld [vmem:[#allocation4 + $0x88] sm:$0xff]
  %v5661 = vld [vmem:[#allocation4 + $0x90] sm:$0xff]
  %v5662 = vld [vmem:[#allocation4 + $0x98] sm:$0xff]
  %v5663 = vld [vmem:[#allocation4 + $0xa0] sm:$0xff]
  %v5664 = vld [vmem:[#allocation4 + $0xa8] sm:$0xff]
  %v5665 = vld [vmem:[#allocation4 + $0xb0] sm:$0xff]
  %v5666 = vld [vmem:[#allocation4 + $0xb8] sm:$0xff]
  %v5667 = vld [vmem:[#allocation4 + $0xc0] sm:$0xff]
  %v5668 = vld [vmem:[#allocation4 + $0xc8] sm:$0xff]
  %v5669 = vld [vmem:[#allocation4 + $0xd0] sm:$0xff]
  %v5670 = vld [vmem:[#allocation4 + $0xd8] sm:$0xff]
  %v5671 = vld [vmem:[#allocation4 + $0xe0] sm:$0xff]
  %v5672 = vld [vmem:[#allocation4 + $0xe8] sm:$0xff]
  %v5673 = vld [vmem:[#allocation4 + $0xf0] sm:$0xff]
  %v5674 = vld [vmem:[#allocation4 + $0xf8] sm:$0xff]
  %v5675 = vld [vmem:[#allocation4 + $0x100] sm:$0xff]
  %v5676 = vld [vmem:[#allocation4 + $0x108] sm:$0xff]
  %v5677 = vld [vmem:[#allocation4 + $0x110] sm:$0xff]
  %v5678 = vld [vmem:[#allocation4 + $0x118] sm:$0xff]
  %v5679 = vld [vmem:[#allocation4 + $0x120] sm:$0xff]
  %v5680 = vld [vmem:[#allocation4 + $0x128] sm:$0xff]
  %v5681 = vld [vmem:[#allocation4 + $0x130] sm:$0xff]
  %v5682 = vld [vmem:[#allocation4 + $0x138] sm:$0xff]
  %v5683 = vld [vmem:[#allocation4 + $0x140] sm:$0xff]
  %v5684 = vld [vmem:[#allocation4 + $0x148] sm:$0xff]
  %v5685 = vld [vmem:[#allocation4 + $0x150] sm:$0xff]
  %v5686 = vld [vmem:[#allocation4 + $0x158] sm:$0xff]
  %v5687 = vld [vmem:[#allocation4 + $0x160] sm:$0xff]
  %v5688 = vld [vmem:[#allocation4 + $0x168] sm:$0xff]
  %v5689 = vld [vmem:[#allocation4 + $0x170] sm:$0xff]
  %v5690 = vld [vmem:[#allocation4 + $0x178] sm:$0xff]
  %v5691 = vld [vmem:[#allocation4 + $0x180] sm:$0xff]
  %v5692 = vld [vmem:[#allocation4 + $0x188] sm:$0xff]
  %v5693 = vld [vmem:[#allocation4 + $0x190] sm:$0xff]
  %v5694 = vld [vmem:[#allocation4 + $0x198] sm:$0xff]
  %v5695 = vld [vmem:[#allocation4 + $0x1a0] sm:$0xff]
  %v5696 = vld [vmem:[#allocation4 + $0x1a8] sm:$0xff]
  %v5697 = vld [vmem:[#allocation4 + $0x1b0] sm:$0xff]
  %v5698 = vld [vmem:[#allocation4 + $0x1b8] sm:$0xff]
  %v5699 = vld [vmem:[#allocation4 + $0x1c0] sm:$0xff]
  %v5700 = vld [vmem:[#allocation4 + $0x1c8] sm:$0xff]
  %v5701 = vld [vmem:[#allocation4 + $0x1d0] sm:$0xff]
  %v5702 = vld [vmem:[#allocation4 + $0x1d8] sm:$0xff]
  %v5703 = vld [vmem:[#allocation4 + $0x1e0] sm:$0xff]
  %v5704 = vld [vmem:[#allocation4 + $0x1e8] sm:$0xff]
  %v5705 = vld [vmem:[#allocation4 + $0x1f0] sm:$0xff]
  %v5706 = vld [vmem:[#allocation4 + $0x1f8] sm:$0xff]
  %v5707 = vld [vmem:[#allocation4 + $0x200] sm:$0xff]
  %v5708 = vld [vmem:[#allocation4 + $0x208] sm:$0xff]
  %v5709 = vld [vmem:[#allocation4 + $0x210] sm:$0xff]
  %v5710 = vld [vmem:[#allocation4 + $0x218] sm:$0xff]
  %v5711 = vld [vmem:[#allocation4 + $0x220] sm:$0xff]
  %v5712 = vld [vmem:[#allocation4 + $0x228] sm:$0xff]
  %v5713 = vld [vmem:[#allocation4 + $0x230] sm:$0xff]
  %v5714 = vld [vmem:[#allocation4 + $0x238] sm:$0xff]
  %v5715 = vld [vmem:[#allocation4 + $0x240] sm:$0xff]
  %v5716 = vld [vmem:[#allocation4 + $0x248] sm:$0xff]
  %v5717 = vld [vmem:[#allocation4 + $0x250] sm:$0xff]
  %v5718 = vld [vmem:[#allocation4 + $0x258] sm:$0xff]
  %v5719 = vld [vmem:[#allocation4 + $0x260] sm:$0xff]
  %v5720 = vld [vmem:[#allocation4 + $0x268] sm:$0xff]
  %v5721 = vld [vmem:[#allocation4 + $0x270] sm:$0xff]
  %v5722 = vld [vmem:[#allocation4 + $0x278] sm:$0xff]
  %v5723 = vld [vmem:[#allocation4 + $0x280] sm:$0xff]
  %v5724 = vld [vmem:[#allocation4 + $0x288] sm:$0xff]
  %v5725 = vld [vmem:[#allocation4 + $0x290] sm:$0xff]
  %v5726 = vld [vmem:[#allocation4 + $0x298] sm:$0xff]
  %v5727 = vld [vmem:[#allocation4 + $0x2a0] sm:$0xff]
  %v5728 = vld [vmem:[#allocation4 + $0x2a8] sm:$0xff]
  %v5729 = vld [vmem:[#allocation4 + $0x2b0] sm:$0xff]
  %v5730 = vld [vmem:[#allocation4 + $0x2b8] sm:$0xff]
  %v5731 = vld [vmem:[#allocation4 + $0x2c0] sm:$0xff]
  %v5732 = vld [vmem:[#allocation4 + $0x2c8] sm:$0xff]
  %v5733 = vld [vmem:[#allocation4 + $0x2d0] sm:$0xff]
  %v5734 = vld [vmem:[#allocation4 + $0x2d8] sm:$0xff]
  %v5735 = vld [vmem:[#allocation4 + $0x2e0] sm:$0xff]
  %v5736 = vld [vmem:[#allocation4 + $0x2e8] sm:$0xff]
  %v5737 = vld [vmem:[#allocation4 + $0x2f0] sm:$0xff]
  %v5738 = vld [vmem:[#allocation4 + $0x2f8] sm:$0xff]
  %v5739 = vld [vmem:[#allocation4 + $0x300] sm:$0xff]
  %v5740 = vld [vmem:[#allocation4 + $0x308] sm:$0xff]
  %v5741 = vld [vmem:[#allocation4 + $0x310] sm:$0xff]
  %v5742 = vld [vmem:[#allocation4 + $0x318] sm:$0xff]
  %v5743 = vld [vmem:[#allocation4 + $0x320] sm:$0xff]
  %v5744 = vld [vmem:[#allocation4 + $0x328] sm:$0xff]
  %v5745 = vld [vmem:[#allocation4 + $0x330] sm:$0xff]
  %v5746 = vld [vmem:[#allocation4 + $0x338] sm:$0xff]
  %v5747 = vld [vmem:[#allocation4 + $0x340] sm:$0xff]
  %v5748 = vld [vmem:[#allocation4 + $0x348] sm:$0xff]
  %v5749 = vld [vmem:[#allocation4 + $0x350] sm:$0xff]
  %v5750 = vld [vmem:[#allocation4 + $0x358] sm:$0xff]
  %v5751 = vld [vmem:[#allocation4 + $0x360] sm:$0xff]
  %v5752 = vld [vmem:[#allocation4 + $0x368] sm:$0xff]
  %v5753 = vld [vmem:[#allocation4 + $0x370] sm:$0xff]
  %v5754 = vld [vmem:[#allocation4 + $0x378] sm:$0xff]
  %v5755 = vld [vmem:[#allocation4 + $0x380] sm:$0xff]
  %v5756 = vld [vmem:[#allocation4 + $0x388] sm:$0xff]
  %v5757 = vld [vmem:[#allocation4 + $0x390] sm:$0xff]
  %v5758 = vld [vmem:[#allocation4 + $0x398] sm:$0xff]
  %v5759 = vld [vmem:[#allocation4 + $0x3a0] sm:$0xff]
  %v5760 = vld [vmem:[#allocation4 + $0x3a8] sm:$0xff]
  %v5761 = vld [vmem:[#allocation4 + $0x3b0] sm:$0xff]
  %v5762 = vld [vmem:[#allocation4 + $0x3b8] sm:$0xff]
  %v5763 = vld [vmem:[#allocation4 + $0x3c0] sm:$0xff]
  %v5764 = vld [vmem:[#allocation4 + $0x3c8] sm:$0xff]
  %v5765 = vld [vmem:[#allocation4 + $0x3d0] sm:$0xff]
  %v5766 = vld [vmem:[#allocation4 + $0x3d8] sm:$0xff]
  %v5767 = vld [vmem:[#allocation4 + $0x3e0] sm:$0xff]
  %v5768 = vld [vmem:[#allocation4 + $0x3e8] sm:$0xff]
  %v5769 = vld [vmem:[#allocation4 + $0x3f0] sm:$0xff]
  %v5770 = vld [vmem:[#allocation4 + $0x3f8] sm:$0xff]
  %v5899 = vunpack.c.l.b16 %v5643
  %v5900 = vunpack.c.h.b16 %v5643
  %v5901 = vunpack.c.l.b16 %v5644
  %v5902 = vunpack.c.h.b16 %v5644
  %v5903 = vunpack.c.l.b16 %v5645
  %v5904 = vunpack.c.h.b16 %v5645
  %v5905 = vunpack.c.l.b16 %v5646
  %v5906 = vunpack.c.h.b16 %v5646
  %v5907 = vunpack.c.l.b16 %v5647
  %v5908 = vunpack.c.h.b16 %v5647
  %v5909 = vunpack.c.l.b16 %v5648
  %v5910 = vunpack.c.h.b16 %v5648
  %v5911 = vunpack.c.l.b16 %v5649
  %v5912 = vunpack.c.h.b16 %v5649
  %v5913 = vunpack.c.l.b16 %v5650
  %v5914 = vunpack.c.h.b16 %v5650
  %v5915 = vunpack.c.l.b16 %v5651
  %v5916 = vunpack.c.h.b16 %v5651
  %v5917 = vunpack.c.l.b16 %v5652
  %v5918 = vunpack.c.h.b16 %v5652
  %v5919 = vunpack.c.l.b16 %v5653
  %v5920 = vunpack.c.h.b16 %v5653
  %v5921 = vunpack.c.l.b16 %v5654
  %v5922 = vunpack.c.h.b16 %v5654
  %v5923 = vunpack.c.l.b16 %v5655
  %v5924 = vunpack.c.h.b16 %v5655
  %v5925 = vunpack.c.l.b16 %v5656
  %v5926 = vunpack.c.h.b16 %v5656
  %v5927 = vunpack.c.l.b16 %v5657
  %v5928 = vunpack.c.h.b16 %v5657
  %v5929 = vunpack.c.l.b16 %v5658
  %v5930 = vunpack.c.h.b16 %v5658
  %v5931 = vunpack.c.l.b16 %v5659
  %v5932 = vunpack.c.h.b16 %v5659
  %v5933 = vunpack.c.l.b16 %v5660
  %v5934 = vunpack.c.h.b16 %v5660
  %v5935 = vunpack.c.l.b16 %v5661
  %v5936 = vunpack.c.h.b16 %v5661
  %v5937 = vunpack.c.l.b16 %v5662
  %v5938 = vunpack.c.h.b16 %v5662
  %v5939 = vunpack.c.l.b16 %v5663
  %v5940 = vunpack.c.h.b16 %v5663
  %v5941 = vunpack.c.l.b16 %v5664
  %v5942 = vunpack.c.h.b16 %v5664
  %v5943 = vunpack.c.l.b16 %v5665
  %v5944 = vunpack.c.h.b16 %v5665
  %v5945 = vunpack.c.l.b16 %v5666
  %v5946 = vunpack.c.h.b16 %v5666
  %v5947 = vunpack.c.l.b16 %v5667
  %v5948 = vunpack.c.h.b16 %v5667
  %v5949 = vunpack.c.l.b16 %v5668
  %v5950 = vunpack.c.h.b16 %v5668
  %v5951 = vunpack.c.l.b16 %v5669
  %v5952 = vunpack.c.h.b16 %v5669
  %v5953 = vunpack.c.l.b16 %v5670
  %v5954 = vunpack.c.h.b16 %v5670
  %v5955 = vunpack.c.l.b16 %v5671
  %v5956 = vunpack.c.h.b16 %v5671
  %v5957 = vunpack.c.l.b16 %v5672
  %v5958 = vunpack.c.h.b16 %v5672
  %v5959 = vunpack.c.l.b16 %v5673
  %v5960 = vunpack.c.h.b16 %v5673
  %v5961 = vunpack.c.l.b16 %v5674
  %v5962 = vunpack.c.h.b16 %v5674
  %v5963 = vunpack.c.l.b16 %v5675
  %v5964 = vunpack.c.h.b16 %v5675
  %v5965 = vunpack.c.l.b16 %v5676
  %v5966 = vunpack.c.h.b16 %v5676
  %v5967 = vunpack.c.l.b16 %v5677
  %v5968 = vunpack.c.h.b16 %v5677
  %v5969 = vunpack.c.l.b16 %v5678
  %v5970 = vunpack.c.h.b16 %v5678
  %v5971 = vunpack.c.l.b16 %v5679
  %v5972 = vunpack.c.h.b16 %v5679
  %v5973 = vunpack.c.l.b16 %v5680
  %v5974 = vunpack.c.h.b16 %v5680
  %v5975 = vunpack.c.l.b16 %v5681
  %v5976 = vunpack.c.h.b16 %v5681
  %v5977 = vunpack.c.l.b16 %v5682
  %v5978 = vunpack.c.h.b16 %v5682
  %v5979 = vunpack.c.l.b16 %v5683
  %v5980 = vunpack.c.h.b16 %v5683
  %v5981 = vunpack.c.l.b16 %v5684
  %v5982 = vunpack.c.h.b16 %v5684
  %v5983 = vunpack.c.l.b16 %v5685
  %v5984 = vunpack.c.h.b16 %v5685
  %v5985 = vunpack.c.l.b16 %v5686
  %v5986 = vunpack.c.h.b16 %v5686
  %v5987 = vunpack.c.l.b16 %v5687
  %v5988 = vunpack.c.h.b16 %v5687
  %v5989 = vunpack.c.l.b16 %v5688
  %v5990 = vunpack.c.h.b16 %v5688
  %v5991 = vunpack.c.l.b16 %v5689
  %v5992 = vunpack.c.h.b16 %v5689
  %v5993 = vunpack.c.l.b16 %v5690
  %v5994 = vunpack.c.h.b16 %v5690
  %v5995 = vunpack.c.l.b16 %v5691
  %v5996 = vunpack.c.h.b16 %v5691
  %v5997 = vunpack.c.l.b16 %v5692
  %v5998 = vunpack.c.h.b16 %v5692
  %v5999 = vunpack.c.l.b16 %v5693
  %v6000 = vunpack.c.h.b16 %v5693
  %v6001 = vunpack.c.l.b16 %v5694
  %v6002 = vunpack.c.h.b16 %v5694
  %v6003 = vunpack.c.l.b16 %v5695
  %v6004 = vunpack.c.h.b16 %v5695
  %v6005 = vunpack.c.l.b16 %v5696
  %v6006 = vunpack.c.h.b16 %v5696
  %v6007 = vunpack.c.l.b16 %v5697
  %v6008 = vunpack.c.h.b16 %v5697
  %v6009 = vunpack.c.l.b16 %v5698
  %v6010 = vunpack.c.h.b16 %v5698
  %v6011 = vunpack.c.l.b16 %v5699
  %v6012 = vunpack.c.h.b16 %v5699
  %v6013 = vunpack.c.l.b16 %v5700
  %v6014 = vunpack.c.h.b16 %v5700
  %v6015 = vunpack.c.l.b16 %v5701
  %v6016 = vunpack.c.h.b16 %v5701
  %v6017 = vunpack.c.l.b16 %v5702
  %v6018 = vunpack.c.h.b16 %v5702
  %v6019 = vunpack.c.l.b16 %v5703
  %v6020 = vunpack.c.h.b16 %v5703
  %v6021 = vunpack.c.l.b16 %v5704
  %v6022 = vunpack.c.h.b16 %v5704
  %v6023 = vunpack.c.l.b16 %v5705
  %v6024 = vunpack.c.h.b16 %v5705
  %v6025 = vunpack.c.l.b16 %v5706
  %v6026 = vunpack.c.h.b16 %v5706
  %v6027 = vunpack.c.l.b16 %v5707
  %v6028 = vunpack.c.h.b16 %v5707
  %v6029 = vunpack.c.l.b16 %v5708
  %v6030 = vunpack.c.h.b16 %v5708
  %v6031 = vunpack.c.l.b16 %v5709
  %v6032 = vunpack.c.h.b16 %v5709
  %v6033 = vunpack.c.l.b16 %v5710
  %v6034 = vunpack.c.h.b16 %v5710
  %v6035 = vunpack.c.l.b16 %v5711
  %v6036 = vunpack.c.h.b16 %v5711
  %v6037 = vunpack.c.l.b16 %v5712
  %v6038 = vunpack.c.h.b16 %v5712
  %v6039 = vunpack.c.l.b16 %v5713
  %v6040 = vunpack.c.h.b16 %v5713
  %v6041 = vunpack.c.l.b16 %v5714
  %v6042 = vunpack.c.h.b16 %v5714
  %v6043 = vunpack.c.l.b16 %v5715
  %v6044 = vunpack.c.h.b16 %v5715
  %v6045 = vunpack.c.l.b16 %v5716
  %v6046 = vunpack.c.h.b16 %v5716
  %v6047 = vunpack.c.l.b16 %v5717
  %v6048 = vunpack.c.h.b16 %v5717
  %v6049 = vunpack.c.l.b16 %v5718
  %v6050 = vunpack.c.h.b16 %v5718
  %v6051 = vunpack.c.l.b16 %v5719
  %v6052 = vunpack.c.h.b16 %v5719
  %v6053 = vunpack.c.l.b16 %v5720
  %v6054 = vunpack.c.h.b16 %v5720
  %v6055 = vunpack.c.l.b16 %v5721
  %v6056 = vunpack.c.h.b16 %v5721
  %v6057 = vunpack.c.l.b16 %v5722
  %v6058 = vunpack.c.h.b16 %v5722
  %v6059 = vunpack.c.l.b16 %v5723
  %v6060 = vunpack.c.h.b16 %v5723
  %v6061 = vunpack.c.l.b16 %v5724
  %v6062 = vunpack.c.h.b16 %v5724
  %v6063 = vunpack.c.l.b16 %v5725
  %v6064 = vunpack.c.h.b16 %v5725
  %v6065 = vunpack.c.l.b16 %v5726
  %v6066 = vunpack.c.h.b16 %v5726
  %v6067 = vunpack.c.l.b16 %v5727
  %v6068 = vunpack.c.h.b16 %v5727
  %v6069 = vunpack.c.l.b16 %v5728
  %v6070 = vunpack.c.h.b16 %v5728
  %v6071 = vunpack.c.l.b16 %v5729
  %v6072 = vunpack.c.h.b16 %v5729
  %v6073 = vunpack.c.l.b16 %v5730
  %v6074 = vunpack.c.h.b16 %v5730
  %v6075 = vunpack.c.l.b16 %v5731
  %v6076 = vunpack.c.h.b16 %v5731
  %v6077 = vunpack.c.l.b16 %v5732
  %v6078 = vunpack.c.h.b16 %v5732
  %v6079 = vunpack.c.l.b16 %v5733
  %v6080 = vunpack.c.h.b16 %v5733
  %v6081 = vunpack.c.l.b16 %v5734
  %v6082 = vunpack.c.h.b16 %v5734
  %v6083 = vunpack.c.l.b16 %v5735
  %v6084 = vunpack.c.h.b16 %v5735
  %v6085 = vunpack.c.l.b16 %v5736
  %v6086 = vunpack.c.h.b16 %v5736
  %v6087 = vunpack.c.l.b16 %v5737
  %v6088 = vunpack.c.h.b16 %v5737
  %v6089 = vunpack.c.l.b16 %v5738
  %v6090 = vunpack.c.h.b16 %v5738
  %v6091 = vunpack.c.l.b16 %v5739
  %v6092 = vunpack.c.h.b16 %v5739
  %v6093 = vunpack.c.l.b16 %v5740
  %v6094 = vunpack.c.h.b16 %v5740
  %v6095 = vunpack.c.l.b16 %v5741
  %v6096 = vunpack.c.h.b16 %v5741
  %v6097 = vunpack.c.l.b16 %v5742
  %v6098 = vunpack.c.h.b16 %v5742
  %v6099 = vunpack.c.l.b16 %v5743
  %v6100 = vunpack.c.h.b16 %v5743
  %v6101 = vunpack.c.l.b16 %v5744
  %v6102 = vunpack.c.h.b16 %v5744
  %v6103 = vunpack.c.l.b16 %v5745
  %v6104 = vunpack.c.h.b16 %v5745
  %v6105 = vunpack.c.l.b16 %v5746
  %v6106 = vunpack.c.h.b16 %v5746
  %v6107 = vunpack.c.l.b16 %v5747
  %v6108 = vunpack.c.h.b16 %v5747
  %v6109 = vunpack.c.l.b16 %v5748
  %v6110 = vunpack.c.h.b16 %v5748
  %v6111 = vunpack.c.l.b16 %v5749
  %v6112 = vunpack.c.h.b16 %v5749
  %v6113 = vunpack.c.l.b16 %v5750
  %v6114 = vunpack.c.h.b16 %v5750
  %v6115 = vunpack.c.l.b16 %v5751
  %v6116 = vunpack.c.h.b16 %v5751
  %v6117 = vunpack.c.l.b16 %v5752
  %v6118 = vunpack.c.h.b16 %v5752
  %v6119 = vunpack.c.l.b16 %v5753
  %v6120 = vunpack.c.h.b16 %v5753
  %v6121 = vunpack.c.l.b16 %v5754
  %v6122 = vunpack.c.h.b16 %v5754
  %v6123 = vunpack.c.l.b16 %v5755
  %v6124 = vunpack.c.h.b16 %v5755
  %v6125 = vunpack.c.l.b16 %v5756
  %v6126 = vunpack.c.h.b16 %v5756
  %v6127 = vunpack.c.l.b16 %v5757
  %v6128 = vunpack.c.h.b16 %v5757
  %v6129 = vunpack.c.l.b16 %v5758
  %v6130 = vunpack.c.h.b16 %v5758
  %v6131 = vunpack.c.l.b16 %v5759
  %v6132 = vunpack.c.h.b16 %v5759
  %v6133 = vunpack.c.l.b16 %v5760
  %v6134 = vunpack.c.h.b16 %v5760
  %v6135 = vunpack.c.l.b16 %v5761
  %v6136 = vunpack.c.h.b16 %v5761
  %v6137 = vunpack.c.l.b16 %v5762
  %v6138 = vunpack.c.h.b16 %v5762
  %v6139 = vunpack.c.l.b16 %v5763
  %v6140 = vunpack.c.h.b16 %v5763
  %v6141 = vunpack.c.l.b16 %v5764
  %v6142 = vunpack.c.h.b16 %v5764
  %v6143 = vunpack.c.l.b16 %v5765
  %v6144 = vunpack.c.h.b16 %v5765
  %v6145 = vunpack.c.l.b16 %v5766
  %v6146 = vunpack.c.h.b16 %v5766
  %v6147 = vunpack.c.l.b16 %v5767
  %v6148 = vunpack.c.h.b16 %v5767
  %v6149 = vunpack.c.l.b16 %v5768
  %v6150 = vunpack.c.h.b16 %v5768
  %v6151 = vunpack.c.l.b16 %v5769
  %v6152 = vunpack.c.h.b16 %v5769
  %v6153 = vunpack.c.l.b16 %v5770
  %v6154 = vunpack.c.h.b16 %v5770
  %v6155 = vpack.c.b16 %v5903, %v5899
  %v6156 = vpack.c.b16 %v5904, %v5900
  %v6157 = vpack.c.b16 %v5905, %v5901
  %v6158 = vpack.c.b16 %v5906, %v5902
  %v6159 = vpack.c.b16 %v5911, %v5907
  %v6160 = vpack.c.b16 %v5912, %v5908
  %v6161 = vpack.c.b16 %v5913, %v5909
  %v6162 = vpack.c.b16 %v5914, %v5910
  %v6163 = vpack.c.b16 %v5919, %v5915
  %v6164 = vpack.c.b16 %v5920, %v5916
  %v6165 = vpack.c.b16 %v5921, %v5917
  %v6166 = vpack.c.b16 %v5922, %v5918
  %v6167 = vpack.c.b16 %v5927, %v5923
  %v6168 = vpack.c.b16 %v5928, %v5924
  %v6169 = vpack.c.b16 %v5929, %v5925
  %v6170 = vpack.c.b16 %v5930, %v5926
  %v6171 = vpack.c.b16 %v5935, %v5931
  %v6172 = vpack.c.b16 %v5936, %v5932
  %v6173 = vpack.c.b16 %v5937, %v5933
  %v6174 = vpack.c.b16 %v5938, %v5934
  %v6175 = vpack.c.b16 %v5943, %v5939
  %v6176 = vpack.c.b16 %v5944, %v5940
  %v6177 = vpack.c.b16 %v5945, %v5941
  %v6178 = vpack.c.b16 %v5946, %v5942
  %v6179 = vpack.c.b16 %v5951, %v5947
  %v6180 = vpack.c.b16 %v5952, %v5948
  %v6181 = vpack.c.b16 %v5953, %v5949
  %v6182 = vpack.c.b16 %v5954, %v5950
  %v6183 = vpack.c.b16 %v5959, %v5955
  %v6184 = vpack.c.b16 %v5960, %v5956
  %v6185 = vpack.c.b16 %v5961, %v5957
  %v6186 = vpack.c.b16 %v5962, %v5958
  %v6187 = vpack.c.b16 %v5967, %v5963
  %v6188 = vpack.c.b16 %v5968, %v5964
  %v6189 = vpack.c.b16 %v5969, %v5965
  %v6190 = vpack.c.b16 %v5970, %v5966
  %v6191 = vpack.c.b16 %v5975, %v5971
  %v6192 = vpack.c.b16 %v5976, %v5972
  %v6193 = vpack.c.b16 %v5977, %v5973
  %v6194 = vpack.c.b16 %v5978, %v5974
  %v6195 = vpack.c.b16 %v5983, %v5979
  %v6196 = vpack.c.b16 %v5984, %v5980
  %v6197 = vpack.c.b16 %v5985, %v5981
  %v6198 = vpack.c.b16 %v5986, %v5982
  %v6199 = vpack.c.b16 %v5991, %v5987
  %v6200 = vpack.c.b16 %v5992, %v5988
  %v6201 = vpack.c.b16 %v5993, %v5989
  %v6202 = vpack.c.b16 %v5994, %v5990
  %v6203 = vpack.c.b16 %v5999, %v5995
  %v6204 = vpack.c.b16 %v6000, %v5996
  %v6205 = vpack.c.b16 %v6001, %v5997
  %v6206 = vpack.c.b16 %v6002, %v5998
  %v6207 = vpack.c.b16 %v6007, %v6003
  %v6208 = vpack.c.b16 %v6008, %v6004
  %v6209 = vpack.c.b16 %v6009, %v6005
  %v6210 = vpack.c.b16 %v6010, %v6006
  %v6211 = vpack.c.b16 %v6015, %v6011
  %v6212 = vpack.c.b16 %v6016, %v6012
  %v6213 = vpack.c.b16 %v6017, %v6013
  %v6214 = vpack.c.b16 %v6018, %v6014
  %v6215 = vpack.c.b16 %v6023, %v6019
  %v6216 = vpack.c.b16 %v6024, %v6020
  %v6217 = vpack.c.b16 %v6025, %v6021
  %v6218 = vpack.c.b16 %v6026, %v6022
  %v6219 = vpack.c.b16 %v6031, %v6027
  %v6220 = vpack.c.b16 %v6032, %v6028
  %v6221 = vpack.c.b16 %v6033, %v6029
  %v6222 = vpack.c.b16 %v6034, %v6030
  %v6223 = vpack.c.b16 %v6039, %v6035
  %v6224 = vpack.c.b16 %v6040, %v6036
  %v6225 = vpack.c.b16 %v6041, %v6037
  %v6226 = vpack.c.b16 %v6042, %v6038
  %v6227 = vpack.c.b16 %v6047, %v6043
  %v6228 = vpack.c.b16 %v6048, %v6044
  %v6229 = vpack.c.b16 %v6049, %v6045
  %v6230 = vpack.c.b16 %v6050, %v6046
  %v6231 = vpack.c.b16 %v6055, %v6051
  %v6232 = vpack.c.b16 %v6056, %v6052
  %v6233 = vpack.c.b16 %v6057, %v6053
  %v6234 = vpack.c.b16 %v6058, %v6054
  %v6235 = vpack.c.b16 %v6063, %v6059
  %v6236 = vpack.c.b16 %v6064, %v6060
  %v6237 = vpack.c.b16 %v6065, %v6061
  %v6238 = vpack.c.b16 %v6066, %v6062
  %v6239 = vpack.c.b16 %v6071, %v6067
  %v6240 = vpack.c.b16 %v6072, %v6068
  %v6241 = vpack.c.b16 %v6073, %v6069
  %v6242 = vpack.c.b16 %v6074, %v6070
  %v6243 = vpack.c.b16 %v6079, %v6075
  %v6244 = vpack.c.b16 %v6080, %v6076
  %v6245 = vpack.c.b16 %v6081, %v6077
  %v6246 = vpack.c.b16 %v6082, %v6078
  %v6247 = vpack.c.b16 %v6087, %v6083
  %v6248 = vpack.c.b16 %v6088, %v6084
  %v6249 = vpack.c.b16 %v6089, %v6085
  %v6250 = vpack.c.b16 %v6090, %v6086
  %v6251 = vpack.c.b16 %v6095, %v6091
  %v6252 = vpack.c.b16 %v6096, %v6092
  %v6253 = vpack.c.b16 %v6097, %v6093
  %v6254 = vpack.c.b16 %v6098, %v6094
  %v6255 = vpack.c.b16 %v6103, %v6099
  %v6256 = vpack.c.b16 %v6104, %v6100
  %v6257 = vpack.c.b16 %v6105, %v6101
  %v6258 = vpack.c.b16 %v6106, %v6102
  %v6259 = vpack.c.b16 %v6111, %v6107
  %v6260 = vpack.c.b16 %v6112, %v6108
  %v6261 = vpack.c.b16 %v6113, %v6109
  %v6262 = vpack.c.b16 %v6114, %v6110
  %v6263 = vpack.c.b16 %v6119, %v6115
  %v6264 = vpack.c.b16 %v6120, %v6116
  %v6265 = vpack.c.b16 %v6121, %v6117
  %v6266 = vpack.c.b16 %v6122, %v6118
  %v6267 = vpack.c.b16 %v6127, %v6123
  %v6268 = vpack.c.b16 %v6128, %v6124
  %v6269 = vpack.c.b16 %v6129, %v6125
  %v6270 = vpack.c.b16 %v6130, %v6126
  %v6271 = vpack.c.b16 %v6135, %v6131
  %v6272 = vpack.c.b16 %v6136, %v6132
  %v6273 = vpack.c.b16 %v6137, %v6133
  %v6274 = vpack.c.b16 %v6138, %v6134
  %v6275 = vpack.c.b16 %v6143, %v6139
  %v6276 = vpack.c.b16 %v6144, %v6140
  %v6277 = vpack.c.b16 %v6145, %v6141
  %v6278 = vpack.c.b16 %v6146, %v6142
  %v6279 = vpack.c.b16 %v6151, %v6147
  %v6280 = vpack.c.b16 %v6152, %v6148
  %v6281 = vpack.c.b16 %v6153, %v6149
  %v6282 = vpack.c.b16 %v6154, %v6150
  %6411 = vmatprep.subr.bf16.mxu0 %v6184
  %6412 = vmatpush1.bf16.msra.mxu0 %v6183
  %6413 = vmatprep.subr.bf16.mxu0 %v6180
  %6414 = vmatpush1.bf16.msra.mxu0 %v6179
  %6415 = vmatprep.subr.bf16.mxu0 %v6176
  %6416 = vmatpush1.bf16.msra.mxu0 %v6175
  %6417 = vmatprep.subr.bf16.mxu0 %v6172
  %6418 = vmatpush1.bf16.msra.mxu0 %v6171
  %6419 = vmatprep.subr.bf16.mxu0 %v6168
  %6420 = vmatpush1.bf16.msra.mxu0 %v6167
  %6421 = vmatprep.subr.bf16.mxu0 %v6164
  %6422 = vmatpush1.bf16.msra.mxu0 %v6163
  %6423 = vmatprep.subr.bf16.mxu0 %v6160
  %6424 = vmatpush1.bf16.msra.mxu0 %v6159
  %6425 = vmatprep.subr.bf16.mxu0 %v6156
  %6426 = vmatpush1.bf16.msra.mxu0 %v6155
  %6427 = vmatprep.subr.bf16.mxu0 %v6216
  %6428 = vmatpush2.bf16.msra.mxu0 %v6215
  %6429 = vmatprep.subr.bf16.mxu0 %v6212
  %6430 = vmatpush2.bf16.msra.mxu0 %v6211
  %6431 = vmatprep.subr.bf16.mxu0 %v6208
  %6432 = vmatpush2.bf16.msra.mxu0 %v6207
  %6433 = vmatprep.subr.bf16.mxu0 %v6204
  %6434 = vmatpush2.bf16.msra.mxu0 %v6203
  %6435 = vmatprep.subr.bf16.mxu0 %v6200
  %6436 = vmatpush2.bf16.msra.mxu0 %v6199
  %6437 = vmatprep.subr.bf16.mxu0 %v6196
  %6438 = vmatpush2.bf16.msra.mxu0 %v6195
  %6439 = vmatprep.subr.bf16.mxu0 %v6192
  %6440 = vmatpush2.bf16.msra.mxu0 %v6191
  %6441 = vmatprep.subr.bf16.mxu0 %v6188
  %6442 = vmatpush2.bf16.msra.mxu0 %v6187
  %6443 = vmatprep.mubr.bf16.mxu0 %v5640
  %6444 = vmatmul.mubr.bf16.gmra.mxu0 %v5639
  %v6445 = vpop.f32.mrf.mxu0
  %v6446 = vadd.f32 0.0, %v6445
  %v6447 = vpop.f32.mrf.mxu0
  %v6448 = vadd.f32 0.0, %v6447
  %v6449 = vpop.f32.mrf.mxu0
  %v6450 = vpop.f32.mrf.mxu0
  %6451 = vdwg.mxu0
  %6452 = vmatprep.subr.bf16.mxu0 %v6248
  %6453 = vmatpush1.bf16.msra.mxu0 %v6247
  %6454 = vmatprep.subr.bf16.mxu0 %v6244
  %6455 = vmatpush1.bf16.msra.mxu0 %v6243
  %6456 = vmatprep.subr.bf16.mxu0 %v6240
  %6457 = vmatpush1.bf16.msra.mxu0 %v6239
  %6458 = vmatprep.subr.bf16.mxu0 %v6236
  %6459 = vmatpush1.bf16.msra.mxu0 %v6235
  %6460 = vmatprep.subr.bf16.mxu0 %v6232
  %6461 = vmatpush1.bf16.msra.mxu0 %v6231
  %6462 = vmatprep.subr.bf16.mxu0 %v6228
  %6463 = vmatpush1.bf16.msra.mxu0 %v6227
  %6464 = vmatprep.subr.bf16.mxu0 %v6224
  %6465 = vmatpush1.bf16.msra.mxu0 %v6223
  %6466 = vmatprep.subr.bf16.mxu0 %v6220
  %6467 = vmatpush1.bf16.msra.mxu0 %v6219
  %6468 = vmatprep.subr.bf16.mxu0 %v6280
  %6469 = vmatpush2.bf16.msra.mxu0 %v6279
  %6470 = vmatprep.subr.bf16.mxu0 %v6276
  %6471 = vmatpush2.bf16.msra.mxu0 %v6275
  %6472 = vmatprep.subr.bf16.mxu0 %v6272
  %6473 = vmatpush2.bf16.msra.mxu0 %v6271
  %6474 = vmatprep.subr.bf16.mxu0 %v6268
  %6475 = vmatpush2.bf16.msra.mxu0 %v6267
  %6476 = vmatprep.subr.bf16.mxu0 %v6264
  %6477 = vmatpush2.bf16.msra.mxu0 %v6263
  %6478 = vmatprep.subr.bf16.mxu0 %v6260
  %6479 = vmatpush2.bf16.msra.mxu0 %v6259
  %6480 = vmatprep.subr.bf16.mxu0 %v6256
  %6481 = vmatpush2.bf16.msra.mxu0 %v6255
  %6482 = vmatprep.subr.bf16.mxu0 %v6252
  %6483 = vmatpush2.bf16.msra.mxu0 %v6251
  %6484 = vmatprep.mubr.bf16.mxu0 %v5642
  %6485 = vmatmul.mubr.bf16.gmra.mxu0 %v5641
  %v6486 = vpop.f32.mrf.mxu0
  %v6487 = vadd.f32 %v6446, %v6486
  %v6488 = vpop.f32.mrf.mxu0
  %v6489 = vadd.f32 %v6448, %v6488
  %v6490 = vpop.f32.mrf.mxu0
  %v6491 = vpop.f32.mrf.mxu0
  %6492 = vdwg.mxu0
  %6493 = vmatprep.subr.bf16.mxu0 %v6186
  %6494 = vmatpush1.bf16.msra.mxu0 %v6185
  %6495 = vmatprep.subr.bf16.mxu0 %v6182
  %6496 = vmatpush1.bf16.msra.mxu0 %v6181
  %6497 = vmatprep.subr.bf16.mxu0 %v6178
  %6498 = vmatpush1.bf16.msra.mxu0 %v6177
  %6499 = vmatprep.subr.bf16.mxu0 %v6174
  %6500 = vmatpush1.bf16.msra.mxu0 %v6173
  %6501 = vmatprep.subr.bf16.mxu0 %v6170
  %6502 = vmatpush1.bf16.msra.mxu0 %v6169
  %6503 = vmatprep.subr.bf16.mxu0 %v6166
  %6504 = vmatpush1.bf16.msra.mxu0 %v6165
  %6505 = vmatprep.subr.bf16.mxu0 %v6162
  %6506 = vmatpush1.bf16.msra.mxu0 %v6161
  %6507 = vmatprep.subr.bf16.mxu0 %v6158
  %6508 = vmatpush1.bf16.msra.mxu0 %v6157
  %6509 = vmatprep.subr.bf16.mxu0 %v6218
  %6510 = vmatpush2.bf16.msra.mxu0 %v6217
  %6511 = vmatprep.subr.bf16.mxu0 %v6214
  %6512 = vmatpush2.bf16.msra.mxu0 %v6213
  %6513 = vmatprep.subr.bf16.mxu0 %v6210
  %6514 = vmatpush2.bf16.msra.mxu0 %v6209
  %6515 = vmatprep.subr.bf16.mxu0 %v6206
  %6516 = vmatpush2.bf16.msra.mxu0 %v6205
  %6517 = vmatprep.subr.bf16.mxu0 %v6202
  %6518 = vmatpush2.bf16.msra.mxu0 %v6201
  %6519 = vmatprep.subr.bf16.mxu0 %v6198
  %6520 = vmatpush2.bf16.msra.mxu0 %v6197
  %6521 = vmatprep.subr.bf16.mxu0 %v6194
  %6522 = vmatpush2.bf16.msra.mxu0 %v6193
  %6523 = vmatprep.subr.bf16.mxu0 %v6190
  %6524 = vmatpush2.bf16.msra.mxu0 %v6189
  %6525 = vmatprep.mubr.bf16.mxu0 %v5640
  %6526 = vmatmul.mubr.bf16.gmra.mxu0 %v5639
  %v6527 = vpop.f32.mrf.mxu0
  %v6528 = vadd.f32 0.0, %v6527
  %v6529 = vpop.f32.mrf.mxu0
  %v6530 = vadd.f32 0.0, %v6529
  %v6531 = vpop.f32.mrf.mxu0
  %v6532 = vpop.f32.mrf.mxu0
  %6533 = vdwg.mxu0
  %6534 = vmatprep.subr.bf16.mxu0 %v6250
  %6535 = vmatpush1.bf16.msra.mxu0 %v6249
  %6536 = vmatprep.subr.bf16.mxu0 %v6246
  %6537 = vmatpush1.bf16.msra.mxu0 %v6245
  %6538 = vmatprep.subr.bf16.mxu0 %v6242
  %6539 = vmatpush1.bf16.msra.mxu0 %v6241
  %6540 = vmatprep.subr.bf16.mxu0 %v6238
  %6541 = vmatpush1.bf16.msra.mxu0 %v6237
  %6542 = vmatprep.subr.bf16.mxu0 %v6234
  %6543 = vmatpush1.bf16.msra.mxu0 %v6233
  %6544 = vmatprep.subr.bf16.mxu0 %v6230
  %6545 = vmatpush1.bf16.msra.mxu0 %v6229
  %6546 = vmatprep.subr.bf16.mxu0 %v6226
  %6547 = vmatpush1.bf16.msra.mxu0 %v6225
  %6548 = vmatprep.subr.bf16.mxu0 %v6222
  %6549 = vmatpush1.bf16.msra.mxu0 %v6221
  %6550 = vmatprep.subr.bf16.mxu0 %v6282
  %6551 = vmatpush2.bf16.msra.mxu0 %v6281
  %6552 = vmatprep.subr.bf16.mxu0 %v6278
  %6553 = vmatpush2.bf16.msra.mxu0 %v6277
  %6554 = vmatprep.subr.bf16.mxu0 %v6274
  %6555 = vmatpush2.bf16.msra.mxu0 %v6273
  %6556 = vmatprep.subr.bf16.mxu0 %v6270
  %6557 = vmatpush2.bf16.msra.mxu0 %v6269
  %6558 = vmatprep.subr.bf16.mxu0 %v6266
  %6559 = vmatpush2.bf16.msra.mxu0 %v6265
  %6560 = vmatprep.subr.bf16.mxu0 %v6262
  %6561 = vmatpush2.bf16.msra.mxu0 %v6261
  %6562 = vmatprep.subr.bf16.mxu0 %v6258
  %6563 = vmatpush2.bf16.msra.mxu0 %v6257
  %6564 = vmatprep.subr.bf16.mxu0 %v6254
  %6565 = vmatpush2.bf16.msra.mxu0 %v6253
  %6566 = vmatprep.mubr.bf16.mxu0 %v5642
  %6567 = vmatmul.mubr.bf16.gmra.mxu0 %v5641
  %v6568 = vpop.f32.mrf.mxu0
  %v6569 = vadd.f32 %v6528, %v6568
  %v6570 = vpop.f32.mrf.mxu0
  %v6571 = vadd.f32 %v6530, %v6570
  %v6572 = vpop.f32.mrf.mxu0
  %v6573 = vpop.f32.mrf.mxu0
  %6574 = vdwg.mxu0
  %v6575 = vld [vmem:[%s12] sm:$0xff]
  %v6576 = vsel %vm1183, %v6487, 0.0
  %v6577 = vrot.slane %v6576, 4
  %v6578 = vadd.f32 %v6576, %v6577
  %v6579 = vrot.slane %v6578, 2
  %v6580 = vadd.f32 %v6578, %v6579
  %v6581 = vrot.slane %v6580, 1
  %v6582 = vadd.f32 %v6580, %v6581
  %v6583 = vsel %vm1183, %v6489, 0.0
  %v6584 = vrot.slane %v6583, 4
  %v6585 = vadd.f32 %v6583, %v6584
  %v6586 = vrot.slane %v6585, 2
  %v6587 = vadd.f32 %v6585, %v6586
  %v6588 = vrot.slane %v6587, 1
  %v6589 = vadd.f32 %v6587, %v6588
  %v6590 = vsel %vm1183, %v6569, 0.0
  %v6591 = vrot.slane %v6590, 4
  %v6592 = vadd.f32 %v6590, %v6591
  %v6593 = vrot.slane %v6592, 2
  %v6594 = vadd.f32 %v6592, %v6593
  %v6595 = vrot.slane %v6594, 1
  %v6596 = vadd.f32 %v6594, %v6595
  %v6597 = vsel %vm1183, %v6571, 0.0
  %v6598 = vrot.slane %v6597, 4
  %v6599 = vadd.f32 %v6597, %v6598
  %v6600 = vrot.slane %v6599, 2
  %v6601 = vadd.f32 %v6599, %v6600
  %v6602 = vrot.slane %v6601, 1
  %v6603 = vadd.f32 %v6601, %v6602
  %v6604 = vmul.f32 %v6487, %v6487
  %v6605 = vmul.f32 %v6489, %v6489
  %v6606 = vmul.f32 %v6569, %v6569
  %v6607 = vmul.f32 %v6571, %v6571
  %v6608 = vsel %vm1183, %v6604, 0.0
  %v6609 = vrot.slane %v6608, 4
  %v6610 = vadd.f32 %v6608, %v6609
  %v6611 = vrot.slane %v6610, 2
  %v6612 = vadd.f32 %v6610, %v6611
  %v6613 = vrot.slane %v6612, 1
  %v6614 = vadd.f32 %v6612, %v6613
  %v6615 = vsel %vm1183, %v6605, 0.0
  %v6616 = vrot.slane %v6615, 4
  %v6617 = vadd.f32 %v6615, %v6616
  %v6618 = vrot.slane %v6617, 2
  %v6619 = vadd.f32 %v6617, %v6618
  %v6620 = vrot.slane %v6619, 1
  %v6621 = vadd.f32 %v6619, %v6620
  %v6622 = vsel %vm1183, %v6606, 0.0
  %v6623 = vrot.slane %v6622, 4
  %v6624 = vadd.f32 %v6622, %v6623
  %v6625 = vrot.slane %v6624, 2
  %v6626 = vadd.f32 %v6624, %v6625
  %v6627 = vrot.slane %v6626, 1
  %v6628 = vadd.f32 %v6626, %v6627
  %v6629 = vsel %vm1183, %v6607, 0.0
  %v6630 = vrot.slane %v6629, 4
  %v6631 = vadd.f32 %v6629, %v6630
  %v6632 = vrot.slane %v6631, 2
  %v6633 = vadd.f32 %v6631, %v6632
  %v6634 = vrot.slane %v6633, 1
  %v6635 = vadd.f32 %v6633, %v6634
  %v6636 = vmul.f32 %v6582, 0.5
  %v6637 = vmul.f32 %v6589, 0.5
  %v6638 = vmul.f32 %v6596, 0.5
  %v6639 = vmul.f32 %v6603, 0.5
  %v6640 = vmul.f32 %v6614, 0.5
  %v6641 = vmul.f32 %v6621, 0.5
  %v6642 = vmul.f32 %v6628, 0.5
  %v6643 = vmul.f32 %v6635, 0.5
  %v6644 = vmul.f32 %v6636, %v6636
  %v6645 = vmul.f32 %v6637, %v6637
  %v6646 = vmul.f32 %v6638, %v6638
  %v6647 = vmul.f32 %v6639, %v6639
  %v6648 = vsub.f32 %v6640, %v6644
  %v6649 = vsub.f32 %v6641, %v6645
  %v6650 = vsub.f32 %v6642, %v6646
  %v6651 = vsub.f32 %v6643, %v6647
  %v6652 = vmax.f32 %v6648, 0.0
  %v6653 = vmax.f32 %v6649, 0.0
  %v6654 = vmax.f32 %v6650, 0.0
  %v6655 = vmax.f32 %v6651, 0.0
  %v6656 = vadd.f32 %v6652, 1e-05
  %v6657 = vadd.f32 %v6653, 1e-05
  %v6658 = vadd.f32 %v6654, 1e-05
  %v6659 = vadd.f32 %v6655, 1e-05
  %v6660 = vrsqrt.pop %v6656
  %v6661 = vrsqrt.pop %v6657
  %v6662 = vrsqrt.pop %v6658
  %v6663 = vrsqrt.pop %v6659
  %v6664 = vsub.f32 %v6487, %v6636
  %v6665 = vsub.f32 %v6489, %v6637
  %v6666 = vsub.f32 %v6569, %v6638
  %v6667 = vsub.f32 %v6571, %v6639
  %v6669 = vlaneseq
  %v6670 = vshrl.u32 %v6669, 7
  %v6671 = vsub.s32 0, %v6670
  %v6672 = vrot.slane %v6575, %v6671
  %v6673 = vlaneseq
  %v6674 = vshrl.u32 %v6673, 7
  %v6675 = vsub.s32 2, %v6674
  %v6676 = vrot.slane %v6575, %v6675
  %v6677 = vlaneseq
  %v6678 = vshrl.u32 %v6677, 7
  %v6679 = vsub.s32 4, %v6678
  %v6680 = vrot.slane %v6575, %v6679
  %v6681 = vlaneseq
  %v6682 = vshrl.u32 %v6681, 7
  %v6683 = vsub.s32 6, %v6682
  %v6684 = vrot.slane %v6575, %v6683
  %v6689 = vmul.f32 %v6660, %v6672
  %v6690 = vmul.f32 %v6661, %v6676
  %v6691 = vmul.f32 %v6662, %v6680
  %v6692 = vmul.f32 %v6663, %v6684
  %v6693 = vlaneseq
  %v6694 = vshrl.u32 %v6693, 7
  %v6695 = vsub.s32 0, %v6694
  %v6696 = vrot.slane %v6689, %v6695
  %v6697 = vlaneseq
  %v6698 = vshrl.u32 %v6697, 7
  %v6699 = vsub.s32 0, %v6698
  %v6700 = vrot.slane %v6690, %v6699
  %v6701 = vlaneseq
  %v6702 = vshrl.u32 %v6701, 7
  %v6703 = vsub.s32 0, %v6702
  %v6704 = vrot.slane %v6691, %v6703
  %v6705 = vlaneseq
  %v6706 = vshrl.u32 %v6705, 7
  %v6707 = vsub.s32 0, %v6706
  %v6708 = vrot.slane %v6692, %v6707
  %v6709 = vmul.f32 %v6664, %v6696
  %v6710 = vmul.f32 %v6665, %v6700
  %v6711 = vmul.f32 %v6666, %v6704
  %v6712 = vmul.f32 %v6667, %v6708
  %v6713 = vlaneseq
  %v6714 = vshrl.u32 %v6713, 7
  %v6715 = vsub.s32 1, %v6714
  %v6716 = vrot.slane %v6575, %v6715
  %v6717 = vlaneseq
  %v6718 = vshrl.u32 %v6717, 7
  %v6719 = vsub.s32 3, %v6718
  %v6720 = vrot.slane %v6575, %v6719
  %v6721 = vlaneseq
  %v6722 = vshrl.u32 %v6721, 7
  %v6723 = vsub.s32 5, %v6722
  %v6724 = vrot.slane %v6575, %v6723
  %v6725 = vlaneseq
  %v6726 = vshrl.u32 %v6725, 7
  %v6727 = vsub.s32 7, %v6726
  %v6728 = vrot.slane %v6575, %v6727
  %v6733 = vlaneseq
  %v6734 = vshrl.u32 %v6733, 7
  %v6735 = vsub.s32 1, %v6734
  %v6736 = vrot.slane %v6716, %v6735
  %v6737 = vlaneseq
  %v6738 = vshrl.u32 %v6737, 7
  %v6739 = vsub.s32 1, %v6738
  %v6740 = vrot.slane %v6720, %v6739
  %v6741 = vlaneseq
  %v6742 = vshrl.u32 %v6741, 7
  %v6743 = vsub.s32 1, %v6742
  %v6744 = vrot.slane %v6724, %v6743
  %v6745 = vlaneseq
  %v6746 = vshrl.u32 %v6745, 7
  %v6747 = vsub.s32 1, %v6746
  %v6748 = vrot.slane %v6728, %v6747
  %v6749 = vadd.f32 %v6709, %v6736
  %v6750 = vadd.f32 %v6710, %v6740
  %v6751 = vadd.f32 %v6711, %v6744
  %v6752 = vadd.f32 %v6712, %v6748
  %v6753 = vmax.f32 %v6749, 0.0
  %v6754 = vmax.f32 %v6750, 0.0
  %v6755 = vmax.f32 %v6751, 0.0
  %v6756 = vmax.f32 %v6752, 0.0
  %v6757 = vpack.c.bf16 %v6753, %v6753
  %v6758 = vpack.c.bf16 %v6754, %v6754
  %v6759 = vpack.c.bf16 %v6755, %v6755
  %v6760 = vpack.c.bf16 %v6756, %v6756
  %v6761 = vld [vmem:[%s13] sm:$0xf]
  %v6762 = vld [vmem:[%s13 + $0x4] sm:$0xf]
  %v6763 = vld [vmem:[%s13 + $0x8] sm:$0xf]
  %v6764 = vld [vmem:[%s13 + $0xc] sm:$0xf]
  %v6765 = vld [vmem:[%s13 + $0x10] sm:$0xf]
  %v6766 = vld [vmem:[%s13 + $0x14] sm:$0xf]
  %v6767 = vld [vmem:[%s13 + $0x18] sm:$0xf]
  %v6768 = vld [vmem:[%s13 + $0x1c] sm:$0xf]
  %v6769 = vld [vmem:[%s13 + $0x20] sm:$0xf]
  %v6770 = vld [vmem:[%s13 + $0x24] sm:$0xf]
  %v6771 = vld [vmem:[%s13 + $0x28] sm:$0xf]
  %v6772 = vld [vmem:[%s13 + $0x2c] sm:$0xf]
  %v6773 = vld [vmem:[%s13 + $0x30] sm:$0xf]
  %v6774 = vld [vmem:[%s13 + $0x34] sm:$0xf]
  %v6775 = vld [vmem:[%s13 + $0x38] sm:$0xf]
  %v6776 = vld [vmem:[%s13 + $0x3c] sm:$0xf]
  %v6777 = vld [vmem:[%s13 + $0x40] sm:$0xf]
  %v6778 = vld [vmem:[%s13 + $0x44] sm:$0xf]
  %v6779 = vld [vmem:[%s13 + $0x48] sm:$0xf]
  %v6780 = vld [vmem:[%s13 + $0x4c] sm:$0xf]
  %v6781 = vld [vmem:[%s13 + $0x50] sm:$0xf]
  %v6782 = vld [vmem:[%s13 + $0x54] sm:$0xf]
  %v6783 = vld [vmem:[%s13 + $0x58] sm:$0xf]
  %v6784 = vld [vmem:[%s13 + $0x5c] sm:$0xf]
  %v6785 = vld [vmem:[%s13 + $0x60] sm:$0xf]
  %v6786 = vld [vmem:[%s13 + $0x64] sm:$0xf]
  %v6787 = vld [vmem:[%s13 + $0x68] sm:$0xf]
  %v6788 = vld [vmem:[%s13 + $0x6c] sm:$0xf]
  %v6789 = vld [vmem:[%s13 + $0x70] sm:$0xf]
  %v6790 = vld [vmem:[%s13 + $0x74] sm:$0xf]
  %v6791 = vld [vmem:[%s13 + $0x78] sm:$0xf]
  %v6792 = vld [vmem:[%s13 + $0x7c] sm:$0xf]
  %v6793 = vld [vmem:[%s13 + $0x80] sm:$0xf]
  %v6794 = vld [vmem:[%s13 + $0x84] sm:$0xf]
  %v6795 = vld [vmem:[%s13 + $0x88] sm:$0xf]
  %v6796 = vld [vmem:[%s13 + $0x8c] sm:$0xf]
  %v6797 = vld [vmem:[%s13 + $0x90] sm:$0xf]
  %v6798 = vld [vmem:[%s13 + $0x94] sm:$0xf]
  %v6799 = vld [vmem:[%s13 + $0x98] sm:$0xf]
  %v6800 = vld [vmem:[%s13 + $0x9c] sm:$0xf]
  %v6801 = vld [vmem:[%s13 + $0xa0] sm:$0xf]
  %v6802 = vld [vmem:[%s13 + $0xa4] sm:$0xf]
  %v6803 = vld [vmem:[%s13 + $0xa8] sm:$0xf]
  %v6804 = vld [vmem:[%s13 + $0xac] sm:$0xf]
  %v6805 = vld [vmem:[%s13 + $0xb0] sm:$0xf]
  %v6806 = vld [vmem:[%s13 + $0xb4] sm:$0xf]
  %v6807 = vld [vmem:[%s13 + $0xb8] sm:$0xf]
  %v6808 = vld [vmem:[%s13 + $0xbc] sm:$0xf]
  %v6809 = vld [vmem:[%s13 + $0xc0] sm:$0xf]
  %v6810 = vld [vmem:[%s13 + $0xc4] sm:$0xf]
  %v6811 = vld [vmem:[%s13 + $0xc8] sm:$0xf]
  %v6812 = vld [vmem:[%s13 + $0xcc] sm:$0xf]
  %v6813 = vld [vmem:[%s13 + $0xd0] sm:$0xf]
  %v6814 = vld [vmem:[%s13 + $0xd4] sm:$0xf]
  %v6815 = vld [vmem:[%s13 + $0xd8] sm:$0xf]
  %v6816 = vld [vmem:[%s13 + $0xdc] sm:$0xf]
  %v6817 = vld [vmem:[%s13 + $0xe0] sm:$0xf]
  %v6818 = vld [vmem:[%s13 + $0xe4] sm:$0xf]
  %v6819 = vld [vmem:[%s13 + $0xe8] sm:$0xf]
  %v6820 = vld [vmem:[%s13 + $0xec] sm:$0xf]
  %v6821 = vld [vmem:[%s13 + $0xf0] sm:$0xf]
  %v6822 = vld [vmem:[%s13 + $0xf4] sm:$0xf]
  %v6823 = vld [vmem:[%s13 + $0xf8] sm:$0xf]
  %v6824 = vld [vmem:[%s13 + $0xfc] sm:$0xf]
  %v6825 = vld [vmem:[%s14] sm:$0x1]
  %v6827 = vlaneseq
  %v6828 = vshrl.u32 %v6827, 7
  %v6829 = vsub.s32 0, %v6828
  %v6830 = vrot.slane %v6825, %v6829
  %v6896 = vunpack.c.l.b16 %v6761
  %v6897 = vunpack.c.l.b16 %v6762
  %v6898 = vunpack.c.l.b16 %v6763
  %v6899 = vunpack.c.l.b16 %v6764
  %v6900 = vunpack.c.l.b16 %v6765
  %v6901 = vunpack.c.l.b16 %v6766
  %v6902 = vunpack.c.l.b16 %v6767
  %v6903 = vunpack.c.l.b16 %v6768
  %v6904 = vunpack.c.l.b16 %v6769
  %v6905 = vunpack.c.l.b16 %v6770
  %v6906 = vunpack.c.l.b16 %v6771
  %v6907 = vunpack.c.l.b16 %v6772
  %v6908 = vunpack.c.l.b16 %v6773
  %v6909 = vunpack.c.l.b16 %v6774
  %v6910 = vunpack.c.l.b16 %v6775
  %v6911 = vunpack.c.l.b16 %v6776
  %v6912 = vunpack.c.l.b16 %v6777
  %v6913 = vunpack.c.l.b16 %v6778
  %v6914 = vunpack.c.l.b16 %v6779
  %v6915 = vunpack.c.l.b16 %v6780
  %v6916 = vunpack.c.l.b16 %v6781
  %v6917 = vunpack.c.l.b16 %v6782
  %v6918 = vunpack.c.l.b16 %v6783
  %v6919 = vunpack.c.l.b16 %v6784
  %v6920 = vunpack.c.l.b16 %v6785
  %v6921 = vunpack.c.l.b16 %v6786
  %v6922 = vunpack.c.l.b16 %v6787
  %v6923 = vunpack.c.l.b16 %v6788
  %v6924 = vunpack.c.l.b16 %v6789
  %v6925 = vunpack.c.l.b16 %v6790
  %v6926 = vunpack.c.l.b16 %v6791
  %v6927 = vunpack.c.l.b16 %v6792
  %v6928 = vunpack.c.l.b16 %v6793
  %v6929 = vunpack.c.l.b16 %v6794
  %v6930 = vunpack.c.l.b16 %v6795
  %v6931 = vunpack.c.l.b16 %v6796
  %v6932 = vunpack.c.l.b16 %v6797
  %v6933 = vunpack.c.l.b16 %v6798
  %v6934 = vunpack.c.l.b16 %v6799
  %v6935 = vunpack.c.l.b16 %v6800
  %v6936 = vunpack.c.l.b16 %v6801
  %v6937 = vunpack.c.l.b16 %v6802
  %v6938 = vunpack.c.l.b16 %v6803
  %v6939 = vunpack.c.l.b16 %v6804
  %v6940 = vunpack.c.l.b16 %v6805
  %v6941 = vunpack.c.l.b16 %v6806
  %v6942 = vunpack.c.l.b16 %v6807
  %v6943 = vunpack.c.l.b16 %v6808
  %v6944 = vunpack.c.l.b16 %v6809
  %v6945 = vunpack.c.l.b16 %v6810
  %v6946 = vunpack.c.l.b16 %v6811
  %v6947 = vunpack.c.l.b16 %v6812
  %v6948 = vunpack.c.l.b16 %v6813
  %v6949 = vunpack.c.l.b16 %v6814
  %v6950 = vunpack.c.l.b16 %v6815
  %v6951 = vunpack.c.l.b16 %v6816
  %v6952 = vunpack.c.l.b16 %v6817
  %v6953 = vunpack.c.l.b16 %v6818
  %v6954 = vunpack.c.l.b16 %v6819
  %v6955 = vunpack.c.l.b16 %v6820
  %v6956 = vunpack.c.l.b16 %v6821
  %v6957 = vunpack.c.l.b16 %v6822
  %v6958 = vunpack.c.l.b16 %v6823
  %v6959 = vunpack.c.l.b16 %v6824
  %v6960 = vpack.c.b16 %v6897, %v6896
  %v6961 = vpack.c.b16 %v6899, %v6898
  %v6962 = vpack.c.b16 %v6901, %v6900
  %v6963 = vpack.c.b16 %v6903, %v6902
  %v6964 = vpack.c.b16 %v6905, %v6904
  %v6965 = vpack.c.b16 %v6907, %v6906
  %v6966 = vpack.c.b16 %v6909, %v6908
  %v6967 = vpack.c.b16 %v6911, %v6910
  %v6968 = vpack.c.b16 %v6913, %v6912
  %v6969 = vpack.c.b16 %v6915, %v6914
  %v6970 = vpack.c.b16 %v6917, %v6916
  %v6971 = vpack.c.b16 %v6919, %v6918
  %v6972 = vpack.c.b16 %v6921, %v6920
  %v6973 = vpack.c.b16 %v6923, %v6922
  %v6974 = vpack.c.b16 %v6925, %v6924
  %v6975 = vpack.c.b16 %v6927, %v6926
  %v6976 = vpack.c.b16 %v6929, %v6928
  %v6977 = vpack.c.b16 %v6931, %v6930
  %v6978 = vpack.c.b16 %v6933, %v6932
  %v6979 = vpack.c.b16 %v6935, %v6934
  %v6980 = vpack.c.b16 %v6937, %v6936
  %v6981 = vpack.c.b16 %v6939, %v6938
  %v6982 = vpack.c.b16 %v6941, %v6940
  %v6983 = vpack.c.b16 %v6943, %v6942
  %v6984 = vpack.c.b16 %v6945, %v6944
  %v6985 = vpack.c.b16 %v6947, %v6946
  %v6986 = vpack.c.b16 %v6949, %v6948
  %v6987 = vpack.c.b16 %v6951, %v6950
  %v6988 = vpack.c.b16 %v6953, %v6952
  %v6989 = vpack.c.b16 %v6955, %v6954
  %v6990 = vpack.c.b16 %v6957, %v6956
  %v6991 = vpack.c.b16 %v6959, %v6958
  %7024 = vmatprep.subr.bf16.mxu0 0
  %7025 = vmatpush1.bf16.msra.mxu0 %v6967
  %7026 = vmatprep.subr.bf16.mxu0 0
  %7027 = vmatpush1.bf16.msra.mxu0 %v6966
  %7028 = vmatprep.subr.bf16.mxu0 0
  %7029 = vmatpush1.bf16.msra.mxu0 %v6965
  %7030 = vmatprep.subr.bf16.mxu0 0
  %7031 = vmatpush1.bf16.msra.mxu0 %v6964
  %7032 = vmatprep.subr.bf16.mxu0 0
  %7033 = vmatpush1.bf16.msra.mxu0 %v6963
  %7034 = vmatprep.subr.bf16.mxu0 0
  %7035 = vmatpush1.bf16.msra.mxu0 %v6962
  %7036 = vmatprep.subr.bf16.mxu0 0
  %7037 = vmatpush1.bf16.msra.mxu0 %v6961
  %7038 = vmatprep.subr.bf16.mxu0 0
  %7039 = vmatpush1.bf16.msra.mxu0 %v6960
  %7040 = vmatprep.subr.bf16.mxu0 0
  %7041 = vmatpush2.bf16.msra.mxu0 %v6975
  %7042 = vmatprep.subr.bf16.mxu0 0
  %7043 = vmatpush2.bf16.msra.mxu0 %v6974
  %7044 = vmatprep.subr.bf16.mxu0 0
  %7045 = vmatpush2.bf16.msra.mxu0 %v6973
  %7046 = vmatprep.subr.bf16.mxu0 0
  %7047 = vmatpush2.bf16.msra.mxu0 %v6972
  %7048 = vmatprep.subr.bf16.mxu0 0
  %7049 = vmatpush2.bf16.msra.mxu0 %v6971
  %7050 = vmatprep.subr.bf16.mxu0 0
  %7051 = vmatpush2.bf16.msra.mxu0 %v6970
  %7052 = vmatprep.subr.bf16.mxu0 0
  %7053 = vmatpush2.bf16.msra.mxu0 %v6969
  %7054 = vmatprep.subr.bf16.mxu0 0
  %7055 = vmatpush2.bf16.msra.mxu0 %v6968
  %7056 = vmatprep.mubr.bf16.mxu0 %v6758
  %7057 = vmatmul.mubr.bf16.gmra.mxu0 %v6757
  %v7058 = vpop.f32.mrf.mxu0
  %v7059 = vadd.f32 %v6830, %v7058
  %v7060 = vpop.f32.mrf.mxu0
  %v7061 = vpop.f32.mrf.mxu0
  %v7062 = vpop.f32.mrf.mxu0
  %7063 = vdwg.mxu0
  %7064 = vmatprep.subr.bf16.mxu0 0
  %7065 = vmatpush1.bf16.msra.mxu0 %v6983
  %7066 = vmatprep.subr.bf16.mxu0 0
  %7067 = vmatpush1.bf16.msra.mxu0 %v6982
  %7068 = vmatprep.subr.bf16.mxu0 0
  %7069 = vmatpush1.bf16.msra.mxu0 %v6981
  %7070 = vmatprep.subr.bf16.mxu0 0
  %7071 = vmatpush1.bf16.msra.mxu0 %v6980
  %7072 = vmatprep.subr.bf16.mxu0 0
  %7073 = vmatpush1.bf16.msra.mxu0 %v6979
  %7074 = vmatprep.subr.bf16.mxu0 0
  %7075 = vmatpush1.bf16.msra.mxu0 %v6978
  %7076 = vmatprep.subr.bf16.mxu0 0
  %7077 = vmatpush1.bf16.msra.mxu0 %v6977
  %7078 = vmatprep.subr.bf16.mxu0 0
  %7079 = vmatpush1.bf16.msra.mxu0 %v6976
  %7080 = vmatprep.subr.bf16.mxu0 0
  %7081 = vmatpush2.bf16.msra.mxu0 %v6991
  %7082 = vmatprep.subr.bf16.mxu0 0
  %7083 = vmatpush2.bf16.msra.mxu0 %v6990
  %7084 = vmatprep.subr.bf16.mxu0 0
  %7085 = vmatpush2.bf16.msra.mxu0 %v6989
  %7086 = vmatprep.subr.bf16.mxu0 0
  %7087 = vmatpush2.bf16.msra.mxu0 %v6988
  %7088 = vmatprep.subr.bf16.mxu0 0
  %7089 = vmatpush2.bf16.msra.mxu0 %v6987
  %7090 = vmatprep.subr.bf16.mxu0 0
  %7091 = vmatpush2.bf16.msra.mxu0 %v6986
  %7092 = vmatprep.subr.bf16.mxu0 0
  %7093 = vmatpush2.bf16.msra.mxu0 %v6985
  %7094 = vmatprep.subr.bf16.mxu0 0
  %7095 = vmatpush2.bf16.msra.mxu0 %v6984
  %7096 = vmatprep.mubr.bf16.mxu0 %v6760
  %7097 = vmatmul.mubr.bf16.gmra.mxu0 %v6759
  %v7098 = vpop.f32.mrf.mxu0
  %v7099 = vadd.f32 %v7059, %v7098
  %v7100 = vpop.f32.mrf.mxu0
  %v7101 = vpop.f32.mrf.mxu0
  %v7102 = vpop.f32.mrf.mxu0
  %7103 = vdwg.mxu0
  %7104 = vst [vmem:[%s15] sm:$0x3] %v7099
  // Predicated region
  $region152: #{_lambda_.1} parent=0 // pred_check
    _
  $region153: #{_lambda_.1} parent=0 // pred_check_branch
    %7106 = sbr.rel (0) target = $region155
  $region154: #{_lambda_.1} parent=0 // pred_region
    _
  $region155: #{_lambda_.1} parent=0 // pred_fallthru
    _
  // Predicated region
  $region156: #{_lambda_.1} parent=0 // pred_check
    _
  $region157: #{_lambda_.1} parent=0 // pred_check_branch
    %7108 = sbr.rel (0) target = $region159
  $region158: #{_lambda_.1} parent=0 // pred_region
    _
  $region159: #{_lambda_.1} parent=0 // pred_fallthru
    _
  %7109 = vsyncmov [#allocation5]
  %s7110 = vpop.sfrf %7109
  %p7111 = scmp.eq.s32.totalorder %s7110, 0
  %p7112 = pneg %p7111
  %7114 = shalt.err (%p7112)
  %s7115 = scalar_lea.sflag [#allocation5], 1
  %7116 = vsyncmov %s7115
  %s7117 = vpop.sfrf %7116
  %p7118 = scmp.eq.s32.totalorder %s7117, 0
  %p7119 = pneg %p7118
  %7121 = shalt.err (%p7119)
  %s7122 = scalar_lea.sflag [#allocation5], 2
  %7123 = vsyncmov %s7122
  %s7124 = vpop.sfrf %7123
  %p7125 = scmp.eq.s32.totalorder %s7124, 0
  %p7126 = pneg %p7125
  %7128 = shalt.err (%p7126)

</llo_original>
